<compile_context>
chip_gen: v6e
topology: v6e:2x2x1
jax: 0.10.0
libtpu: 0.0.40
codegen_flags: <defaults>
</compile_context>

<pallas_src>
import functools

import jax
import jax.numpy as jnp
from jax.experimental import pallas as pl
from jax.experimental.pallas import tpu as pltpu

CELU_ALPHA = 1.3   # utils.activation('CELU') -> nn.CELU(1.3) in the reference repo
EPS = 1e-5         # PyTorch default eps for LayerNorm / GroupNorm
NEG_INF = -1e9
VMEM_LIMIT = 48 * 1024 * 1024

_F32 = jnp.float32
_BF16 = jnp.bfloat16
_VMEM = pl.BlockSpec(memory_space=pltpu.MemorySpace.VMEM)


# ----------------------------- in-kernel helpers -----------------------------

def _celu(x, alpha=CELU_ALPHA):
    return jnp.maximum(x, 0.0) + jnp.minimum(0.0, alpha * (jnp.exp(x / alpha) - 1.0))


def _layer_norm(x, gamma, beta, eps=EPS):
    mu = jnp.mean(x, axis=-1, keepdims=True)
    var = jnp.mean((x - mu) ** 2, axis=-1, keepdims=True)
    return (x - mu) * jax.lax.rsqrt(var + eps) * gamma + beta


# ------------------- kernel A: LowRank / SCAtt attention ---------------------
# Fused over heads: projections are full-E matmuls; GroupNorm group statistics and
# head-wise contractions use small 0/1 indicator & block-diagonal matrices so no
# lane-axis reshapes or per-head slicing are needed.

def scatt_kernel(*refs, num_heads, first_layer):
    if first_layer:
        (x_ref, mask_ref,
         w_proj_ref, b_proj_ref, gn_g_ref, gn_b_ref,
         gsel_ref, gexp_ref,
         w_basic_ref, b_basic_ref, w_last_ref, b_last_ref,
         w_last2_ref, b_last2_ref,
         w_bifg_ref, b_bif_ref,
         gx0_out_ref, gx_out_ref, gxb_out_ref) = refs
        gx_ref = None
    else:
        (gx_ref, x_ref, mask_ref,
         w_proj_ref, b_proj_ref, gn_g_ref, gn_b_ref,
         gsel_ref, gexp_ref,
         w_basic_ref, b_basic_ref, w_last_ref, b_last_ref,
         w_last2_ref, b_last2_ref,
         w_bifg_ref, b_bif_ref,
         gx_out_ref, gxb_out_ref) = refs
        gx0_out_ref = None

    B, S, E = x_ref.shape
    H = num_heads
    Dh = E // H

    x = x_ref[...]                                   # [B, S, E]
    mask = mask_ref[...]                             # [B, S]
    xf = x.reshape(B * S, E)
    xf_bf = xf.astype(_BF16)

    msum = jnp.maximum(jnp.sum(mask, axis=1, keepdims=True), 1.0)   # [B, 1]
    inv_msum = pl.reciprocal(msum, approx=True)

    if first_layer:
        # fused Encoder-level masked mean (gx0)
        gx = jnp.sum(x * mask[:, :, None], axis=1) * inv_msum       # [B, E]
        gx0_out_ref[...] = gx
    else:
        gx = gx_ref[...]
    gx_bf = gx.astype(_BF16)

    gsel = gsel_ref[...]                             # [E, H] 0/1 group-select
    gexp = gexp_ref[...]                             # [H, E] 0/1 group-expand

    def in_proj(inp_bf, idx):
        """LowRank.in_proj_*: Linear -> CELU(1.3) -> GroupNorm(heads) (fused full-E)."""
        w = w_proj_ref[idx]                          # [E, E] bf16
        y = jnp.dot(inp_bf, w, preferred_element_type=_F32) + b_proj_ref[idx]
        y = _celu(y)                                 # [N, E] f32
        # group statistics via indicator matmuls (keeps everything lane-dense)
        gsum = jnp.dot(y, gsel, preferred_element_type=_F32)        # [N, H]
        gsq = jnp.dot(y * y, gsel, preferred_element_type=_F32)     # [N, H]
        mean = gsum * (1.0 / Dh)
        var = gsq * (1.0 / Dh) - mean * mean
        rstd = jax.lax.rsqrt(var + EPS)
        mean_e = jnp.dot(mean, gexp, preferred_element_type=_F32)   # [N, E]
        rstd_e = jnp.dot(rstd, gexp, preferred_element_type=_F32)   # [N, E]
        return (y - mean_e) * rstd_e * gn_g_ref[idx] + gn_b_ref[idx]

    q = in_proj(gx_bf, 0)                            # [B, E]
    k = in_proj(xf_bf, 1)                            # [B*S, E]
    v1 = in_proj(gx_bf, 2)                           # [B, E]
    v2 = in_proj(xf_bf, 3)                           # [B*S, E]

    # low-rank bilinear map (channels are head-grouped, so this is exactly q_h * k_h)
    att = (q[:, None, :] * k.reshape(B, S, E)).reshape(B * S, E)

    # per-head Linear(Dh->Dm) via block-diagonal weight, ReLU
    basic = jnp.maximum(
        jnp.dot(att.astype(_BF16), w_basic_ref[...], preferred_element_type=_F32)
        + b_basic_ref[...], 0.0)                     # [B*S, H*Dm]
    HDm = basic.shape[-1]
    basic3 = basic.reshape(B, S, HDm)

    # masked mean pool over S -> channel-attention branch input
    pool = jnp.sum(basic3 * mask[:, :, None], axis=1) * inv_msum    # [B, H*Dm]

    # spatial attention: per-head Linear(Dm->1) logits -> mask fill -> softmax over S
    logits = (jnp.dot(basic, w_last_ref[...], preferred_element_type=_F32)
              + b_last_ref[...]).reshape(B, S, H)
    logits = jnp.where(mask[:, :, None] == 0.0, NEG_INF, logits)
    logits = logits - jnp.max(logits, axis=1, keepdims=True)
    p = jnp.exp(logits)
    alpha_sp = p * pl.reciprocal(jnp.sum(p, axis=1, keepdims=True), approx=True)

    # channel attention: per-head Linear(Dm->Dh) via block-diagonal weight, sigmoid
    alpha_ch = jax.nn.sigmoid(
        jnp.dot(pool.astype(_BF16), w_last2_ref[...], preferred_element_type=_F32)
        + b_last2_ref[...])                          # [B, E]

    # attend value2: expand per-head weights to per-channel and contract over S
    alpha_e = jnp.dot(alpha_sp.reshape(B * S, H), gexp,
                      preferred_element_type=_F32).reshape(B, S, E)
    v2_att = jnp.sum(alpha_e * v2.reshape(B, S, E), axis=1)         # [B, E]

    gx_new = v1 * v2_att * alpha_ch                  # [B, E]   (dropout -> identity)
    gx_out_ref[...] = gx_new

    # gx half of bifeat_emb, computed ONCE per layer (split-w_bif trick)
    gxb = jnp.dot(gx_new.astype(_BF16), w_bifg_ref[...],
                  preferred_element_type=_F32) + b_bif_ref[...]     # [B, E]
    gxb_out_ref[...] = gxb[:, None, :]


# ------------ kernel B: bifeat_emb + LayerNorm + FeedForward (tiled) ----------

def bifeat_ff_kernel(x_ref, gxb_ref, w_bifx_ref, ln1_g_ref, ln1_b_ref,
                     w_ff1_ref, b_ff1_ref, w_ff2_ref, b_ff2_ref,
                     ln2_g_ref, ln2_b_ref, x_out_ref):
    _, TS, E = x_ref.shape
    xf = x_ref[...].reshape(TS, E)                   # this (batch, seq-tile) slab
    gxb = gxb_ref[...].reshape(1, E)                 # gx@w_bif_gx + b_bif (this batch)

    # bifeat_emb: Linear(2E->E) split as x-half matmul + precomputed gx-half, CELU
    bif = _celu(jnp.dot(xf.astype(_BF16), w_bifx_ref[...],
                        preferred_element_type=_F32) + gxb)
    x1 = _layer_norm(bif + xf, ln1_g_ref[...], ln1_b_ref[...])

    # FeedForward: Linear -> ReLU -> Linear, residual, LayerNorm
    h1 = jnp.maximum(jnp.dot(x1.astype(_BF16), w_ff1_ref[...],
                             preferred_element_type=_F32) + b_ff1_ref[...], 0.0)
    h2 = jnp.dot(h1.astype(_BF16), w_ff2_ref[...],
                 preferred_element_type=_F32) + b_ff2_ref[...]
    x2 = _layer_norm(x1 + h2, ln2_g_ref[...], ln2_b_ref[...])

    x_out_ref[...] = x2.reshape(1, TS, E)


# --------------------- kernel C: Encoder.proj_norm ----------------------------

def proj_norm_kernel(gxc_ref, w_ref, b_ref, g_ref, be_ref, out_ref):
    y = jnp.dot(gxc_ref[...].astype(_BF16), w_ref[...],
                preferred_element_type=_F32) + b_ref[...]
    out_ref[...] = _layer_norm(y, g_ref[...], be_ref[...])


# -------------------------------- wrappers -----------------------------------

def _seq_tile(S):
    for ts in (512, 256, 128):
        if S % ts == 0:
            return ts
    return S


def scatt_attention(gx, x, mask, lp, gsel, gexp, num_heads, first_layer):
    B, S, E = x.shape
    weights = (lp["w_proj"], lp["b_proj"], lp["gn_g"], lp["gn_b"],
               gsel, gexp,
               lp["w_basic_bd"], lp["b_basic_t"], lp["w_last_bd"], lp["b_last"],
               lp["w_last2_bd"], lp["b_last2_t"],
               lp["w_bif_gx"], lp["b_bif"])
    if first_layer:
        args = (x, mask) + weights
        out_shape = (jax.ShapeDtypeStruct((B, E), _F32),      # gx0 (masked mean)
                     jax.ShapeDtypeStruct((B, E), _F32),       # gx_new
                     jax.ShapeDtypeStruct((B, 1, E), _F32))    # gx half of bifeat
        out_specs = (_VMEM, _VMEM, _VMEM)
    else:
        args = (gx, x, mask) + weights
        out_shape = (jax.ShapeDtypeStruct((B, E), _F32),
                     jax.ShapeDtypeStruct((B, 1, E), _F32))
        out_specs = (_VMEM, _VMEM)
    return pl.pallas_call(
        functools.partial(scatt_kernel, num_heads=num_heads, first_layer=first_layer),
        out_shape=out_shape,
        in_specs=[_VMEM] * len(args),
        out_specs=out_specs,
        compiler_params=pltpu.CompilerParams(vmem_limit_bytes=VMEM_LIMIT),
    )(*args)


def bifeat_ff(x, gxb, lp):
    B, S, E = x.shape
    ts = _seq_tile(S)
    grid = (B, S // ts)
    full = lambda b, s: (0, 0)
    args = (x, gxb, lp["w_bif_x"], lp["ln1_g"], lp["ln1_b"],
            lp["w_ff1"], lp["b_ff1"], lp["w_ff2"], lp["b_ff2"],
            lp["ln2_g"], lp["ln2_b"])
    in_specs = [
        pl.BlockSpec((1, ts, E), lambda b, s: (b, s, 0)),   # x tile
        pl.BlockSpec((1, 1, E), lambda b, s: (b, 0, 0)),    # gxb row for this batch
        pl.BlockSpec((E, E), full),                         # w_bif_x (resident)
        pl.BlockSpec((1, E), full),
        pl.BlockSpec((1, E), full),
        pl.BlockSpec((E, 4 * E), full),
        pl.BlockSpec((1, 4 * E), full),
        pl.BlockSpec((4 * E, E), full),
        pl.BlockSpec((1, E), full),
        pl.BlockSpec((1, E), full),
        pl.BlockSpec((1, E), full),
    ]
    return pl.pallas_call(
        bifeat_ff_kernel,
        out_shape=jax.ShapeDtypeStruct((B, S, E), x.dtype),
        grid=grid,
        in_specs=in_specs,
        out_specs=pl.BlockSpec((1, ts, E), lambda b, s: (b, s, 0)),
        input_output_aliases={0: 0},                        # rewrite x in place
        compiler_params=pltpu.CompilerParams(
            dimension_semantics=("parallel", "parallel"),
            vmem_limit_bytes=VMEM_LIMIT),
    )(*args)


def proj_norm(gx_cat, params):
    B = gx_cat.shape[0]
    E = params["w_pn"].shape[1]
    return pl.pallas_call(
        proj_norm_kernel,
        out_shape=jax.ShapeDtypeStruct((B, E), _F32),
        in_specs=[_VMEM] * 5,
        out_specs=_VMEM,
        compiler_params=pltpu.CompilerParams(vmem_limit_bytes=VMEM_LIMIT),
    )(gx_cat, params["w_pn"], params["b_pn"], params["g_pn"], params["be_pn"])


def encoder_forward(x, mask, params, num_heads):
    gsel, gexp = params["gsel"], params["gexp"]
    gx = None
    gx_arr = []
    for li, lp in enumerate(params["layers"]):
        first = (li == 0)
        outs = scatt_attention(gx, x, mask, lp, gsel, gexp, num_heads, first)
        if first:
            gx0, gx, gxb = outs
            gx_arr.append(gx0)
        else:
            gx, gxb = outs
        gx_arr.append(gx)
        x = bifeat_ff(x, gxb, lp)
    gx_cat = jnp.concatenate(gx_arr, axis=-1)               # glue: concat outside kernel
    gx = proj_norm(gx_cat, params)
    return gx, x


# --------------------------- deterministic params ----------------------------

def init_params(key, embed_dim, att_heads, att_mid_dim, layer_num):
    E, H = embed_dim, att_heads
    Dh = E // H
    Dm = att_mid_dim[1]
    assert att_mid_dim[0] == Dh and att_mid_dim[-1] == Dh

    def dense(k, shape, scale=0.02):
        return scale * jax.random.normal(k, shape, dtype=jnp.float32)

    # head-group indicator matrices (0/1), shared by all layers
    head_of = jnp.arange(E, dtype=jnp.int32) // Dh
    gsel = (head_of[:, None] == jnp.arange(H)[None, :]).astype(_F32)   # [E, H]
    gexp = gsel.T                                                       # [H, E]
    eye_h = jnp.eye(H, dtype=_F32)

    layers = []
    for li in range(layer_num):
        k = jax.random.fold_in(key, li)
        ks = jax.random.split(k, 8)

        # fused in-projection weights: out channels grouped by head along E
        w_proj = dense(ks[0], (4, E, E))
        b_proj = dense(ks[1], (4, E)).reshape(4, 1, E)

        # SCAtt weights (shared across heads) + their fused block-diagonal forms
        w_basic = dense(ks[2], (Dh, Dm))
        w_last = dense(ks[3], (Dm,))
        w_last2 = dense(ks[4], (Dm, Dh))
        b_basic = jnp.zeros((1, Dm), _F32)
        b_last2 = jnp.zeros((1, Dh), _F32)

        # bifeat_emb Linear(2E->E) split into gx / x halves
        w_bif = dense(ks[5], (2 * E, E))

        layers.append(dict(
            w_proj=w_proj.astype(_BF16),
            b_proj=b_proj,
            gn_g=jnp.ones((4, 1, E), _F32),
            gn_b=jnp.zeros((4, 1, E), _F32),
            w_basic_bd=jnp.kron(eye_h, w_basic).astype(_BF16),       # [E, H*Dm]
            b_basic_t=jnp.tile(b_basic, (1, H)),                     # [1, H*Dm]
            w_last_bd=jnp.kron(eye_h, w_last[:, None]),              # [H*Dm, H] f32
            b_last=jnp.zeros((1, 1), _F32),
            w_last2_bd=jnp.kron(eye_h, w_last2).astype(_BF16),       # [H*Dm, E]
            b_last2_t=jnp.tile(b_last2, (1, H)),                     # [1, E]
            w_bif_gx=w_bif[:E].astype(_BF16),
            w_bif_x=w_bif[E:].astype(_BF16),
            b_bif=jnp.zeros((1, E), _F32),
            ln1_g=jnp.ones((1, E), _F32),
            ln1_b=jnp.zeros((1, E), _F32),
            w_ff1=dense(ks[6], (E, 4 * E)).astype(_BF16),
            b_ff1=jnp.zeros((1, 4 * E), _F32),
            w_ff2=dense(ks[7], (4 * E, E)).astype(_BF16),
            b_ff2=jnp.zeros((1, E), _F32),
            ln2_g=jnp.ones((1, E), _F32),
            ln2_b=jnp.zeros((1, E), _F32),
        ))

    kp = jax.random.fold_in(key, 10_000)
    return dict(
        layers=layers,
        gsel=gsel,
        gexp=gexp,
        w_pn=dense(kp, (E * (layer_num + 1), E)).astype(_BF16),
        b_pn=jnp.zeros((1, E), _F32),
        g_pn=jnp.ones((1, E), _F32),
        be_pn=jnp.zeros((1, E), _F32),
    )


# ----------------------------------- main -------------------------------------

if __name__ == "__main__":
    B, S, E, H, L = 2, 8, 32, 4, 2           # batch, seq, embed, heads, layers
    Dh = E // H
    att_mid_dim = [Dh, Dh // 2, Dh]          # analogous to [96, 48, 96] @ 768/8

    key = jax.random.PRNGKey(0)
    kx, kp = jax.random.split(key, 2)
    x = jax.random.normal(kx, (B, S, E), dtype=jnp.float32)
    mask = jnp.ones((B, S), dtype=jnp.float32)
    mask = mask.at[1, 6:].set(0.0)           # pad the tail of the second sample

    params = init_params(kp, E, H, att_mid_dim, L)

    fwd = jax.jit(functools.partial(encoder_forward, num_heads=H))
    gx, x_out = fwd(x, mask, params)
    jax.block_until_ready((gx, x_out))

    assert gx.shape == (B, E) and x_out.shape == (B, S, E)
    assert bool(jnp.all(jnp.isfinite(gx))) and bool(jnp.all(jnp.isfinite(x_out)))
    print("KERNEL_OK")
</pallas_src>

<mosaic_0001>
module attributes {stable_mosaic.version = 11 : i64} {
  func.func @bifeat_ff_kernel(%arg0: i32, %arg1: i32, %arg2: memref<1x8x32xf32, #tpu.memory_space<vmem>>, %arg3: memref<1x1x32xf32, #tpu.memory_space<vmem>>, %arg4: memref<32x32xbf16, #tpu.memory_space<vmem>>, %arg5: memref<1x32xf32, #tpu.memory_space<vmem>>, %arg6: memref<1x32xf32, #tpu.memory_space<vmem>>, %arg7: memref<32x128xbf16, #tpu.memory_space<vmem>>, %arg8: memref<1x128xf32, #tpu.memory_space<vmem>>, %arg9: memref<128x32xbf16, #tpu.memory_space<vmem>>, %arg10: memref<1x32xf32, #tpu.memory_space<vmem>>, %arg11: memref<1x32xf32, #tpu.memory_space<vmem>>, %arg12: memref<1x32xf32, #tpu.memory_space<vmem>>, %arg13: memref<1x8x32xf32, #tpu.memory_space<vmem>>) attributes {dimension_semantics = [#tpu.dimension_semantics<parallel>, #tpu.dimension_semantics<parallel>], iteration_bounds = array<i64: 2, 1>, scalar_prefetch = 0 : i64, scratch_operands = 0 : i64, tpu.core_type = #tpu.core_type<tc>, window_params = [{transform_indices = @transform_0, window_bounds = array<i64: 1, 8, 32>}, {transform_indices = @transform_1, window_bounds = array<i64: 1, 1, 32>}, {pipeline_mode = #tpu.pipeline_mode<synchronous>, transform_indices = @transform_2, window_bounds = array<i64: 32, 32>}, {pipeline_mode = #tpu.pipeline_mode<synchronous>, transform_indices = @transform_3, window_bounds = array<i64: 1, 32>}, {pipeline_mode = #tpu.pipeline_mode<synchronous>, transform_indices = @transform_4, window_bounds = array<i64: 1, 32>}, {pipeline_mode = #tpu.pipeline_mode<synchronous>, transform_indices = @transform_5, window_bounds = array<i64: 32, 128>}, {pipeline_mode = #tpu.pipeline_mode<synchronous>, transform_indices = @transform_6, window_bounds = array<i64: 1, 128>}, {pipeline_mode = #tpu.pipeline_mode<synchronous>, transform_indices = @transform_7, window_bounds = array<i64: 128, 32>}, {pipeline_mode = #tpu.pipeline_mode<synchronous>, transform_indices = @transform_8, window_bounds = array<i64: 1, 32>}, {pipeline_mode = #tpu.pipeline_mode<synchronous>, transform_indices = @transform_9, window_bounds = array<i64: 1, 32>}, {pipeline_mode = #tpu.pipeline_mode<synchronous>, transform_indices = @transform_10, window_bounds = array<i64: 1, 32>}, {transform_indices = @transform_11, window_bounds = array<i64: 1, 8, 32>}]} {
    %c0 = arith.constant 0 : index
    %c0_0 = arith.constant 0 : index
    %c0_1 = arith.constant 0 : index
    %0 = vector.load %arg2[%c0, %c0_0, %c0_1] : memref<1x8x32xf32, #tpu.memory_space<vmem>>, vector<1x8x32xf32>
    %1 = vector.shape_cast %0 : vector<1x8x32xf32> to vector<8x32xf32>
    %c0_2 = arith.constant 0 : index
    %c0_3 = arith.constant 0 : index
    %c0_4 = arith.constant 0 : index
    %2 = vector.load %arg3[%c0_2, %c0_3, %c0_4] : memref<1x1x32xf32, #tpu.memory_space<vmem>>, vector<1x1x32xf32>
    %3 = vector.shape_cast %2 : vector<1x1x32xf32> to vector<1x32xf32>
    %4 = arith.truncf %1 : vector<8x32xf32> to vector<8x32xbf16>
    %c0_5 = arith.constant 0 : index
    %c0_6 = arith.constant 0 : index
    %5 = vector.load %arg4[%c0_5, %c0_6] : memref<32x32xbf16, #tpu.memory_space<vmem>>, vector<32x32xbf16>
    %cst = arith.constant dense<0.000000e+00> : vector<8x32xf32>
    %6 = tpu.matmul %4, %5, %cst {dimension_numbers = #tpu.dot_dimension_numbers<[1], [0], [0], [1], [0, 0, 1, 1], [], []>} : vector<8x32xbf16>, vector<32x32xbf16>, vector<8x32xf32> -> vector<8x32xf32>
    %7 = vector.broadcast %3 : vector<1x32xf32> to vector<8x32xf32>
    %8 = arith.addf %6, %7 : vector<8x32xf32>
    %cst_7 = arith.constant 0.000000e+00 : f32
    %9 = vector.broadcast %cst_7 : f32 to vector<8x32xf32>
    %10 = arith.maximumf %8, %9 : vector<8x32xf32>
    %cst_8 = arith.constant 1.300000e+00 : f32
    %11 = vector.broadcast %cst_8 : f32 to vector<8x32xf32>
    %12 = arith.divf %8, %11 : vector<8x32xf32>
    %13 = math.exp %12 : vector<8x32xf32>
    %cst_9 = arith.constant 1.000000e+00 : f32
    %14 = vector.broadcast %cst_9 : f32 to vector<8x32xf32>
    %15 = arith.subf %13, %14 : vector<8x32xf32>
    %cst_10 = arith.constant 1.300000e+00 : f32
    %16 = vector.broadcast %cst_10 : f32 to vector<8x32xf32>
    %17 = arith.mulf %16, %15 : vector<8x32xf32>
    %cst_11 = arith.constant 0.000000e+00 : f32
    %18 = vector.broadcast %cst_11 : f32 to vector<8x32xf32>
    %19 = arith.minimumf %18, %17 : vector<8x32xf32>
    %20 = arith.addf %10, %19 : vector<8x32xf32>
    %21 = arith.addf %20, %1 : vector<8x32xf32>
    %c0_12 = arith.constant 0 : index
    %c0_13 = arith.constant 0 : index
    %22 = vector.load %arg5[%c0_12, %c0_13] : memref<1x32xf32, #tpu.memory_space<vmem>>, vector<1x32xf32>
    %c0_14 = arith.constant 0 : index
    %c0_15 = arith.constant 0 : index
    %23 = vector.load %arg6[%c0_14, %c0_15] : memref<1x32xf32, #tpu.memory_space<vmem>>, vector<1x32xf32>
    %cst_16 = arith.constant dense<0.000000e+00> : vector<8xf32>
    %24 = vector.multi_reduction <add>, %21, %cst_16 [1] : vector<8x32xf32> to vector<8xf32>
    %25 = vector.shape_cast %24 : vector<8xf32> to vector<8x1xf32>
    %cst_17 = arith.constant 3.200000e+01 : f32
    %26 = vector.broadcast %cst_17 : f32 to vector<8x1xf32>
    %27 = arith.divf %25, %26 : vector<8x1xf32>
    %28 = vector.broadcast %27 : vector<8x1xf32> to vector<8x32xf32>
    %29 = arith.subf %21, %28 : vector<8x32xf32>
    %30 = arith.mulf %29, %29 : vector<8x32xf32>
    %cst_18 = arith.constant dense<0.000000e+00> : vector<8xf32>
    %31 = vector.multi_reduction <add>, %30, %cst_18 [1] : vector<8x32xf32> to vector<8xf32>
    %32 = vector.shape_cast %31 : vector<8xf32> to vector<8x1xf32>
    %cst_19 = arith.constant 3.200000e+01 : f32
    %33 = vector.broadcast %cst_19 : f32 to vector<8x1xf32>
    %34 = arith.divf %32, %33 : vector<8x1xf32>
    %35 = vector.broadcast %27 : vector<8x1xf32> to vector<8x32xf32>
    %36 = arith.subf %21, %35 : vector<8x32xf32>
    %cst_20 = arith.constant 9.99999974E-6 : f32
    %37 = vector.broadcast %cst_20 : f32 to vector<8x1xf32>
    %38 = arith.addf %34, %37 : vector<8x1xf32>
    %39 = math.rsqrt %38 : vector<8x1xf32>
    %40 = vector.broadcast %39 : vector<8x1xf32> to vector<8x32xf32>
    %41 = arith.mulf %36, %40 : vector<8x32xf32>
    %42 = vector.broadcast %22 : vector<1x32xf32> to vector<8x32xf32>
    %43 = arith.mulf %41, %42 : vector<8x32xf32>
    %44 = vector.broadcast %23 : vector<1x32xf32> to vector<8x32xf32>
    %45 = arith.addf %43, %44 : vector<8x32xf32>
    %46 = arith.truncf %45 : vector<8x32xf32> to vector<8x32xbf16>
    %c0_21 = arith.constant 0 : index
    %c0_22 = arith.constant 0 : index
    %47 = vector.load %arg7[%c0_21, %c0_22] : memref<32x128xbf16, #tpu.memory_space<vmem>>, vector<32x128xbf16>
    %cst_23 = arith.constant dense<0.000000e+00> : vector<8x128xf32>
    %48 = tpu.matmul %46, %47, %cst_23 {dimension_numbers = #tpu.dot_dimension_numbers<[1], [0], [0], [1], [0, 0, 1, 1], [], []>} : vector<8x32xbf16>, vector<32x128xbf16>, vector<8x128xf32> -> vector<8x128xf32>
    %c0_24 = arith.constant 0 : index
    %c0_25 = arith.constant 0 : index
    %49 = vector.load %arg8[%c0_24, %c0_25] : memref<1x128xf32, #tpu.memory_space<vmem>>, vector<1x128xf32>
    %50 = vector.broadcast %49 : vector<1x128xf32> to vector<8x128xf32>
    %51 = arith.addf %48, %50 : vector<8x128xf32>
    %cst_26 = arith.constant 0.000000e+00 : f32
    %52 = vector.broadcast %cst_26 : f32 to vector<8x128xf32>
    %53 = arith.maximumf %51, %52 : vector<8x128xf32>
    %54 = arith.truncf %53 : vector<8x128xf32> to vector<8x128xbf16>
    %c0_27 = arith.constant 0 : index
    %c0_28 = arith.constant 0 : index
    %55 = vector.load %arg9[%c0_27, %c0_28] : memref<128x32xbf16, #tpu.memory_space<vmem>>, vector<128x32xbf16>
    %cst_29 = arith.constant dense<0.000000e+00> : vector<8x32xf32>
    %56 = tpu.matmul %54, %55, %cst_29 {dimension_numbers = #tpu.dot_dimension_numbers<[1], [0], [0], [1], [0, 0, 1, 1], [], []>} : vector<8x128xbf16>, vector<128x32xbf16>, vector<8x32xf32> -> vector<8x32xf32>
    %c0_30 = arith.constant 0 : index
    %c0_31 = arith.constant 0 : index
    %57 = vector.load %arg10[%c0_30, %c0_31] : memref<1x32xf32, #tpu.memory_space<vmem>>, vector<1x32xf32>
    %58 = vector.broadcast %57 : vector<1x32xf32> to vector<8x32xf32>
    %59 = arith.addf %56, %58 : vector<8x32xf32>
    %60 = arith.addf %45, %59 : vector<8x32xf32>
    %c0_32 = arith.constant 0 : index
    %c0_33 = arith.constant 0 : index
    %61 = vector.load %arg11[%c0_32, %c0_33] : memref<1x32xf32, #tpu.memory_space<vmem>>, vector<1x32xf32>
    %c0_34 = arith.constant 0 : index
    %c0_35 = arith.constant 0 : index
    %62 = vector.load %arg12[%c0_34, %c0_35] : memref<1x32xf32, #tpu.memory_space<vmem>>, vector<1x32xf32>
    %cst_36 = arith.constant dense<0.000000e+00> : vector<8xf32>
    %63 = vector.multi_reduction <add>, %60, %cst_36 [1] : vector<8x32xf32> to vector<8xf32>
    %64 = vector.shape_cast %63 : vector<8xf32> to vector<8x1xf32>
    %cst_37 = arith.constant 3.200000e+01 : f32
    %65 = vector.broadcast %cst_37 : f32 to vector<8x1xf32>
    %66 = arith.divf %64, %65 : vector<8x1xf32>
    %67 = vector.broadcast %66 : vector<8x1xf32> to vector<8x32xf32>
    %68 = arith.subf %60, %67 : vector<8x32xf32>
    %69 = arith.mulf %68, %68 : vector<8x32xf32>
    %cst_38 = arith.constant dense<0.000000e+00> : vector<8xf32>
    %70 = vector.multi_reduction <add>, %69, %cst_38 [1] : vector<8x32xf32> to vector<8xf32>
    %71 = vector.shape_cast %70 : vector<8xf32> to vector<8x1xf32>
    %cst_39 = arith.constant 3.200000e+01 : f32
    %72 = vector.broadcast %cst_39 : f32 to vector<8x1xf32>
    %73 = arith.divf %71, %72 : vector<8x1xf32>
    %74 = vector.broadcast %66 : vector<8x1xf32> to vector<8x32xf32>
    %75 = arith.subf %60, %74 : vector<8x32xf32>
    %cst_40 = arith.constant 9.99999974E-6 : f32
    %76 = vector.broadcast %cst_40 : f32 to vector<8x1xf32>
    %77 = arith.addf %73, %76 : vector<8x1xf32>
    %78 = math.rsqrt %77 : vector<8x1xf32>
    %79 = vector.broadcast %78 : vector<8x1xf32> to vector<8x32xf32>
    %80 = arith.mulf %75, %79 : vector<8x32xf32>
    %81 = vector.broadcast %61 : vector<1x32xf32> to vector<8x32xf32>
    %82 = arith.mulf %80, %81 : vector<8x32xf32>
    %83 = vector.broadcast %62 : vector<1x32xf32> to vector<8x32xf32>
    %84 = arith.addf %82, %83 : vector<8x32xf32>
    %85 = vector.shape_cast %84 : vector<8x32xf32> to vector<1x8x32xf32>
    %c0_41 = arith.constant 0 : index
    %c0_42 = arith.constant 0 : index
    %c0_43 = arith.constant 0 : index
    %86 = vector.load %arg13[%c0_41, %c0_42, %c0_43] : memref<1x8x32xf32, #tpu.memory_space<vmem>>, vector<1x8x32xf32>
    tpu.vector_store %arg13[%c0_41, %c0_42, %c0_43], %85 {strides = array<i32>} : memref<1x8x32xf32, #tpu.memory_space<vmem>>, vector<1x8x32xf32>,
    return
  }
  func.func @transform_0(%arg0: i32, %arg1: i32) -> (i32, i32, i32) {
    %c0_i32 = arith.constant 0 : i32
    %c0_i32_0 = arith.constant 0 : i32
    return %arg0, %arg1, %c0_i32 : i32, i32, i32
  }
  func.func @transform_1(%arg0: i32, %arg1: i32) -> (i32, i32, i32) {
    %c0_i32 = arith.constant 0 : i32
    %c0_i32_0 = arith.constant 0 : i32
    %c0_i32_1 = arith.constant 0 : i32
    return %arg0, %c0_i32, %c0_i32_0 : i32, i32, i32
  }
  func.func @transform_2(%arg0: i32, %arg1: i32) -> (i32, i32) {
    %c0_i32 = arith.constant 0 : i32
    %c0_i32_0 = arith.constant 0 : i32
    %c0_i32_1 = arith.constant 0 : i32
    return %c0_i32, %c0_i32_0 : i32, i32
  }
  func.func @transform_3(%arg0: i32, %arg1: i32) -> (i32, i32) {
    %c0_i32 = arith.constant 0 : i32
    %c0_i32_0 = arith.constant 0 : i32
    %c0_i32_1 = arith.constant 0 : i32
    return %c0_i32, %c0_i32_0 : i32, i32
  }
  func.func @transform_4(%arg0: i32, %arg1: i32) -> (i32, i32) {
    %c0_i32 = arith.constant 0 : i32
    %c0_i32_0 = arith.constant 0 : i32
    %c0_i32_1 = arith.constant 0 : i32
    return %c0_i32, %c0_i32_0 : i32, i32
  }
  func.func @transform_5(%arg0: i32, %arg1: i32) -> (i32, i32) {
    %c0_i32 = arith.constant 0 : i32
    %c0_i32_0 = arith.constant 0 : i32
    %c0_i32_1 = arith.constant 0 : i32
    return %c0_i32, %c0_i32_0 : i32, i32
  }
  func.func @transform_6(%arg0: i32, %arg1: i32) -> (i32, i32) {
    %c0_i32 = arith.constant 0 : i32
    %c0_i32_0 = arith.constant 0 : i32
    %c0_i32_1 = arith.constant 0 : i32
    return %c0_i32, %c0_i32_0 : i32, i32
  }
  func.func @transform_7(%arg0: i32, %arg1: i32) -> (i32, i32) {
    %c0_i32 = arith.constant 0 : i32
    %c0_i32_0 = arith.constant 0 : i32
    %c0_i32_1 = arith.constant 0 : i32
    return %c0_i32, %c0_i32_0 : i32, i32
  }
  func.func @transform_8(%arg0: i32, %arg1: i32) -> (i32, i32) {
    %c0_i32 = arith.constant 0 : i32
    %c0_i32_0 = arith.constant 0 : i32
    %c0_i32_1 = arith.constant 0 : i32
    return %c0_i32, %c0_i32_0 : i32, i32
  }
  func.func @transform_9(%arg0: i32, %arg1: i32) -> (i32, i32) {
    %c0_i32 = arith.constant 0 : i32
    %c0_i32_0 = arith.constant 0 : i32
    %c0_i32_1 = arith.constant 0 : i32
    return %c0_i32, %c0_i32_0 : i32, i32
  }
  func.func @transform_10(%arg0: i32, %arg1: i32) -> (i32, i32) {
    %c0_i32 = arith.constant 0 : i32
    %c0_i32_0 = arith.constant 0 : i32
    %c0_i32_1 = arith.constant 0 : i32
    return %c0_i32, %c0_i32_0 : i32, i32
  }
  func.func @transform_11(%arg0: i32, %arg1: i32) -> (i32, i32, i32) {
    %c0_i32 = arith.constant 0 : i32
    %c0_i32_0 = arith.constant 0 : i32
    return %arg0, %arg1, %c0_i32 : i32, i32, i32
  }
}

module attributes {stable_mosaic.version = 11 : i64} {
  func.func @scatt_kernel(%arg0: memref<2x8x32xf32, #tpu.memory_space<vmem>>, %arg1: memref<2x8xf32, #tpu.memory_space<vmem>>, %arg2: memref<4x32x32xbf16, #tpu.memory_space<vmem>>, %arg3: memref<4x1x32xf32, #tpu.memory_space<vmem>>, %arg4: memref<4x1x32xf32, #tpu.memory_space<vmem>>, %arg5: memref<4x1x32xf32, #tpu.memory_space<vmem>>, %arg6: memref<32x4xf32, #tpu.memory_space<vmem>>, %arg7: memref<4x32xf32, #tpu.memory_space<vmem>>, %arg8: memref<32x16xbf16, #tpu.memory_space<vmem>>, %arg9: memref<1x16xf32, #tpu.memory_space<vmem>>, %arg10: memref<16x4xf32, #tpu.memory_space<vmem>>, %arg11: memref<1x1xf32, #tpu.memory_space<vmem>>, %arg12: memref<16x32xbf16, #tpu.memory_space<vmem>>, %arg13: memref<1x32xf32, #tpu.memory_space<vmem>>, %arg14: memref<32x32xbf16, #tpu.memory_space<vmem>>, %arg15: memref<1x32xf32, #tpu.memory_space<vmem>>, %arg16: memref<2x32xf32, #tpu.memory_space<vmem>>, %arg17: memref<2x32xf32, #tpu.memory_space<vmem>>, %arg18: memref<2x1x32xf32, #tpu.memory_space<vmem>>) attributes {dimension_semantics = [], scalar_prefetch = 0 : i64, scratch_operands = 0 : i64, tpu.core_type = #tpu.core_type<tc>} {
    %c0 = arith.constant 0 : index
    %c0_0 = arith.constant 0 : index
    %c0_1 = arith.constant 0 : index
    %0 = vector.load %arg0[%c0, %c0_0, %c0_1] : memref<2x8x32xf32, #tpu.memory_space<vmem>>, vector<2x8x32xf32>
    %c0_2 = arith.constant 0 : index
    %c0_3 = arith.constant 0 : index
    %1 = vector.load %arg1[%c0_2, %c0_3] : memref<2x8xf32, #tpu.memory_space<vmem>>, vector<2x8xf32>
    %2 = vector.shape_cast %0 : vector<2x8x32xf32> to vector<16x32xf32>
    %3 = arith.truncf %2 : vector<16x32xf32> to vector<16x32xbf16>
    %cst = arith.constant dense<0.000000e+00> : vector<2xf32>
    %4 = vector.multi_reduction <add>, %1, %cst [1] : vector<2x8xf32> to vector<2xf32>
    %5 = vector.shape_cast %4 : vector<2xf32> to vector<2x1xf32>
    %cst_4 = arith.constant 1.000000e+00 : f32
    %6 = vector.broadcast %cst_4 : f32 to vector<2x1xf32>
    %7 = arith.maximumf %5, %6 : vector<2x1xf32>
    %8 = tpu.reciprocal %7 {approx = true} : vector<2x1xf32> -> vector<2x1xf32>
    %9 = vector.shape_cast %1 : vector<2x8xf32> to vector<2x8x1xf32>
    %10 = vector.broadcast %9 : vector<2x8x1xf32> to vector<2x8x32xf32>
    %11 = arith.mulf %0, %10 : vector<2x8x32xf32>
    %cst_5 = arith.constant dense<0.000000e+00> : vector<2x32xf32>
    %12 = vector.multi_reduction <add>, %11, %cst_5 [1] : vector<2x8x32xf32> to vector<2x32xf32>
    %13 = vector.broadcast %8 : vector<2x1xf32> to vector<2x32xf32>
    %14 = arith.mulf %12, %13 : vector<2x32xf32>
    %c0_6 = arith.constant 0 : index
    %c0_7 = arith.constant 0 : index
    %15 = vector.load %arg16[%c0_6, %c0_7] : memref<2x32xf32, #tpu.memory_space<vmem>>, vector<2x32xf32>
    tpu.vector_store %arg16[%c0_6, %c0_7], %14 {strides = array<i32>} : memref<2x32xf32, #tpu.memory_space<vmem>>, vector<2x32xf32>,
    %16 = arith.truncf %14 : vector<2x32xf32> to vector<2x32xbf16>
    %c0_8 = arith.constant 0 : index
    %c0_9 = arith.constant 0 : index
    %17 = vector.load %arg6[%c0_8, %c0_9] : memref<32x4xf32, #tpu.memory_space<vmem>>, vector<32x4xf32>
    %c0_10 = arith.constant 0 : index
    %c0_11 = arith.constant 0 : index
    %18 = vector.load %arg7[%c0_10, %c0_11] : memref<4x32xf32, #tpu.memory_space<vmem>>, vector<4x32xf32>
    %c0_12 = arith.constant 0 : index
    %c0_13 = arith.constant 0 : index
    %c0_14 = arith.constant 0 : index
    %19 = vector.load %arg2[%c0_12, %c0_13, %c0_14] : memref<4x32x32xbf16, #tpu.memory_space<vmem>>, vector<1x32x32xbf16>
    %20 = vector.shape_cast %19 : vector<1x32x32xbf16> to vector<32x32xbf16>
    %cst_15 = arith.constant dense<0.000000e+00> : vector<2x32xf32>
    %21 = tpu.matmul %16, %20, %cst_15 {dimension_numbers = #tpu.dot_dimension_numbers<[1], [0], [0], [1], [0, 0, 1, 1], [], []>} : vector<2x32xbf16>, vector<32x32xbf16>, vector<2x32xf32> -> vector<2x32xf32>
    %c0_16 = arith.constant 0 : index
    %c0_17 = arith.constant 0 : index
    %c0_18 = arith.constant 0 : index
    %22 = vector.load %arg3[%c0_16, %c0_17, %c0_18] : memref<4x1x32xf32, #tpu.memory_space<vmem>>, vector<1x1x32xf32>
    %23 = vector.shape_cast %22 : vector<1x1x32xf32> to vector<1x32xf32>
    %24 = vector.broadcast %23 : vector<1x32xf32> to vector<2x32xf32>
    %25 = arith.addf %21, %24 : vector<2x32xf32>
    %cst_19 = arith.constant 0.000000e+00 : f32
    %26 = vector.broadcast %cst_19 : f32 to vector<2x32xf32>
    %27 = arith.maximumf %25, %26 : vector<2x32xf32>
    %cst_20 = arith.constant 1.300000e+00 : f32
    %28 = vector.broadcast %cst_20 : f32 to vector<2x32xf32>
    %29 = arith.divf %25, %28 : vector<2x32xf32>
    %30 = math.exp %29 : vector<2x32xf32>
    %cst_21 = arith.constant 1.000000e+00 : f32
    %31 = vector.broadcast %cst_21 : f32 to vector<2x32xf32>
    %32 = arith.subf %30, %31 : vector<2x32xf32>
    %cst_22 = arith.constant 1.300000e+00 : f32
    %33 = vector.broadcast %cst_22 : f32 to vector<2x32xf32>
    %34 = arith.mulf %33, %32 : vector<2x32xf32>
    %cst_23 = arith.constant 0.000000e+00 : f32
    %35 = vector.broadcast %cst_23 : f32 to vector<2x32xf32>
    %36 = arith.minimumf %35, %34 : vector<2x32xf32>
    %37 = arith.addf %27, %36 : vector<2x32xf32>
    %cst_24 = arith.constant dense<0.000000e+00> : vector<2x4xf32>
    %38 = tpu.matmul %37, %17, %cst_24 {dimension_numbers = #tpu.dot_dimension_numbers<[1], [0], [0], [1], [0, 0, 1, 1], [], []>} : vector<2x32xf32>, vector<32x4xf32>, vector<2x4xf32> -> vector<2x4xf32>
    %39 = arith.mulf %37, %37 : vector<2x32xf32>
    %cst_25 = arith.constant dense<0.000000e+00> : vector<2x4xf32>
    %40 = tpu.matmul %39, %17, %cst_25 {dimension_numbers = #tpu.dot_dimension_numbers<[1], [0], [0], [1], [0, 0, 1, 1], [], []>} : vector<2x32xf32>, vector<32x4xf32>, vector<2x4xf32> -> vector<2x4xf32>
    %cst_26 = arith.constant 1.250000e-01 : f32
    %41 = vector.broadcast %cst_26 : f32 to vector<2x4xf32>
    %42 = arith.mulf %38, %41 : vector<2x4xf32>
    %cst_27 = arith.constant 1.250000e-01 : f32
    %43 = vector.broadcast %cst_27 : f32 to vector<2x4xf32>
    %44 = arith.mulf %40, %43 : vector<2x4xf32>
    %45 = arith.mulf %42, %42 : vector<2x4xf32>
    %46 = arith.subf %44, %45 : vector<2x4xf32>
    %cst_28 = arith.constant 9.99999974E-6 : f32
    %47 = vector.broadcast %cst_28 : f32 to vector<2x4xf32>
    %48 = arith.addf %46, %47 : vector<2x4xf32>
    %49 = math.rsqrt %48 : vector<2x4xf32>
    %cst_29 = arith.constant dense<0.000000e+00> : vector<2x32xf32>
    %50 = tpu.matmul %42, %18, %cst_29 {dimension_numbers = #tpu.dot_dimension_numbers<[1], [0], [0], [1], [0, 0, 1, 1], [], []>} : vector<2x4xf32>, vector<4x32xf32>, vector<2x32xf32> -> vector<2x32xf32>
    %cst_30 = arith.constant dense<0.000000e+00> : vector<2x32xf32>
    %51 = tpu.matmul %49, %18, %cst_30 {dimension_numbers = #tpu.dot_dimension_numbers<[1], [0], [0], [1], [0, 0, 1, 1], [], []>} : vector<2x4xf32>, vector<4x32xf32>, vector<2x32xf32> -> vector<2x32xf32>
    %52 = arith.subf %37, %50 : vector<2x32xf32>
    %53 = arith.mulf %52, %51 : vector<2x32xf32>
    %c0_31 = arith.constant 0 : index
    %c0_32 = arith.constant 0 : index
    %c0_33 = arith.constant 0 : index
    %54 = vector.load %arg4[%c0_31, %c0_32, %c0_33] : memref<4x1x32xf32, #tpu.memory_space<vmem>>, vector<1x1x32xf32>
    %55 = vector.shape_cast %54 : vector<1x1x32xf32> to vector<1x32xf32>
    %56 = vector.broadcast %55 : vector<1x32xf32> to vector<2x32xf32>
    %57 = arith.mulf %53, %56 : vector<2x32xf32>
    %c0_34 = arith.constant 0 : index
    %c0_35 = arith.constant 0 : index
    %c0_36 = arith.constant 0 : index
    %58 = vector.load %arg5[%c0_34, %c0_35, %c0_36] : memref<4x1x32xf32, #tpu.memory_space<vmem>>, vector<1x1x32xf32>
    %59 = vector.shape_cast %58 : vector<1x1x32xf32> to vector<1x32xf32>
    %60 = vector.broadcast %59 : vector<1x32xf32> to vector<2x32xf32>
    %61 = arith.addf %57, %60 : vector<2x32xf32>
    %c1 = arith.constant 1 : index
    %c0_37 = arith.constant 0 : index
    %c0_38 = arith.constant 0 : index
    %62 = vector.load %arg2[%c1, %c0_37, %c0_38] : memref<4x32x32xbf16, #tpu.memory_space<vmem>>, vector<1x32x32xbf16>
    %63 = vector.shape_cast %62 : vector<1x32x32xbf16> to vector<32x32xbf16>
    %cst_39 = arith.constant dense<0.000000e+00> : vector<16x32xf32>
    %64 = tpu.matmul %3, %63, %cst_39 {dimension_numbers = #tpu.dot_dimension_numbers<[1], [0], [0], [1], [0, 0, 1, 1], [], []>} : vector<16x32xbf16>, vector<32x32xbf16>, vector<16x32xf32> -> vector<16x32xf32>
    %c1_40 = arith.constant 1 : index
    %c0_41 = arith.constant 0 : index
    %c0_42 = arith.constant 0 : index
    %65 = vector.load %arg3[%c1_40, %c0_41, %c0_42] : memref<4x1x32xf32, #tpu.memory_space<vmem>>, vector<1x1x32xf32>
    %66 = vector.shape_cast %65 : vector<1x1x32xf32> to vector<1x32xf32>
    %67 = vector.broadcast %66 : vector<1x32xf32> to vector<16x32xf32>
    %68 = arith.addf %64, %67 : vector<16x32xf32>
    %cst_43 = arith.constant 0.000000e+00 : f32
    %69 = vector.broadcast %cst_43 : f32 to vector<16x32xf32>
    %70 = arith.maximumf %68, %69 : vector<16x32xf32>
    %cst_44 = arith.constant 1.300000e+00 : f32
    %71 = vector.broadcast %cst_44 : f32 to vector<16x32xf32>
    %72 = arith.divf %68, %71 : vector<16x32xf32>
    %73 = math.exp %72 : vector<16x32xf32>
    %cst_45 = arith.constant 1.000000e+00 : f32
    %74 = vector.broadcast %cst_45 : f32 to vector<16x32xf32>
    %75 = arith.subf %73, %74 : vector<16x32xf32>
    %cst_46 = arith.constant 1.300000e+00 : f32
    %76 = vector.broadcast %cst_46 : f32 to vector<16x32xf32>
    %77 = arith.mulf %76, %75 : vector<16x32xf32>
    %cst_47 = arith.constant 0.000000e+00 : f32
    %78 = vector.broadcast %cst_47 : f32 to vector<16x32xf32>
    %79 = arith.minimumf %78, %77 : vector<16x32xf32>
    %80 = arith.addf %70, %79 : vector<16x32xf32>
    %cst_48 = arith.constant dense<0.000000e+00> : vector<16x4xf32>
    %81 = tpu.matmul %80, %17, %cst_48 {dimension_numbers = #tpu.dot_dimension_numbers<[1], [0], [0], [1], [0, 0, 1, 1], [], []>} : vector<16x32xf32>, vector<32x4xf32>, vector<16x4xf32> -> vector<16x4xf32>
    %82 = arith.mulf %80, %80 : vector<16x32xf32>
    %cst_49 = arith.constant dense<0.000000e+00> : vector<16x4xf32>
    %83 = tpu.matmul %82, %17, %cst_49 {dimension_numbers = #tpu.dot_dimension_numbers<[1], [0], [0], [1], [0, 0, 1, 1], [], []>} : vector<16x32xf32>, vector<32x4xf32>, vector<16x4xf32> -> vector<16x4xf32>
    %cst_50 = arith.constant 1.250000e-01 : f32
    %84 = vector.broadcast %cst_50 : f32 to vector<16x4xf32>
    %85 = arith.mulf %81, %84 : vector<16x4xf32>
    %cst_51 = arith.constant 1.250000e-01 : f32
    %86 = vector.broadcast %cst_51 : f32 to vector<16x4xf32>
    %87 = arith.mulf %83, %86 : vector<16x4xf32>
    %88 = arith.mulf %85, %85 : vector<16x4xf32>
    %89 = arith.subf %87, %88 : vector<16x4xf32>
    %cst_52 = arith.constant 9.99999974E-6 : f32
    %90 = vector.broadcast %cst_52 : f32 to vector<16x4xf32>
    %91 = arith.addf %89, %90 : vector<16x4xf32>
    %92 = math.rsqrt %91 : vector<16x4xf32>
    %cst_53 = arith.constant dense<0.000000e+00> : vector<16x32xf32>
    %93 = tpu.matmul %85, %18, %cst_53 {dimension_numbers = #tpu.dot_dimension_numbers<[1], [0], [0], [1], [0, 0, 1, 1], [], []>} : vector<16x4xf32>, vector<4x32xf32>, vector<16x32xf32> -> vector<16x32xf32>
    %cst_54 = arith.constant dense<0.000000e+00> : vector<16x32xf32>
    %94 = tpu.matmul %92, %18, %cst_54 {dimension_numbers = #tpu.dot_dimension_numbers<[1], [0], [0], [1], [0, 0, 1, 1], [], []>} : vector<16x4xf32>, vector<4x32xf32>, vector<16x32xf32> -> vector<16x32xf32>
    %95 = arith.subf %80, %93 : vector<16x32xf32>
    %96 = arith.mulf %95, %94 : vector<16x32xf32>
    %c1_55 = arith.constant 1 : index
    %c0_56 = arith.constant 0 : index
    %c0_57 = arith.constant 0 : index
    %97 = vector.load %arg4[%c1_55, %c0_56, %c0_57] : memref<4x1x32xf32, #tpu.memory_space<vmem>>, vector<1x1x32xf32>
    %98 = vector.shape_cast %97 : vector<1x1x32xf32> to vector<1x32xf32>
    %99 = vector.broadcast %98 : vector<1x32xf32> to vector<16x32xf32>
    %100 = arith.mulf %96, %99 : vector<16x32xf32>
    %c1_58 = arith.constant 1 : index
    %c0_59 = arith.constant 0 : index
    %c0_60 = arith.constant 0 : index
    %101 = vector.load %arg5[%c1_58, %c0_59, %c0_60] : memref<4x1x32xf32, #tpu.memory_space<vmem>>, vector<1x1x32xf32>
    %102 = vector.shape_cast %101 : vector<1x1x32xf32> to vector<1x32xf32>
    %103 = vector.broadcast %102 : vector<1x32xf32> to vector<16x32xf32>
    %104 = arith.addf %100, %103 : vector<16x32xf32>
    %c2 = arith.constant 2 : index
    %c0_61 = arith.constant 0 : index
    %c0_62 = arith.constant 0 : index
    %105 = vector.load %arg2[%c2, %c0_61, %c0_62] : memref<4x32x32xbf16, #tpu.memory_space<vmem>>, vector<1x32x32xbf16>
    %106 = vector.shape_cast %105 : vector<1x32x32xbf16> to vector<32x32xbf16>
    %cst_63 = arith.constant dense<0.000000e+00> : vector<2x32xf32>
    %107 = tpu.matmul %16, %106, %cst_63 {dimension_numbers = #tpu.dot_dimension_numbers<[1], [0], [0], [1], [0, 0, 1, 1], [], []>} : vector<2x32xbf16>, vector<32x32xbf16>, vector<2x32xf32> -> vector<2x32xf32>
    %c2_64 = arith.constant 2 : index
    %c0_65 = arith.constant 0 : index
    %c0_66 = arith.constant 0 : index
    %108 = vector.load %arg3[%c2_64, %c0_65, %c0_66] : memref<4x1x32xf32, #tpu.memory_space<vmem>>, vector<1x1x32xf32>
    %109 = vector.shape_cast %108 : vector<1x1x32xf32> to vector<1x32xf32>
    %110 = vector.broadcast %109 : vector<1x32xf32> to vector<2x32xf32>
    %111 = arith.addf %107, %110 : vector<2x32xf32>
    %cst_67 = arith.constant 0.000000e+00 : f32
    %112 = vector.broadcast %cst_67 : f32 to vector<2x32xf32>
    %113 = arith.maximumf %111, %112 : vector<2x32xf32>
    %cst_68 = arith.constant 1.300000e+00 : f32
    %114 = vector.broadcast %cst_68 : f32 to vector<2x32xf32>
    %115 = arith.divf %111, %114 : vector<2x32xf32>
    %116 = math.exp %115 : vector<2x32xf32>
    %cst_69 = arith.constant 1.000000e+00 : f32
    %117 = vector.broadcast %cst_69 : f32 to vector<2x32xf32>
    %118 = arith.subf %116, %117 : vector<2x32xf32>
    %cst_70 = arith.constant 1.300000e+00 : f32
    %119 = vector.broadcast %cst_70 : f32 to vector<2x32xf32>
    %120 = arith.mulf %119, %118 : vector<2x32xf32>
    %cst_71 = arith.constant 0.000000e+00 : f32
    %121 = vector.broadcast %cst_71 : f32 to vector<2x32xf32>
    %122 = arith.minimumf %121, %120 : vector<2x32xf32>
    %123 = arith.addf %113, %122 : vector<2x32xf32>
    %cst_72 = arith.constant dense<0.000000e+00> : vector<2x4xf32>
    %124 = tpu.matmul %123, %17, %cst_72 {dimension_numbers = #tpu.dot_dimension_numbers<[1], [0], [0], [1], [0, 0, 1, 1], [], []>} : vector<2x32xf32>, vector<32x4xf32>, vector<2x4xf32> -> vector<2x4xf32>
    %125 = arith.mulf %123, %123 : vector<2x32xf32>
    %cst_73 = arith.constant dense<0.000000e+00> : vector<2x4xf32>
    %126 = tpu.matmul %125, %17, %cst_73 {dimension_numbers = #tpu.dot_dimension_numbers<[1], [0], [0], [1], [0, 0, 1, 1], [], []>} : vector<2x32xf32>, vector<32x4xf32>, vector<2x4xf32> -> vector<2x4xf32>
    %cst_74 = arith.constant 1.250000e-01 : f32
    %127 = vector.broadcast %cst_74 : f32 to vector<2x4xf32>
    %128 = arith.mulf %124, %127 : vector<2x4xf32>
    %cst_75 = arith.constant 1.250000e-01 : f32
    %129 = vector.broadcast %cst_75 : f32 to vector<2x4xf32>
    %130 = arith.mulf %126, %129 : vector<2x4xf32>
    %131 = arith.mulf %128, %128 : vector<2x4xf32>
    %132 = arith.subf %130, %131 : vector<2x4xf32>
    %cst_76 = arith.constant 9.99999974E-6 : f32
    %133 = vector.broadcast %cst_76 : f32 to vector<2x4xf32>
    %134 = arith.addf %132, %133 : vector<2x4xf32>
    %135 = math.rsqrt %134 : vector<2x4xf32>
    %cst_77 = arith.constant dense<0.000000e+00> : vector<2x32xf32>
    %136 = tpu.matmul %128, %18, %cst_77 {dimension_numbers = #tpu.dot_dimension_numbers<[1], [0], [0], [1], [0, 0, 1, 1], [], []>} : vector<2x4xf32>, vector<4x32xf32>, vector<2x32xf32> -> vector<2x32xf32>
    %cst_78 = arith.constant dense<0.000000e+00> : vector<2x32xf32>
    %137 = tpu.matmul %135, %18, %cst_78 {dimension_numbers = #tpu.dot_dimension_numbers<[1], [0], [0], [1], [0, 0, 1, 1], [], []>} : vector<2x4xf32>, vector<4x32xf32>, vector<2x32xf32> -> vector<2x32xf32>
    %138 = arith.subf %123, %136 : vector<2x32xf32>
    %139 = arith.mulf %138, %137 : vector<2x32xf32>
    %c2_79 = arith.constant 2 : index
    %c0_80 = arith.constant 0 : index
    %c0_81 = arith.constant 0 : index
    %140 = vector.load %arg4[%c2_79, %c0_80, %c0_81] : memref<4x1x32xf32, #tpu.memory_space<vmem>>, vector<1x1x32xf32>
    %141 = vector.shape_cast %140 : vector<1x1x32xf32> to vector<1x32xf32>
    %142 = vector.broadcast %141 : vector<1x32xf32> to vector<2x32xf32>
    %143 = arith.mulf %139, %142 : vector<2x32xf32>
    %c2_82 = arith.constant 2 : index
    %c0_83 = arith.constant 0 : index
    %c0_84 = arith.constant 0 : index
    %144 = vector.load %arg5[%c2_82, %c0_83, %c0_84] : memref<4x1x32xf32, #tpu.memory_space<vmem>>, vector<1x1x32xf32>
    %145 = vector.shape_cast %144 : vector<1x1x32xf32> to vector<1x32xf32>
    %146 = vector.broadcast %145 : vector<1x32xf32> to vector<2x32xf32>
    %147 = arith.addf %143, %146 : vector<2x32xf32>
    %c3 = arith.constant 3 : index
    %c0_85 = arith.constant 0 : index
    %c0_86 = arith.constant 0 : index
    %148 = vector.load %arg2[%c3, %c0_85, %c0_86] : memref<4x32x32xbf16, #tpu.memory_space<vmem>>, vector<1x32x32xbf16>
    %149 = vector.shape_cast %148 : vector<1x32x32xbf16> to vector<32x32xbf16>
    %cst_87 = arith.constant dense<0.000000e+00> : vector<16x32xf32>
    %150 = tpu.matmul %3, %149, %cst_87 {dimension_numbers = #tpu.dot_dimension_numbers<[1], [0], [0], [1], [0, 0, 1, 1], [], []>} : vector<16x32xbf16>, vector<32x32xbf16>, vector<16x32xf32> -> vector<16x32xf32>
    %c3_88 = arith.constant 3 : index
    %c0_89 = arith.constant 0 : index
    %c0_90 = arith.constant 0 : index
    %151 = vector.load %arg3[%c3_88, %c0_89, %c0_90] : memref<4x1x32xf32, #tpu.memory_space<vmem>>, vector<1x1x32xf32>
    %152 = vector.shape_cast %151 : vector<1x1x32xf32> to vector<1x32xf32>
    %153 = vector.broadcast %152 : vector<1x32xf32> to vector<16x32xf32>
    %154 = arith.addf %150, %153 : vector<16x32xf32>
    %cst_91 = arith.constant 0.000000e+00 : f32
    %155 = vector.broadcast %cst_91 : f32 to vector<16x32xf32>
    %156 = arith.maximumf %154, %155 : vector<16x32xf32>
    %cst_92 = arith.constant 1.300000e+00 : f32
    %157 = vector.broadcast %cst_92 : f32 to vector<16x32xf32>
    %158 = arith.divf %154, %157 : vector<16x32xf32>
    %159 = math.exp %158 : vector<16x32xf32>
    %cst_93 = arith.constant 1.000000e+00 : f32
    %160 = vector.broadcast %cst_93 : f32 to vector<16x32xf32>
    %161 = arith.subf %159, %160 : vector<16x32xf32>
    %cst_94 = arith.constant 1.300000e+00 : f32
    %162 = vector.broadcast %cst_94 : f32 to vector<16x32xf32>
    %163 = arith.mulf %162, %161 : vector<16x32xf32>
    %cst_95 = arith.constant 0.000000e+00 : f32
    %164 = vector.broadcast %cst_95 : f32 to vector<16x32xf32>
    %165 = arith.minimumf %164, %163 : vector<16x32xf32>
    %166 = arith.addf %156, %165 : vector<16x32xf32>
    %cst_96 = arith.constant dense<0.000000e+00> : vector<16x4xf32>
    %167 = tpu.matmul %166, %17, %cst_96 {dimension_numbers = #tpu.dot_dimension_numbers<[1], [0], [0], [1], [0, 0, 1, 1], [], []>} : vector<16x32xf32>, vector<32x4xf32>, vector<16x4xf32> -> vector<16x4xf32>
    %168 = arith.mulf %166, %166 : vector<16x32xf32>
    %cst_97 = arith.constant dense<0.000000e+00> : vector<16x4xf32>
    %169 = tpu.matmul %168, %17, %cst_97 {dimension_numbers = #tpu.dot_dimension_numbers<[1], [0], [0], [1], [0, 0, 1, 1], [], []>} : vector<16x32xf32>, vector<32x4xf32>, vector<16x4xf32> -> vector<16x4xf32>
    %cst_98 = arith.constant 1.250000e-01 : f32
    %170 = vector.broadcast %cst_98 : f32 to vector<16x4xf32>
    %171 = arith.mulf %167, %170 : vector<16x4xf32>
    %cst_99 = arith.constant 1.250000e-01 : f32
    %172 = vector.broadcast %cst_99 : f32 to vector<16x4xf32>
    %173 = arith.mulf %169, %172 : vector<16x4xf32>
    %174 = arith.mulf %171, %171 : vector<16x4xf32>
    %175 = arith.subf %173, %174 : vector<16x4xf32>
    %cst_100 = arith.constant 9.99999974E-6 : f32
    %176 = vector.broadcast %cst_100 : f32 to vector<16x4xf32>
    %177 = arith.addf %175, %176 : vector<16x4xf32>
    %178 = math.rsqrt %177 : vector<16x4xf32>
    %cst_101 = arith.constant dense<0.000000e+00> : vector<16x32xf32>
    %179 = tpu.matmul %171, %18, %cst_101 {dimension_numbers = #tpu.dot_dimension_numbers<[1], [0], [0], [1], [0, 0, 1, 1], [], []>} : vector<16x4xf32>, vector<4x32xf32>, vector<16x32xf32> -> vector<16x32xf32>
    %cst_102 = arith.constant dense<0.000000e+00> : vector<16x32xf32>
    %180 = tpu.matmul %178, %18, %cst_102 {dimension_numbers = #tpu.dot_dimension_numbers<[1], [0], [0], [1], [0, 0, 1, 1], [], []>} : vector<16x4xf32>, vector<4x32xf32>, vector<16x32xf32> -> vector<16x32xf32>
    %181 = arith.subf %166, %179 : vector<16x32xf32>
    %182 = arith.mulf %181, %180 : vector<16x32xf32>
    %c3_103 = arith.constant 3 : index
    %c0_104 = arith.constant 0 : index
    %c0_105 = arith.constant 0 : index
    %183 = vector.load %arg4[%c3_103, %c0_104, %c0_105] : memref<4x1x32xf32, #tpu.memory_space<vmem>>, vector<1x1x32xf32>
    %184 = vector.shape_cast %183 : vector<1x1x32xf32> to vector<1x32xf32>
    %185 = vector.broadcast %184 : vector<1x32xf32> to vector<16x32xf32>
    %186 = arith.mulf %182, %185 : vector<16x32xf32>
    %c3_106 = arith.constant 3 : index
    %c0_107 = arith.constant 0 : index
    %c0_108 = arith.constant 0 : index
    %187 = vector.load %arg5[%c3_106, %c0_107, %c0_108] : memref<4x1x32xf32, #tpu.memory_space<vmem>>, vector<1x1x32xf32>
    %188 = vector.shape_cast %187 : vector<1x1x32xf32> to vector<1x32xf32>
    %189 = vector.broadcast %188 : vector<1x32xf32> to vector<16x32xf32>
    %190 = arith.addf %186, %189 : vector<16x32xf32>
    %191 = vector.shape_cast %61 : vector<2x32xf32> to vector<2x1x32xf32>
    %192 = vector.shape_cast %104 : vector<16x32xf32> to vector<2x8x32xf32>
    %193 = vector.broadcast %191 : vector<2x1x32xf32> to vector<2x8x32xf32>
    %194 = arith.mulf %193, %192 : vector<2x8x32xf32>
    %195 = vector.shape_cast %194 : vector<2x8x32xf32> to vector<16x32xf32>
    %196 = arith.truncf %195 : vector<16x32xf32> to vector<16x32xbf16>
    %c0_109 = arith.constant 0 : index
    %c0_110 = arith.constant 0 : index
    %197 = vector.load %arg8[%c0_109, %c0_110] : memref<32x16xbf16, #tpu.memory_space<vmem>>, vector<32x16xbf16>
    %cst_111 = arith.constant dense<0.000000e+00> : vector<16x16xf32>
    %198 = tpu.matmul %196, %197, %cst_111 {dimension_numbers = #tpu.dot_dimension_numbers<[1], [0], [0], [1], [0, 0, 1, 1], [], []>} : vector<16x32xbf16>, vector<32x16xbf16>, vector<16x16xf32> -> vector<16x16xf32>
    %c0_112 = arith.constant 0 : index
    %c0_113 = arith.constant 0 : index
    %199 = vector.load %arg9[%c0_112, %c0_113] : memref<1x16xf32, #tpu.memory_space<vmem>>, vector<1x16xf32>
    %200 = vector.broadcast %199 : vector<1x16xf32> to vector<16x16xf32>
    %201 = arith.addf %198, %200 : vector<16x16xf32>
    %cst_114 = arith.constant 0.000000e+00 : f32
    %202 = vector.broadcast %cst_114 : f32 to vector<16x16xf32>
    %203 = arith.maximumf %201, %202 : vector<16x16xf32>
    %204 = vector.shape_cast %203 : vector<16x16xf32> to vector<2x8x16xf32>
    %205 = vector.shape_cast %1 : vector<2x8xf32> to vector<2x8x1xf32>
    %206 = vector.broadcast %205 : vector<2x8x1xf32> to vector<2x8x16xf32>
    %207 = arith.mulf %204, %206 : vector<2x8x16xf32>
    %cst_115 = arith.constant dense<0.000000e+00> : vector<2x16xf32>
    %208 = vector.multi_reduction <add>, %207, %cst_115 [1] : vector<2x8x16xf32> to vector<2x16xf32>
    %209 = vector.broadcast %8 : vector<2x1xf32> to vector<2x16xf32>
    %210 = arith.mulf %208, %209 : vector<2x16xf32>
    %c0_116 = arith.constant 0 : index
    %c0_117 = arith.constant 0 : index
    %211 = vector.load %arg10[%c0_116, %c0_117] : memref<16x4xf32, #tpu.memory_space<vmem>>, vector<16x4xf32>
    %cst_118 = arith.constant dense<0.000000e+00> : vector<16x4xf32>
    %212 = tpu.matmul %203, %211, %cst_118 {dimension_numbers = #tpu.dot_dimension_numbers<[1], [0], [0], [1], [0, 0, 1, 1], [], []>} : vector<16x16xf32>, vector<16x4xf32>, vector<16x4xf32> -> vector<16x4xf32>
    %c0_119 = arith.constant 0 : index
    %c0_120 = arith.constant 0 : index
    %213 = vector.load %arg11[%c0_119, %c0_120] : memref<1x1xf32, #tpu.memory_space<vmem>>, vector<1x1xf32>
    %214 = vector.broadcast %213 : vector<1x1xf32> to vector<16x4xf32>
    %215 = arith.addf %212, %214 : vector<16x4xf32>
    %216 = vector.shape_cast %215 : vector<16x4xf32> to vector<2x8x4xf32>
    %217 = vector.shape_cast %1 : vector<2x8xf32> to vector<2x8x1xf32>
    %cst_121 = arith.constant 0.000000e+00 : f32
    %218 = vector.broadcast %cst_121 : f32 to vector<2x8x1xf32>
    %219 = arith.cmpf oeq, %217, %218 : vector<2x8x1xf32>
    %cst_122 = arith.constant -1.000000e+09 : f32
    %220 = vector.shape_cast %219 : vector<2x8x1xi1> to vector<2x8x1xi1>
    %221 = vector.broadcast %220 : vector<2x8x1xi1> to vector<2x8x4xi1>
    %222 = vector.broadcast %cst_122 : f32 to vector<2x8x4xf32>
    %223 = arith.select %221, %222, %216 : vector<2x8x4xi1>, vector<2x8x4xf32>
    %cst_123 = arith.constant dense<0xFF800000> : vector<2x4xf32>
    %224 = vector.multi_reduction <maximumf>, %223, %cst_123 [1] : vector<2x8x4xf32> to vector<2x4xf32>
    %225 = vector.shape_cast %224 : vector<2x4xf32> to vector<2x1x4xf32>
    %226 = vector.broadcast %225 : vector<2x1x4xf32> to vector<2x8x4xf32>
    %227 = arith.subf %223, %226 : vector<2x8x4xf32>
    %228 = math.exp %227 : vector<2x8x4xf32>
    %cst_124 = arith.constant dense<0.000000e+00> : vector<2x4xf32>
    %229 = vector.multi_reduction <add>, %228, %cst_124 [1] : vector<2x8x4xf32> to vector<2x4xf32>
    %230 = vector.shape_cast %229 : vector<2x4xf32> to vector<2x1x4xf32>
    %231 = tpu.reciprocal %230 {approx = true} : vector<2x1x4xf32> -> vector<2x1x4xf32>
    %232 = vector.broadcast %231 : vector<2x1x4xf32> to vector<2x8x4xf32>
    %233 = arith.mulf %228, %232 : vector<2x8x4xf32>
    %234 = arith.truncf %210 : vector<2x16xf32> to vector<2x16xbf16>
    %c0_125 = arith.constant 0 : index
    %c0_126 = arith.constant 0 : index
    %235 = vector.load %arg12[%c0_125, %c0_126] : memref<16x32xbf16, #tpu.memory_space<vmem>>, vector<16x32xbf16>
    %cst_127 = arith.constant dense<0.000000e+00> : vector<2x32xf32>
    %236 = tpu.matmul %234, %235, %cst_127 {dimension_numbers = #tpu.dot_dimension_numbers<[1], [0], [0], [1], [0, 0, 1, 1], [], []>} : vector<2x16xbf16>, vector<16x32xbf16>, vector<2x32xf32> -> vector<2x32xf32>
    %c0_128 = arith.constant 0 : index
    %c0_129 = arith.constant 0 : index
    %237 = vector.load %arg13[%c0_128, %c0_129] : memref<1x32xf32, #tpu.memory_space<vmem>>, vector<1x32xf32>
    %238 = vector.broadcast %237 : vector<1x32xf32> to vector<2x32xf32>
    %239 = arith.addf %236, %238 : vector<2x32xf32>
    %240 = arith.negf %239 : vector<2x32xf32>
    %241 = math.exp %240 : vector<2x32xf32>
    %cst_130 = arith.constant 1.000000e+00 : f32
    %242 = vector.broadcast %cst_130 : f32 to vector<2x32xf32>
    %243 = arith.addf %242, %241 : vector<2x32xf32>
    %244 = arith.divf %242, %243 : vector<2x32xf32>
    %245 = vector.shape_cast %233 : vector<2x8x4xf32> to vector<16x4xf32>
    %cst_131 = arith.constant dense<0.000000e+00> : vector<16x32xf32>
    %246 = tpu.matmul %245, %18, %cst_131 {dimension_numbers = #tpu.dot_dimension_numbers<[1], [0], [0], [1], [0, 0, 1, 1], [], []>} : vector<16x4xf32>, vector<4x32xf32>, vector<16x32xf32> -> vector<16x32xf32>
    %247 = vector.shape_cast %246 : vector<16x32xf32> to vector<2x8x32xf32>
    %248 = vector.shape_cast %190 : vector<16x32xf32> to vector<2x8x32xf32>
    %249 = arith.mulf %247, %248 : vector<2x8x32xf32>
    %cst_132 = arith.constant dense<0.000000e+00> : vector<2x32xf32>
    %250 = vector.multi_reduction <add>, %249, %cst_132 [1] : vector<2x8x32xf32> to vector<2x32xf32>
    %251 = arith.mulf %147, %250 : vector<2x32xf32>
    %252 = arith.mulf %251, %244 : vector<2x32xf32>
    %c0_133 = arith.constant 0 : index
    %c0_134 = arith.constant 0 : index
    %253 = vector.load %arg17[%c0_133, %c0_134] : memref<2x32xf32, #tpu.memory_space<vmem>>, vector<2x32xf32>
    tpu.vector_store %arg17[%c0_133, %c0_134], %252 {strides = array<i32>} : memref<2x32xf32, #tpu.memory_space<vmem>>, vector<2x32xf32>,
    %254 = arith.truncf %252 : vector<2x32xf32> to vector<2x32xbf16>
    %c0_135 = arith.constant 0 : index
    %c0_136 = arith.constant 0 : index
    %255 = vector.load %arg14[%c0_135, %c0_136] : memref<32x32xbf16, #tpu.memory_space<vmem>>, vector<32x32xbf16>
    %cst_137 = arith.constant dense<0.000000e+00> : vector<2x32xf32>
    %256 = tpu.matmul %254, %255, %cst_137 {dimension_numbers = #tpu.dot_dimension_numbers<[1], [0], [0], [1], [0, 0, 1, 1], [], []>} : vector<2x32xbf16>, vector<32x32xbf16>, vector<2x32xf32> -> vector<2x32xf32>
    %c0_138 = arith.constant 0 : index
    %c0_139 = arith.constant 0 : index
    %257 = vector.load %arg15[%c0_138, %c0_139] : memref<1x32xf32, #tpu.memory_space<vmem>>, vector<1x32xf32>
    %258 = vector.broadcast %257 : vector<1x32xf32> to vector<2x32xf32>
    %259 = arith.addf %256, %258 : vector<2x32xf32>
    %260 = vector.shape_cast %259 : vector<2x32xf32> to vector<2x1x32xf32>
    %c0_140 = arith.constant 0 : index
    %c0_141 = arith.constant 0 : index
    %c0_142 = arith.constant 0 : index
    %261 = vector.load %arg18[%c0_140, %c0_141, %c0_142] : memref<2x1x32xf32, #tpu.memory_space<vmem>>, vector<2x1x32xf32>
    tpu.vector_store %arg18[%c0_140, %c0_141, %c0_142], %260 {strides = array<i32>} : memref<2x1x32xf32, #tpu.memory_space<vmem>>, vector<2x1x32xf32>,
    return
  }
}

module attributes {stable_mosaic.version = 11 : i64} {
  func.func @scatt_kernel(%arg0: memref<2x32xf32, #tpu.memory_space<vmem>>, %arg1: memref<2x8x32xf32, #tpu.memory_space<vmem>>, %arg2: memref<2x8xf32, #tpu.memory_space<vmem>>, %arg3: memref<4x32x32xbf16, #tpu.memory_space<vmem>>, %arg4: memref<4x1x32xf32, #tpu.memory_space<vmem>>, %arg5: memref<4x1x32xf32, #tpu.memory_space<vmem>>, %arg6: memref<4x1x32xf32, #tpu.memory_space<vmem>>, %arg7: memref<32x4xf32, #tpu.memory_space<vmem>>, %arg8: memref<4x32xf32, #tpu.memory_space<vmem>>, %arg9: memref<32x16xbf16, #tpu.memory_space<vmem>>, %arg10: memref<1x16xf32, #tpu.memory_space<vmem>>, %arg11: memref<16x4xf32, #tpu.memory_space<vmem>>, %arg12: memref<1x1xf32, #tpu.memory_space<vmem>>, %arg13: memref<16x32xbf16, #tpu.memory_space<vmem>>, %arg14: memref<1x32xf32, #tpu.memory_space<vmem>>, %arg15: memref<32x32xbf16, #tpu.memory_space<vmem>>, %arg16: memref<1x32xf32, #tpu.memory_space<vmem>>, %arg17: memref<2x32xf32, #tpu.memory_space<vmem>>, %arg18: memref<2x1x32xf32, #tpu.memory_space<vmem>>) attributes {dimension_semantics = [], scalar_prefetch = 0 : i64, scratch_operands = 0 : i64, tpu.core_type = #tpu.core_type<tc>} {
    %c0 = arith.constant 0 : index
    %c0_0 = arith.constant 0 : index
    %c0_1 = arith.constant 0 : index
    %0 = vector.load %arg1[%c0, %c0_0, %c0_1] : memref<2x8x32xf32, #tpu.memory_space<vmem>>, vector<2x8x32xf32>
    %c0_2 = arith.constant 0 : index
    %c0_3 = arith.constant 0 : index
    %1 = vector.load %arg2[%c0_2, %c0_3] : memref<2x8xf32, #tpu.memory_space<vmem>>, vector<2x8xf32>
    %2 = vector.shape_cast %0 : vector<2x8x32xf32> to vector<16x32xf32>
    %3 = arith.truncf %2 : vector<16x32xf32> to vector<16x32xbf16>
    %cst = arith.constant dense<0.000000e+00> : vector<2xf32>
    %4 = vector.multi_reduction <add>, %1, %cst [1] : vector<2x8xf32> to vector<2xf32>
    %5 = vector.shape_cast %4 : vector<2xf32> to vector<2x1xf32>
    %cst_4 = arith.constant 1.000000e+00 : f32
    %6 = vector.broadcast %cst_4 : f32 to vector<2x1xf32>
    %7 = arith.maximumf %5, %6 : vector<2x1xf32>
    %8 = tpu.reciprocal %7 {approx = true} : vector<2x1xf32> -> vector<2x1xf32>
    %c0_5 = arith.constant 0 : index
    %c0_6 = arith.constant 0 : index
    %9 = vector.load %arg0[%c0_5, %c0_6] : memref<2x32xf32, #tpu.memory_space<vmem>>, vector<2x32xf32>
    %10 = arith.truncf %9 : vector<2x32xf32> to vector<2x32xbf16>
    %c0_7 = arith.constant 0 : index
    %c0_8 = arith.constant 0 : index
    %11 = vector.load %arg7[%c0_7, %c0_8] : memref<32x4xf32, #tpu.memory_space<vmem>>, vector<32x4xf32>
    %c0_9 = arith.constant 0 : index
    %c0_10 = arith.constant 0 : index
    %12 = vector.load %arg8[%c0_9, %c0_10] : memref<4x32xf32, #tpu.memory_space<vmem>>, vector<4x32xf32>
    %c0_11 = arith.constant 0 : index
    %c0_12 = arith.constant 0 : index
    %c0_13 = arith.constant 0 : index
    %13 = vector.load %arg3[%c0_11, %c0_12, %c0_13] : memref<4x32x32xbf16, #tpu.memory_space<vmem>>, vector<1x32x32xbf16>
    %14 = vector.shape_cast %13 : vector<1x32x32xbf16> to vector<32x32xbf16>
    %cst_14 = arith.constant dense<0.000000e+00> : vector<2x32xf32>
    %15 = tpu.matmul %10, %14, %cst_14 {dimension_numbers = #tpu.dot_dimension_numbers<[1], [0], [0], [1], [0, 0, 1, 1], [], []>} : vector<2x32xbf16>, vector<32x32xbf16>, vector<2x32xf32> -> vector<2x32xf32>
    %c0_15 = arith.constant 0 : index
    %c0_16 = arith.constant 0 : index
    %c0_17 = arith.constant 0 : index
    %16 = vector.load %arg4[%c0_15, %c0_16, %c0_17] : memref<4x1x32xf32, #tpu.memory_space<vmem>>, vector<1x1x32xf32>
    %17 = vector.shape_cast %16 : vector<1x1x32xf32> to vector<1x32xf32>
    %18 = vector.broadcast %17 : vector<1x32xf32> to vector<2x32xf32>
    %19 = arith.addf %15, %18 : vector<2x32xf32>
    %cst_18 = arith.constant 0.000000e+00 : f32
    %20 = vector.broadcast %cst_18 : f32 to vector<2x32xf32>
    %21 = arith.maximumf %19, %20 : vector<2x32xf32>
    %cst_19 = arith.constant 1.300000e+00 : f32
    %22 = vector.broadcast %cst_19 : f32 to vector<2x32xf32>
    %23 = arith.divf %19, %22 : vector<2x32xf32>
    %24 = math.exp %23 : vector<2x32xf32>
    %cst_20 = arith.constant 1.000000e+00 : f32
    %25 = vector.broadcast %cst_20 : f32 to vector<2x32xf32>
    %26 = arith.subf %24, %25 : vector<2x32xf32>
    %cst_21 = arith.constant 1.300000e+00 : f32
    %27 = vector.broadcast %cst_21 : f32 to vector<2x32xf32>
    %28 = arith.mulf %27, %26 : vector<2x32xf32>
    %cst_22 = arith.constant 0.000000e+00 : f32
    %29 = vector.broadcast %cst_22 : f32 to vector<2x32xf32>
    %30 = arith.minimumf %29, %28 : vector<2x32xf32>
    %31 = arith.addf %21, %30 : vector<2x32xf32>
    %cst_23 = arith.constant dense<0.000000e+00> : vector<2x4xf32>
    %32 = tpu.matmul %31, %11, %cst_23 {dimension_numbers = #tpu.dot_dimension_numbers<[1], [0], [0], [1], [0, 0, 1, 1], [], []>} : vector<2x32xf32>, vector<32x4xf32>, vector<2x4xf32> -> vector<2x4xf32>
    %33 = arith.mulf %31, %31 : vector<2x32xf32>
    %cst_24 = arith.constant dense<0.000000e+00> : vector<2x4xf32>
    %34 = tpu.matmul %33, %11, %cst_24 {dimension_numbers = #tpu.dot_dimension_numbers<[1], [0], [0], [1], [0, 0, 1, 1], [], []>} : vector<2x32xf32>, vector<32x4xf32>, vector<2x4xf32> -> vector<2x4xf32>
    %cst_25 = arith.constant 1.250000e-01 : f32
    %35 = vector.broadcast %cst_25 : f32 to vector<2x4xf32>
    %36 = arith.mulf %32, %35 : vector<2x4xf32>
    %cst_26 = arith.constant 1.250000e-01 : f32
    %37 = vector.broadcast %cst_26 : f32 to vector<2x4xf32>
    %38 = arith.mulf %34, %37 : vector<2x4xf32>
    %39 = arith.mulf %36, %36 : vector<2x4xf32>
    %40 = arith.subf %38, %39 : vector<2x4xf32>
    %cst_27 = arith.constant 9.99999974E-6 : f32
    %41 = vector.broadcast %cst_27 : f32 to vector<2x4xf32>
    %42 = arith.addf %40, %41 : vector<2x4xf32>
    %43 = math.rsqrt %42 : vector<2x4xf32>
    %cst_28 = arith.constant dense<0.000000e+00> : vector<2x32xf32>
    %44 = tpu.matmul %36, %12, %cst_28 {dimension_numbers = #tpu.dot_dimension_numbers<[1], [0], [0], [1], [0, 0, 1, 1], [], []>} : vector<2x4xf32>, vector<4x32xf32>, vector<2x32xf32> -> vector<2x32xf32>
    %cst_29 = arith.constant dense<0.000000e+00> : vector<2x32xf32>
    %45 = tpu.matmul %43, %12, %cst_29 {dimension_numbers = #tpu.dot_dimension_numbers<[1], [0], [0], [1], [0, 0, 1, 1], [], []>} : vector<2x4xf32>, vector<4x32xf32>, vector<2x32xf32> -> vector<2x32xf32>
    %46 = arith.subf %31, %44 : vector<2x32xf32>
    %47 = arith.mulf %46, %45 : vector<2x32xf32>
    %c0_30 = arith.constant 0 : index
    %c0_31 = arith.constant 0 : index
    %c0_32 = arith.constant 0 : index
    %48 = vector.load %arg5[%c0_30, %c0_31, %c0_32] : memref<4x1x32xf32, #tpu.memory_space<vmem>>, vector<1x1x32xf32>
    %49 = vector.shape_cast %48 : vector<1x1x32xf32> to vector<1x32xf32>
    %50 = vector.broadcast %49 : vector<1x32xf32> to vector<2x32xf32>
    %51 = arith.mulf %47, %50 : vector<2x32xf32>
    %c0_33 = arith.constant 0 : index
    %c0_34 = arith.constant 0 : index
    %c0_35 = arith.constant 0 : index
    %52 = vector.load %arg6[%c0_33, %c0_34, %c0_35] : memref<4x1x32xf32, #tpu.memory_space<vmem>>, vector<1x1x32xf32>
    %53 = vector.shape_cast %52 : vector<1x1x32xf32> to vector<1x32xf32>
    %54 = vector.broadcast %53 : vector<1x32xf32> to vector<2x32xf32>
    %55 = arith.addf %51, %54 : vector<2x32xf32>
    %c1 = arith.constant 1 : index
    %c0_36 = arith.constant 0 : index
    %c0_37 = arith.constant 0 : index
    %56 = vector.load %arg3[%c1, %c0_36, %c0_37] : memref<4x32x32xbf16, #tpu.memory_space<vmem>>, vector<1x32x32xbf16>
    %57 = vector.shape_cast %56 : vector<1x32x32xbf16> to vector<32x32xbf16>
    %cst_38 = arith.constant dense<0.000000e+00> : vector<16x32xf32>
    %58 = tpu.matmul %3, %57, %cst_38 {dimension_numbers = #tpu.dot_dimension_numbers<[1], [0], [0], [1], [0, 0, 1, 1], [], []>} : vector<16x32xbf16>, vector<32x32xbf16>, vector<16x32xf32> -> vector<16x32xf32>
    %c1_39 = arith.constant 1 : index
    %c0_40 = arith.constant 0 : index
    %c0_41 = arith.constant 0 : index
    %59 = vector.load %arg4[%c1_39, %c0_40, %c0_41] : memref<4x1x32xf32, #tpu.memory_space<vmem>>, vector<1x1x32xf32>
    %60 = vector.shape_cast %59 : vector<1x1x32xf32> to vector<1x32xf32>
    %61 = vector.broadcast %60 : vector<1x32xf32> to vector<16x32xf32>
    %62 = arith.addf %58, %61 : vector<16x32xf32>
    %cst_42 = arith.constant 0.000000e+00 : f32
    %63 = vector.broadcast %cst_42 : f32 to vector<16x32xf32>
    %64 = arith.maximumf %62, %63 : vector<16x32xf32>
    %cst_43 = arith.constant 1.300000e+00 : f32
    %65 = vector.broadcast %cst_43 : f32 to vector<16x32xf32>
    %66 = arith.divf %62, %65 : vector<16x32xf32>
    %67 = math.exp %66 : vector<16x32xf32>
    %cst_44 = arith.constant 1.000000e+00 : f32
    %68 = vector.broadcast %cst_44 : f32 to vector<16x32xf32>
    %69 = arith.subf %67, %68 : vector<16x32xf32>
    %cst_45 = arith.constant 1.300000e+00 : f32
    %70 = vector.broadcast %cst_45 : f32 to vector<16x32xf32>
    %71 = arith.mulf %70, %69 : vector<16x32xf32>
    %cst_46 = arith.constant 0.000000e+00 : f32
    %72 = vector.broadcast %cst_46 : f32 to vector<16x32xf32>
    %73 = arith.minimumf %72, %71 : vector<16x32xf32>
    %74 = arith.addf %64, %73 : vector<16x32xf32>
    %cst_47 = arith.constant dense<0.000000e+00> : vector<16x4xf32>
    %75 = tpu.matmul %74, %11, %cst_47 {dimension_numbers = #tpu.dot_dimension_numbers<[1], [0], [0], [1], [0, 0, 1, 1], [], []>} : vector<16x32xf32>, vector<32x4xf32>, vector<16x4xf32> -> vector<16x4xf32>
    %76 = arith.mulf %74, %74 : vector<16x32xf32>
    %cst_48 = arith.constant dense<0.000000e+00> : vector<16x4xf32>
    %77 = tpu.matmul %76, %11, %cst_48 {dimension_numbers = #tpu.dot_dimension_numbers<[1], [0], [0], [1], [0, 0, 1, 1], [], []>} : vector<16x32xf32>, vector<32x4xf32>, vector<16x4xf32> -> vector<16x4xf32>
    %cst_49 = arith.constant 1.250000e-01 : f32
    %78 = vector.broadcast %cst_49 : f32 to vector<16x4xf32>
    %79 = arith.mulf %75, %78 : vector<16x4xf32>
    %cst_50 = arith.constant 1.250000e-01 : f32
    %80 = vector.broadcast %cst_50 : f32 to vector<16x4xf32>
    %81 = arith.mulf %77, %80 : vector<16x4xf32>
    %82 = arith.mulf %79, %79 : vector<16x4xf32>
    %83 = arith.subf %81, %82 : vector<16x4xf32>
    %cst_51 = arith.constant 9.99999974E-6 : f32
    %84 = vector.broadcast %cst_51 : f32 to vector<16x4xf32>
    %85 = arith.addf %83, %84 : vector<16x4xf32>
    %86 = math.rsqrt %85 : vector<16x4xf32>
    %cst_52 = arith.constant dense<0.000000e+00> : vector<16x32xf32>
    %87 = tpu.matmul %79, %12, %cst_52 {dimension_numbers = #tpu.dot_dimension_numbers<[1], [0], [0], [1], [0, 0, 1, 1], [], []>} : vector<16x4xf32>, vector<4x32xf32>, vector<16x32xf32> -> vector<16x32xf32>
    %cst_53 = arith.constant dense<0.000000e+00> : vector<16x32xf32>
    %88 = tpu.matmul %86, %12, %cst_53 {dimension_numbers = #tpu.dot_dimension_numbers<[1], [0], [0], [1], [0, 0, 1, 1], [], []>} : vector<16x4xf32>, vector<4x32xf32>, vector<16x32xf32> -> vector<16x32xf32>
    %89 = arith.subf %74, %87 : vector<16x32xf32>
    %90 = arith.mulf %89, %88 : vector<16x32xf32>
    %c1_54 = arith.constant 1 : index
    %c0_55 = arith.constant 0 : index
    %c0_56 = arith.constant 0 : index
    %91 = vector.load %arg5[%c1_54, %c0_55, %c0_56] : memref<4x1x32xf32, #tpu.memory_space<vmem>>, vector<1x1x32xf32>
    %92 = vector.shape_cast %91 : vector<1x1x32xf32> to vector<1x32xf32>
    %93 = vector.broadcast %92 : vector<1x32xf32> to vector<16x32xf32>
    %94 = arith.mulf %90, %93 : vector<16x32xf32>
    %c1_57 = arith.constant 1 : index
    %c0_58 = arith.constant 0 : index
    %c0_59 = arith.constant 0 : index
    %95 = vector.load %arg6[%c1_57, %c0_58, %c0_59] : memref<4x1x32xf32, #tpu.memory_space<vmem>>, vector<1x1x32xf32>
    %96 = vector.shape_cast %95 : vector<1x1x32xf32> to vector<1x32xf32>
    %97 = vector.broadcast %96 : vector<1x32xf32> to vector<16x32xf32>
    %98 = arith.addf %94, %97 : vector<16x32xf32>
    %c2 = arith.constant 2 : index
    %c0_60 = arith.constant 0 : index
    %c0_61 = arith.constant 0 : index
    %99 = vector.load %arg3[%c2, %c0_60, %c0_61] : memref<4x32x32xbf16, #tpu.memory_space<vmem>>, vector<1x32x32xbf16>
    %100 = vector.shape_cast %99 : vector<1x32x32xbf16> to vector<32x32xbf16>
    %cst_62 = arith.constant dense<0.000000e+00> : vector<2x32xf32>
    %101 = tpu.matmul %10, %100, %cst_62 {dimension_numbers = #tpu.dot_dimension_numbers<[1], [0], [0], [1], [0, 0, 1, 1], [], []>} : vector<2x32xbf16>, vector<32x32xbf16>, vector<2x32xf32> -> vector<2x32xf32>
    %c2_63 = arith.constant 2 : index
    %c0_64 = arith.constant 0 : index
    %c0_65 = arith.constant 0 : index
    %102 = vector.load %arg4[%c2_63, %c0_64, %c0_65] : memref<4x1x32xf32, #tpu.memory_space<vmem>>, vector<1x1x32xf32>
    %103 = vector.shape_cast %102 : vector<1x1x32xf32> to vector<1x32xf32>
    %104 = vector.broadcast %103 : vector<1x32xf32> to vector<2x32xf32>
    %105 = arith.addf %101, %104 : vector<2x32xf32>
    %cst_66 = arith.constant 0.000000e+00 : f32
    %106 = vector.broadcast %cst_66 : f32 to vector<2x32xf32>
    %107 = arith.maximumf %105, %106 : vector<2x32xf32>
    %cst_67 = arith.constant 1.300000e+00 : f32
    %108 = vector.broadcast %cst_67 : f32 to vector<2x32xf32>
    %109 = arith.divf %105, %108 : vector<2x32xf32>
    %110 = math.exp %109 : vector<2x32xf32>
    %cst_68 = arith.constant 1.000000e+00 : f32
    %111 = vector.broadcast %cst_68 : f32 to vector<2x32xf32>
    %112 = arith.subf %110, %111 : vector<2x32xf32>
    %cst_69 = arith.constant 1.300000e+00 : f32
    %113 = vector.broadcast %cst_69 : f32 to vector<2x32xf32>
    %114 = arith.mulf %113, %112 : vector<2x32xf32>
    %cst_70 = arith.constant 0.000000e+00 : f32
    %115 = vector.broadcast %cst_70 : f32 to vector<2x32xf32>
    %116 = arith.minimumf %115, %114 : vector<2x32xf32>
    %117 = arith.addf %107, %116 : vector<2x32xf32>
    %cst_71 = arith.constant dense<0.000000e+00> : vector<2x4xf32>
    %118 = tpu.matmul %117, %11, %cst_71 {dimension_numbers = #tpu.dot_dimension_numbers<[1], [0], [0], [1], [0, 0, 1, 1], [], []>} : vector<2x32xf32>, vector<32x4xf32>, vector<2x4xf32> -> vector<2x4xf32>
    %119 = arith.mulf %117, %117 : vector<2x32xf32>
    %cst_72 = arith.constant dense<0.000000e+00> : vector<2x4xf32>
    %120 = tpu.matmul %119, %11, %cst_72 {dimension_numbers = #tpu.dot_dimension_numbers<[1], [0], [0], [1], [0, 0, 1, 1], [], []>} : vector<2x32xf32>, vector<32x4xf32>, vector<2x4xf32> -> vector<2x4xf32>
    %cst_73 = arith.constant 1.250000e-01 : f32
    %121 = vector.broadcast %cst_73 : f32 to vector<2x4xf32>
    %122 = arith.mulf %118, %121 : vector<2x4xf32>
    %cst_74 = arith.constant 1.250000e-01 : f32
    %123 = vector.broadcast %cst_74 : f32 to vector<2x4xf32>
    %124 = arith.mulf %120, %123 : vector<2x4xf32>
    %125 = arith.mulf %122, %122 : vector<2x4xf32>
    %126 = arith.subf %124, %125 : vector<2x4xf32>
    %cst_75 = arith.constant 9.99999974E-6 : f32
    %127 = vector.broadcast %cst_75 : f32 to vector<2x4xf32>
    %128 = arith.addf %126, %127 : vector<2x4xf32>
    %129 = math.rsqrt %128 : vector<2x4xf32>
    %cst_76 = arith.constant dense<0.000000e+00> : vector<2x32xf32>
    %130 = tpu.matmul %122, %12, %cst_76 {dimension_numbers = #tpu.dot_dimension_numbers<[1], [0], [0], [1], [0, 0, 1, 1], [], []>} : vector<2x4xf32>, vector<4x32xf32>, vector<2x32xf32> -> vector<2x32xf32>
    %cst_77 = arith.constant dense<0.000000e+00> : vector<2x32xf32>
    %131 = tpu.matmul %129, %12, %cst_77 {dimension_numbers = #tpu.dot_dimension_numbers<[1], [0], [0], [1], [0, 0, 1, 1], [], []>} : vector<2x4xf32>, vector<4x32xf32>, vector<2x32xf32> -> vector<2x32xf32>
    %132 = arith.subf %117, %130 : vector<2x32xf32>
    %133 = arith.mulf %132, %131 : vector<2x32xf32>
    %c2_78 = arith.constant 2 : index
    %c0_79 = arith.constant 0 : index
    %c0_80 = arith.constant 0 : index
    %134 = vector.load %arg5[%c2_78, %c0_79, %c0_80] : memref<4x1x32xf32, #tpu.memory_space<vmem>>, vector<1x1x32xf32>
    %135 = vector.shape_cast %134 : vector<1x1x32xf32> to vector<1x32xf32>
    %136 = vector.broadcast %135 : vector<1x32xf32> to vector<2x32xf32>
    %137 = arith.mulf %133, %136 : vector<2x32xf32>
    %c2_81 = arith.constant 2 : index
    %c0_82 = arith.constant 0 : index
    %c0_83 = arith.constant 0 : index
    %138 = vector.load %arg6[%c2_81, %c0_82, %c0_83] : memref<4x1x32xf32, #tpu.memory_space<vmem>>, vector<1x1x32xf32>
    %139 = vector.shape_cast %138 : vector<1x1x32xf32> to vector<1x32xf32>
    %140 = vector.broadcast %139 : vector<1x32xf32> to vector<2x32xf32>
    %141 = arith.addf %137, %140 : vector<2x32xf32>
    %c3 = arith.constant 3 : index
    %c0_84 = arith.constant 0 : index
    %c0_85 = arith.constant 0 : index
    %142 = vector.load %arg3[%c3, %c0_84, %c0_85] : memref<4x32x32xbf16, #tpu.memory_space<vmem>>, vector<1x32x32xbf16>
    %143 = vector.shape_cast %142 : vector<1x32x32xbf16> to vector<32x32xbf16>
    %cst_86 = arith.constant dense<0.000000e+00> : vector<16x32xf32>
    %144 = tpu.matmul %3, %143, %cst_86 {dimension_numbers = #tpu.dot_dimension_numbers<[1], [0], [0], [1], [0, 0, 1, 1], [], []>} : vector<16x32xbf16>, vector<32x32xbf16>, vector<16x32xf32> -> vector<16x32xf32>
    %c3_87 = arith.constant 3 : index
    %c0_88 = arith.constant 0 : index
    %c0_89 = arith.constant 0 : index
    %145 = vector.load %arg4[%c3_87, %c0_88, %c0_89] : memref<4x1x32xf32, #tpu.memory_space<vmem>>, vector<1x1x32xf32>
    %146 = vector.shape_cast %145 : vector<1x1x32xf32> to vector<1x32xf32>
    %147 = vector.broadcast %146 : vector<1x32xf32> to vector<16x32xf32>
    %148 = arith.addf %144, %147 : vector<16x32xf32>
    %cst_90 = arith.constant 0.000000e+00 : f32
    %149 = vector.broadcast %cst_90 : f32 to vector<16x32xf32>
    %150 = arith.maximumf %148, %149 : vector<16x32xf32>
    %cst_91 = arith.constant 1.300000e+00 : f32
    %151 = vector.broadcast %cst_91 : f32 to vector<16x32xf32>
    %152 = arith.divf %148, %151 : vector<16x32xf32>
    %153 = math.exp %152 : vector<16x32xf32>
    %cst_92 = arith.constant 1.000000e+00 : f32
    %154 = vector.broadcast %cst_92 : f32 to vector<16x32xf32>
    %155 = arith.subf %153, %154 : vector<16x32xf32>
    %cst_93 = arith.constant 1.300000e+00 : f32
    %156 = vector.broadcast %cst_93 : f32 to vector<16x32xf32>
    %157 = arith.mulf %156, %155 : vector<16x32xf32>
    %cst_94 = arith.constant 0.000000e+00 : f32
    %158 = vector.broadcast %cst_94 : f32 to vector<16x32xf32>
    %159 = arith.minimumf %158, %157 : vector<16x32xf32>
    %160 = arith.addf %150, %159 : vector<16x32xf32>
    %cst_95 = arith.constant dense<0.000000e+00> : vector<16x4xf32>
    %161 = tpu.matmul %160, %11, %cst_95 {dimension_numbers = #tpu.dot_dimension_numbers<[1], [0], [0], [1], [0, 0, 1, 1], [], []>} : vector<16x32xf32>, vector<32x4xf32>, vector<16x4xf32> -> vector<16x4xf32>
    %162 = arith.mulf %160, %160 : vector<16x32xf32>
    %cst_96 = arith.constant dense<0.000000e+00> : vector<16x4xf32>
    %163 = tpu.matmul %162, %11, %cst_96 {dimension_numbers = #tpu.dot_dimension_numbers<[1], [0], [0], [1], [0, 0, 1, 1], [], []>} : vector<16x32xf32>, vector<32x4xf32>, vector<16x4xf32> -> vector<16x4xf32>
    %cst_97 = arith.constant 1.250000e-01 : f32
    %164 = vector.broadcast %cst_97 : f32 to vector<16x4xf32>
    %165 = arith.mulf %161, %164 : vector<16x4xf32>
    %cst_98 = arith.constant 1.250000e-01 : f32
    %166 = vector.broadcast %cst_98 : f32 to vector<16x4xf32>
    %167 = arith.mulf %163, %166 : vector<16x4xf32>
    %168 = arith.mulf %165, %165 : vector<16x4xf32>
    %169 = arith.subf %167, %168 : vector<16x4xf32>
    %cst_99 = arith.constant 9.99999974E-6 : f32
    %170 = vector.broadcast %cst_99 : f32 to vector<16x4xf32>
    %171 = arith.addf %169, %170 : vector<16x4xf32>
    %172 = math.rsqrt %171 : vector<16x4xf32>
    %cst_100 = arith.constant dense<0.000000e+00> : vector<16x32xf32>
    %173 = tpu.matmul %165, %12, %cst_100 {dimension_numbers = #tpu.dot_dimension_numbers<[1], [0], [0], [1], [0, 0, 1, 1], [], []>} : vector<16x4xf32>, vector<4x32xf32>, vector<16x32xf32> -> vector<16x32xf32>
    %cst_101 = arith.constant dense<0.000000e+00> : vector<16x32xf32>
    %174 = tpu.matmul %172, %12, %cst_101 {dimension_numbers = #tpu.dot_dimension_numbers<[1], [0], [0], [1], [0, 0, 1, 1], [], []>} : vector<16x4xf32>, vector<4x32xf32>, vector<16x32xf32> -> vector<16x32xf32>
    %175 = arith.subf %160, %173 : vector<16x32xf32>
    %176 = arith.mulf %175, %174 : vector<16x32xf32>
    %c3_102 = arith.constant 3 : index
    %c0_103 = arith.constant 0 : index
    %c0_104 = arith.constant 0 : index
    %177 = vector.load %arg5[%c3_102, %c0_103, %c0_104] : memref<4x1x32xf32, #tpu.memory_space<vmem>>, vector<1x1x32xf32>
    %178 = vector.shape_cast %177 : vector<1x1x32xf32> to vector<1x32xf32>
    %179 = vector.broadcast %178 : vector<1x32xf32> to vector<16x32xf32>
    %180 = arith.mulf %176, %179 : vector<16x32xf32>
    %c3_105 = arith.constant 3 : index
    %c0_106 = arith.constant 0 : index
    %c0_107 = arith.constant 0 : index
    %181 = vector.load %arg6[%c3_105, %c0_106, %c0_107] : memref<4x1x32xf32, #tpu.memory_space<vmem>>, vector<1x1x32xf32>
    %182 = vector.shape_cast %181 : vector<1x1x32xf32> to vector<1x32xf32>
    %183 = vector.broadcast %182 : vector<1x32xf32> to vector<16x32xf32>
    %184 = arith.addf %180, %183 : vector<16x32xf32>
    %185 = vector.shape_cast %55 : vector<2x32xf32> to vector<2x1x32xf32>
    %186 = vector.shape_cast %98 : vector<16x32xf32> to vector<2x8x32xf32>
    %187 = vector.broadcast %185 : vector<2x1x32xf32> to vector<2x8x32xf32>
    %188 = arith.mulf %187, %186 : vector<2x8x32xf32>
    %189 = vector.shape_cast %188 : vector<2x8x32xf32> to vector<16x32xf32>
    %190 = arith.truncf %189 : vector<16x32xf32> to vector<16x32xbf16>
    %c0_108 = arith.constant 0 : index
    %c0_109 = arith.constant 0 : index
    %191 = vector.load %arg9[%c0_108, %c0_109] : memref<32x16xbf16, #tpu.memory_space<vmem>>, vector<32x16xbf16>
    %cst_110 = arith.constant dense<0.000000e+00> : vector<16x16xf32>
    %192 = tpu.matmul %190, %191, %cst_110 {dimension_numbers = #tpu.dot_dimension_numbers<[1], [0], [0], [1], [0, 0, 1, 1], [], []>} : vector<16x32xbf16>, vector<32x16xbf16>, vector<16x16xf32> -> vector<16x16xf32>
    %c0_111 = arith.constant 0 : index
    %c0_112 = arith.constant 0 : index
    %193 = vector.load %arg10[%c0_111, %c0_112] : memref<1x16xf32, #tpu.memory_space<vmem>>, vector<1x16xf32>
    %194 = vector.broadcast %193 : vector<1x16xf32> to vector<16x16xf32>
    %195 = arith.addf %192, %194 : vector<16x16xf32>
    %cst_113 = arith.constant 0.000000e+00 : f32
    %196 = vector.broadcast %cst_113 : f32 to vector<16x16xf32>
    %197 = arith.maximumf %195, %196 : vector<16x16xf32>
    %198 = vector.shape_cast %197 : vector<16x16xf32> to vector<2x8x16xf32>
    %199 = vector.shape_cast %1 : vector<2x8xf32> to vector<2x8x1xf32>
    %200 = vector.broadcast %199 : vector<2x8x1xf32> to vector<2x8x16xf32>
    %201 = arith.mulf %198, %200 : vector<2x8x16xf32>
    %cst_114 = arith.constant dense<0.000000e+00> : vector<2x16xf32>
    %202 = vector.multi_reduction <add>, %201, %cst_114 [1] : vector<2x8x16xf32> to vector<2x16xf32>
    %203 = vector.broadcast %8 : vector<2x1xf32> to vector<2x16xf32>
    %204 = arith.mulf %202, %203 : vector<2x16xf32>
    %c0_115 = arith.constant 0 : index
    %c0_116 = arith.constant 0 : index
    %205 = vector.load %arg11[%c0_115, %c0_116] : memref<16x4xf32, #tpu.memory_space<vmem>>, vector<16x4xf32>
    %cst_117 = arith.constant dense<0.000000e+00> : vector<16x4xf32>
    %206 = tpu.matmul %197, %205, %cst_117 {dimension_numbers = #tpu.dot_dimension_numbers<[1], [0], [0], [1], [0, 0, 1, 1], [], []>} : vector<16x16xf32>, vector<16x4xf32>, vector<16x4xf32> -> vector<16x4xf32>
    %c0_118 = arith.constant 0 : index
    %c0_119 = arith.constant 0 : index
    %207 = vector.load %arg12[%c0_118, %c0_119] : memref<1x1xf32, #tpu.memory_space<vmem>>, vector<1x1xf32>
    %208 = vector.broadcast %207 : vector<1x1xf32> to vector<16x4xf32>
    %209 = arith.addf %206, %208 : vector<16x4xf32>
    %210 = vector.shape_cast %209 : vector<16x4xf32> to vector<2x8x4xf32>
    %211 = vector.shape_cast %1 : vector<2x8xf32> to vector<2x8x1xf32>
    %cst_120 = arith.constant 0.000000e+00 : f32
    %212 = vector.broadcast %cst_120 : f32 to vector<2x8x1xf32>
    %213 = arith.cmpf oeq, %211, %212 : vector<2x8x1xf32>
    %cst_121 = arith.constant -1.000000e+09 : f32
    %214 = vector.shape_cast %213 : vector<2x8x1xi1> to vector<2x8x1xi1>
    %215 = vector.broadcast %214 : vector<2x8x1xi1> to vector<2x8x4xi1>
    %216 = vector.broadcast %cst_121 : f32 to vector<2x8x4xf32>
    %217 = arith.select %215, %216, %210 : vector<2x8x4xi1>, vector<2x8x4xf32>
    %cst_122 = arith.constant dense<0xFF800000> : vector<2x4xf32>
    %218 = vector.multi_reduction <maximumf>, %217, %cst_122 [1] : vector<2x8x4xf32> to vector<2x4xf32>
    %219 = vector.shape_cast %218 : vector<2x4xf32> to vector<2x1x4xf32>
    %220 = vector.broadcast %219 : vector<2x1x4xf32> to vector<2x8x4xf32>
    %221 = arith.subf %217, %220 : vector<2x8x4xf32>
    %222 = math.exp %221 : vector<2x8x4xf32>
    %cst_123 = arith.constant dense<0.000000e+00> : vector<2x4xf32>
    %223 = vector.multi_reduction <add>, %222, %cst_123 [1] : vector<2x8x4xf32> to vector<2x4xf32>
    %224 = vector.shape_cast %223 : vector<2x4xf32> to vector<2x1x4xf32>
    %225 = tpu.reciprocal %224 {approx = true} : vector<2x1x4xf32> -> vector<2x1x4xf32>
    %226 = vector.broadcast %225 : vector<2x1x4xf32> to vector<2x8x4xf32>
    %227 = arith.mulf %222, %226 : vector<2x8x4xf32>
    %228 = arith.truncf %204 : vector<2x16xf32> to vector<2x16xbf16>
    %c0_124 = arith.constant 0 : index
    %c0_125 = arith.constant 0 : index
    %229 = vector.load %arg13[%c0_124, %c0_125] : memref<16x32xbf16, #tpu.memory_space<vmem>>, vector<16x32xbf16>
    %cst_126 = arith.constant dense<0.000000e+00> : vector<2x32xf32>
    %230 = tpu.matmul %228, %229, %cst_126 {dimension_numbers = #tpu.dot_dimension_numbers<[1], [0], [0], [1], [0, 0, 1, 1], [], []>} : vector<2x16xbf16>, vector<16x32xbf16>, vector<2x32xf32> -> vector<2x32xf32>
    %c0_127 = arith.constant 0 : index
    %c0_128 = arith.constant 0 : index
    %231 = vector.load %arg14[%c0_127, %c0_128] : memref<1x32xf32, #tpu.memory_space<vmem>>, vector<1x32xf32>
    %232 = vector.broadcast %231 : vector<1x32xf32> to vector<2x32xf32>
    %233 = arith.addf %230, %232 : vector<2x32xf32>
    %234 = arith.negf %233 : vector<2x32xf32>
    %235 = math.exp %234 : vector<2x32xf32>
    %cst_129 = arith.constant 1.000000e+00 : f32
    %236 = vector.broadcast %cst_129 : f32 to vector<2x32xf32>
    %237 = arith.addf %236, %235 : vector<2x32xf32>
    %238 = arith.divf %236, %237 : vector<2x32xf32>
    %239 = vector.shape_cast %227 : vector<2x8x4xf32> to vector<16x4xf32>
    %cst_130 = arith.constant dense<0.000000e+00> : vector<16x32xf32>
    %240 = tpu.matmul %239, %12, %cst_130 {dimension_numbers = #tpu.dot_dimension_numbers<[1], [0], [0], [1], [0, 0, 1, 1], [], []>} : vector<16x4xf32>, vector<4x32xf32>, vector<16x32xf32> -> vector<16x32xf32>
    %241 = vector.shape_cast %240 : vector<16x32xf32> to vector<2x8x32xf32>
    %242 = vector.shape_cast %184 : vector<16x32xf32> to vector<2x8x32xf32>
    %243 = arith.mulf %241, %242 : vector<2x8x32xf32>
    %cst_131 = arith.constant dense<0.000000e+00> : vector<2x32xf32>
    %244 = vector.multi_reduction <add>, %243, %cst_131 [1] : vector<2x8x32xf32> to vector<2x32xf32>
    %245 = arith.mulf %141, %244 : vector<2x32xf32>
    %246 = arith.mulf %245, %238 : vector<2x32xf32>
    %c0_132 = arith.constant 0 : index
    %c0_133 = arith.constant 0 : index
    %247 = vector.load %arg17[%c0_132, %c0_133] : memref<2x32xf32, #tpu.memory_space<vmem>>, vector<2x32xf32>
    tpu.vector_store %arg17[%c0_132, %c0_133], %246 {strides = array<i32>} : memref<2x32xf32, #tpu.memory_space<vmem>>, vector<2x32xf32>,
    %248 = arith.truncf %246 : vector<2x32xf32> to vector<2x32xbf16>
    %c0_134 = arith.constant 0 : index
    %c0_135 = arith.constant 0 : index
    %249 = vector.load %arg15[%c0_134, %c0_135] : memref<32x32xbf16, #tpu.memory_space<vmem>>, vector<32x32xbf16>
    %cst_136 = arith.constant dense<0.000000e+00> : vector<2x32xf32>
    %250 = tpu.matmul %248, %249, %cst_136 {dimension_numbers = #tpu.dot_dimension_numbers<[1], [0], [0], [1], [0, 0, 1, 1], [], []>} : vector<2x32xbf16>, vector<32x32xbf16>, vector<2x32xf32> -> vector<2x32xf32>
    %c0_137 = arith.constant 0 : index
    %c0_138 = arith.constant 0 : index
    %251 = vector.load %arg16[%c0_137, %c0_138] : memref<1x32xf32, #tpu.memory_space<vmem>>, vector<1x32xf32>
    %252 = vector.broadcast %251 : vector<1x32xf32> to vector<2x32xf32>
    %253 = arith.addf %250, %252 : vector<2x32xf32>
    %254 = vector.shape_cast %253 : vector<2x32xf32> to vector<2x1x32xf32>
    %c0_139 = arith.constant 0 : index
    %c0_140 = arith.constant 0 : index
    %c0_141 = arith.constant 0 : index
    %255 = vector.load %arg18[%c0_139, %c0_140, %c0_141] : memref<2x1x32xf32, #tpu.memory_space<vmem>>, vector<2x1x32xf32>
    tpu.vector_store %arg18[%c0_139, %c0_140, %c0_141], %254 {strides = array<i32>} : memref<2x1x32xf32, #tpu.memory_space<vmem>>, vector<2x1x32xf32>,
    return
  }
}

module attributes {stable_mosaic.version = 11 : i64} {
  func.func @proj_norm_kernel(%arg0: memref<2x96xf32, #tpu.memory_space<vmem>>, %arg1: memref<96x32xbf16, #tpu.memory_space<vmem>>, %arg2: memref<1x32xf32, #tpu.memory_space<vmem>>, %arg3: memref<1x32xf32, #tpu.memory_space<vmem>>, %arg4: memref<1x32xf32, #tpu.memory_space<vmem>>, %arg5: memref<2x32xf32, #tpu.memory_space<vmem>>) attributes {dimension_semantics = [], scalar_prefetch = 0 : i64, scratch_operands = 0 : i64, tpu.core_type = #tpu.core_type<tc>} {
    %c0 = arith.constant 0 : index
    %c0_0 = arith.constant 0 : index
    %0 = vector.load %arg0[%c0, %c0_0] : memref<2x96xf32, #tpu.memory_space<vmem>>, vector<2x96xf32>
    %1 = arith.truncf %0 : vector<2x96xf32> to vector<2x96xbf16>
    %c0_1 = arith.constant 0 : index
    %c0_2 = arith.constant 0 : index
    %2 = vector.load %arg1[%c0_1, %c0_2] : memref<96x32xbf16, #tpu.memory_space<vmem>>, vector<96x32xbf16>
    %cst = arith.constant dense<0.000000e+00> : vector<2x32xf32>
    %3 = tpu.matmul %1, %2, %cst {dimension_numbers = #tpu.dot_dimension_numbers<[1], [0], [0], [1], [0, 0, 1, 1], [], []>} : vector<2x96xbf16>, vector<96x32xbf16>, vector<2x32xf32> -> vector<2x32xf32>
    %c0_3 = arith.constant 0 : index
    %c0_4 = arith.constant 0 : index
    %4 = vector.load %arg2[%c0_3, %c0_4] : memref<1x32xf32, #tpu.memory_space<vmem>>, vector<1x32xf32>
    %5 = vector.broadcast %4 : vector<1x32xf32> to vector<2x32xf32>
    %6 = arith.addf %3, %5 : vector<2x32xf32>
    %c0_5 = arith.constant 0 : index
    %c0_6 = arith.constant 0 : index
    %7 = vector.load %arg3[%c0_5, %c0_6] : memref<1x32xf32, #tpu.memory_space<vmem>>, vector<1x32xf32>
    %c0_7 = arith.constant 0 : index
    %c0_8 = arith.constant 0 : index
    %8 = vector.load %arg4[%c0_7, %c0_8] : memref<1x32xf32, #tpu.memory_space<vmem>>, vector<1x32xf32>
    %cst_9 = arith.constant dense<0.000000e+00> : vector<2xf32>
    %9 = vector.multi_reduction <add>, %6, %cst_9 [1] : vector<2x32xf32> to vector<2xf32>
    %10 = vector.shape_cast %9 : vector<2xf32> to vector<2x1xf32>
    %cst_10 = arith.constant 3.200000e+01 : f32
    %11 = vector.broadcast %cst_10 : f32 to vector<2x1xf32>
    %12 = arith.divf %10, %11 : vector<2x1xf32>
    %13 = vector.broadcast %12 : vector<2x1xf32> to vector<2x32xf32>
    %14 = arith.subf %6, %13 : vector<2x32xf32>
    %15 = arith.mulf %14, %14 : vector<2x32xf32>
    %cst_11 = arith.constant dense<0.000000e+00> : vector<2xf32>
    %16 = vector.multi_reduction <add>, %15, %cst_11 [1] : vector<2x32xf32> to vector<2xf32>
    %17 = vector.shape_cast %16 : vector<2xf32> to vector<2x1xf32>
    %cst_12 = arith.constant 3.200000e+01 : f32
    %18 = vector.broadcast %cst_12 : f32 to vector<2x1xf32>
    %19 = arith.divf %17, %18 : vector<2x1xf32>
    %20 = vector.broadcast %12 : vector<2x1xf32> to vector<2x32xf32>
    %21 = arith.subf %6, %20 : vector<2x32xf32>
    %cst_13 = arith.constant 9.99999974E-6 : f32
    %22 = vector.broadcast %cst_13 : f32 to vector<2x1xf32>
    %23 = arith.addf %19, %22 : vector<2x1xf32>
    %24 = math.rsqrt %23 : vector<2x1xf32>
    %25 = vector.broadcast %24 : vector<2x1xf32> to vector<2x32xf32>
    %26 = arith.mulf %21, %25 : vector<2x32xf32>
    %27 = vector.broadcast %7 : vector<1x32xf32> to vector<2x32xf32>
    %28 = arith.mulf %26, %27 : vector<2x32xf32>
    %29 = vector.broadcast %8 : vector<1x32xf32> to vector<2x32xf32>
    %30 = arith.addf %28, %29 : vector<2x32xf32>
    %c0_14 = arith.constant 0 : index
    %c0_15 = arith.constant 0 : index
    %31 = vector.load %arg5[%c0_14, %c0_15] : memref<2x32xf32, #tpu.memory_space<vmem>>, vector<2x32xf32>
    tpu.vector_store %arg5[%c0_14, %c0_15], %30 {strides = array<i32>} : memref<2x32xf32, #tpu.memory_space<vmem>>, vector<2x32xf32>,
    return
  }
}

</mosaic_0001>

<llo_original>
// kernel: encoder_forward.9
$region0: #{encoder_forward.9}
  #allocation0 [shape = 'u32[]', space=smem, size = 0x4, offset = 0x4, fixed_abs, tag = 'smem constant byte address 0x4 - core index']
  #allocation1 [shape = 'u32[144,128]{1,0:T(1,128)}', space=vmem, size = 0x12000, scoped, tag = 'internal scratch']
  %s0 = inlined_call_operand.vmem [shape: f32[2,96], index: 0, kind: input, shape index: {}]
  %s1 = inlined_call_operand.vmem [shape: bf16[96,32], index: 1, kind: input, shape index: {}]
  %s2 = inlined_call_operand.vmem [shape: f32[1,32], index: 2, kind: input, shape index: {}]
  %s3 = inlined_call_operand.vmem [shape: f32[1,32], index: 3, kind: input, shape index: {}]
  %s4 = inlined_call_operand.vmem [shape: f32[1,32], index: 4, kind: input, shape index: {}]
  %s5 = inlined_call_operand.hbm [shape: f32[2,32], index: 5, kind: output, shape index: {}]
  %s6 = sld [smem:[#allocation0]]
  $region30: #{encoder_forward.9} parent=0
    _
  %s8 = ssub.s32 1, %s6
  %s9 = scalar_select 0, %s8, %s6
  $region1: #{encoder_forward.9} parent=0
    #allocation2 [shape = 'u8[1024]{0}', space=vmem, size = 0x400, scoped, tag = 'output window, operand 0, single buffered']
    #allocation3 [shape = 's32[1]{0}', space=sflag, size = 0x4, scoped, tag = 'scoped memory for encoder_forward.9']
    %10 = vsyncpa [#allocation3], 0
    // Predicated region
    $region2: #{encoder_forward.9} parent=1 // pred_check
      _
    $region3: #{encoder_forward.9} parent=1 // pred_check_branch
      %12 = sbr.rel (0) target = $region5
    $region4: #{encoder_forward.9} parent=1 // pred_region
      _
    $region5: #{encoder_forward.9} parent=1 // pred_fallthru
      _
    // Predicated region
    $region6: #{encoder_forward.9} parent=1 // pred_check
      _
    $region7: #{encoder_forward.9} parent=1 // pred_check_branch
      %14 = sbr.rel (0) target = $region9
    $region8: #{encoder_forward.9} parent=1 // pred_region
      _
    $region9: #{encoder_forward.9} parent=1 // pred_fallthru
      _
    // Predicated region
    $region10: #{encoder_forward.9} parent=1 // pred_check
      _
    $region11: #{encoder_forward.9} parent=1 // pred_check_branch
      %16 = sbr.rel (0) target = $region13
    $region12: #{encoder_forward.9} parent=1 // pred_region
      _
    $region13: #{encoder_forward.9} parent=1 // pred_fallthru
      _
    // Predicated region
    $region14: #{encoder_forward.9} parent=1 // pred_check
      _
    $region15: #{encoder_forward.9} parent=1 // pred_check_branch
      %18 = sbr.rel (0) target = $region17
    $region16: #{encoder_forward.9} parent=1 // pred_region
      _
    $region17: #{encoder_forward.9} parent=1 // pred_fallthru
      _
    // Predicated region
    $region18: #{encoder_forward.9} parent=1 // pred_check
      _
    $region19: #{encoder_forward.9} parent=1 // pred_check_branch
      %20 = sbr.rel (0) target = $region21
    $region20: #{encoder_forward.9} parent=1 // pred_region
      _
    $region21: #{encoder_forward.9} parent=1 // pred_fallthru
      _
    %v22 = vld [vmem:[%s0] sm:$0x3]
    %v23 = vpack.c.bf16 %v22, %v22
    %v24 = vld [vmem:[%s1] sm:$0xf]
    %v25 = vld [vmem:[%s1 + $0x4] sm:$0xf]
    %v26 = vld [vmem:[%s1 + $0x8] sm:$0xf]
    %v27 = vld [vmem:[%s1 + $0xc] sm:$0xf]
    %v28 = vld [vmem:[%s1 + $0x10] sm:$0xf]
    %v29 = vld [vmem:[%s1 + $0x14] sm:$0xf]
    %v30 = vld [vmem:[%s1 + $0x18] sm:$0xf]
    %v31 = vld [vmem:[%s1 + $0x1c] sm:$0xf]
    %v32 = vld [vmem:[%s1 + $0x20] sm:$0xf]
    %v33 = vld [vmem:[%s1 + $0x24] sm:$0xf]
    %v34 = vld [vmem:[%s1 + $0x28] sm:$0xf]
    %v35 = vld [vmem:[%s1 + $0x2c] sm:$0xf]
    %v36 = vld [vmem:[%s2] sm:$0x1]
    %v38 = vlaneseq
    %v39 = vshrl.u32 %v38, 7
    %v40 = vsub.s32 0, %v39
    %v41 = vrot.slane %v36, %v40
    %v55 = vunpack.c.l.b16 %v24
    %v56 = vunpack.c.l.b16 %v25
    %v57 = vunpack.c.l.b16 %v26
    %v58 = vunpack.c.l.b16 %v27
    %v59 = vunpack.c.l.b16 %v28
    %v60 = vunpack.c.l.b16 %v29
    %v61 = vunpack.c.l.b16 %v30
    %v62 = vunpack.c.l.b16 %v31
    %v63 = vunpack.c.l.b16 %v32
    %v64 = vunpack.c.l.b16 %v33
    %v65 = vunpack.c.l.b16 %v34
    %v66 = vunpack.c.l.b16 %v35
    %v67 = vpack.c.b16 %v56, %v55
    %v68 = vpack.c.b16 %v58, %v57
    %v69 = vpack.c.b16 %v60, %v59
    %v70 = vpack.c.b16 %v62, %v61
    %v71 = vpack.c.b16 %v64, %v63
    %v72 = vpack.c.b16 %v66, %v65
    %vm79 = vcmask 785408
    %v81 = vsel %vm79, %v23, 0
    %83 = vmatprep.subr.bf16.mxu0 0
    %84 = vmatpush1.bf16.msra.mxu0 0
    %85 = vmatprep.subr.bf16.mxu0 0
    %86 = vmatpush1.bf16.msra.mxu0 0
    %87 = vmatprep.subr.bf16.mxu0 0
    %88 = vmatpush1.bf16.msra.mxu0 %v72
    %89 = vmatprep.subr.bf16.mxu0 0
    %90 = vmatpush1.bf16.msra.mxu0 %v71
    %91 = vmatprep.subr.bf16.mxu0 0
    %92 = vmatpush1.bf16.msra.mxu0 %v70
    %93 = vmatprep.subr.bf16.mxu0 0
    %94 = vmatpush1.bf16.msra.mxu0 %v69
    %95 = vmatprep.subr.bf16.mxu0 0
    %96 = vmatpush1.bf16.msra.mxu0 %v68
    %97 = vmatprep.subr.bf16.mxu0 0
    %98 = vmatpush1.bf16.msra.mxu0 %v67
    %99 = vmatprep.subr.bf16.mxu0 0
    %100 = vmatpush2.bf16.msra.mxu0 0
    %101 = vmatprep.subr.bf16.mxu0 0
    %102 = vmatpush2.bf16.msra.mxu0 0
    %103 = vmatprep.subr.bf16.mxu0 0
    %104 = vmatpush2.bf16.msra.mxu0 0
    %105 = vmatprep.subr.bf16.mxu0 0
    %106 = vmatpush2.bf16.msra.mxu0 0
    %107 = vmatprep.subr.bf16.mxu0 0
    %108 = vmatpush2.bf16.msra.mxu0 0
    %109 = vmatprep.subr.bf16.mxu0 0
    %110 = vmatpush2.bf16.msra.mxu0 0
    %111 = vmatprep.subr.bf16.mxu0 0
    %112 = vmatpush2.bf16.msra.mxu0 0
    %113 = vmatprep.subr.bf16.mxu0 0
    %114 = vmatpush2.bf16.msra.mxu0 0
    %115 = vmatprep.mubr.bf16.mxu0 0
    %116 = vmatmul.mubr.bf16.gmra.mxu0 %v81
    %v117 = vpop.f32.mrf.mxu0
    %v118 = vadd.f32 %v41, %v117
    %v119 = vpop.f32.mrf.mxu0
    %v120 = vpop.f32.mrf.mxu0
    %v121 = vpop.f32.mrf.mxu0
    %122 = vdwg.mxu0
    %v123 = vld [vmem:[%s3] sm:$0x1]
    %v124 = vld [vmem:[%s4] sm:$0x1]
    %vm125 = vcmask 254976
    %v126 = vsel %vm125, %v118, 0.0
    %127 = vadd.xlane.f32.xlu0 %v126
    %v128 = vpop.xlane.xlu0 %127
    %v129 = vrcp.pop 32.0
    %v130 = vmul.f32 %v128, %v129
    %v131 = vsub.f32 %v118, %v130
    %v132 = vmul.f32 %v131, %v131
    %v133 = vsel %vm125, %v132, 0.0
    %134 = vadd.xlane.f32.xlu0 %v133
    %v135 = vpop.xlane.xlu0 %134
    %v136 = vmul.f32 %v135, %v129
    %v137 = vadd.f32 %v136, 1e-05
    %v138 = vrsqrt.pop %v137
    %v139 = vmul.f32 %v131, %v138
    %v141 = vlaneseq
    %v142 = vshrl.u32 %v141, 7
    %v143 = vsub.s32 0, %v142
    %v144 = vrot.slane %v123, %v143
    %v146 = vmul.f32 %v139, %v144
    %v148 = vlaneseq
    %v149 = vshrl.u32 %v148, 7
    %v150 = vsub.s32 0, %v149
    %v151 = vrot.slane %v124, %v150
    %v153 = vadd.f32 %v146, %v151
    %154 = vst.msk [vmem:[#allocation2] sm:$0x3] %vm125, %v153
    // Predicated region
    $region22: #{encoder_forward.9} parent=1 // pred_check
      _
    $region23: #{encoder_forward.9} parent=1 // pred_check_branch
      %156 = sbr.rel (0) target = $region25
    $region24: #{encoder_forward.9} parent=1 // pred_region
      %s158 = ssub.s32 32, 32
      %159 = vsyncadd [#allocation3], %s158
      %s161 = sshll.u32 [#allocation2], 4
      %s162 = int_to_ptr.vmem [resolvable:$true] %s161
      %164 = dma.vmem_to_hbm [thread:$0]  %s162, 32, %s5, [#allocation3]
    $region25: #{encoder_forward.9} parent=1 // pred_fallthru
      _
    // Predicated region
    $region26: #{encoder_forward.9} parent=1 // pred_check
      _
    $region27: #{encoder_forward.9} parent=1 // pred_check_branch
      %166 = sbr.rel (0) target = $region29
    $region28: #{encoder_forward.9} parent=1 // pred_region
      %167 = dma.done [#allocation3], 32
    $region29: #{encoder_forward.9} parent=1 // pred_fallthru
      _
    %168 = vsyncpa [#allocation3], 1

// kernel: encoder_forward.6
$region0: #{encoder_forward.6}
  #allocation0 [shape = 'u32[]', space=smem, size = 0x4, offset = 0x4, fixed_abs, tag = 'smem constant byte address 0x4 - core index']
  #allocation1 [shape = 'u32[144,128]{1,0:T(1,128)}', space=vmem, size = 0x12000, scoped, tag = 'internal scratch']
  %s0 = inlined_call_operand.vmem [shape: f32[2,8,32], index: 0, kind: input, shape index: {}, may-alias: {0,11}]
  %s1 = inlined_call_operand.vmem [shape: f32[2,1,32], index: 1, kind: input, shape index: {}]
  %s2 = inlined_call_operand.vmem [shape: bf16[32,32], index: 2, kind: input, shape index: {}]
  %s3 = inlined_call_operand.vmem [shape: f32[1,32], index: 3, kind: input, shape index: {}]
  %s4 = inlined_call_operand.vmem [shape: f32[1,32], index: 4, kind: input, shape index: {}]
  %s5 = inlined_call_operand.vmem [shape: bf16[32,128], index: 5, kind: input, shape index: {}]
  %s6 = inlined_call_operand.vmem [shape: f32[1,128], index: 6, kind: input, shape index: {}]
  %s7 = inlined_call_operand.vmem [shape: bf16[128,32], index: 7, kind: input, shape index: {}]
  %s8 = inlined_call_operand.vmem [shape: f32[1,32], index: 8, kind: input, shape index: {}]
  %s9 = inlined_call_operand.vmem [shape: f32[1,32], index: 9, kind: input, shape index: {}]
  %s10 = inlined_call_operand.vmem [shape: f32[1,32], index: 10, kind: input, shape index: {}]
  %s11 = inlined_call_operand.vmem [shape: f32[2,8,32], index: 11, kind: output, shape index: {}, may-alias: {0,11}]
  %s12 = sld [smem:[#allocation0]]
  $region77: #{encoder_forward.6} parent=0
    _
  %s14 = ssub.s32 1, %s12
  %s15 = scalar_select 0, %s14, %s12
  loop: start=0, step=1, limit=4
  $region2: #{encoder_forward.6} parent=0 // loop_pre_header
    _
  $region3: #{encoder_forward.6} parent=0 // loop_header
    %s17 = sphi 0, %s21
    %p18 = scmp.ge.s32.totalorder %s17, 4
    %s24 = sphi 0, %s36
    %s25 = sphi 0, %s32
    %s26 = sphi 0, %s24
    %s27 = sphi 0, %s25
    %s28 = sphi 0, %s26
    %s29 = sphi 0, %s27
    %s41 = sphi 0, %s43
    %s44 = sphi 0, %s41
    %s45 = sphi 0, %s44
    %s61 = sphi 0, %s45
    %s67 = sphi 0, %s69
    %s70 = sphi 0, %s67
    %s71 = sphi 0, %s70
    %s87 = sphi 0, %s71
    %s91 = sphi 0, %s91
    %s93 = sphi 0, %s91
    %s94 = sphi 0, %s93
    %s108 = sphi 0, %s94
    %s112 = sphi 0, %s112
    %s114 = sphi 0, %s112
    %s115 = sphi 0, %s114
    %s129 = sphi 0, %s115
    %s133 = sphi 0, %s133
    %s135 = sphi 0, %s133
    %s136 = sphi 0, %s135
    %s150 = sphi 0, %s136
    %s154 = sphi 0, %s154
    %s156 = sphi 0, %s154
    %s157 = sphi 0, %s156
    %s171 = sphi 0, %s157
    %s175 = sphi 0, %s175
    %s177 = sphi 0, %s175
    %s178 = sphi 0, %s177
    %s192 = sphi 0, %s178
    %s196 = sphi 0, %s196
    %s198 = sphi 0, %s196
    %s199 = sphi 0, %s198
    %s213 = sphi 0, %s199
    %s217 = sphi 0, %s217
    %s219 = sphi 0, %s217
    %s220 = sphi 0, %s219
    %s234 = sphi 0, %s220
    %s238 = sphi 0, %s238
    %s240 = sphi 0, %s238
    %s241 = sphi 0, %s240
    %s255 = sphi 0, %s241
    %s259 = sphi 0, %s259
    %s261 = sphi 0, %s259
    %s262 = sphi 0, %s261
    %s276 = sphi 0, %s262
    %s284 = sphi 0, %s286
    %s287 = sphi 0, %s284
    %s288 = sphi 0, %s287
    %s304 = sphi 0, %s288
  $region4: #{encoder_forward.6} parent=0 // loop_header_branch
    %20 = sbr.rel (%p18) target = $region8
  $region5: #{encoder_forward.6} parent=0 // loop_body
    %s22 = ssub.s32 %s17, 1
    %s23 = ssub.s32 %s17, 2
    %s30 = sadd.s32 1, %s25
    %p31 = scmp.ge.s32.totalorder %s30, 1
    %s32 = scalar_select %p31, 0, %s30
    %s33 = sadd.s32 1, %s24
    %s34 = scalar_select %p31, %s33, %s24
    %p35 = scmp.ge.s32.totalorder %s34, 2
    %s36 = scalar_select %p35, 0, %s34
    %s37 = ssub.s32 %s24, %s36
    %s38 = ssub.s32 %s25, %s32
    %s39 = sor.u32 %s37, %s38
    %p40 = scmp.eq.s32.totalorder %s39, 0
    %s42 = sadd.s32 %s41, 1
    %s43 = scalar_select %p40, %s41, %s42
    %p46 = pneg %p40
    %p47 = scmp.eq.s32.totalorder %s17, 1
    %p48 = por %p46, %p47
    %p49 = scmp.ne.s32.totalorder %s41, %s44
    %p50 = scmp.eq.s32.totalorder %s17, 0
    %p51 = por %p49, %p50
    %p52 = scmp.ne.s32.totalorder %s41, %s44
    %p53 = scmp.eq.s32.totalorder %s22, 1
    %p54 = por %p52, %p53
    %p55 = scmp.ne.s32.totalorder %s44, %s45
    %p56 = scmp.eq.s32.totalorder %s22, 0
    %p57 = por %p55, %p56
    %p58 = scmp.ne.s32.totalorder %s44, %s45
    %p59 = scmp.eq.s32.totalorder %s23, 1
    %p60 = por %p58, %p59
    %p62 = scmp.ne.s32.totalorder %s45, %s61
    %p63 = scmp.eq.s32.totalorder %s23, 0
    %p64 = por %p62, %p63
    %s65 = ssub.s32 %s24, %s36
    %p66 = scmp.eq.s32.totalorder %s65, 0
    %s68 = sadd.s32 %s67, 1
    %s69 = scalar_select %p66, %s67, %s68
    %p72 = pneg %p66
    %p73 = scmp.eq.s32.totalorder %s17, 1
    %p74 = por %p72, %p73
    %p75 = scmp.ne.s32.totalorder %s67, %s70
    %p76 = scmp.eq.s32.totalorder %s17, 0
    %p77 = por %p75, %p76
    %p78 = scmp.ne.s32.totalorder %s67, %s70
    %p79 = scmp.eq.s32.totalorder %s22, 1
    %p80 = por %p78, %p79
    %p81 = scmp.ne.s32.totalorder %s70, %s71
    %p82 = scmp.eq.s32.totalorder %s22, 0
    %p83 = por %p81, %p82
    %p84 = scmp.ne.s32.totalorder %s70, %s71
    %p85 = scmp.eq.s32.totalorder %s23, 1
    %p86 = por %p84, %p85
    %p88 = scmp.ne.s32.totalorder %s71, %s87
    %p89 = scmp.eq.s32.totalorder %s23, 0
    %p90 = por %p88, %p89
    %s92 = sadd.s32 %s91, 1
    %p95 = scmp.eq.s32.totalorder %s17, 1
    %p96 = scmp.ne.s32.totalorder %s91, %s93
    %p97 = scmp.eq.s32.totalorder %s17, 0
    %p98 = por %p96, %p97
    %p99 = scmp.ne.s32.totalorder %s91, %s93
    %p100 = scmp.eq.s32.totalorder %s22, 1
    %p101 = por %p99, %p100
    %p102 = scmp.ne.s32.totalorder %s93, %s94
    %p103 = scmp.eq.s32.totalorder %s22, 0
    %p104 = por %p102, %p103
    %p105 = scmp.ne.s32.totalorder %s93, %s94
    %p106 = scmp.eq.s32.totalorder %s23, 1
    %p107 = por %p105, %p106
    %p109 = scmp.ne.s32.totalorder %s94, %s108
    %p110 = scmp.eq.s32.totalorder %s23, 0
    %p111 = por %p109, %p110
    %s113 = sadd.s32 %s112, 1
    %p116 = scmp.eq.s32.totalorder %s17, 1
    %p117 = scmp.ne.s32.totalorder %s112, %s114
    %p118 = scmp.eq.s32.totalorder %s17, 0
    %p119 = por %p117, %p118
    %p120 = scmp.ne.s32.totalorder %s112, %s114
    %p121 = scmp.eq.s32.totalorder %s22, 1
    %p122 = por %p120, %p121
    %p123 = scmp.ne.s32.totalorder %s114, %s115
    %p124 = scmp.eq.s32.totalorder %s22, 0
    %p125 = por %p123, %p124
    %p126 = scmp.ne.s32.totalorder %s114, %s115
    %p127 = scmp.eq.s32.totalorder %s23, 1
    %p128 = por %p126, %p127
    %p130 = scmp.ne.s32.totalorder %s115, %s129
    %p131 = scmp.eq.s32.totalorder %s23, 0
    %p132 = por %p130, %p131
    %s134 = sadd.s32 %s133, 1
    %p137 = scmp.eq.s32.totalorder %s17, 1
    %p138 = scmp.ne.s32.totalorder %s133, %s135
    %p139 = scmp.eq.s32.totalorder %s17, 0
    %p140 = por %p138, %p139
    %p141 = scmp.ne.s32.totalorder %s133, %s135
    %p142 = scmp.eq.s32.totalorder %s22, 1
    %p143 = por %p141, %p142
    %p144 = scmp.ne.s32.totalorder %s135, %s136
    %p145 = scmp.eq.s32.totalorder %s22, 0
    %p146 = por %p144, %p145
    %p147 = scmp.ne.s32.totalorder %s135, %s136
    %p148 = scmp.eq.s32.totalorder %s23, 1
    %p149 = por %p147, %p148
    %p151 = scmp.ne.s32.totalorder %s136, %s150
    %p152 = scmp.eq.s32.totalorder %s23, 0
    %p153 = por %p151, %p152
    %s155 = sadd.s32 %s154, 1
    %p158 = scmp.eq.s32.totalorder %s17, 1
    %p159 = scmp.ne.s32.totalorder %s154, %s156
    %p160 = scmp.eq.s32.totalorder %s17, 0
    %p161 = por %p159, %p160
    %p162 = scmp.ne.s32.totalorder %s154, %s156
    %p163 = scmp.eq.s32.totalorder %s22, 1
    %p164 = por %p162, %p163
    %p165 = scmp.ne.s32.totalorder %s156, %s157
    %p166 = scmp.eq.s32.totalorder %s22, 0
    %p167 = por %p165, %p166
    %p168 = scmp.ne.s32.totalorder %s156, %s157
    %p169 = scmp.eq.s32.totalorder %s23, 1
    %p170 = por %p168, %p169
    %p172 = scmp.ne.s32.totalorder %s157, %s171
    %p173 = scmp.eq.s32.totalorder %s23, 0
    %p174 = por %p172, %p173
    %s176 = sadd.s32 %s175, 1
    %p179 = scmp.eq.s32.totalorder %s17, 1
    %p180 = scmp.ne.s32.totalorder %s175, %s177
    %p181 = scmp.eq.s32.totalorder %s17, 0
    %p182 = por %p180, %p181
    %p183 = scmp.ne.s32.totalorder %s175, %s177
    %p184 = scmp.eq.s32.totalorder %s22, 1
    %p185 = por %p183, %p184
    %p186 = scmp.ne.s32.totalorder %s177, %s178
    %p187 = scmp.eq.s32.totalorder %s22, 0
    %p188 = por %p186, %p187
    %p189 = scmp.ne.s32.totalorder %s177, %s178
    %p190 = scmp.eq.s32.totalorder %s23, 1
    %p191 = por %p189, %p190
    %p193 = scmp.ne.s32.totalorder %s178, %s192
    %p194 = scmp.eq.s32.totalorder %s23, 0
    %p195 = por %p193, %p194
    %s197 = sadd.s32 %s196, 1
    %p200 = scmp.eq.s32.totalorder %s17, 1
    %p201 = scmp.ne.s32.totalorder %s196, %s198
    %p202 = scmp.eq.s32.totalorder %s17, 0
    %p203 = por %p201, %p202
    %p204 = scmp.ne.s32.totalorder %s196, %s198
    %p205 = scmp.eq.s32.totalorder %s22, 1
    %p206 = por %p204, %p205
    %p207 = scmp.ne.s32.totalorder %s198, %s199
    %p208 = scmp.eq.s32.totalorder %s22, 0
    %p209 = por %p207, %p208
    %p210 = scmp.ne.s32.totalorder %s198, %s199
    %p211 = scmp.eq.s32.totalorder %s23, 1
    %p212 = por %p210, %p211
    %p214 = scmp.ne.s32.totalorder %s199, %s213
    %p215 = scmp.eq.s32.totalorder %s23, 0
    %p216 = por %p214, %p215
    %s218 = sadd.s32 %s217, 1
    %p221 = scmp.eq.s32.totalorder %s17, 1
    %p222 = scmp.ne.s32.totalorder %s217, %s219
    %p223 = scmp.eq.s32.totalorder %s17, 0
    %p224 = por %p222, %p223
    %p225 = scmp.ne.s32.totalorder %s217, %s219
    %p226 = scmp.eq.s32.totalorder %s22, 1
    %p227 = por %p225, %p226
    %p228 = scmp.ne.s32.totalorder %s219, %s220
    %p229 = scmp.eq.s32.totalorder %s22, 0
    %p230 = por %p228, %p229
    %p231 = scmp.ne.s32.totalorder %s219, %s220
    %p232 = scmp.eq.s32.totalorder %s23, 1
    %p233 = por %p231, %p232
    %p235 = scmp.ne.s32.totalorder %s220, %s234
    %p236 = scmp.eq.s32.totalorder %s23, 0
    %p237 = por %p235, %p236
    %s239 = sadd.s32 %s238, 1
    %p242 = scmp.eq.s32.totalorder %s17, 1
    %p243 = scmp.ne.s32.totalorder %s238, %s240
    %p244 = scmp.eq.s32.totalorder %s17, 0
    %p245 = por %p243, %p244
    %p246 = scmp.ne.s32.totalorder %s238, %s240
    %p247 = scmp.eq.s32.totalorder %s22, 1
    %p248 = por %p246, %p247
    %p249 = scmp.ne.s32.totalorder %s240, %s241
    %p250 = scmp.eq.s32.totalorder %s22, 0
    %p251 = por %p249, %p250
    %p252 = scmp.ne.s32.totalorder %s240, %s241
    %p253 = scmp.eq.s32.totalorder %s23, 1
    %p254 = por %p252, %p253
    %p256 = scmp.ne.s32.totalorder %s241, %s255
    %p257 = scmp.eq.s32.totalorder %s23, 0
    %p258 = por %p256, %p257
    %s260 = sadd.s32 %s259, 1
    %p263 = scmp.eq.s32.totalorder %s17, 1
    %p264 = scmp.ne.s32.totalorder %s259, %s261
    %p265 = scmp.eq.s32.totalorder %s17, 0
    %p266 = por %p264, %p265
    %p267 = scmp.ne.s32.totalorder %s259, %s261
    %p268 = scmp.eq.s32.totalorder %s22, 1
    %p269 = por %p267, %p268
    %p270 = scmp.ne.s32.totalorder %s261, %s262
    %p271 = scmp.eq.s32.totalorder %s22, 0
    %p272 = por %p270, %p271
    %p273 = scmp.ne.s32.totalorder %s261, %s262
    %p274 = scmp.eq.s32.totalorder %s23, 1
    %p275 = por %p273, %p274
    %p277 = scmp.ne.s32.totalorder %s262, %s276
    %p278 = scmp.eq.s32.totalorder %s23, 0
    %p279 = por %p277, %p278
    %s280 = ssub.s32 %s24, %s36
    %s281 = ssub.s32 %s25, %s32
    %s282 = sor.u32 %s280, %s281
    %p283 = scmp.eq.s32.totalorder %s282, 0
    %s285 = sadd.s32 %s284, 1
    %s286 = scalar_select %p283, %s284, %s285
    %p289 = pneg %p283
    %p290 = scmp.eq.s32.totalorder %s17, 1
    %p291 = por %p289, %p290
    %p292 = scmp.ne.s32.totalorder %s284, %s287
    %p293 = scmp.eq.s32.totalorder %s17, 0
    %p294 = por %p292, %p293
    %p295 = scmp.ne.s32.totalorder %s284, %s287
    %p296 = scmp.eq.s32.totalorder %s22, 1
    %p297 = por %p295, %p296
    %p298 = scmp.ne.s32.totalorder %s287, %s288
    %p299 = scmp.eq.s32.totalorder %s22, 0
    %p300 = por %p298, %p299
    %p301 = scmp.ne.s32.totalorder %s287, %s288
    %p302 = scmp.eq.s32.totalorder %s23, 1
    %p303 = por %p301, %p302
    %p305 = scmp.ne.s32.totalorder %s288, %s304
    %p306 = scmp.eq.s32.totalorder %s23, 0
    %p307 = por %p305, %p306
    %p308 = scmp.le.s32.totalorder 1, %s17
    %p309 = scmp.lt.s32.totalorder %s17, 3
    %p310 = pnand %p308, %p309
    %p311 = pneg %p310
    // Predicated region
    $region9: #{encoder_forward.6} parent=5 // pred_check
      _
    $region10: #{encoder_forward.6} parent=5 // pred_check_branch
      %313 = sbr.rel (%p310) target = $region12
    $region11: #{encoder_forward.6} parent=5 // pred_region
      %s314 = ssub.s32 %s17, 1
      // Predicated region
      $region13: #{encoder_forward.6} parent=11 // pred_check
        %p315 = pneg %p104
      $region14: #{encoder_forward.6} parent=11 // pred_check_branch
        %317 = sbr.rel (%p315) target = $region16
      $region15: #{encoder_forward.6} parent=11 // pred_region
        _
      $region16: #{encoder_forward.6} parent=11 // pred_fallthru
        _
      // Predicated region
      $region17: #{encoder_forward.6} parent=11 // pred_check
        %p318 = pneg %p125
      $region18: #{encoder_forward.6} parent=11 // pred_check_branch
        %320 = sbr.rel (%p318) target = $region20
      $region19: #{encoder_forward.6} parent=11 // pred_region
        _
      $region20: #{encoder_forward.6} parent=11 // pred_fallthru
        _
      // Predicated region
      $region21: #{encoder_forward.6} parent=11 // pred_check
        %p321 = pneg %p146
      $region22: #{encoder_forward.6} parent=11 // pred_check_branch
        %323 = sbr.rel (%p321) target = $region24
      $region23: #{encoder_forward.6} parent=11 // pred_region
        _
      $region24: #{encoder_forward.6} parent=11 // pred_fallthru
        _
      // Predicated region
      $region25: #{encoder_forward.6} parent=11 // pred_check
        %p324 = pneg %p167
      $region26: #{encoder_forward.6} parent=11 // pred_check_branch
        %326 = sbr.rel (%p324) target = $region28
      $region27: #{encoder_forward.6} parent=11 // pred_region
        _
      $region28: #{encoder_forward.6} parent=11 // pred_fallthru
        _
      // Predicated region
      $region29: #{encoder_forward.6} parent=11 // pred_check
        %p327 = pneg %p188
      $region30: #{encoder_forward.6} parent=11 // pred_check_branch
        %329 = sbr.rel (%p327) target = $region32
      $region31: #{encoder_forward.6} parent=11 // pred_region
        _
      $region32: #{encoder_forward.6} parent=11 // pred_fallthru
        _
      // Predicated region
      $region33: #{encoder_forward.6} parent=11 // pred_check
        %p330 = pneg %p209
      $region34: #{encoder_forward.6} parent=11 // pred_check_branch
        %332 = sbr.rel (%p330) target = $region36
      $region35: #{encoder_forward.6} parent=11 // pred_region
        _
      $region36: #{encoder_forward.6} parent=11 // pred_fallthru
        _
      // Predicated region
      $region37: #{encoder_forward.6} parent=11 // pred_check
        %p333 = pneg %p230
      $region38: #{encoder_forward.6} parent=11 // pred_check_branch
        %335 = sbr.rel (%p333) target = $region40
      $region39: #{encoder_forward.6} parent=11 // pred_region
        _
      $region40: #{encoder_forward.6} parent=11 // pred_fallthru
        _
      // Predicated region
      $region41: #{encoder_forward.6} parent=11 // pred_check
        %p336 = pneg %p251
      $region42: #{encoder_forward.6} parent=11 // pred_check_branch
        %338 = sbr.rel (%p336) target = $region44
      $region43: #{encoder_forward.6} parent=11 // pred_region
        _
      $region44: #{encoder_forward.6} parent=11 // pred_fallthru
        _
      // Predicated region
      $region45: #{encoder_forward.6} parent=11 // pred_check
        %p339 = pneg %p272
      $region46: #{encoder_forward.6} parent=11 // pred_check_branch
        %341 = sbr.rel (%p339) target = $region48
      $region47: #{encoder_forward.6} parent=11 // pred_region
        _
      $region48: #{encoder_forward.6} parent=11 // pred_fallthru
        _
    $region12: #{encoder_forward.6} parent=5 // pred_fallthru
      _
    %p342 = scmp.lt.s32.totalorder %s17, 2
    // Predicated region
    $region49: #{encoder_forward.6} parent=5 // pred_check
      %p343 = pneg %p342
    $region50: #{encoder_forward.6} parent=5 // pred_check_branch
      %345 = sbr.rel (%p343) target = $region52
    $region51: #{encoder_forward.6} parent=5 // pred_region
      // Predicated region
      $region53: #{encoder_forward.6} parent=51 // pred_check
        %p346 = pneg %p51
      $region54: #{encoder_forward.6} parent=51 // pred_check_branch
        %348 = sbr.rel (%p346) target = $region56
      $region55: #{encoder_forward.6} parent=51 // pred_region
        %p349 = scmp.lt.s32.totalorder %s24, 1
        %s350 = scalar_select %p349, %s24, 1
        %p351 = scmp.lt.s32.totalorder %s25, 0
        %s352 = scalar_select %p351, %s25, 0
        %s353 = sadd.s32 %s352, %s350
        %s354 = smul.addr %s353, 8
        %s355 = scalar_lea.vmem %s0, %s354
      $region56: #{encoder_forward.6} parent=51 // pred_fallthru
        _
      // Predicated region
      $region57: #{encoder_forward.6} parent=51 // pred_check
        %p356 = pneg %p77
      $region58: #{encoder_forward.6} parent=51 // pred_check_branch
        %358 = sbr.rel (%p356) target = $region60
      $region59: #{encoder_forward.6} parent=51 // pred_region
        %p359 = scmp.lt.s32.totalorder %s24, 1
        %s360 = scalar_select %p359, %s24, 1
        %s361 = scalar_lea.vmem %s1, %s360
      $region60: #{encoder_forward.6} parent=51 // pred_fallthru
        _
    $region52: #{encoder_forward.6} parent=5 // pred_fallthru
      _
    %p362 = scmp.le.s32.totalorder 1, %s17
    %p363 = scmp.lt.s32.totalorder %s17, 3
    %p364 = pnand %p362, %p363
    %p365 = pneg %p364
    // Predicated region
    $region61: #{encoder_forward.6} parent=5 // pred_check
      _
    $region62: #{encoder_forward.6} parent=5 // pred_check_branch
      %367 = sbr.rel (%p364) target = $region64
    $region63: #{encoder_forward.6} parent=5 // pred_region
      %s368 = ssub.s32 %s17, 1
      %p369 = scmp.lt.s32.totalorder %s26, 1
      %s370 = scalar_select %p369, %s26, 1
      %p371 = scmp.lt.s32.totalorder %s27, 0
      %s372 = scalar_select %p371, %s27, 0
      %s373 = sadd.s32 %s372, %s370
      %s374 = smul.addr %s373, 8
      %s375 = scalar_lea.vmem %s0, %s374
      %p376 = pneg %p57
      %p377 = pneg %p54
      %p378 = scmp.lt.s32.totalorder %s26, 1
      %s379 = scalar_select %p378, %s26, 1
      %s380 = scalar_lea.vmem %s1, %s379
      %p381 = pneg %p83
      %p382 = pneg %p80
      %p383 = pneg %p104
      %p384 = pneg %p101
      %p385 = pneg %p125
      %p386 = pneg %p122
      %p387 = pneg %p146
      %p388 = pneg %p143
      %p389 = pneg %p167
      %p390 = pneg %p164
      %p391 = pneg %p188
      %p392 = pneg %p185
      %p393 = pneg %p209
      %p394 = pneg %p206
      %p395 = pneg %p230
      %p396 = pneg %p227
      %p397 = pneg %p251
      %p398 = pneg %p248
      %p399 = pneg %p272
      %p400 = pneg %p269
      %p401 = pneg %p300
      %p402 = pneg %p297
      %p403 = scmp.lt.s32.totalorder %s26, 1
      %s404 = scalar_select %p403, %s26, 1
      %p405 = scmp.lt.s32.totalorder %s27, 0
      %s406 = scalar_select %p405, %s27, 0
      %s407 = sadd.s32 %s406, %s404
      %s408 = smul.addr %s407, 8
      %s409 = scalar_lea.vmem %s11, %s408
      %p410 = scmp.lt.s32.totalorder %s26, 1
      %s411 = scalar_select %p410, %s26, 1
      %p412 = scmp.lt.s32.totalorder %s27, 0
      %s413 = scalar_select %p412, %s27, 0
      %s414 = sadd.s32 %s413, %s411
      %s415 = smul.addr %s414, 8
      %s416 = scalar_lea.vmem %s0, %s415
      %p417 = scmp.lt.s32.totalorder %s26, 1
      %s418 = scalar_select %p417, %s26, 1
      %s419 = scalar_lea.vmem %s1, %s418
      %p420 = scmp.lt.s32.totalorder %s26, 1
      %s421 = scalar_select %p420, %s26, 1
      %p422 = scmp.lt.s32.totalorder %s27, 0
      %s423 = scalar_select %p422, %s27, 0
      %s424 = sadd.s32 %s423, %s421
      %s425 = smul.addr %s424, 8
      %s426 = scalar_lea.vmem %s11, %s425
      %v428 = vld [vmem:[%s416] sm:$0xff]
      %v429 = vld [vmem:[%s419] sm:$0x1]
      %v430 = vpack.c.bf16 %v428, %v428
      %v431 = vld [vmem:[%s2] sm:$0xf]
      %v432 = vld [vmem:[%s2 + $0x4] sm:$0xf]
      %v433 = vld [vmem:[%s2 + $0x8] sm:$0xf]
      %v434 = vld [vmem:[%s2 + $0xc] sm:$0xf]
      %v436 = vlaneseq
      %v437 = vshrl.u32 %v436, 7
      %v438 = vsub.s32 0, %v437
      %v439 = vrot.slane %v429, %v438
      %v445 = vunpack.c.l.b16 %v431
      %v446 = vunpack.c.l.b16 %v432
      %v447 = vunpack.c.l.b16 %v433
      %v448 = vunpack.c.l.b16 %v434
      %v449 = vpack.c.b16 %v446, %v445
      %v450 = vpack.c.b16 %v448, %v447
      %vm453 = vcmask 261120
      %v455 = vsel %vm453, %v430, 0
      %457 = vmatprep.subr.bf16.mxu0 0
      %458 = vmatpush1.bf16.msra.mxu0 0
      %459 = vmatprep.subr.bf16.mxu0 0
      %460 = vmatpush1.bf16.msra.mxu0 0
      %461 = vmatprep.subr.bf16.mxu0 0
      %462 = vmatpush1.bf16.msra.mxu0 0
      %463 = vmatprep.subr.bf16.mxu0 0
      %464 = vmatpush1.bf16.msra.mxu0 0
      %465 = vmatprep.subr.bf16.mxu0 0
      %466 = vmatpush1.bf16.msra.mxu0 0
      %467 = vmatprep.subr.bf16.mxu0 0
      %468 = vmatpush1.bf16.msra.mxu0 0
      %469 = vmatprep.subr.bf16.mxu0 0
      %470 = vmatpush1.bf16.msra.mxu0 %v450
      %471 = vmatprep.subr.bf16.mxu0 0
      %472 = vmatpush1.bf16.msra.mxu0 %v449
      %473 = vmatprep.subr.bf16.mxu0 0
      %474 = vmatpush2.bf16.msra.mxu0 0
      %475 = vmatprep.subr.bf16.mxu0 0
      %476 = vmatpush2.bf16.msra.mxu0 0
      %477 = vmatprep.subr.bf16.mxu0 0
      %478 = vmatpush2.bf16.msra.mxu0 0
      %479 = vmatprep.subr.bf16.mxu0 0
      %480 = vmatpush2.bf16.msra.mxu0 0
      %481 = vmatprep.subr.bf16.mxu0 0
      %482 = vmatpush2.bf16.msra.mxu0 0
      %483 = vmatprep.subr.bf16.mxu0 0
      %484 = vmatpush2.bf16.msra.mxu0 0
      %485 = vmatprep.subr.bf16.mxu0 0
      %486 = vmatpush2.bf16.msra.mxu0 0
      %487 = vmatprep.subr.bf16.mxu0 0
      %488 = vmatpush2.bf16.msra.mxu0 0
      %489 = vmatprep.mubr.bf16.mxu0 0
      %490 = vmatmul.mubr.bf16.gmra.mxu0 %v455
      %v491 = vpop.f32.mrf.mxu0
      %v492 = vadd.f32 %v439, %v491
      %v493 = vpop.f32.mrf.mxu0
      %v494 = vpop.f32.mrf.mxu0
      %v495 = vpop.f32.mrf.mxu0
      %496 = vdwg.mxu0
      %v497 = vmax.f32 %v492, 0.0
      %v498 = vrcp.pop 1.3
      %v499 = vmul.f32 %v492, %v498
      %v500 = vmul.f32 %v499, 1.442695
      %v501 = vpow.pop %v500
      %v502 = vsub.f32 %v501, 1.0
      %v503 = vmul.f32 %v502, 1.3
      %v504 = vmin.f32 %v503, 0.0
      %v505 = vadd.f32 %v497, %v504
      %v506 = vadd.f32 %v505, %v428
      %v507 = vld [vmem:[%s3] sm:$0x1]
      %v508 = vld [vmem:[%s4] sm:$0x1]
      %v509 = vsel %vm453, %v506, 0.0
      %510 = vadd.xlane.f32.xlu0 %v509
      %v511 = vpop.xlane.xlu0 %510
      %v512 = vrcp.pop 32.0
      %v513 = vmul.f32 %v511, %v512
      %v514 = vsub.f32 %v506, %v513
      %v515 = vmul.f32 %v514, %v514
      %v516 = vsel %vm453, %v515, 0.0
      %517 = vadd.xlane.f32.xlu0 %v516
      %v518 = vpop.xlane.xlu0 %517
      %v519 = vmul.f32 %v518, %v512
      %v520 = vadd.f32 %v519, 1e-05
      %v521 = vrsqrt.pop %v520
      %v522 = vmul.f32 %v514, %v521
      %v524 = vlaneseq
      %v525 = vshrl.u32 %v524, 7
      %v526 = vsub.s32 0, %v525
      %v527 = vrot.slane %v507, %v526
      %v529 = vmul.f32 %v522, %v527
      %v531 = vlaneseq
      %v532 = vshrl.u32 %v531, 7
      %v533 = vsub.s32 0, %v532
      %v534 = vrot.slane %v508, %v533
      %v536 = vadd.f32 %v529, %v534
      %v537 = vpack.c.bf16 %v536, %v536
      %v538 = vld [vmem:[%s5] sm:$0xf]
      %v539 = vld [vmem:[%s5 + $0x4] sm:$0xf]
      %v540 = vld [vmem:[%s5 + $0x8] sm:$0xf]
      %v541 = vld [vmem:[%s5 + $0xc] sm:$0xf]
      %v542 = vld [vmem:[%s6] sm:$0x1]
      %v544 = vlaneseq
      %v545 = vshrl.u32 %v544, 7
      %v546 = vsub.s32 0, %v545
      %v547 = vrot.slane %v542, %v546
      %v553 = vunpack.c.l.b16 %v538
      %v554 = vunpack.c.l.b16 %v539
      %v555 = vunpack.c.l.b16 %v540
      %v556 = vunpack.c.l.b16 %v541
      %v557 = vpack.c.b16 %v554, %v553
      %v558 = vpack.c.b16 %v556, %v555
      %v562 = vsel %vm453, %v537, 0
      %564 = vmatprep.subr.bf16.mxu0 0
      %565 = vmatpush1.bf16.msra.mxu0 0
      %566 = vmatprep.subr.bf16.mxu0 0
      %567 = vmatpush1.bf16.msra.mxu0 0
      %568 = vmatprep.subr.bf16.mxu0 0
      %569 = vmatpush1.bf16.msra.mxu0 0
      %570 = vmatprep.subr.bf16.mxu0 0
      %571 = vmatpush1.bf16.msra.mxu0 0
      %572 = vmatprep.subr.bf16.mxu0 0
      %573 = vmatpush1.bf16.msra.mxu0 0
      %574 = vmatprep.subr.bf16.mxu0 0
      %575 = vmatpush1.bf16.msra.mxu0 0
      %576 = vmatprep.subr.bf16.mxu0 0
      %577 = vmatpush1.bf16.msra.mxu0 %v558
      %578 = vmatprep.subr.bf16.mxu0 0
      %579 = vmatpush1.bf16.msra.mxu0 %v557
      %580 = vmatprep.subr.bf16.mxu0 0
      %581 = vmatpush2.bf16.msra.mxu0 0
      %582 = vmatprep.subr.bf16.mxu0 0
      %583 = vmatpush2.bf16.msra.mxu0 0
      %584 = vmatprep.subr.bf16.mxu0 0
      %585 = vmatpush2.bf16.msra.mxu0 0
      %586 = vmatprep.subr.bf16.mxu0 0
      %587 = vmatpush2.bf16.msra.mxu0 0
      %588 = vmatprep.subr.bf16.mxu0 0
      %589 = vmatpush2.bf16.msra.mxu0 0
      %590 = vmatprep.subr.bf16.mxu0 0
      %591 = vmatpush2.bf16.msra.mxu0 0
      %592 = vmatprep.subr.bf16.mxu0 0
      %593 = vmatpush2.bf16.msra.mxu0 0
      %594 = vmatprep.subr.bf16.mxu0 0
      %595 = vmatpush2.bf16.msra.mxu0 0
      %596 = vmatprep.mubr.bf16.mxu0 0
      %597 = vmatmul.mubr.bf16.gmra.mxu0 %v562
      %v598 = vpop.f32.mrf.mxu0
      %v599 = vadd.f32 %v547, %v598
      %v600 = vpop.f32.mrf.mxu0
      %v601 = vpop.f32.mrf.mxu0
      %v602 = vpop.f32.mrf.mxu0
      %603 = vdwg.mxu0
      %v604 = vmax.f32 %v599, 0.0
      %v605 = vpack.c.bf16 %v604, %v604
      %v606 = vld [vmem:[%s7] sm:$0xf]
      %v607 = vld [vmem:[%s7 + $0x4] sm:$0xf]
      %v608 = vld [vmem:[%s7 + $0x8] sm:$0xf]
      %v609 = vld [vmem:[%s7 + $0xc] sm:$0xf]
      %v610 = vld [vmem:[%s7 + $0x10] sm:$0xf]
      %v611 = vld [vmem:[%s7 + $0x14] sm:$0xf]
      %v612 = vld [vmem:[%s7 + $0x18] sm:$0xf]
      %v613 = vld [vmem:[%s7 + $0x1c] sm:$0xf]
      %v614 = vld [vmem:[%s7 + $0x20] sm:$0xf]
      %v615 = vld [vmem:[%s7 + $0x24] sm:$0xf]
      %v616 = vld [vmem:[%s7 + $0x28] sm:$0xf]
      %v617 = vld [vmem:[%s7 + $0x2c] sm:$0xf]
      %v618 = vld [vmem:[%s7 + $0x30] sm:$0xf]
      %v619 = vld [vmem:[%s7 + $0x34] sm:$0xf]
      %v620 = vld [vmem:[%s7 + $0x38] sm:$0xf]
      %v621 = vld [vmem:[%s7 + $0x3c] sm:$0xf]
      %v622 = vld [vmem:[%s8] sm:$0x1]
      %v624 = vlaneseq
      %v625 = vshrl.u32 %v624, 7
      %v626 = vsub.s32 0, %v625
      %v627 = vrot.slane %v622, %v626
      %v645 = vunpack.c.l.b16 %v606
      %v646 = vunpack.c.l.b16 %v607
      %v647 = vunpack.c.l.b16 %v608
      %v648 = vunpack.c.l.b16 %v609
      %v649 = vunpack.c.l.b16 %v610
      %v650 = vunpack.c.l.b16 %v611
      %v651 = vunpack.c.l.b16 %v612
      %v652 = vunpack.c.l.b16 %v613
      %v653 = vunpack.c.l.b16 %v614
      %v654 = vunpack.c.l.b16 %v615
      %v655 = vunpack.c.l.b16 %v616
      %v656 = vunpack.c.l.b16 %v617
      %v657 = vunpack.c.l.b16 %v618
      %v658 = vunpack.c.l.b16 %v619
      %v659 = vunpack.c.l.b16 %v620
      %v660 = vunpack.c.l.b16 %v621
      %v661 = vpack.c.b16 %v646, %v645
      %v662 = vpack.c.b16 %v648, %v647
      %v663 = vpack.c.b16 %v650, %v649
      %v664 = vpack.c.b16 %v652, %v651
      %v665 = vpack.c.b16 %v654, %v653
      %v666 = vpack.c.b16 %v656, %v655
      %v667 = vpack.c.b16 %v658, %v657
      %v668 = vpack.c.b16 %v660, %v659
      %677 = vmatprep.subr.bf16.mxu0 0
      %678 = vmatpush1.bf16.msra.mxu0 %v668
      %679 = vmatprep.subr.bf16.mxu0 0
      %680 = vmatpush1.bf16.msra.mxu0 %v667
      %681 = vmatprep.subr.bf16.mxu0 0
      %682 = vmatpush1.bf16.msra.mxu0 %v666
      %683 = vmatprep.subr.bf16.mxu0 0
      %684 = vmatpush1.bf16.msra.mxu0 %v665
      %685 = vmatprep.subr.bf16.mxu0 0
      %686 = vmatpush1.bf16.msra.mxu0 %v664
      %687 = vmatprep.subr.bf16.mxu0 0
      %688 = vmatpush1.bf16.msra.mxu0 %v663
      %689 = vmatprep.subr.bf16.mxu0 0
      %690 = vmatpush1.bf16.msra.mxu0 %v662
      %691 = vmatprep.subr.bf16.mxu0 0
      %692 = vmatpush1.bf16.msra.mxu0 %v661
      %693 = vmatprep.subr.bf16.mxu0 0
      %694 = vmatpush2.bf16.msra.mxu0 0
      %695 = vmatprep.subr.bf16.mxu0 0
      %696 = vmatpush2.bf16.msra.mxu0 0
      %697 = vmatprep.subr.bf16.mxu0 0
      %698 = vmatpush2.bf16.msra.mxu0 0
      %699 = vmatprep.subr.bf16.mxu0 0
      %700 = vmatpush2.bf16.msra.mxu0 0
      %701 = vmatprep.subr.bf16.mxu0 0
      %702 = vmatpush2.bf16.msra.mxu0 0
      %703 = vmatprep.subr.bf16.mxu0 0
      %704 = vmatpush2.bf16.msra.mxu0 0
      %705 = vmatprep.subr.bf16.mxu0 0
      %706 = vmatpush2.bf16.msra.mxu0 0
      %707 = vmatprep.subr.bf16.mxu0 0
      %708 = vmatpush2.bf16.msra.mxu0 0
      %709 = vmatprep.mubr.bf16.mxu0 0
      %710 = vmatmul.mubr.bf16.gmra.mxu0 %v605
      %v711 = vpop.f32.mrf.mxu0
      %v712 = vadd.f32 %v627, %v711
      %v713 = vpop.f32.mrf.mxu0
      %v714 = vpop.f32.mrf.mxu0
      %v715 = vpop.f32.mrf.mxu0
      %716 = vdwg.mxu0
      %v717 = vadd.f32 %v536, %v712
      %v718 = vld [vmem:[%s9] sm:$0x1]
      %v719 = vld [vmem:[%s10] sm:$0x1]
      %v720 = vsel %vm453, %v717, 0.0
      %721 = vadd.xlane.f32.xlu0 %v720
      %v722 = vpop.xlane.xlu0 %721
      %v723 = vmul.f32 %v722, %v512
      %v724 = vsub.f32 %v717, %v723
      %v725 = vmul.f32 %v724, %v724
      %v726 = vsel %vm453, %v725, 0.0
      %727 = vadd.xlane.f32.xlu0 %v726
      %v728 = vpop.xlane.xlu0 %727
      %v729 = vmul.f32 %v728, %v512
      %v730 = vadd.f32 %v729, 1e-05
      %v731 = vrsqrt.pop %v730
      %v732 = vmul.f32 %v724, %v731
      %v734 = vlaneseq
      %v735 = vshrl.u32 %v734, 7
      %v736 = vsub.s32 0, %v735
      %v737 = vrot.slane %v718, %v736
      %v739 = vmul.f32 %v732, %v737
      %v741 = vlaneseq
      %v742 = vshrl.u32 %v741, 7
      %v743 = vsub.s32 0, %v742
      %v744 = vrot.slane %v719, %v743
      %v746 = vadd.f32 %v739, %v744
      %747 = vst.msk [vmem:[%s426] sm:$0xff] %vm453, %v746
      %p748 = scmp.lt.s32.totalorder %s26, 1
      %s749 = scalar_select %p748, %s26, 1
      %p750 = scmp.lt.s32.totalorder %s27, 0
      %s751 = scalar_select %p750, %s27, 0
      %s752 = sadd.s32 %s751, %s749
      %s753 = smul.addr %s752, 8
      %s754 = scalar_lea.vmem %s11, %s753
      // Predicated region
      $region65: #{encoder_forward.6} parent=63 // pred_check
        %p755 = pneg %p297
      $region66: #{encoder_forward.6} parent=63 // pred_check_branch
        %757 = sbr.rel (%p755) target = $region68
      $region67: #{encoder_forward.6} parent=63 // pred_region
        _
      $region68: #{encoder_forward.6} parent=63 // pred_fallthru
        _
    $region64: #{encoder_forward.6} parent=5 // pred_fallthru
      _
    %p758 = scmp.le.s32.totalorder 2, %s17
    // Predicated region
    $region69: #{encoder_forward.6} parent=5 // pred_check
      %p759 = pneg %p758
    $region70: #{encoder_forward.6} parent=5 // pred_check_branch
      %761 = sbr.rel (%p759) target = $region72
    $region71: #{encoder_forward.6} parent=5 // pred_region
      %s762 = ssub.s32 %s17, 2
      // Predicated region
      $region73: #{encoder_forward.6} parent=71 // pred_check
        %p763 = pneg %p303
      $region74: #{encoder_forward.6} parent=71 // pred_check_branch
        %765 = sbr.rel (%p763) target = $region76
      $region75: #{encoder_forward.6} parent=71 // pred_region
        %p766 = scmp.lt.s32.totalorder %s28, 1
        %s767 = scalar_select %p766, %s28, 1
        %p768 = scmp.lt.s32.totalorder %s29, 0
        %s769 = scalar_select %p768, %s29, 0
        %s770 = sadd.s32 %s769, %s767
        %s771 = smul.addr %s770, 8
        %s772 = scalar_lea.vmem %s11, %s771
      $region76: #{encoder_forward.6} parent=71 // pred_fallthru
        _
    $region72: #{encoder_forward.6} parent=5 // pred_fallthru
      _
  $region6: #{encoder_forward.6} parent=0 // loop_footer
    %s21 = sadd.s32 1, %s17
  $region7: #{encoder_forward.6} parent=0 // loop_footer_branch
    %16 = sbr.rel target = $region3
  $region8: #{encoder_forward.6} parent=0 // loop_exit
    _

// kernel: encoder_forward.7
$region0: #{encoder_forward.7}
  #allocation0 [shape = 'u32[]', space=smem, size = 0x4, offset = 0x4, fixed_abs, tag = 'smem constant byte address 0x4 - core index']
  #allocation1 [shape = 'u32[144,128]{1,0:T(1,128)}', space=vmem, size = 0x12000, scoped, tag = 'internal scratch']
  #allocation2 [shape = 'f32[1,1]{1,0:T(1,128)S(1)}', space=vmem, size = 0x200, scoped, tag = 'scoped memory for encoder_forward.7']
  %s0 = inlined_call_operand.vmem [shape: f32[2,32], index: 0, kind: input, shape index: {}]
  %s1 = inlined_call_operand.vmem [shape: f32[2,8,32], index: 1, kind: input, shape index: {}]
  %s2 = inlined_call_operand.vmem [shape: f32[2,8], index: 2, kind: input, shape index: {}]
  %s3 = inlined_call_operand.vmem [shape: bf16[4,32,32], index: 3, kind: input, shape index: {}]
  %s4 = inlined_call_operand.vmem [shape: f32[4,1,32], index: 4, kind: input, shape index: {}]
  %s5 = inlined_call_operand.vmem [shape: f32[4,1,32], index: 5, kind: input, shape index: {}]
  %s6 = inlined_call_operand.vmem [shape: f32[4,1,32], index: 6, kind: input, shape index: {}]
  %s7 = inlined_call_operand.vmem [shape: f32[32,4], index: 7, kind: input, shape index: {}]
  %s8 = inlined_call_operand.vmem [shape: f32[4,32], index: 8, kind: input, shape index: {}]
  %s9 = inlined_call_operand.vmem [shape: bf16[32,16], index: 9, kind: input, shape index: {}]
  %s10 = inlined_call_operand.vmem [shape: f32[1,16], index: 10, kind: input, shape index: {}]
  %s11 = inlined_call_operand.vmem [shape: f32[16,4], index: 11, kind: input, shape index: {}]
  %s12 = inlined_call_operand.<no memory space> [shape: f32[1,1], index: 12, kind: input, shape index: {}]
  %s13 = inlined_call_operand.vmem [shape: bf16[16,32], index: 13, kind: input, shape index: {}]
  %s14 = inlined_call_operand.vmem [shape: f32[1,32], index: 14, kind: input, shape index: {}]
  %s15 = inlined_call_operand.vmem [shape: bf16[32,32], index: 15, kind: input, shape index: {}]
  %s16 = inlined_call_operand.vmem [shape: f32[1,32], index: 16, kind: input, shape index: {}]
  %s17 = inlined_call_operand.vmem [shape: f32[2,32], index: 17, kind: output, shape index: {0}]
  %s18 = inlined_call_operand.vmem [shape: f32[2,1,32], index: 18, kind: output, shape index: {1}]
  %19 = xla_tuple %s17, %s18
  %s20 = sld [smem:[#allocation0]]
  $region86: #{encoder_forward.7} parent=0
    _
  %s22 = ssub.s32 1, %s20
  %s23 = scalar_select 0, %s22, %s20
  %v24 = vstv %s12
  %25 = vst [vmem:[#allocation2] sm:$0x1] %v24
  // Predicated region
  $region2: #{encoder_forward.7} parent=0 // pred_check
    _
  $region3: #{encoder_forward.7} parent=0 // pred_check_branch
    %27 = sbr.rel (0) target = $region5
  $region4: #{encoder_forward.7} parent=0 // pred_region
    _
  $region5: #{encoder_forward.7} parent=0 // pred_fallthru
    _
  // Predicated region
  $region6: #{encoder_forward.7} parent=0 // pred_check
    _
  $region7: #{encoder_forward.7} parent=0 // pred_check_branch
    %29 = sbr.rel (0) target = $region9
  $region8: #{encoder_forward.7} parent=0 // pred_region
    _
  $region9: #{encoder_forward.7} parent=0 // pred_fallthru
    _
  // Predicated region
  $region10: #{encoder_forward.7} parent=0 // pred_check
    _
  $region11: #{encoder_forward.7} parent=0 // pred_check_branch
    %31 = sbr.rel (0) target = $region13
  $region12: #{encoder_forward.7} parent=0 // pred_region
    _
  $region13: #{encoder_forward.7} parent=0 // pred_fallthru
    _
  // Predicated region
  $region14: #{encoder_forward.7} parent=0 // pred_check
    _
  $region15: #{encoder_forward.7} parent=0 // pred_check_branch
    %33 = sbr.rel (0) target = $region17
  $region16: #{encoder_forward.7} parent=0 // pred_region
    _
  $region17: #{encoder_forward.7} parent=0 // pred_fallthru
    _
  // Predicated region
  $region18: #{encoder_forward.7} parent=0 // pred_check
    _
  $region19: #{encoder_forward.7} parent=0 // pred_check_branch
    %35 = sbr.rel (0) target = $region21
  $region20: #{encoder_forward.7} parent=0 // pred_region
    _
  $region21: #{encoder_forward.7} parent=0 // pred_fallthru
    _
  // Predicated region
  $region22: #{encoder_forward.7} parent=0 // pred_check
    _
  $region23: #{encoder_forward.7} parent=0 // pred_check_branch
    %37 = sbr.rel (0) target = $region25
  $region24: #{encoder_forward.7} parent=0 // pred_region
    _
  $region25: #{encoder_forward.7} parent=0 // pred_fallthru
    _
  // Predicated region
  $region26: #{encoder_forward.7} parent=0 // pred_check
    _
  $region27: #{encoder_forward.7} parent=0 // pred_check_branch
    %39 = sbr.rel (0) target = $region29
  $region28: #{encoder_forward.7} parent=0 // pred_region
    _
  $region29: #{encoder_forward.7} parent=0 // pred_fallthru
    _
  // Predicated region
  $region30: #{encoder_forward.7} parent=0 // pred_check
    _
  $region31: #{encoder_forward.7} parent=0 // pred_check_branch
    %41 = sbr.rel (0) target = $region33
  $region32: #{encoder_forward.7} parent=0 // pred_region
    _
  $region33: #{encoder_forward.7} parent=0 // pred_fallthru
    _
  // Predicated region
  $region34: #{encoder_forward.7} parent=0 // pred_check
    _
  $region35: #{encoder_forward.7} parent=0 // pred_check_branch
    %43 = sbr.rel (0) target = $region37
  $region36: #{encoder_forward.7} parent=0 // pred_region
    _
  $region37: #{encoder_forward.7} parent=0 // pred_fallthru
    _
  // Predicated region
  $region38: #{encoder_forward.7} parent=0 // pred_check
    _
  $region39: #{encoder_forward.7} parent=0 // pred_check_branch
    %45 = sbr.rel (0) target = $region41
  $region40: #{encoder_forward.7} parent=0 // pred_region
    _
  $region41: #{encoder_forward.7} parent=0 // pred_fallthru
    _
  // Predicated region
  $region42: #{encoder_forward.7} parent=0 // pred_check
    _
  $region43: #{encoder_forward.7} parent=0 // pred_check_branch
    %47 = sbr.rel (0) target = $region45
  $region44: #{encoder_forward.7} parent=0 // pred_region
    _
  $region45: #{encoder_forward.7} parent=0 // pred_fallthru
    _
  // Predicated region
  $region46: #{encoder_forward.7} parent=0 // pred_check
    _
  $region47: #{encoder_forward.7} parent=0 // pred_check_branch
    %49 = sbr.rel (0) target = $region49
  $region48: #{encoder_forward.7} parent=0 // pred_region
    _
  $region49: #{encoder_forward.7} parent=0 // pred_fallthru
    _
  // Predicated region
  $region50: #{encoder_forward.7} parent=0 // pred_check
    _
  $region51: #{encoder_forward.7} parent=0 // pred_check_branch
    %51 = sbr.rel (0) target = $region53
  $region52: #{encoder_forward.7} parent=0 // pred_region
    _
  $region53: #{encoder_forward.7} parent=0 // pred_fallthru
    _
  // Predicated region
  $region54: #{encoder_forward.7} parent=0 // pred_check
    _
  $region55: #{encoder_forward.7} parent=0 // pred_check_branch
    %53 = sbr.rel (0) target = $region57
  $region56: #{encoder_forward.7} parent=0 // pred_region
    _
  $region57: #{encoder_forward.7} parent=0 // pred_fallthru
    _
  // Predicated region
  $region58: #{encoder_forward.7} parent=0 // pred_check
    _
  $region59: #{encoder_forward.7} parent=0 // pred_check_branch
    %55 = sbr.rel (0) target = $region61
  $region60: #{encoder_forward.7} parent=0 // pred_region
    _
  $region61: #{encoder_forward.7} parent=0 // pred_fallthru
    _
  // Predicated region
  $region62: #{encoder_forward.7} parent=0 // pred_check
    _
  $region63: #{encoder_forward.7} parent=0 // pred_check_branch
    %57 = sbr.rel (0) target = $region65
  $region64: #{encoder_forward.7} parent=0 // pred_region
    _
  $region65: #{encoder_forward.7} parent=0 // pred_fallthru
    _
  // Predicated region
  $region66: #{encoder_forward.7} parent=0 // pred_check
    _
  $region67: #{encoder_forward.7} parent=0 // pred_check_branch
    %59 = sbr.rel (0) target = $region69
  $region68: #{encoder_forward.7} parent=0 // pred_region
    _
  $region69: #{encoder_forward.7} parent=0 // pred_fallthru
    _
  %v61 = vld [vmem:[%s1] sm:$0xff]
  %v62 = vld [vmem:[%s1 + $0x8] sm:$0xff]
  %v63 = vld [vmem:[%s2] sm:$0x3]
  %v64 = vpack.c.bf16 %v62, %v61
  %vm65 = vcmask 58368
  %v66 = vsel %vm65, %v63, 0.0
  %67 = vadd.xlane.f32.xlu0 %v66
  %v68 = vpop.xlane.xlu0 %67
  %v69 = vmax.f32 %v68, 1.0
  %v70 = vrcp.pop %v69
  %v71 = vld [vmem:[%s0] sm:$0x3]
  %v72 = vpack.c.bf16 %v71, %v71
  %v73 = vld [vmem:[%s7] sm:$0xff]
  %v74 = vld [vmem:[%s7 + $0x8] sm:$0xff]
  %v75 = vld [vmem:[%s7 + $0x10] sm:$0xff]
  %v76 = vld [vmem:[%s7 + $0x18] sm:$0xff]
  %v77 = vld [vmem:[%s8] sm:$0xf]
  %v78 = vld [vmem:[%s3] sm:$0xf]
  %v79 = vld [vmem:[%s3 + $0x4] sm:$0xf]
  %v80 = vld [vmem:[%s3 + $0x8] sm:$0xf]
  %v81 = vld [vmem:[%s3 + $0xc] sm:$0xf]
  %v82 = vld [vmem:[%s4] sm:$0x1]
  %v84 = vlaneseq
  %v85 = vshrl.u32 %v84, 7
  %v86 = vsub.s32 0, %v85
  %v87 = vrot.slane %v82, %v86
  %v93 = vunpack.c.l.b16 %v78
  %v94 = vunpack.c.l.b16 %v79
  %v95 = vunpack.c.l.b16 %v80
  %v96 = vunpack.c.l.b16 %v81
  %v97 = vpack.c.b16 %v94, %v93
  %v98 = vpack.c.b16 %v96, %v95
  %vm101 = vcmask 261120
  %v103 = vsel %vm101, %v72, 0
  %105 = vmatprep.subr.bf16.mxu0 0
  %106 = vmatpush1.bf16.msra.mxu0 0
  %107 = vmatprep.subr.bf16.mxu0 0
  %108 = vmatpush1.bf16.msra.mxu0 0
  %109 = vmatprep.subr.bf16.mxu0 0
  %110 = vmatpush1.bf16.msra.mxu0 0
  %111 = vmatprep.subr.bf16.mxu0 0
  %112 = vmatpush1.bf16.msra.mxu0 0
  %113 = vmatprep.subr.bf16.mxu0 0
  %114 = vmatpush1.bf16.msra.mxu0 0
  %115 = vmatprep.subr.bf16.mxu0 0
  %116 = vmatpush1.bf16.msra.mxu0 0
  %117 = vmatprep.subr.bf16.mxu0 0
  %118 = vmatpush1.bf16.msra.mxu0 %v98
  %119 = vmatprep.subr.bf16.mxu0 0
  %120 = vmatpush1.bf16.msra.mxu0 %v97
  %121 = vmatprep.subr.bf16.mxu0 0
  %122 = vmatpush2.bf16.msra.mxu0 0
  %123 = vmatprep.subr.bf16.mxu0 0
  %124 = vmatpush2.bf16.msra.mxu0 0
  %125 = vmatprep.subr.bf16.mxu0 0
  %126 = vmatpush2.bf16.msra.mxu0 0
  %127 = vmatprep.subr.bf16.mxu0 0
  %128 = vmatpush2.bf16.msra.mxu0 0
  %129 = vmatprep.subr.bf16.mxu0 0
  %130 = vmatpush2.bf16.msra.mxu0 0
  %131 = vmatprep.subr.bf16.mxu0 0
  %132 = vmatpush2.bf16.msra.mxu0 0
  %133 = vmatprep.subr.bf16.mxu0 0
  %134 = vmatpush2.bf16.msra.mxu0 0
  %135 = vmatprep.subr.bf16.mxu0 0
  %136 = vmatpush2.bf16.msra.mxu0 0
  %137 = vmatprep.mubr.bf16.mxu0 0
  %138 = vmatmul.mubr.bf16.gmra.mxu0 %v103
  %v139 = vpop.f32.mrf.mxu0
  %v140 = vadd.f32 %v87, %v139
  %v141 = vpop.f32.mrf.mxu0
  %v142 = vpop.f32.mrf.mxu0
  %v143 = vpop.f32.mrf.mxu0
  %144 = vdwg.mxu0
  %v145 = vmax.f32 %v140, 0.0
  %v146 = vrcp.pop 1.3
  %v147 = vmul.f32 %v140, %v146
  %v148 = vmul.f32 %v147, 1.442695
  %v149 = vpow.pop %v148
  %v150 = vsub.f32 %v149, 1.0
  %v151 = vmul.f32 %v150, 1.3
  %v152 = vmin.f32 %v151, 0.0
  %v153 = vadd.f32 %v145, %v152
  %v155 = vsel %vm101, %v153, 0
  %157 = vmatprep.subr.mxu0 0.0
  %158 = vmatpush1.msra.mxu0 0.0
  %159 = vmatprep.subr.mxu0 0.0
  %160 = vmatpush1.msra.mxu0 0.0
  %161 = vmatprep.subr.mxu0 0.0
  %162 = vmatpush1.msra.mxu0 0.0
  %163 = vmatprep.subr.mxu0 0.0
  %164 = vmatpush1.msra.mxu0 0.0
  %165 = vmatprep.subr.mxu0 0.0
  %166 = vmatpush1.msra.mxu0 0.0
  %167 = vmatprep.subr.mxu0 0.0
  %168 = vmatpush1.msra.mxu0 0.0
  %169 = vmatprep.subr.mxu0 0.0
  %170 = vmatpush1.msra.mxu0 0.0
  %171 = vmatprep.subr.mxu0 0.0
  %172 = vmatpush1.msra.mxu0 0.0
  %173 = vmatprep.subr.mxu0 0.0
  %174 = vmatpush1.msra.mxu0 0.0
  %175 = vmatprep.subr.mxu0 0.0
  %176 = vmatpush1.msra.mxu0 0.0
  %177 = vmatprep.subr.mxu0 0.0
  %178 = vmatpush1.msra.mxu0 0.0
  %179 = vmatprep.subr.mxu0 0.0
  %180 = vmatpush1.msra.mxu0 0.0
  %181 = vmatprep.subr.mxu0 0.0
  %182 = vmatpush1.msra.mxu0 %v76
  %183 = vmatprep.subr.mxu0 0.0
  %184 = vmatpush1.msra.mxu0 %v75
  %185 = vmatprep.subr.mxu0 0.0
  %186 = vmatpush1.msra.mxu0 %v74
  %187 = vmatprep.subr.mxu0 0.0
  %188 = vmatpush1.msra.mxu0 %v73
  %189 = vmatprep.subr.mxu0 0.0
  %190 = vmatpush2.msra.mxu0 0.0
  %191 = vmatprep.subr.mxu0 0.0
  %192 = vmatpush2.msra.mxu0 0.0
  %193 = vmatprep.subr.mxu0 0.0
  %194 = vmatpush2.msra.mxu0 0.0
  %195 = vmatprep.subr.mxu0 0.0
  %196 = vmatpush2.msra.mxu0 0.0
  %197 = vmatprep.subr.mxu0 0.0
  %198 = vmatpush2.msra.mxu0 0.0
  %199 = vmatprep.subr.mxu0 0.0
  %200 = vmatpush2.msra.mxu0 0.0
  %201 = vmatprep.subr.mxu0 0.0
  %202 = vmatpush2.msra.mxu0 0.0
  %203 = vmatprep.subr.mxu0 0.0
  %204 = vmatpush2.msra.mxu0 0.0
  %205 = vmatprep.subr.mxu0 0.0
  %206 = vmatpush2.msra.mxu0 0.0
  %207 = vmatprep.subr.mxu0 0.0
  %208 = vmatpush2.msra.mxu0 0.0
  %209 = vmatprep.subr.mxu0 0.0
  %210 = vmatpush2.msra.mxu0 0.0
  %211 = vmatprep.subr.mxu0 0.0
  %212 = vmatpush2.msra.mxu0 0.0
  %213 = vmatprep.subr.mxu0 0.0
  %214 = vmatpush2.msra.mxu0 0.0
  %215 = vmatprep.subr.mxu0 0.0
  %216 = vmatpush2.msra.mxu0 0.0
  %217 = vmatprep.subr.mxu0 0.0
  %218 = vmatpush2.msra.mxu0 0.0
  %219 = vmatprep.subr.mxu0 0.0
  %220 = vmatpush2.msra.mxu0 0.0
  %221 = vmatprep.mubr.f32.mxu0 0.0
  %222 = vmatmul.mubr.f32.gmra.mxu0 %v155
  %v223 = vpop.f32.mrf.mxu0
  %v224 = vadd.f32 0.0, %v223
  %v225 = vpop.f32.mrf.mxu0
  %226 = vdwg.mxu0
  %v227 = vmul.f32 %v153, %v153
  %v229 = vsel %vm101, %v227, 0
  %231 = vmatprep.subr.mxu0 0.0
  %232 = vmatpush1.msra.mxu0 0.0
  %233 = vmatprep.subr.mxu0 0.0
  %234 = vmatpush1.msra.mxu0 0.0
  %235 = vmatprep.subr.mxu0 0.0
  %236 = vmatpush1.msra.mxu0 0.0
  %237 = vmatprep.subr.mxu0 0.0
  %238 = vmatpush1.msra.mxu0 0.0
  %239 = vmatprep.subr.mxu0 0.0
  %240 = vmatpush1.msra.mxu0 0.0
  %241 = vmatprep.subr.mxu0 0.0
  %242 = vmatpush1.msra.mxu0 0.0
  %243 = vmatprep.subr.mxu0 0.0
  %244 = vmatpush1.msra.mxu0 0.0
  %245 = vmatprep.subr.mxu0 0.0
  %246 = vmatpush1.msra.mxu0 0.0
  %247 = vmatprep.subr.mxu0 0.0
  %248 = vmatpush1.msra.mxu0 0.0
  %249 = vmatprep.subr.mxu0 0.0
  %250 = vmatpush1.msra.mxu0 0.0
  %251 = vmatprep.subr.mxu0 0.0
  %252 = vmatpush1.msra.mxu0 0.0
  %253 = vmatprep.subr.mxu0 0.0
  %254 = vmatpush1.msra.mxu0 0.0
  %255 = vmatprep.subr.mxu0 0.0
  %256 = vmatpush1.msra.mxu0 %v76
  %257 = vmatprep.subr.mxu0 0.0
  %258 = vmatpush1.msra.mxu0 %v75
  %259 = vmatprep.subr.mxu0 0.0
  %260 = vmatpush1.msra.mxu0 %v74
  %261 = vmatprep.subr.mxu0 0.0
  %262 = vmatpush1.msra.mxu0 %v73
  %263 = vmatprep.subr.mxu0 0.0
  %264 = vmatpush2.msra.mxu0 0.0
  %265 = vmatprep.subr.mxu0 0.0
  %266 = vmatpush2.msra.mxu0 0.0
  %267 = vmatprep.subr.mxu0 0.0
  %268 = vmatpush2.msra.mxu0 0.0
  %269 = vmatprep.subr.mxu0 0.0
  %270 = vmatpush2.msra.mxu0 0.0
  %271 = vmatprep.subr.mxu0 0.0
  %272 = vmatpush2.msra.mxu0 0.0
  %273 = vmatprep.subr.mxu0 0.0
  %274 = vmatpush2.msra.mxu0 0.0
  %275 = vmatprep.subr.mxu0 0.0
  %276 = vmatpush2.msra.mxu0 0.0
  %277 = vmatprep.subr.mxu0 0.0
  %278 = vmatpush2.msra.mxu0 0.0
  %279 = vmatprep.subr.mxu0 0.0
  %280 = vmatpush2.msra.mxu0 0.0
  %281 = vmatprep.subr.mxu0 0.0
  %282 = vmatpush2.msra.mxu0 0.0
  %283 = vmatprep.subr.mxu0 0.0
  %284 = vmatpush2.msra.mxu0 0.0
  %285 = vmatprep.subr.mxu0 0.0
  %286 = vmatpush2.msra.mxu0 0.0
  %287 = vmatprep.subr.mxu0 0.0
  %288 = vmatpush2.msra.mxu0 0.0
  %289 = vmatprep.subr.mxu0 0.0
  %290 = vmatpush2.msra.mxu0 0.0
  %291 = vmatprep.subr.mxu0 0.0
  %292 = vmatpush2.msra.mxu0 0.0
  %293 = vmatprep.subr.mxu0 0.0
  %294 = vmatpush2.msra.mxu0 0.0
  %295 = vmatprep.mubr.f32.mxu0 0.0
  %296 = vmatmul.mubr.f32.gmra.mxu0 %v229
  %v297 = vpop.f32.mrf.mxu0
  %v298 = vadd.f32 0.0, %v297
  %v299 = vpop.f32.mrf.mxu0
  %300 = vdwg.mxu0
  %v301 = vmul.f32 %v224, 0.125
  %v302 = vmul.f32 %v298, 0.125
  %v303 = vmul.f32 %v301, %v301
  %v304 = vsub.f32 %v302, %v303
  %v305 = vadd.f32 %v304, 1e-05
  %v306 = vrsqrt.pop %v305
  %vm307 = vcmask 31744
  %v309 = vsel %vm307, %v301, 0
  %vm311 = vcmask 1043456
  %v313 = vsel %vm311, %v77, 0
  %315 = vmatprep.subr.mxu0 0.0
  %316 = vmatpush1.msra.mxu0 0.0
  %317 = vmatprep.subr.mxu0 0.0
  %318 = vmatpush1.msra.mxu0 0.0
  %319 = vmatprep.subr.mxu0 0.0
  %320 = vmatpush1.msra.mxu0 0.0
  %321 = vmatprep.subr.mxu0 0.0
  %322 = vmatpush1.msra.mxu0 0.0
  %323 = vmatprep.subr.mxu0 0.0
  %324 = vmatpush1.msra.mxu0 0.0
  %325 = vmatprep.subr.mxu0 0.0
  %326 = vmatpush1.msra.mxu0 0.0
  %327 = vmatprep.subr.mxu0 0.0
  %328 = vmatpush1.msra.mxu0 0.0
  %329 = vmatprep.subr.mxu0 0.0
  %330 = vmatpush1.msra.mxu0 0.0
  %331 = vmatprep.subr.mxu0 0.0
  %332 = vmatpush1.msra.mxu0 0.0
  %333 = vmatprep.subr.mxu0 0.0
  %334 = vmatpush1.msra.mxu0 0.0
  %335 = vmatprep.subr.mxu0 0.0
  %336 = vmatpush1.msra.mxu0 0.0
  %337 = vmatprep.subr.mxu0 0.0
  %338 = vmatpush1.msra.mxu0 0.0
  %339 = vmatprep.subr.mxu0 0.0
  %340 = vmatpush1.msra.mxu0 0.0
  %341 = vmatprep.subr.mxu0 0.0
  %342 = vmatpush1.msra.mxu0 0.0
  %343 = vmatprep.subr.mxu0 0.0
  %344 = vmatpush1.msra.mxu0 0.0
  %345 = vmatprep.subr.mxu0 0.0
  %346 = vmatpush1.msra.mxu0 %v313
  %347 = vmatprep.subr.mxu0 0.0
  %348 = vmatpush2.msra.mxu0 0.0
  %349 = vmatprep.subr.mxu0 0.0
  %350 = vmatpush2.msra.mxu0 0.0
  %351 = vmatprep.subr.mxu0 0.0
  %352 = vmatpush2.msra.mxu0 0.0
  %353 = vmatprep.subr.mxu0 0.0
  %354 = vmatpush2.msra.mxu0 0.0
  %355 = vmatprep.subr.mxu0 0.0
  %356 = vmatpush2.msra.mxu0 0.0
  %357 = vmatprep.subr.mxu0 0.0
  %358 = vmatpush2.msra.mxu0 0.0
  %359 = vmatprep.subr.mxu0 0.0
  %360 = vmatpush2.msra.mxu0 0.0
  %361 = vmatprep.subr.mxu0 0.0
  %362 = vmatpush2.msra.mxu0 0.0
  %363 = vmatprep.subr.mxu0 0.0
  %364 = vmatpush2.msra.mxu0 0.0
  %365 = vmatprep.subr.mxu0 0.0
  %366 = vmatpush2.msra.mxu0 0.0
  %367 = vmatprep.subr.mxu0 0.0
  %368 = vmatpush2.msra.mxu0 0.0
  %369 = vmatprep.subr.mxu0 0.0
  %370 = vmatpush2.msra.mxu0 0.0
  %371 = vmatprep.subr.mxu0 0.0
  %372 = vmatpush2.msra.mxu0 0.0
  %373 = vmatprep.subr.mxu0 0.0
  %374 = vmatpush2.msra.mxu0 0.0
  %375 = vmatprep.subr.mxu0 0.0
  %376 = vmatpush2.msra.mxu0 0.0
  %377 = vmatprep.subr.mxu0 0.0
  %378 = vmatpush2.msra.mxu0 0.0
  %379 = vmatprep.mubr.f32.mxu0 0.0
  %380 = vmatmul.mubr.f32.gmra.mxu0 %v309
  %v381 = vpop.f32.mrf.mxu0
  %v382 = vadd.f32 0.0, %v381
  %v383 = vpop.f32.mrf.mxu0
  %384 = vdwg.mxu0
  %v386 = vsel %vm307, %v306, 0
  %388 = vmatprep.subr.mxu0 0.0
  %389 = vmatpush1.msra.mxu0 0.0
  %390 = vmatprep.subr.mxu0 0.0
  %391 = vmatpush1.msra.mxu0 0.0
  %392 = vmatprep.subr.mxu0 0.0
  %393 = vmatpush1.msra.mxu0 0.0
  %394 = vmatprep.subr.mxu0 0.0
  %395 = vmatpush1.msra.mxu0 0.0
  %396 = vmatprep.subr.mxu0 0.0
  %397 = vmatpush1.msra.mxu0 0.0
  %398 = vmatprep.subr.mxu0 0.0
  %399 = vmatpush1.msra.mxu0 0.0
  %400 = vmatprep.subr.mxu0 0.0
  %401 = vmatpush1.msra.mxu0 0.0
  %402 = vmatprep.subr.mxu0 0.0
  %403 = vmatpush1.msra.mxu0 0.0
  %404 = vmatprep.subr.mxu0 0.0
  %405 = vmatpush1.msra.mxu0 0.0
  %406 = vmatprep.subr.mxu0 0.0
  %407 = vmatpush1.msra.mxu0 0.0
  %408 = vmatprep.subr.mxu0 0.0
  %409 = vmatpush1.msra.mxu0 0.0
  %410 = vmatprep.subr.mxu0 0.0
  %411 = vmatpush1.msra.mxu0 0.0
  %412 = vmatprep.subr.mxu0 0.0
  %413 = vmatpush1.msra.mxu0 0.0
  %414 = vmatprep.subr.mxu0 0.0
  %415 = vmatpush1.msra.mxu0 0.0
  %416 = vmatprep.subr.mxu0 0.0
  %417 = vmatpush1.msra.mxu0 0.0
  %418 = vmatprep.subr.mxu0 0.0
  %419 = vmatpush1.msra.mxu0 %v313
  %420 = vmatprep.subr.mxu0 0.0
  %421 = vmatpush2.msra.mxu0 0.0
  %422 = vmatprep.subr.mxu0 0.0
  %423 = vmatpush2.msra.mxu0 0.0
  %424 = vmatprep.subr.mxu0 0.0
  %425 = vmatpush2.msra.mxu0 0.0
  %426 = vmatprep.subr.mxu0 0.0
  %427 = vmatpush2.msra.mxu0 0.0
  %428 = vmatprep.subr.mxu0 0.0
  %429 = vmatpush2.msra.mxu0 0.0
  %430 = vmatprep.subr.mxu0 0.0
  %431 = vmatpush2.msra.mxu0 0.0
  %432 = vmatprep.subr.mxu0 0.0
  %433 = vmatpush2.msra.mxu0 0.0
  %434 = vmatprep.subr.mxu0 0.0
  %435 = vmatpush2.msra.mxu0 0.0
  %436 = vmatprep.subr.mxu0 0.0
  %437 = vmatpush2.msra.mxu0 0.0
  %438 = vmatprep.subr.mxu0 0.0
  %439 = vmatpush2.msra.mxu0 0.0
  %440 = vmatprep.subr.mxu0 0.0
  %441 = vmatpush2.msra.mxu0 0.0
  %442 = vmatprep.subr.mxu0 0.0
  %443 = vmatpush2.msra.mxu0 0.0
  %444 = vmatprep.subr.mxu0 0.0
  %445 = vmatpush2.msra.mxu0 0.0
  %446 = vmatprep.subr.mxu0 0.0
  %447 = vmatpush2.msra.mxu0 0.0
  %448 = vmatprep.subr.mxu0 0.0
  %449 = vmatpush2.msra.mxu0 0.0
  %450 = vmatprep.subr.mxu0 0.0
  %451 = vmatpush2.msra.mxu0 0.0
  %452 = vmatprep.mubr.f32.mxu0 0.0
  %453 = vmatmul.mubr.f32.gmra.mxu0 %v386
  %v454 = vpop.f32.mrf.mxu0
  %v455 = vadd.f32 0.0, %v454
  %v456 = vpop.f32.mrf.mxu0
  %457 = vdwg.mxu0
  %v458 = vsub.f32 %v153, %v382
  %v459 = vmul.f32 %v458, %v455
  %v460 = vld [vmem:[%s5] sm:$0x1]
  %v462 = vlaneseq
  %v463 = vshrl.u32 %v462, 7
  %v464 = vsub.s32 0, %v463
  %v465 = vrot.slane %v460, %v464
  %v467 = vmul.f32 %v459, %v465
  %v468 = vld [vmem:[%s6] sm:$0x1]
  %v470 = vlaneseq
  %v471 = vshrl.u32 %v470, 7
  %v472 = vsub.s32 0, %v471
  %v473 = vrot.slane %v468, %v472
  %v475 = vadd.f32 %v467, %v473
  %s476 = scalar_lea.vmem %s3, 16
  %v477 = vld [vmem:[%s476] sm:$0xf]
  %v478 = vld [vmem:[%s476 + $0x4] sm:$0xf]
  %v479 = vld [vmem:[%s476 + $0x8] sm:$0xf]
  %v480 = vld [vmem:[%s476 + $0xc] sm:$0xf]
  %s481 = scalar_lea.vmem %s4, 1
  %v482 = vld [vmem:[%s481] sm:$0x1]
  %v484 = vlaneseq
  %v485 = vshrl.u32 %v484, 7
  %v486 = vsub.s32 0, %v485
  %v487 = vrot.slane %v482, %v486
  %v493 = vunpack.c.l.b16 %v477
  %v494 = vunpack.c.l.b16 %v478
  %v495 = vunpack.c.l.b16 %v479
  %v496 = vunpack.c.l.b16 %v480
  %v497 = vpack.c.b16 %v494, %v493
  %v498 = vpack.c.b16 %v496, %v495
  %v502 = vsel %vm101, %v64, 0
  %504 = vmatprep.subr.bf16.mxu0 0
  %505 = vmatpush1.bf16.msra.mxu0 0
  %506 = vmatprep.subr.bf16.mxu0 0
  %507 = vmatpush1.bf16.msra.mxu0 0
  %508 = vmatprep.subr.bf16.mxu0 0
  %509 = vmatpush1.bf16.msra.mxu0 0
  %510 = vmatprep.subr.bf16.mxu0 0
  %511 = vmatpush1.bf16.msra.mxu0 0
  %512 = vmatprep.subr.bf16.mxu0 0
  %513 = vmatpush1.bf16.msra.mxu0 0
  %514 = vmatprep.subr.bf16.mxu0 0
  %515 = vmatpush1.bf16.msra.mxu0 0
  %516 = vmatprep.subr.bf16.mxu0 0
  %517 = vmatpush1.bf16.msra.mxu0 %v498
  %518 = vmatprep.subr.bf16.mxu0 0
  %519 = vmatpush1.bf16.msra.mxu0 %v497
  %520 = vmatprep.subr.bf16.mxu0 0
  %521 = vmatpush2.bf16.msra.mxu0 0
  %522 = vmatprep.subr.bf16.mxu0 0
  %523 = vmatpush2.bf16.msra.mxu0 0
  %524 = vmatprep.subr.bf16.mxu0 0
  %525 = vmatpush2.bf16.msra.mxu0 0
  %526 = vmatprep.subr.bf16.mxu0 0
  %527 = vmatpush2.bf16.msra.mxu0 0
  %528 = vmatprep.subr.bf16.mxu0 0
  %529 = vmatpush2.bf16.msra.mxu0 0
  %530 = vmatprep.subr.bf16.mxu0 0
  %531 = vmatpush2.bf16.msra.mxu0 0
  %532 = vmatprep.subr.bf16.mxu0 0
  %533 = vmatpush2.bf16.msra.mxu0 0
  %534 = vmatprep.subr.bf16.mxu0 0
  %535 = vmatpush2.bf16.msra.mxu0 0
  %536 = vmatprep.mubr.bf16.mxu0 0
  %537 = vmatmul.mubr.bf16.gmra.mxu0 %v502
  %v538 = vpop.f32.mrf.mxu0
  %v539 = vadd.f32 %v487, %v538
  %v540 = vpop.f32.mrf.mxu0
  %v541 = vpop.f32.mrf.mxu0
  %v542 = vadd.f32 %v487, %v541
  %v543 = vpop.f32.mrf.mxu0
  %544 = vdwg.mxu0
  %v545 = vmax.f32 %v539, 0.0
  %v546 = vmax.f32 %v542, 0.0
  %v547 = vmul.f32 %v539, %v146
  %v548 = vmul.f32 %v542, %v146
  %v549 = vmul.f32 %v547, 1.442695
  %v550 = vpow.pop %v549
  %v551 = vmul.f32 %v548, 1.442695
  %v552 = vpow.pop %v551
  %v553 = vsub.f32 %v550, 1.0
  %v554 = vsub.f32 %v552, 1.0
  %v555 = vmul.f32 %v553, 1.3
  %v556 = vmul.f32 %v554, 1.3
  %v557 = vmin.f32 %v555, 0.0
  %v558 = vmin.f32 %v556, 0.0
  %v559 = vadd.f32 %v545, %v557
  %v560 = vadd.f32 %v546, %v558
  %v562 = vsel %vm101, %v559, 0
  %v565 = vsel %vm101, %v560, 0
  %567 = vmatprep.subr.mxu0 0.0
  %568 = vmatpush1.msra.mxu0 0.0
  %569 = vmatprep.subr.mxu0 0.0
  %570 = vmatpush1.msra.mxu0 0.0
  %571 = vmatprep.subr.mxu0 0.0
  %572 = vmatpush1.msra.mxu0 0.0
  %573 = vmatprep.subr.mxu0 0.0
  %574 = vmatpush1.msra.mxu0 0.0
  %575 = vmatprep.subr.mxu0 0.0
  %576 = vmatpush1.msra.mxu0 0.0
  %577 = vmatprep.subr.mxu0 0.0
  %578 = vmatpush1.msra.mxu0 0.0
  %579 = vmatprep.subr.mxu0 0.0
  %580 = vmatpush1.msra.mxu0 0.0
  %581 = vmatprep.subr.mxu0 0.0
  %582 = vmatpush1.msra.mxu0 0.0
  %583 = vmatprep.subr.mxu0 0.0
  %584 = vmatpush1.msra.mxu0 0.0
  %585 = vmatprep.subr.mxu0 0.0
  %586 = vmatpush1.msra.mxu0 0.0
  %587 = vmatprep.subr.mxu0 0.0
  %588 = vmatpush1.msra.mxu0 0.0
  %589 = vmatprep.subr.mxu0 0.0
  %590 = vmatpush1.msra.mxu0 0.0
  %591 = vmatprep.subr.mxu0 0.0
  %592 = vmatpush1.msra.mxu0 %v76
  %593 = vmatprep.subr.mxu0 0.0
  %594 = vmatpush1.msra.mxu0 %v75
  %595 = vmatprep.subr.mxu0 0.0
  %596 = vmatpush1.msra.mxu0 %v74
  %597 = vmatprep.subr.mxu0 0.0
  %598 = vmatpush1.msra.mxu0 %v73
  %599 = vmatprep.subr.mxu0 0.0
  %600 = vmatpush2.msra.mxu0 0.0
  %601 = vmatprep.subr.mxu0 0.0
  %602 = vmatpush2.msra.mxu0 0.0
  %603 = vmatprep.subr.mxu0 0.0
  %604 = vmatpush2.msra.mxu0 0.0
  %605 = vmatprep.subr.mxu0 0.0
  %606 = vmatpush2.msra.mxu0 0.0
  %607 = vmatprep.subr.mxu0 0.0
  %608 = vmatpush2.msra.mxu0 0.0
  %609 = vmatprep.subr.mxu0 0.0
  %610 = vmatpush2.msra.mxu0 0.0
  %611 = vmatprep.subr.mxu0 0.0
  %612 = vmatpush2.msra.mxu0 0.0
  %613 = vmatprep.subr.mxu0 0.0
  %614 = vmatpush2.msra.mxu0 0.0
  %615 = vmatprep.subr.mxu0 0.0
  %616 = vmatpush2.msra.mxu0 0.0
  %617 = vmatprep.subr.mxu0 0.0
  %618 = vmatpush2.msra.mxu0 0.0
  %619 = vmatprep.subr.mxu0 0.0
  %620 = vmatpush2.msra.mxu0 0.0
  %621 = vmatprep.subr.mxu0 0.0
  %622 = vmatpush2.msra.mxu0 0.0
  %623 = vmatprep.subr.mxu0 0.0
  %624 = vmatpush2.msra.mxu0 0.0
  %625 = vmatprep.subr.mxu0 0.0
  %626 = vmatpush2.msra.mxu0 0.0
  %627 = vmatprep.subr.mxu0 0.0
  %628 = vmatpush2.msra.mxu0 0.0
  %629 = vmatprep.subr.mxu0 0.0
  %630 = vmatpush2.msra.mxu0 0.0
  %631 = vmatprep.mubr.f32.mxu0 0.0
  %632 = vmatmul.mubr.f32.gmra.mxu0 %v562
  %v633 = vpop.f32.mrf.mxu0
  %v634 = vadd.f32 0.0, %v633
  %v635 = vpop.f32.mrf.mxu0
  %636 = vmatprep.mubr.f32.mxu0 0.0
  %637 = vmatmul.mubr.f32.gmra.mxu0 %v565
  %v638 = vpop.f32.mrf.mxu0
  %v639 = vadd.f32 0.0, %v638
  %v640 = vpop.f32.mrf.mxu0
  %641 = vdwg.mxu0
  %v642 = vmul.f32 %v559, %v559
  %v643 = vmul.f32 %v560, %v560
  %v645 = vsel %vm101, %v642, 0
  %v648 = vsel %vm101, %v643, 0
  %650 = vmatprep.subr.mxu0 0.0
  %651 = vmatpush1.msra.mxu0 0.0
  %652 = vmatprep.subr.mxu0 0.0
  %653 = vmatpush1.msra.mxu0 0.0
  %654 = vmatprep.subr.mxu0 0.0
  %655 = vmatpush1.msra.mxu0 0.0
  %656 = vmatprep.subr.mxu0 0.0
  %657 = vmatpush1.msra.mxu0 0.0
  %658 = vmatprep.subr.mxu0 0.0
  %659 = vmatpush1.msra.mxu0 0.0
  %660 = vmatprep.subr.mxu0 0.0
  %661 = vmatpush1.msra.mxu0 0.0
  %662 = vmatprep.subr.mxu0 0.0
  %663 = vmatpush1.msra.mxu0 0.0
  %664 = vmatprep.subr.mxu0 0.0
  %665 = vmatpush1.msra.mxu0 0.0
  %666 = vmatprep.subr.mxu0 0.0
  %667 = vmatpush1.msra.mxu0 0.0
  %668 = vmatprep.subr.mxu0 0.0
  %669 = vmatpush1.msra.mxu0 0.0
  %670 = vmatprep.subr.mxu0 0.0
  %671 = vmatpush1.msra.mxu0 0.0
  %672 = vmatprep.subr.mxu0 0.0
  %673 = vmatpush1.msra.mxu0 0.0
  %674 = vmatprep.subr.mxu0 0.0
  %675 = vmatpush1.msra.mxu0 %v76
  %676 = vmatprep.subr.mxu0 0.0
  %677 = vmatpush1.msra.mxu0 %v75
  %678 = vmatprep.subr.mxu0 0.0
  %679 = vmatpush1.msra.mxu0 %v74
  %680 = vmatprep.subr.mxu0 0.0
  %681 = vmatpush1.msra.mxu0 %v73
  %682 = vmatprep.subr.mxu0 0.0
  %683 = vmatpush2.msra.mxu0 0.0
  %684 = vmatprep.subr.mxu0 0.0
  %685 = vmatpush2.msra.mxu0 0.0
  %686 = vmatprep.subr.mxu0 0.0
  %687 = vmatpush2.msra.mxu0 0.0
  %688 = vmatprep.subr.mxu0 0.0
  %689 = vmatpush2.msra.mxu0 0.0
  %690 = vmatprep.subr.mxu0 0.0
  %691 = vmatpush2.msra.mxu0 0.0
  %692 = vmatprep.subr.mxu0 0.0
  %693 = vmatpush2.msra.mxu0 0.0
  %694 = vmatprep.subr.mxu0 0.0
  %695 = vmatpush2.msra.mxu0 0.0
  %696 = vmatprep.subr.mxu0 0.0
  %697 = vmatpush2.msra.mxu0 0.0
  %698 = vmatprep.subr.mxu0 0.0
  %699 = vmatpush2.msra.mxu0 0.0
  %700 = vmatprep.subr.mxu0 0.0
  %701 = vmatpush2.msra.mxu0 0.0
  %702 = vmatprep.subr.mxu0 0.0
  %703 = vmatpush2.msra.mxu0 0.0
  %704 = vmatprep.subr.mxu0 0.0
  %705 = vmatpush2.msra.mxu0 0.0
  %706 = vmatprep.subr.mxu0 0.0
  %707 = vmatpush2.msra.mxu0 0.0
  %708 = vmatprep.subr.mxu0 0.0
  %709 = vmatpush2.msra.mxu0 0.0
  %710 = vmatprep.subr.mxu0 0.0
  %711 = vmatpush2.msra.mxu0 0.0
  %712 = vmatprep.subr.mxu0 0.0
  %713 = vmatpush2.msra.mxu0 0.0
  %714 = vmatprep.mubr.f32.mxu0 0.0
  %715 = vmatmul.mubr.f32.gmra.mxu0 %v645
  %v716 = vpop.f32.mrf.mxu0
  %v717 = vadd.f32 0.0, %v716
  %v718 = vpop.f32.mrf.mxu0
  %719 = vmatprep.mubr.f32.mxu0 0.0
  %720 = vmatmul.mubr.f32.gmra.mxu0 %v648
  %v721 = vpop.f32.mrf.mxu0
  %v722 = vadd.f32 0.0, %v721
  %v723 = vpop.f32.mrf.mxu0
  %724 = vdwg.mxu0
  %v725 = vmul.f32 %v634, 0.125
  %v726 = vmul.f32 %v639, 0.125
  %v727 = vmul.f32 %v717, 0.125
  %v728 = vmul.f32 %v722, 0.125
  %v729 = vmul.f32 %v725, %v725
  %v730 = vmul.f32 %v726, %v726
  %v731 = vsub.f32 %v727, %v729
  %v732 = vsub.f32 %v728, %v730
  %v733 = vadd.f32 %v731, 1e-05
  %v734 = vadd.f32 %v732, 1e-05
  %v735 = vrsqrt.pop %v733
  %v736 = vrsqrt.pop %v734
  %v738 = vsel %vm307, %v725, 0
  %v741 = vsel %vm307, %v726, 0
  %743 = vmatprep.subr.mxu0 0.0
  %744 = vmatpush1.msra.mxu0 0.0
  %745 = vmatprep.subr.mxu0 0.0
  %746 = vmatpush1.msra.mxu0 0.0
  %747 = vmatprep.subr.mxu0 0.0
  %748 = vmatpush1.msra.mxu0 0.0
  %749 = vmatprep.subr.mxu0 0.0
  %750 = vmatpush1.msra.mxu0 0.0
  %751 = vmatprep.subr.mxu0 0.0
  %752 = vmatpush1.msra.mxu0 0.0
  %753 = vmatprep.subr.mxu0 0.0
  %754 = vmatpush1.msra.mxu0 0.0
  %755 = vmatprep.subr.mxu0 0.0
  %756 = vmatpush1.msra.mxu0 0.0
  %757 = vmatprep.subr.mxu0 0.0
  %758 = vmatpush1.msra.mxu0 0.0
  %759 = vmatprep.subr.mxu0 0.0
  %760 = vmatpush1.msra.mxu0 0.0
  %761 = vmatprep.subr.mxu0 0.0
  %762 = vmatpush1.msra.mxu0 0.0
  %763 = vmatprep.subr.mxu0 0.0
  %764 = vmatpush1.msra.mxu0 0.0
  %765 = vmatprep.subr.mxu0 0.0
  %766 = vmatpush1.msra.mxu0 0.0
  %767 = vmatprep.subr.mxu0 0.0
  %768 = vmatpush1.msra.mxu0 0.0
  %769 = vmatprep.subr.mxu0 0.0
  %770 = vmatpush1.msra.mxu0 0.0
  %771 = vmatprep.subr.mxu0 0.0
  %772 = vmatpush1.msra.mxu0 0.0
  %773 = vmatprep.subr.mxu0 0.0
  %774 = vmatpush1.msra.mxu0 %v313
  %775 = vmatprep.subr.mxu0 0.0
  %776 = vmatpush2.msra.mxu0 0.0
  %777 = vmatprep.subr.mxu0 0.0
  %778 = vmatpush2.msra.mxu0 0.0
  %779 = vmatprep.subr.mxu0 0.0
  %780 = vmatpush2.msra.mxu0 0.0
  %781 = vmatprep.subr.mxu0 0.0
  %782 = vmatpush2.msra.mxu0 0.0
  %783 = vmatprep.subr.mxu0 0.0
  %784 = vmatpush2.msra.mxu0 0.0
  %785 = vmatprep.subr.mxu0 0.0
  %786 = vmatpush2.msra.mxu0 0.0
  %787 = vmatprep.subr.mxu0 0.0
  %788 = vmatpush2.msra.mxu0 0.0
  %789 = vmatprep.subr.mxu0 0.0
  %790 = vmatpush2.msra.mxu0 0.0
  %791 = vmatprep.subr.mxu0 0.0
  %792 = vmatpush2.msra.mxu0 0.0
  %793 = vmatprep.subr.mxu0 0.0
  %794 = vmatpush2.msra.mxu0 0.0
  %795 = vmatprep.subr.mxu0 0.0
  %796 = vmatpush2.msra.mxu0 0.0
  %797 = vmatprep.subr.mxu0 0.0
  %798 = vmatpush2.msra.mxu0 0.0
  %799 = vmatprep.subr.mxu0 0.0
  %800 = vmatpush2.msra.mxu0 0.0
  %801 = vmatprep.subr.mxu0 0.0
  %802 = vmatpush2.msra.mxu0 0.0
  %803 = vmatprep.subr.mxu0 0.0
  %804 = vmatpush2.msra.mxu0 0.0
  %805 = vmatprep.subr.mxu0 0.0
  %806 = vmatpush2.msra.mxu0 0.0
  %807 = vmatprep.mubr.f32.mxu0 0.0
  %808 = vmatmul.mubr.f32.gmra.mxu0 %v738
  %v809 = vpop.f32.mrf.mxu0
  %v810 = vadd.f32 0.0, %v809
  %v811 = vpop.f32.mrf.mxu0
  %812 = vmatprep.mubr.f32.mxu0 0.0
  %813 = vmatmul.mubr.f32.gmra.mxu0 %v741
  %v814 = vpop.f32.mrf.mxu0
  %v815 = vadd.f32 0.0, %v814
  %v816 = vpop.f32.mrf.mxu0
  %817 = vdwg.mxu0
  %v819 = vsel %vm307, %v735, 0
  %v822 = vsel %vm307, %v736, 0
  %824 = vmatprep.subr.mxu0 0.0
  %825 = vmatpush1.msra.mxu0 0.0
  %826 = vmatprep.subr.mxu0 0.0
  %827 = vmatpush1.msra.mxu0 0.0
  %828 = vmatprep.subr.mxu0 0.0
  %829 = vmatpush1.msra.mxu0 0.0
  %830 = vmatprep.subr.mxu0 0.0
  %831 = vmatpush1.msra.mxu0 0.0
  %832 = vmatprep.subr.mxu0 0.0
  %833 = vmatpush1.msra.mxu0 0.0
  %834 = vmatprep.subr.mxu0 0.0
  %835 = vmatpush1.msra.mxu0 0.0
  %836 = vmatprep.subr.mxu0 0.0
  %837 = vmatpush1.msra.mxu0 0.0
  %838 = vmatprep.subr.mxu0 0.0
  %839 = vmatpush1.msra.mxu0 0.0
  %840 = vmatprep.subr.mxu0 0.0
  %841 = vmatpush1.msra.mxu0 0.0
  %842 = vmatprep.subr.mxu0 0.0
  %843 = vmatpush1.msra.mxu0 0.0
  %844 = vmatprep.subr.mxu0 0.0
  %845 = vmatpush1.msra.mxu0 0.0
  %846 = vmatprep.subr.mxu0 0.0
  %847 = vmatpush1.msra.mxu0 0.0
  %848 = vmatprep.subr.mxu0 0.0
  %849 = vmatpush1.msra.mxu0 0.0
  %850 = vmatprep.subr.mxu0 0.0
  %851 = vmatpush1.msra.mxu0 0.0
  %852 = vmatprep.subr.mxu0 0.0
  %853 = vmatpush1.msra.mxu0 0.0
  %854 = vmatprep.subr.mxu0 0.0
  %855 = vmatpush1.msra.mxu0 %v313
  %856 = vmatprep.subr.mxu0 0.0
  %857 = vmatpush2.msra.mxu0 0.0
  %858 = vmatprep.subr.mxu0 0.0
  %859 = vmatpush2.msra.mxu0 0.0
  %860 = vmatprep.subr.mxu0 0.0
  %861 = vmatpush2.msra.mxu0 0.0
  %862 = vmatprep.subr.mxu0 0.0
  %863 = vmatpush2.msra.mxu0 0.0
  %864 = vmatprep.subr.mxu0 0.0
  %865 = vmatpush2.msra.mxu0 0.0
  %866 = vmatprep.subr.mxu0 0.0
  %867 = vmatpush2.msra.mxu0 0.0
  %868 = vmatprep.subr.mxu0 0.0
  %869 = vmatpush2.msra.mxu0 0.0
  %870 = vmatprep.subr.mxu0 0.0
  %871 = vmatpush2.msra.mxu0 0.0
  %872 = vmatprep.subr.mxu0 0.0
  %873 = vmatpush2.msra.mxu0 0.0
  %874 = vmatprep.subr.mxu0 0.0
  %875 = vmatpush2.msra.mxu0 0.0
  %876 = vmatprep.subr.mxu0 0.0
  %877 = vmatpush2.msra.mxu0 0.0
  %878 = vmatprep.subr.mxu0 0.0
  %879 = vmatpush2.msra.mxu0 0.0
  %880 = vmatprep.subr.mxu0 0.0
  %881 = vmatpush2.msra.mxu0 0.0
  %882 = vmatprep.subr.mxu0 0.0
  %883 = vmatpush2.msra.mxu0 0.0
  %884 = vmatprep.subr.mxu0 0.0
  %885 = vmatpush2.msra.mxu0 0.0
  %886 = vmatprep.subr.mxu0 0.0
  %887 = vmatpush2.msra.mxu0 0.0
  %888 = vmatprep.mubr.f32.mxu0 0.0
  %889 = vmatmul.mubr.f32.gmra.mxu0 %v819
  %v890 = vpop.f32.mrf.mxu0
  %v891 = vadd.f32 0.0, %v890
  %v892 = vpop.f32.mrf.mxu0
  %893 = vmatprep.mubr.f32.mxu0 0.0
  %894 = vmatmul.mubr.f32.gmra.mxu0 %v822
  %v895 = vpop.f32.mrf.mxu0
  %v896 = vadd.f32 0.0, %v895
  %v897 = vpop.f32.mrf.mxu0
  %898 = vdwg.mxu0
  %v899 = vsub.f32 %v559, %v810
  %v900 = vsub.f32 %v560, %v815
  %v901 = vmul.f32 %v899, %v891
  %v902 = vmul.f32 %v900, %v896
  %s903 = scalar_lea.vmem %s5, 1
  %v904 = vld [vmem:[%s903] sm:$0x1]
  %v906 = vlaneseq
  %v907 = vshrl.u32 %v906, 7
  %v908 = vsub.s32 0, %v907
  %v909 = vrot.slane %v904, %v908
  %v911 = vmul.f32 %v901, %v909
  %v912 = vmul.f32 %v902, %v909
  %s913 = scalar_lea.vmem %s6, 1
  %v914 = vld [vmem:[%s913] sm:$0x1]
  %v916 = vlaneseq
  %v917 = vshrl.u32 %v916, 7
  %v918 = vsub.s32 0, %v917
  %v919 = vrot.slane %v914, %v918
  %v921 = vadd.f32 %v911, %v919
  %v922 = vadd.f32 %v912, %v919
  %s923 = scalar_lea.vmem %s3, 32
  %v924 = vld [vmem:[%s923] sm:$0xf]
  %v925 = vld [vmem:[%s923 + $0x4] sm:$0xf]
  %v926 = vld [vmem:[%s923 + $0x8] sm:$0xf]
  %v927 = vld [vmem:[%s923 + $0xc] sm:$0xf]
  %s928 = scalar_lea.vmem %s4, 2
  %v929 = vld [vmem:[%s928] sm:$0x1]
  %v931 = vlaneseq
  %v932 = vshrl.u32 %v931, 7
  %v933 = vsub.s32 0, %v932
  %v934 = vrot.slane %v929, %v933
  %v940 = vunpack.c.l.b16 %v924
  %v941 = vunpack.c.l.b16 %v925
  %v942 = vunpack.c.l.b16 %v926
  %v943 = vunpack.c.l.b16 %v927
  %v944 = vpack.c.b16 %v941, %v940
  %v945 = vpack.c.b16 %v943, %v942
  %948 = vmatprep.subr.bf16.mxu0 0
  %949 = vmatpush1.bf16.msra.mxu0 0
  %950 = vmatprep.subr.bf16.mxu0 0
  %951 = vmatpush1.bf16.msra.mxu0 0
  %952 = vmatprep.subr.bf16.mxu0 0
  %953 = vmatpush1.bf16.msra.mxu0 0
  %954 = vmatprep.subr.bf16.mxu0 0
  %955 = vmatpush1.bf16.msra.mxu0 0
  %956 = vmatprep.subr.bf16.mxu0 0
  %957 = vmatpush1.bf16.msra.mxu0 0
  %958 = vmatprep.subr.bf16.mxu0 0
  %959 = vmatpush1.bf16.msra.mxu0 0
  %960 = vmatprep.subr.bf16.mxu0 0
  %961 = vmatpush1.bf16.msra.mxu0 %v945
  %962 = vmatprep.subr.bf16.mxu0 0
  %963 = vmatpush1.bf16.msra.mxu0 %v944
  %964 = vmatprep.subr.bf16.mxu0 0
  %965 = vmatpush2.bf16.msra.mxu0 0
  %966 = vmatprep.subr.bf16.mxu0 0
  %967 = vmatpush2.bf16.msra.mxu0 0
  %968 = vmatprep.subr.bf16.mxu0 0
  %969 = vmatpush2.bf16.msra.mxu0 0
  %970 = vmatprep.subr.bf16.mxu0 0
  %971 = vmatpush2.bf16.msra.mxu0 0
  %972 = vmatprep.subr.bf16.mxu0 0
  %973 = vmatpush2.bf16.msra.mxu0 0
  %974 = vmatprep.subr.bf16.mxu0 0
  %975 = vmatpush2.bf16.msra.mxu0 0
  %976 = vmatprep.subr.bf16.mxu0 0
  %977 = vmatpush2.bf16.msra.mxu0 0
  %978 = vmatprep.subr.bf16.mxu0 0
  %979 = vmatpush2.bf16.msra.mxu0 0
  %980 = vmatprep.mubr.bf16.mxu0 0
  %981 = vmatmul.mubr.bf16.gmra.mxu0 %v103
  %v982 = vpop.f32.mrf.mxu0
  %v983 = vadd.f32 %v934, %v982
  %v984 = vpop.f32.mrf.mxu0
  %v985 = vpop.f32.mrf.mxu0
  %v986 = vpop.f32.mrf.mxu0
  %987 = vdwg.mxu0
  %v988 = vmax.f32 %v983, 0.0
  %v989 = vmul.f32 %v983, %v146
  %v990 = vmul.f32 %v989, 1.442695
  %v991 = vpow.pop %v990
  %v992 = vsub.f32 %v991, 1.0
  %v993 = vmul.f32 %v992, 1.3
  %v994 = vmin.f32 %v993, 0.0
  %v995 = vadd.f32 %v988, %v994
  %v997 = vsel %vm101, %v995, 0
  %999 = vmatprep.subr.mxu0 0.0
  %1000 = vmatpush1.msra.mxu0 0.0
  %1001 = vmatprep.subr.mxu0 0.0
  %1002 = vmatpush1.msra.mxu0 0.0
  %1003 = vmatprep.subr.mxu0 0.0
  %1004 = vmatpush1.msra.mxu0 0.0
  %1005 = vmatprep.subr.mxu0 0.0
  %1006 = vmatpush1.msra.mxu0 0.0
  %1007 = vmatprep.subr.mxu0 0.0
  %1008 = vmatpush1.msra.mxu0 0.0
  %1009 = vmatprep.subr.mxu0 0.0
  %1010 = vmatpush1.msra.mxu0 0.0
  %1011 = vmatprep.subr.mxu0 0.0
  %1012 = vmatpush1.msra.mxu0 0.0
  %1013 = vmatprep.subr.mxu0 0.0
  %1014 = vmatpush1.msra.mxu0 0.0
  %1015 = vmatprep.subr.mxu0 0.0
  %1016 = vmatpush1.msra.mxu0 0.0
  %1017 = vmatprep.subr.mxu0 0.0
  %1018 = vmatpush1.msra.mxu0 0.0
  %1019 = vmatprep.subr.mxu0 0.0
  %1020 = vmatpush1.msra.mxu0 0.0
  %1021 = vmatprep.subr.mxu0 0.0
  %1022 = vmatpush1.msra.mxu0 0.0
  %1023 = vmatprep.subr.mxu0 0.0
  %1024 = vmatpush1.msra.mxu0 %v76
  %1025 = vmatprep.subr.mxu0 0.0
  %1026 = vmatpush1.msra.mxu0 %v75
  %1027 = vmatprep.subr.mxu0 0.0
  %1028 = vmatpush1.msra.mxu0 %v74
  %1029 = vmatprep.subr.mxu0 0.0
  %1030 = vmatpush1.msra.mxu0 %v73
  %1031 = vmatprep.subr.mxu0 0.0
  %1032 = vmatpush2.msra.mxu0 0.0
  %1033 = vmatprep.subr.mxu0 0.0
  %1034 = vmatpush2.msra.mxu0 0.0
  %1035 = vmatprep.subr.mxu0 0.0
  %1036 = vmatpush2.msra.mxu0 0.0
  %1037 = vmatprep.subr.mxu0 0.0
  %1038 = vmatpush2.msra.mxu0 0.0
  %1039 = vmatprep.subr.mxu0 0.0
  %1040 = vmatpush2.msra.mxu0 0.0
  %1041 = vmatprep.subr.mxu0 0.0
  %1042 = vmatpush2.msra.mxu0 0.0
  %1043 = vmatprep.subr.mxu0 0.0
  %1044 = vmatpush2.msra.mxu0 0.0
  %1045 = vmatprep.subr.mxu0 0.0
  %1046 = vmatpush2.msra.mxu0 0.0
  %1047 = vmatprep.subr.mxu0 0.0
  %1048 = vmatpush2.msra.mxu0 0.0
  %1049 = vmatprep.subr.mxu0 0.0
  %1050 = vmatpush2.msra.mxu0 0.0
  %1051 = vmatprep.subr.mxu0 0.0
  %1052 = vmatpush2.msra.mxu0 0.0
  %1053 = vmatprep.subr.mxu0 0.0
  %1054 = vmatpush2.msra.mxu0 0.0
  %1055 = vmatprep.subr.mxu0 0.0
  %1056 = vmatpush2.msra.mxu0 0.0
  %1057 = vmatprep.subr.mxu0 0.0
  %1058 = vmatpush2.msra.mxu0 0.0
  %1059 = vmatprep.subr.mxu0 0.0
  %1060 = vmatpush2.msra.mxu0 0.0
  %1061 = vmatprep.subr.mxu0 0.0
  %1062 = vmatpush2.msra.mxu0 0.0
  %1063 = vmatprep.mubr.f32.mxu0 0.0
  %1064 = vmatmul.mubr.f32.gmra.mxu0 %v997
  %v1065 = vpop.f32.mrf.mxu0
  %v1066 = vadd.f32 0.0, %v1065
  %v1067 = vpop.f32.mrf.mxu0
  %1068 = vdwg.mxu0
  %v1069 = vmul.f32 %v995, %v995
  %v1071 = vsel %vm101, %v1069, 0
  %1073 = vmatprep.subr.mxu0 0.0
  %1074 = vmatpush1.msra.mxu0 0.0
  %1075 = vmatprep.subr.mxu0 0.0
  %1076 = vmatpush1.msra.mxu0 0.0
  %1077 = vmatprep.subr.mxu0 0.0
  %1078 = vmatpush1.msra.mxu0 0.0
  %1079 = vmatprep.subr.mxu0 0.0
  %1080 = vmatpush1.msra.mxu0 0.0
  %1081 = vmatprep.subr.mxu0 0.0
  %1082 = vmatpush1.msra.mxu0 0.0
  %1083 = vmatprep.subr.mxu0 0.0
  %1084 = vmatpush1.msra.mxu0 0.0
  %1085 = vmatprep.subr.mxu0 0.0
  %1086 = vmatpush1.msra.mxu0 0.0
  %1087 = vmatprep.subr.mxu0 0.0
  %1088 = vmatpush1.msra.mxu0 0.0
  %1089 = vmatprep.subr.mxu0 0.0
  %1090 = vmatpush1.msra.mxu0 0.0
  %1091 = vmatprep.subr.mxu0 0.0
  %1092 = vmatpush1.msra.mxu0 0.0
  %1093 = vmatprep.subr.mxu0 0.0
  %1094 = vmatpush1.msra.mxu0 0.0
  %1095 = vmatprep.subr.mxu0 0.0
  %1096 = vmatpush1.msra.mxu0 0.0
  %1097 = vmatprep.subr.mxu0 0.0
  %1098 = vmatpush1.msra.mxu0 %v76
  %1099 = vmatprep.subr.mxu0 0.0
  %1100 = vmatpush1.msra.mxu0 %v75
  %1101 = vmatprep.subr.mxu0 0.0
  %1102 = vmatpush1.msra.mxu0 %v74
  %1103 = vmatprep.subr.mxu0 0.0
  %1104 = vmatpush1.msra.mxu0 %v73
  %1105 = vmatprep.subr.mxu0 0.0
  %1106 = vmatpush2.msra.mxu0 0.0
  %1107 = vmatprep.subr.mxu0 0.0
  %1108 = vmatpush2.msra.mxu0 0.0
  %1109 = vmatprep.subr.mxu0 0.0
  %1110 = vmatpush2.msra.mxu0 0.0
  %1111 = vmatprep.subr.mxu0 0.0
  %1112 = vmatpush2.msra.mxu0 0.0
  %1113 = vmatprep.subr.mxu0 0.0
  %1114 = vmatpush2.msra.mxu0 0.0
  %1115 = vmatprep.subr.mxu0 0.0
  %1116 = vmatpush2.msra.mxu0 0.0
  %1117 = vmatprep.subr.mxu0 0.0
  %1118 = vmatpush2.msra.mxu0 0.0
  %1119 = vmatprep.subr.mxu0 0.0
  %1120 = vmatpush2.msra.mxu0 0.0
  %1121 = vmatprep.subr.mxu0 0.0
  %1122 = vmatpush2.msra.mxu0 0.0
  %1123 = vmatprep.subr.mxu0 0.0
  %1124 = vmatpush2.msra.mxu0 0.0
  %1125 = vmatprep.subr.mxu0 0.0
  %1126 = vmatpush2.msra.mxu0 0.0
  %1127 = vmatprep.subr.mxu0 0.0
  %1128 = vmatpush2.msra.mxu0 0.0
  %1129 = vmatprep.subr.mxu0 0.0
  %1130 = vmatpush2.msra.mxu0 0.0
  %1131 = vmatprep.subr.mxu0 0.0
  %1132 = vmatpush2.msra.mxu0 0.0
  %1133 = vmatprep.subr.mxu0 0.0
  %1134 = vmatpush2.msra.mxu0 0.0
  %1135 = vmatprep.subr.mxu0 0.0
  %1136 = vmatpush2.msra.mxu0 0.0
  %1137 = vmatprep.mubr.f32.mxu0 0.0
  %1138 = vmatmul.mubr.f32.gmra.mxu0 %v1071
  %v1139 = vpop.f32.mrf.mxu0
  %v1140 = vadd.f32 0.0, %v1139
  %v1141 = vpop.f32.mrf.mxu0
  %1142 = vdwg.mxu0
  %v1143 = vmul.f32 %v1066, 0.125
  %v1144 = vmul.f32 %v1140, 0.125
  %v1145 = vmul.f32 %v1143, %v1143
  %v1146 = vsub.f32 %v1144, %v1145
  %v1147 = vadd.f32 %v1146, 1e-05
  %v1148 = vrsqrt.pop %v1147
  %v1150 = vsel %vm307, %v1143, 0
  %1152 = vmatprep.subr.mxu0 0.0
  %1153 = vmatpush1.msra.mxu0 0.0
  %1154 = vmatprep.subr.mxu0 0.0
  %1155 = vmatpush1.msra.mxu0 0.0
  %1156 = vmatprep.subr.mxu0 0.0
  %1157 = vmatpush1.msra.mxu0 0.0
  %1158 = vmatprep.subr.mxu0 0.0
  %1159 = vmatpush1.msra.mxu0 0.0
  %1160 = vmatprep.subr.mxu0 0.0
  %1161 = vmatpush1.msra.mxu0 0.0
  %1162 = vmatprep.subr.mxu0 0.0
  %1163 = vmatpush1.msra.mxu0 0.0
  %1164 = vmatprep.subr.mxu0 0.0
  %1165 = vmatpush1.msra.mxu0 0.0
  %1166 = vmatprep.subr.mxu0 0.0
  %1167 = vmatpush1.msra.mxu0 0.0
  %1168 = vmatprep.subr.mxu0 0.0
  %1169 = vmatpush1.msra.mxu0 0.0
  %1170 = vmatprep.subr.mxu0 0.0
  %1171 = vmatpush1.msra.mxu0 0.0
  %1172 = vmatprep.subr.mxu0 0.0
  %1173 = vmatpush1.msra.mxu0 0.0
  %1174 = vmatprep.subr.mxu0 0.0
  %1175 = vmatpush1.msra.mxu0 0.0
  %1176 = vmatprep.subr.mxu0 0.0
  %1177 = vmatpush1.msra.mxu0 0.0
  %1178 = vmatprep.subr.mxu0 0.0
  %1179 = vmatpush1.msra.mxu0 0.0
  %1180 = vmatprep.subr.mxu0 0.0
  %1181 = vmatpush1.msra.mxu0 0.0
  %1182 = vmatprep.subr.mxu0 0.0
  %1183 = vmatpush1.msra.mxu0 %v313
  %1184 = vmatprep.subr.mxu0 0.0
  %1185 = vmatpush2.msra.mxu0 0.0
  %1186 = vmatprep.subr.mxu0 0.0
  %1187 = vmatpush2.msra.mxu0 0.0
  %1188 = vmatprep.subr.mxu0 0.0
  %1189 = vmatpush2.msra.mxu0 0.0
  %1190 = vmatprep.subr.mxu0 0.0
  %1191 = vmatpush2.msra.mxu0 0.0
  %1192 = vmatprep.subr.mxu0 0.0
  %1193 = vmatpush2.msra.mxu0 0.0
  %1194 = vmatprep.subr.mxu0 0.0
  %1195 = vmatpush2.msra.mxu0 0.0
  %1196 = vmatprep.subr.mxu0 0.0
  %1197 = vmatpush2.msra.mxu0 0.0
  %1198 = vmatprep.subr.mxu0 0.0
  %1199 = vmatpush2.msra.mxu0 0.0
  %1200 = vmatprep.subr.mxu0 0.0
  %1201 = vmatpush2.msra.mxu0 0.0
  %1202 = vmatprep.subr.mxu0 0.0
  %1203 = vmatpush2.msra.mxu0 0.0
  %1204 = vmatprep.subr.mxu0 0.0
  %1205 = vmatpush2.msra.mxu0 0.0
  %1206 = vmatprep.subr.mxu0 0.0
  %1207 = vmatpush2.msra.mxu0 0.0
  %1208 = vmatprep.subr.mxu0 0.0
  %1209 = vmatpush2.msra.mxu0 0.0
  %1210 = vmatprep.subr.mxu0 0.0
  %1211 = vmatpush2.msra.mxu0 0.0
  %1212 = vmatprep.subr.mxu0 0.0
  %1213 = vmatpush2.msra.mxu0 0.0
  %1214 = vmatprep.subr.mxu0 0.0
  %1215 = vmatpush2.msra.mxu0 0.0
  %1216 = vmatprep.mubr.f32.mxu0 0.0
  %1217 = vmatmul.mubr.f32.gmra.mxu0 %v1150
  %v1218 = vpop.f32.mrf.mxu0
  %v1219 = vadd.f32 0.0, %v1218
  %v1220 = vpop.f32.mrf.mxu0
  %1221 = vdwg.mxu0
  %v1223 = vsel %vm307, %v1148, 0
  %1225 = vmatprep.subr.mxu0 0.0
  %1226 = vmatpush1.msra.mxu0 0.0
  %1227 = vmatprep.subr.mxu0 0.0
  %1228 = vmatpush1.msra.mxu0 0.0
  %1229 = vmatprep.subr.mxu0 0.0
  %1230 = vmatpush1.msra.mxu0 0.0
  %1231 = vmatprep.subr.mxu0 0.0
  %1232 = vmatpush1.msra.mxu0 0.0
  %1233 = vmatprep.subr.mxu0 0.0
  %1234 = vmatpush1.msra.mxu0 0.0
  %1235 = vmatprep.subr.mxu0 0.0
  %1236 = vmatpush1.msra.mxu0 0.0
  %1237 = vmatprep.subr.mxu0 0.0
  %1238 = vmatpush1.msra.mxu0 0.0
  %1239 = vmatprep.subr.mxu0 0.0
  %1240 = vmatpush1.msra.mxu0 0.0
  %1241 = vmatprep.subr.mxu0 0.0
  %1242 = vmatpush1.msra.mxu0 0.0
  %1243 = vmatprep.subr.mxu0 0.0
  %1244 = vmatpush1.msra.mxu0 0.0
  %1245 = vmatprep.subr.mxu0 0.0
  %1246 = vmatpush1.msra.mxu0 0.0
  %1247 = vmatprep.subr.mxu0 0.0
  %1248 = vmatpush1.msra.mxu0 0.0
  %1249 = vmatprep.subr.mxu0 0.0
  %1250 = vmatpush1.msra.mxu0 0.0
  %1251 = vmatprep.subr.mxu0 0.0
  %1252 = vmatpush1.msra.mxu0 0.0
  %1253 = vmatprep.subr.mxu0 0.0
  %1254 = vmatpush1.msra.mxu0 0.0
  %1255 = vmatprep.subr.mxu0 0.0
  %1256 = vmatpush1.msra.mxu0 %v313
  %1257 = vmatprep.subr.mxu0 0.0
  %1258 = vmatpush2.msra.mxu0 0.0
  %1259 = vmatprep.subr.mxu0 0.0
  %1260 = vmatpush2.msra.mxu0 0.0
  %1261 = vmatprep.subr.mxu0 0.0
  %1262 = vmatpush2.msra.mxu0 0.0
  %1263 = vmatprep.subr.mxu0 0.0
  %1264 = vmatpush2.msra.mxu0 0.0
  %1265 = vmatprep.subr.mxu0 0.0
  %1266 = vmatpush2.msra.mxu0 0.0
  %1267 = vmatprep.subr.mxu0 0.0
  %1268 = vmatpush2.msra.mxu0 0.0
  %1269 = vmatprep.subr.mxu0 0.0
  %1270 = vmatpush2.msra.mxu0 0.0
  %1271 = vmatprep.subr.mxu0 0.0
  %1272 = vmatpush2.msra.mxu0 0.0
  %1273 = vmatprep.subr.mxu0 0.0
  %1274 = vmatpush2.msra.mxu0 0.0
  %1275 = vmatprep.subr.mxu0 0.0
  %1276 = vmatpush2.msra.mxu0 0.0
  %1277 = vmatprep.subr.mxu0 0.0
  %1278 = vmatpush2.msra.mxu0 0.0
  %1279 = vmatprep.subr.mxu0 0.0
  %1280 = vmatpush2.msra.mxu0 0.0
  %1281 = vmatprep.subr.mxu0 0.0
  %1282 = vmatpush2.msra.mxu0 0.0
  %1283 = vmatprep.subr.mxu0 0.0
  %1284 = vmatpush2.msra.mxu0 0.0
  %1285 = vmatprep.subr.mxu0 0.0
  %1286 = vmatpush2.msra.mxu0 0.0
  %1287 = vmatprep.subr.mxu0 0.0
  %1288 = vmatpush2.msra.mxu0 0.0
  %1289 = vmatprep.mubr.f32.mxu0 0.0
  %1290 = vmatmul.mubr.f32.gmra.mxu0 %v1223
  %v1291 = vpop.f32.mrf.mxu0
  %v1292 = vadd.f32 0.0, %v1291
  %v1293 = vpop.f32.mrf.mxu0
  %1294 = vdwg.mxu0
  %v1295 = vsub.f32 %v995, %v1219
  %v1296 = vmul.f32 %v1295, %v1292
  %s1297 = scalar_lea.vmem %s5, 2
  %v1298 = vld [vmem:[%s1297] sm:$0x1]
  %v1300 = vlaneseq
  %v1301 = vshrl.u32 %v1300, 7
  %v1302 = vsub.s32 0, %v1301
  %v1303 = vrot.slane %v1298, %v1302
  %v1305 = vmul.f32 %v1296, %v1303
  %s1306 = scalar_lea.vmem %s6, 2
  %v1307 = vld [vmem:[%s1306] sm:$0x1]
  %v1309 = vlaneseq
  %v1310 = vshrl.u32 %v1309, 7
  %v1311 = vsub.s32 0, %v1310
  %v1312 = vrot.slane %v1307, %v1311
  %v1314 = vadd.f32 %v1305, %v1312
  %s1315 = scalar_lea.vmem %s3, 48
  %v1316 = vld [vmem:[%s1315] sm:$0xf]
  %v1317 = vld [vmem:[%s1315 + $0x4] sm:$0xf]
  %v1318 = vld [vmem:[%s1315 + $0x8] sm:$0xf]
  %v1319 = vld [vmem:[%s1315 + $0xc] sm:$0xf]
  %s1320 = scalar_lea.vmem %s4, 3
  %v1321 = vld [vmem:[%s1320] sm:$0x1]
  %v1323 = vlaneseq
  %v1324 = vshrl.u32 %v1323, 7
  %v1325 = vsub.s32 0, %v1324
  %v1326 = vrot.slane %v1321, %v1325
  %v1332 = vunpack.c.l.b16 %v1316
  %v1333 = vunpack.c.l.b16 %v1317
  %v1334 = vunpack.c.l.b16 %v1318
  %v1335 = vunpack.c.l.b16 %v1319
  %v1336 = vpack.c.b16 %v1333, %v1332
  %v1337 = vpack.c.b16 %v1335, %v1334
  %1340 = vmatprep.subr.bf16.mxu0 0
  %1341 = vmatpush1.bf16.msra.mxu0 0
  %1342 = vmatprep.subr.bf16.mxu0 0
  %1343 = vmatpush1.bf16.msra.mxu0 0
  %1344 = vmatprep.subr.bf16.mxu0 0
  %1345 = vmatpush1.bf16.msra.mxu0 0
  %1346 = vmatprep.subr.bf16.mxu0 0
  %1347 = vmatpush1.bf16.msra.mxu0 0
  %1348 = vmatprep.subr.bf16.mxu0 0
  %1349 = vmatpush1.bf16.msra.mxu0 0
  %1350 = vmatprep.subr.bf16.mxu0 0
  %1351 = vmatpush1.bf16.msra.mxu0 0
  %1352 = vmatprep.subr.bf16.mxu0 0
  %1353 = vmatpush1.bf16.msra.mxu0 %v1337
  %1354 = vmatprep.subr.bf16.mxu0 0
  %1355 = vmatpush1.bf16.msra.mxu0 %v1336
  %1356 = vmatprep.subr.bf16.mxu0 0
  %1357 = vmatpush2.bf16.msra.mxu0 0
  %1358 = vmatprep.subr.bf16.mxu0 0
  %1359 = vmatpush2.bf16.msra.mxu0 0
  %1360 = vmatprep.subr.bf16.mxu0 0
  %1361 = vmatpush2.bf16.msra.mxu0 0
  %1362 = vmatprep.subr.bf16.mxu0 0
  %1363 = vmatpush2.bf16.msra.mxu0 0
  %1364 = vmatprep.subr.bf16.mxu0 0
  %1365 = vmatpush2.bf16.msra.mxu0 0
  %1366 = vmatprep.subr.bf16.mxu0 0
  %1367 = vmatpush2.bf16.msra.mxu0 0
  %1368 = vmatprep.subr.bf16.mxu0 0
  %1369 = vmatpush2.bf16.msra.mxu0 0
  %1370 = vmatprep.subr.bf16.mxu0 0
  %1371 = vmatpush2.bf16.msra.mxu0 0
  %1372 = vmatprep.mubr.bf16.mxu0 0
  %1373 = vmatmul.mubr.bf16.gmra.mxu0 %v502
  %v1374 = vpop.f32.mrf.mxu0
  %v1375 = vadd.f32 %v1326, %v1374
  %v1376 = vpop.f32.mrf.mxu0
  %v1377 = vpop.f32.mrf.mxu0
  %v1378 = vadd.f32 %v1326, %v1377
  %v1379 = vpop.f32.mrf.mxu0
  %1380 = vdwg.mxu0
  %v1381 = vmax.f32 %v1375, 0.0
  %v1382 = vmax.f32 %v1378, 0.0
  %v1383 = vmul.f32 %v1375, %v146
  %v1384 = vmul.f32 %v1378, %v146
  %v1385 = vmul.f32 %v1383, 1.442695
  %v1386 = vpow.pop %v1385
  %v1387 = vmul.f32 %v1384, 1.442695
  %v1388 = vpow.pop %v1387
  %v1389 = vsub.f32 %v1386, 1.0
  %v1390 = vsub.f32 %v1388, 1.0
  %v1391 = vmul.f32 %v1389, 1.3
  %v1392 = vmul.f32 %v1390, 1.3
  %v1393 = vmin.f32 %v1391, 0.0
  %v1394 = vmin.f32 %v1392, 0.0
  %v1395 = vadd.f32 %v1381, %v1393
  %v1396 = vadd.f32 %v1382, %v1394
  %v1398 = vsel %vm101, %v1395, 0
  %v1401 = vsel %vm101, %v1396, 0
  %1403 = vmatprep.subr.mxu0 0.0
  %1404 = vmatpush1.msra.mxu0 0.0
  %1405 = vmatprep.subr.mxu0 0.0
  %1406 = vmatpush1.msra.mxu0 0.0
  %1407 = vmatprep.subr.mxu0 0.0
  %1408 = vmatpush1.msra.mxu0 0.0
  %1409 = vmatprep.subr.mxu0 0.0
  %1410 = vmatpush1.msra.mxu0 0.0
  %1411 = vmatprep.subr.mxu0 0.0
  %1412 = vmatpush1.msra.mxu0 0.0
  %1413 = vmatprep.subr.mxu0 0.0
  %1414 = vmatpush1.msra.mxu0 0.0
  %1415 = vmatprep.subr.mxu0 0.0
  %1416 = vmatpush1.msra.mxu0 0.0
  %1417 = vmatprep.subr.mxu0 0.0
  %1418 = vmatpush1.msra.mxu0 0.0
  %1419 = vmatprep.subr.mxu0 0.0
  %1420 = vmatpush1.msra.mxu0 0.0
  %1421 = vmatprep.subr.mxu0 0.0
  %1422 = vmatpush1.msra.mxu0 0.0
  %1423 = vmatprep.subr.mxu0 0.0
  %1424 = vmatpush1.msra.mxu0 0.0
  %1425 = vmatprep.subr.mxu0 0.0
  %1426 = vmatpush1.msra.mxu0 0.0
  %1427 = vmatprep.subr.mxu0 0.0
  %1428 = vmatpush1.msra.mxu0 %v76
  %1429 = vmatprep.subr.mxu0 0.0
  %1430 = vmatpush1.msra.mxu0 %v75
  %1431 = vmatprep.subr.mxu0 0.0
  %1432 = vmatpush1.msra.mxu0 %v74
  %1433 = vmatprep.subr.mxu0 0.0
  %1434 = vmatpush1.msra.mxu0 %v73
  %1435 = vmatprep.subr.mxu0 0.0
  %1436 = vmatpush2.msra.mxu0 0.0
  %1437 = vmatprep.subr.mxu0 0.0
  %1438 = vmatpush2.msra.mxu0 0.0
  %1439 = vmatprep.subr.mxu0 0.0
  %1440 = vmatpush2.msra.mxu0 0.0
  %1441 = vmatprep.subr.mxu0 0.0
  %1442 = vmatpush2.msra.mxu0 0.0
  %1443 = vmatprep.subr.mxu0 0.0
  %1444 = vmatpush2.msra.mxu0 0.0
  %1445 = vmatprep.subr.mxu0 0.0
  %1446 = vmatpush2.msra.mxu0 0.0
  %1447 = vmatprep.subr.mxu0 0.0
  %1448 = vmatpush2.msra.mxu0 0.0
  %1449 = vmatprep.subr.mxu0 0.0
  %1450 = vmatpush2.msra.mxu0 0.0
  %1451 = vmatprep.subr.mxu0 0.0
  %1452 = vmatpush2.msra.mxu0 0.0
  %1453 = vmatprep.subr.mxu0 0.0
  %1454 = vmatpush2.msra.mxu0 0.0
  %1455 = vmatprep.subr.mxu0 0.0
  %1456 = vmatpush2.msra.mxu0 0.0
  %1457 = vmatprep.subr.mxu0 0.0
  %1458 = vmatpush2.msra.mxu0 0.0
  %1459 = vmatprep.subr.mxu0 0.0
  %1460 = vmatpush2.msra.mxu0 0.0
  %1461 = vmatprep.subr.mxu0 0.0
  %1462 = vmatpush2.msra.mxu0 0.0
  %1463 = vmatprep.subr.mxu0 0.0
  %1464 = vmatpush2.msra.mxu0 0.0
  %1465 = vmatprep.subr.mxu0 0.0
  %1466 = vmatpush2.msra.mxu0 0.0
  %1467 = vmatprep.mubr.f32.mxu0 0.0
  %1468 = vmatmul.mubr.f32.gmra.mxu0 %v1398
  %v1469 = vpop.f32.mrf.mxu0
  %v1470 = vadd.f32 0.0, %v1469
  %v1471 = vpop.f32.mrf.mxu0
  %1472 = vmatprep.mubr.f32.mxu0 0.0
  %1473 = vmatmul.mubr.f32.gmra.mxu0 %v1401
  %v1474 = vpop.f32.mrf.mxu0
  %v1475 = vadd.f32 0.0, %v1474
  %v1476 = vpop.f32.mrf.mxu0
  %1477 = vdwg.mxu0
  %v1478 = vmul.f32 %v1395, %v1395
  %v1479 = vmul.f32 %v1396, %v1396
  %v1481 = vsel %vm101, %v1478, 0
  %v1484 = vsel %vm101, %v1479, 0
  %1486 = vmatprep.subr.mxu0 0.0
  %1487 = vmatpush1.msra.mxu0 0.0
  %1488 = vmatprep.subr.mxu0 0.0
  %1489 = vmatpush1.msra.mxu0 0.0
  %1490 = vmatprep.subr.mxu0 0.0
  %1491 = vmatpush1.msra.mxu0 0.0
  %1492 = vmatprep.subr.mxu0 0.0
  %1493 = vmatpush1.msra.mxu0 0.0
  %1494 = vmatprep.subr.mxu0 0.0
  %1495 = vmatpush1.msra.mxu0 0.0
  %1496 = vmatprep.subr.mxu0 0.0
  %1497 = vmatpush1.msra.mxu0 0.0
  %1498 = vmatprep.subr.mxu0 0.0
  %1499 = vmatpush1.msra.mxu0 0.0
  %1500 = vmatprep.subr.mxu0 0.0
  %1501 = vmatpush1.msra.mxu0 0.0
  %1502 = vmatprep.subr.mxu0 0.0
  %1503 = vmatpush1.msra.mxu0 0.0
  %1504 = vmatprep.subr.mxu0 0.0
  %1505 = vmatpush1.msra.mxu0 0.0
  %1506 = vmatprep.subr.mxu0 0.0
  %1507 = vmatpush1.msra.mxu0 0.0
  %1508 = vmatprep.subr.mxu0 0.0
  %1509 = vmatpush1.msra.mxu0 0.0
  %1510 = vmatprep.subr.mxu0 0.0
  %1511 = vmatpush1.msra.mxu0 %v76
  %1512 = vmatprep.subr.mxu0 0.0
  %1513 = vmatpush1.msra.mxu0 %v75
  %1514 = vmatprep.subr.mxu0 0.0
  %1515 = vmatpush1.msra.mxu0 %v74
  %1516 = vmatprep.subr.mxu0 0.0
  %1517 = vmatpush1.msra.mxu0 %v73
  %1518 = vmatprep.subr.mxu0 0.0
  %1519 = vmatpush2.msra.mxu0 0.0
  %1520 = vmatprep.subr.mxu0 0.0
  %1521 = vmatpush2.msra.mxu0 0.0
  %1522 = vmatprep.subr.mxu0 0.0
  %1523 = vmatpush2.msra.mxu0 0.0
  %1524 = vmatprep.subr.mxu0 0.0
  %1525 = vmatpush2.msra.mxu0 0.0
  %1526 = vmatprep.subr.mxu0 0.0
  %1527 = vmatpush2.msra.mxu0 0.0
  %1528 = vmatprep.subr.mxu0 0.0
  %1529 = vmatpush2.msra.mxu0 0.0
  %1530 = vmatprep.subr.mxu0 0.0
  %1531 = vmatpush2.msra.mxu0 0.0
  %1532 = vmatprep.subr.mxu0 0.0
  %1533 = vmatpush2.msra.mxu0 0.0
  %1534 = vmatprep.subr.mxu0 0.0
  %1535 = vmatpush2.msra.mxu0 0.0
  %1536 = vmatprep.subr.mxu0 0.0
  %1537 = vmatpush2.msra.mxu0 0.0
  %1538 = vmatprep.subr.mxu0 0.0
  %1539 = vmatpush2.msra.mxu0 0.0
  %1540 = vmatprep.subr.mxu0 0.0
  %1541 = vmatpush2.msra.mxu0 0.0
  %1542 = vmatprep.subr.mxu0 0.0
  %1543 = vmatpush2.msra.mxu0 0.0
  %1544 = vmatprep.subr.mxu0 0.0
  %1545 = vmatpush2.msra.mxu0 0.0
  %1546 = vmatprep.subr.mxu0 0.0
  %1547 = vmatpush2.msra.mxu0 0.0
  %1548 = vmatprep.subr.mxu0 0.0
  %1549 = vmatpush2.msra.mxu0 0.0
  %1550 = vmatprep.mubr.f32.mxu0 0.0
  %1551 = vmatmul.mubr.f32.gmra.mxu0 %v1481
  %v1552 = vpop.f32.mrf.mxu0
  %v1553 = vadd.f32 0.0, %v1552
  %v1554 = vpop.f32.mrf.mxu0
  %1555 = vmatprep.mubr.f32.mxu0 0.0
  %1556 = vmatmul.mubr.f32.gmra.mxu0 %v1484
  %v1557 = vpop.f32.mrf.mxu0
  %v1558 = vadd.f32 0.0, %v1557
  %v1559 = vpop.f32.mrf.mxu0
  %1560 = vdwg.mxu0
  %v1561 = vmul.f32 %v1470, 0.125
  %v1562 = vmul.f32 %v1475, 0.125
  %v1563 = vmul.f32 %v1553, 0.125
  %v1564 = vmul.f32 %v1558, 0.125
  %v1565 = vmul.f32 %v1561, %v1561
  %v1566 = vmul.f32 %v1562, %v1562
  %v1567 = vsub.f32 %v1563, %v1565
  %v1568 = vsub.f32 %v1564, %v1566
  %v1569 = vadd.f32 %v1567, 1e-05
  %v1570 = vadd.f32 %v1568, 1e-05
  %v1571 = vrsqrt.pop %v1569
  %v1572 = vrsqrt.pop %v1570
  %v1574 = vsel %vm307, %v1561, 0
  %v1577 = vsel %vm307, %v1562, 0
  %1579 = vmatprep.subr.mxu0 0.0
  %1580 = vmatpush1.msra.mxu0 0.0
  %1581 = vmatprep.subr.mxu0 0.0
  %1582 = vmatpush1.msra.mxu0 0.0
  %1583 = vmatprep.subr.mxu0 0.0
  %1584 = vmatpush1.msra.mxu0 0.0
  %1585 = vmatprep.subr.mxu0 0.0
  %1586 = vmatpush1.msra.mxu0 0.0
  %1587 = vmatprep.subr.mxu0 0.0
  %1588 = vmatpush1.msra.mxu0 0.0
  %1589 = vmatprep.subr.mxu0 0.0
  %1590 = vmatpush1.msra.mxu0 0.0
  %1591 = vmatprep.subr.mxu0 0.0
  %1592 = vmatpush1.msra.mxu0 0.0
  %1593 = vmatprep.subr.mxu0 0.0
  %1594 = vmatpush1.msra.mxu0 0.0
  %1595 = vmatprep.subr.mxu0 0.0
  %1596 = vmatpush1.msra.mxu0 0.0
  %1597 = vmatprep.subr.mxu0 0.0
  %1598 = vmatpush1.msra.mxu0 0.0
  %1599 = vmatprep.subr.mxu0 0.0
  %1600 = vmatpush1.msra.mxu0 0.0
  %1601 = vmatprep.subr.mxu0 0.0
  %1602 = vmatpush1.msra.mxu0 0.0
  %1603 = vmatprep.subr.mxu0 0.0
  %1604 = vmatpush1.msra.mxu0 0.0
  %1605 = vmatprep.subr.mxu0 0.0
  %1606 = vmatpush1.msra.mxu0 0.0
  %1607 = vmatprep.subr.mxu0 0.0
  %1608 = vmatpush1.msra.mxu0 0.0
  %1609 = vmatprep.subr.mxu0 0.0
  %1610 = vmatpush1.msra.mxu0 %v313
  %1611 = vmatprep.subr.mxu0 0.0
  %1612 = vmatpush2.msra.mxu0 0.0
  %1613 = vmatprep.subr.mxu0 0.0
  %1614 = vmatpush2.msra.mxu0 0.0
  %1615 = vmatprep.subr.mxu0 0.0
  %1616 = vmatpush2.msra.mxu0 0.0
  %1617 = vmatprep.subr.mxu0 0.0
  %1618 = vmatpush2.msra.mxu0 0.0
  %1619 = vmatprep.subr.mxu0 0.0
  %1620 = vmatpush2.msra.mxu0 0.0
  %1621 = vmatprep.subr.mxu0 0.0
  %1622 = vmatpush2.msra.mxu0 0.0
  %1623 = vmatprep.subr.mxu0 0.0
  %1624 = vmatpush2.msra.mxu0 0.0
  %1625 = vmatprep.subr.mxu0 0.0
  %1626 = vmatpush2.msra.mxu0 0.0
  %1627 = vmatprep.subr.mxu0 0.0
  %1628 = vmatpush2.msra.mxu0 0.0
  %1629 = vmatprep.subr.mxu0 0.0
  %1630 = vmatpush2.msra.mxu0 0.0
  %1631 = vmatprep.subr.mxu0 0.0
  %1632 = vmatpush2.msra.mxu0 0.0
  %1633 = vmatprep.subr.mxu0 0.0
  %1634 = vmatpush2.msra.mxu0 0.0
  %1635 = vmatprep.subr.mxu0 0.0
  %1636 = vmatpush2.msra.mxu0 0.0
  %1637 = vmatprep.subr.mxu0 0.0
  %1638 = vmatpush2.msra.mxu0 0.0
  %1639 = vmatprep.subr.mxu0 0.0
  %1640 = vmatpush2.msra.mxu0 0.0
  %1641 = vmatprep.subr.mxu0 0.0
  %1642 = vmatpush2.msra.mxu0 0.0
  %1643 = vmatprep.mubr.f32.mxu0 0.0
  %1644 = vmatmul.mubr.f32.gmra.mxu0 %v1574
  %v1645 = vpop.f32.mrf.mxu0
  %v1646 = vadd.f32 0.0, %v1645
  %v1647 = vpop.f32.mrf.mxu0
  %1648 = vmatprep.mubr.f32.mxu0 0.0
  %1649 = vmatmul.mubr.f32.gmra.mxu0 %v1577
  %v1650 = vpop.f32.mrf.mxu0
  %v1651 = vadd.f32 0.0, %v1650
  %v1652 = vpop.f32.mrf.mxu0
  %1653 = vdwg.mxu0
  %v1655 = vsel %vm307, %v1571, 0
  %v1658 = vsel %vm307, %v1572, 0
  %1660 = vmatprep.subr.mxu0 0.0
  %1661 = vmatpush1.msra.mxu0 0.0
  %1662 = vmatprep.subr.mxu0 0.0
  %1663 = vmatpush1.msra.mxu0 0.0
  %1664 = vmatprep.subr.mxu0 0.0
  %1665 = vmatpush1.msra.mxu0 0.0
  %1666 = vmatprep.subr.mxu0 0.0
  %1667 = vmatpush1.msra.mxu0 0.0
  %1668 = vmatprep.subr.mxu0 0.0
  %1669 = vmatpush1.msra.mxu0 0.0
  %1670 = vmatprep.subr.mxu0 0.0
  %1671 = vmatpush1.msra.mxu0 0.0
  %1672 = vmatprep.subr.mxu0 0.0
  %1673 = vmatpush1.msra.mxu0 0.0
  %1674 = vmatprep.subr.mxu0 0.0
  %1675 = vmatpush1.msra.mxu0 0.0
  %1676 = vmatprep.subr.mxu0 0.0
  %1677 = vmatpush1.msra.mxu0 0.0
  %1678 = vmatprep.subr.mxu0 0.0
  %1679 = vmatpush1.msra.mxu0 0.0
  %1680 = vmatprep.subr.mxu0 0.0
  %1681 = vmatpush1.msra.mxu0 0.0
  %1682 = vmatprep.subr.mxu0 0.0
  %1683 = vmatpush1.msra.mxu0 0.0
  %1684 = vmatprep.subr.mxu0 0.0
  %1685 = vmatpush1.msra.mxu0 0.0
  %1686 = vmatprep.subr.mxu0 0.0
  %1687 = vmatpush1.msra.mxu0 0.0
  %1688 = vmatprep.subr.mxu0 0.0
  %1689 = vmatpush1.msra.mxu0 0.0
  %1690 = vmatprep.subr.mxu0 0.0
  %1691 = vmatpush1.msra.mxu0 %v313
  %1692 = vmatprep.subr.mxu0 0.0
  %1693 = vmatpush2.msra.mxu0 0.0
  %1694 = vmatprep.subr.mxu0 0.0
  %1695 = vmatpush2.msra.mxu0 0.0
  %1696 = vmatprep.subr.mxu0 0.0
  %1697 = vmatpush2.msra.mxu0 0.0
  %1698 = vmatprep.subr.mxu0 0.0
  %1699 = vmatpush2.msra.mxu0 0.0
  %1700 = vmatprep.subr.mxu0 0.0
  %1701 = vmatpush2.msra.mxu0 0.0
  %1702 = vmatprep.subr.mxu0 0.0
  %1703 = vmatpush2.msra.mxu0 0.0
  %1704 = vmatprep.subr.mxu0 0.0
  %1705 = vmatpush2.msra.mxu0 0.0
  %1706 = vmatprep.subr.mxu0 0.0
  %1707 = vmatpush2.msra.mxu0 0.0
  %1708 = vmatprep.subr.mxu0 0.0
  %1709 = vmatpush2.msra.mxu0 0.0
  %1710 = vmatprep.subr.mxu0 0.0
  %1711 = vmatpush2.msra.mxu0 0.0
  %1712 = vmatprep.subr.mxu0 0.0
  %1713 = vmatpush2.msra.mxu0 0.0
  %1714 = vmatprep.subr.mxu0 0.0
  %1715 = vmatpush2.msra.mxu0 0.0
  %1716 = vmatprep.subr.mxu0 0.0
  %1717 = vmatpush2.msra.mxu0 0.0
  %1718 = vmatprep.subr.mxu0 0.0
  %1719 = vmatpush2.msra.mxu0 0.0
  %1720 = vmatprep.subr.mxu0 0.0
  %1721 = vmatpush2.msra.mxu0 0.0
  %1722 = vmatprep.subr.mxu0 0.0
  %1723 = vmatpush2.msra.mxu0 0.0
  %1724 = vmatprep.mubr.f32.mxu0 0.0
  %1725 = vmatmul.mubr.f32.gmra.mxu0 %v1655
  %v1726 = vpop.f32.mrf.mxu0
  %v1727 = vadd.f32 0.0, %v1726
  %v1728 = vpop.f32.mrf.mxu0
  %1729 = vmatprep.mubr.f32.mxu0 0.0
  %1730 = vmatmul.mubr.f32.gmra.mxu0 %v1658
  %v1731 = vpop.f32.mrf.mxu0
  %v1732 = vadd.f32 0.0, %v1731
  %v1733 = vpop.f32.mrf.mxu0
  %1734 = vdwg.mxu0
  %v1735 = vsub.f32 %v1395, %v1646
  %v1736 = vsub.f32 %v1396, %v1651
  %v1737 = vmul.f32 %v1735, %v1727
  %v1738 = vmul.f32 %v1736, %v1732
  %s1739 = scalar_lea.vmem %s5, 3
  %v1740 = vld [vmem:[%s1739] sm:$0x1]
  %v1742 = vlaneseq
  %v1743 = vshrl.u32 %v1742, 7
  %v1744 = vsub.s32 0, %v1743
  %v1745 = vrot.slane %v1740, %v1744
  %v1747 = vmul.f32 %v1737, %v1745
  %v1748 = vmul.f32 %v1738, %v1745
  %s1749 = scalar_lea.vmem %s6, 3
  %v1750 = vld [vmem:[%s1749] sm:$0x1]
  %v1752 = vlaneseq
  %v1753 = vshrl.u32 %v1752, 7
  %v1754 = vsub.s32 0, %v1753
  %v1755 = vrot.slane %v1750, %v1754
  %v1757 = vadd.f32 %v1747, %v1755
  %v1758 = vadd.f32 %v1748, %v1755
  %v1761 = vunpack.c.l.s4 1966171168
  %v1762 = vunpack.c.0.s8 %v1761
  %v1763 = vlaneseq
  %v1764 = vshrl.u32 %v1763, 7
  %v1765 = vsub.s32 %v1762, %v1764
  %v1766 = vrot.slane %v475, %v1765
  %v1767 = vcombine.high %v1766, %v1766
  %v1769 = vunpack.c.l.s4 1966171168
  %v1770 = vunpack.c.0.s8 %v1769
  %v1771 = vlaneseq
  %v1772 = vshrl.u32 %v1771, 7
  %v1773 = vsub.s32 %v1770, %v1772
  %v1774 = vrot.slane %v1766, %v1773
  %v1776 = vunpack.c.l.s4 1966171168
  %v1777 = vunpack.c.0.s8 %v1776
  %v1778 = vlaneseq
  %v1779 = vshrl.u32 %v1778, 7
  %v1780 = vsub.s32 %v1777, %v1779
  %v1781 = vrot.slane %v1767, %v1780
  %v1782 = vlaneseq
  %v1783 = vshrl.u32 %v1782, 7
  %v1784 = vsub.s32 0, %v1783
  %v1785 = vrot.slane %v1774, %v1784
  %v1786 = vlaneseq
  %v1787 = vshrl.u32 %v1786, 7
  %v1788 = vsub.s32 0, %v1787
  %v1789 = vrot.slane %v1781, %v1788
  %v1792 = vmul.f32 %v1785, %v921
  %v1793 = vmul.f32 %v1789, %v922
  %v1794 = vpack.c.bf16 %v1793, %v1792
  %v1795 = vld [vmem:[%s9] sm:$0xf]
  %v1796 = vld [vmem:[%s9 + $0x4] sm:$0xf]
  %v1797 = vld [vmem:[%s9 + $0x8] sm:$0xf]
  %v1798 = vld [vmem:[%s9 + $0xc] sm:$0xf]
  %v1799 = vld [vmem:[%s10] sm:$0x1]
  %v1801 = vlaneseq
  %v1802 = vshrl.u32 %v1801, 7
  %v1803 = vsub.s32 0, %v1802
  %v1804 = vrot.slane %v1799, %v1803
  %v1810 = vunpack.c.l.b16 %v1795
  %v1811 = vunpack.c.l.b16 %v1796
  %v1812 = vunpack.c.l.b16 %v1797
  %v1813 = vunpack.c.l.b16 %v1798
  %v1814 = vpack.c.b16 %v1811, %v1810
  %v1815 = vpack.c.b16 %v1813, %v1812
  %v1819 = vsel %vm101, %v1794, 0
  %1821 = vmatprep.subr.bf16.mxu0 0
  %1822 = vmatpush1.bf16.msra.mxu0 0
  %1823 = vmatprep.subr.bf16.mxu0 0
  %1824 = vmatpush1.bf16.msra.mxu0 0
  %1825 = vmatprep.subr.bf16.mxu0 0
  %1826 = vmatpush1.bf16.msra.mxu0 0
  %1827 = vmatprep.subr.bf16.mxu0 0
  %1828 = vmatpush1.bf16.msra.mxu0 0
  %1829 = vmatprep.subr.bf16.mxu0 0
  %1830 = vmatpush1.bf16.msra.mxu0 0
  %1831 = vmatprep.subr.bf16.mxu0 0
  %1832 = vmatpush1.bf16.msra.mxu0 0
  %1833 = vmatprep.subr.bf16.mxu0 0
  %1834 = vmatpush1.bf16.msra.mxu0 %v1815
  %1835 = vmatprep.subr.bf16.mxu0 0
  %1836 = vmatpush1.bf16.msra.mxu0 %v1814
  %1837 = vmatprep.subr.bf16.mxu0 0
  %1838 = vmatpush2.bf16.msra.mxu0 0
  %1839 = vmatprep.subr.bf16.mxu0 0
  %1840 = vmatpush2.bf16.msra.mxu0 0
  %1841 = vmatprep.subr.bf16.mxu0 0
  %1842 = vmatpush2.bf16.msra.mxu0 0
  %1843 = vmatprep.subr.bf16.mxu0 0
  %1844 = vmatpush2.bf16.msra.mxu0 0
  %1845 = vmatprep.subr.bf16.mxu0 0
  %1846 = vmatpush2.bf16.msra.mxu0 0
  %1847 = vmatprep.subr.bf16.mxu0 0
  %1848 = vmatpush2.bf16.msra.mxu0 0
  %1849 = vmatprep.subr.bf16.mxu0 0
  %1850 = vmatpush2.bf16.msra.mxu0 0
  %1851 = vmatprep.subr.bf16.mxu0 0
  %1852 = vmatpush2.bf16.msra.mxu0 0
  %1853 = vmatprep.mubr.bf16.mxu0 0
  %1854 = vmatmul.mubr.bf16.gmra.mxu0 %v1819
  %v1855 = vpop.f32.mrf.mxu0
  %v1856 = vadd.f32 %v1804, %v1855
  %v1857 = vpop.f32.mrf.mxu0
  %v1858 = vpop.f32.mrf.mxu0
  %v1859 = vadd.f32 %v1804, %v1858
  %v1860 = vpop.f32.mrf.mxu0
  %1861 = vdwg.mxu0
  %v1862 = vmax.f32 %v1856, 0.0
  %v1863 = vmax.f32 %v1859, 0.0
  %v1864 = vlaneseq
  %v1865 = vshrl.u32 %v1864, 7
  %v1866 = vsub.s32 0, %v1865
  %v1867 = vrot.slane %v63, %v1866
  %1869 = vbcast.lane.b32.xlu0 %v1867, 256
  %v1870 = vpop.permute.xlu0 %1869
  %v1871 = vlaneseq
  %v1872 = vshrl.u32 %v1871, 7
  %v1873 = vsub.s32 1, %v1872
  %v1874 = vrot.slane %v63, %v1873
  %1876 = vbcast.lane.b32.xlu0 %v1874, 256
  %v1877 = vpop.permute.xlu0 %1876
  %v1878 = vmul.f32 %v1862, %v1870
  %v1879 = vmul.f32 %v1863, %v1877
  %vm1880 = vcmask 130048
  %v1881 = vsel %vm1880, %v1878, 0.0
  %v1882 = vrot.slane %v1881, 4
  %v1883 = vadd.f32 %v1881, %v1882
  %v1884 = vrot.slane %v1883, 2
  %v1885 = vadd.f32 %v1883, %v1884
  %v1886 = vrot.slane %v1885, 1
  %v1887 = vadd.f32 %v1885, %v1886
  %v1888 = vsel %vm1880, %v1879, 0.0
  %v1889 = vrot.slane %v1888, 4
  %v1890 = vadd.f32 %v1888, %v1889
  %v1891 = vrot.slane %v1890, 2
  %v1892 = vadd.f32 %v1890, %v1891
  %v1893 = vrot.slane %v1892, 1
  %v1894 = vadd.f32 %v1892, %v1893
  %v1896 = vrot.slane %v70, 1
  %v1899 = vmul.f32 %v1887, %v70
  %v1900 = vmul.f32 %v1894, %v1896
  %v1901 = vld [vmem:[%s11] sm:$0xff]
  %v1902 = vld [vmem:[%s11 + $0x8] sm:$0xff]
  %v1903 = vld [vmem:[#allocation2] sm:$0x1]
  %v1905 = vlaneseq
  %v1906 = vshrl.u32 %v1905, 7
  %v1907 = vsub.s32 0, %v1906
  %v1908 = vrot.slane %v1903, %v1907
  %1909 = vset.pattern.permute.xlu0 0
  %1910 = vperm.xlu0 %1909, %v1908
  %v1911 = vpop.permute.xlu0 %1910
  %v1914 = vsel %vm1880, %v1862, 0
  %v1917 = vsel %vm1880, %v1863, 0
  %1919 = vmatprep.subr.mxu0 0.0
  %1920 = vmatpush1.msra.mxu0 0.0
  %1921 = vmatprep.subr.mxu0 0.0
  %1922 = vmatpush1.msra.mxu0 0.0
  %1923 = vmatprep.subr.mxu0 0.0
  %1924 = vmatpush1.msra.mxu0 0.0
  %1925 = vmatprep.subr.mxu0 0.0
  %1926 = vmatpush1.msra.mxu0 0.0
  %1927 = vmatprep.subr.mxu0 0.0
  %1928 = vmatpush1.msra.mxu0 0.0
  %1929 = vmatprep.subr.mxu0 0.0
  %1930 = vmatpush1.msra.mxu0 0.0
  %1931 = vmatprep.subr.mxu0 0.0
  %1932 = vmatpush1.msra.mxu0 0.0
  %1933 = vmatprep.subr.mxu0 0.0
  %1934 = vmatpush1.msra.mxu0 0.0
  %1935 = vmatprep.subr.mxu0 0.0
  %1936 = vmatpush1.msra.mxu0 0.0
  %1937 = vmatprep.subr.mxu0 0.0
  %1938 = vmatpush1.msra.mxu0 0.0
  %1939 = vmatprep.subr.mxu0 0.0
  %1940 = vmatpush1.msra.mxu0 0.0
  %1941 = vmatprep.subr.mxu0 0.0
  %1942 = vmatpush1.msra.mxu0 0.0
  %1943 = vmatprep.subr.mxu0 0.0
  %1944 = vmatpush1.msra.mxu0 0.0
  %1945 = vmatprep.subr.mxu0 0.0
  %1946 = vmatpush1.msra.mxu0 0.0
  %1947 = vmatprep.subr.mxu0 0.0
  %1948 = vmatpush1.msra.mxu0 %v1902
  %1949 = vmatprep.subr.mxu0 0.0
  %1950 = vmatpush1.msra.mxu0 %v1901
  %1951 = vmatprep.subr.mxu0 0.0
  %1952 = vmatpush2.msra.mxu0 0.0
  %1953 = vmatprep.subr.mxu0 0.0
  %1954 = vmatpush2.msra.mxu0 0.0
  %1955 = vmatprep.subr.mxu0 0.0
  %1956 = vmatpush2.msra.mxu0 0.0
  %1957 = vmatprep.subr.mxu0 0.0
  %1958 = vmatpush2.msra.mxu0 0.0
  %1959 = vmatprep.subr.mxu0 0.0
  %1960 = vmatpush2.msra.mxu0 0.0
  %1961 = vmatprep.subr.mxu0 0.0
  %1962 = vmatpush2.msra.mxu0 0.0
  %1963 = vmatprep.subr.mxu0 0.0
  %1964 = vmatpush2.msra.mxu0 0.0
  %1965 = vmatprep.subr.mxu0 0.0
  %1966 = vmatpush2.msra.mxu0 0.0
  %1967 = vmatprep.subr.mxu0 0.0
  %1968 = vmatpush2.msra.mxu0 0.0
  %1969 = vmatprep.subr.mxu0 0.0
  %1970 = vmatpush2.msra.mxu0 0.0
  %1971 = vmatprep.subr.mxu0 0.0
  %1972 = vmatpush2.msra.mxu0 0.0
  %1973 = vmatprep.subr.mxu0 0.0
  %1974 = vmatpush2.msra.mxu0 0.0
  %1975 = vmatprep.subr.mxu0 0.0
  %1976 = vmatpush2.msra.mxu0 0.0
  %1977 = vmatprep.subr.mxu0 0.0
  %1978 = vmatpush2.msra.mxu0 0.0
  %1979 = vmatprep.subr.mxu0 0.0
  %1980 = vmatpush2.msra.mxu0 0.0
  %1981 = vmatprep.subr.mxu0 0.0
  %1982 = vmatpush2.msra.mxu0 0.0
  %1983 = vmatprep.mubr.f32.mxu0 0.0
  %1984 = vmatmul.mubr.f32.gmra.mxu0 %v1914
  %v1985 = vpop.f32.mrf.mxu0
  %v1986 = vadd.f32 %v1911, %v1985
  %v1987 = vpop.f32.mrf.mxu0
  %1988 = vmatprep.mubr.f32.mxu0 0.0
  %1989 = vmatmul.mubr.f32.gmra.mxu0 %v1917
  %v1990 = vpop.f32.mrf.mxu0
  %v1991 = vadd.f32 %v1911, %v1990
  %v1992 = vpop.f32.mrf.mxu0
  %1993 = vdwg.mxu0
  %vm1994 = vcmp.eq.f32.partialorder %v1870, 0.0
  %vm1995 = vcmp.eq.f32.partialorder %v1877, 0.0
  %v1996 = vsel %vm1994, 1, 0
  %v1997 = vsel %vm1995, 1, 0
  %vm1998 = vcmp.eq.s32.totalorder %v1996, 1
  %vm1999 = vcmp.eq.s32.totalorder %v1997, 1
  %v2000 = vsel %vm1998, -1e+09, %v1986
  %v2001 = vsel %vm1999, -1e+09, %v1991
  %v2002 = vsel %vm307, %v2000, -inf
  %v2003 = vrot.slane %v2002, 4
  %v2004 = vmax.f32 %v2002, %v2003
  %v2005 = vrot.slane %v2004, 2
  %v2006 = vmax.f32 %v2004, %v2005
  %v2007 = vrot.slane %v2006, 1
  %v2008 = vmax.f32 %v2006, %v2007
  %v2009 = vsel %vm307, %v2001, -inf
  %v2010 = vrot.slane %v2009, 4
  %v2011 = vmax.f32 %v2009, %v2010
  %v2012 = vrot.slane %v2011, 2
  %v2013 = vmax.f32 %v2011, %v2012
  %v2014 = vrot.slane %v2013, 1
  %v2015 = vmax.f32 %v2013, %v2014
  %v2016 = vsub.f32 %v2000, %v2008
  %v2017 = vsub.f32 %v2001, %v2015
  %v2018 = vmul.f32 %v2016, 1.442695
  %v2019 = vpow.pop %v2018
  %v2020 = vmul.f32 %v2017, 1.442695
  %v2021 = vpow.pop %v2020
  %v2022 = vsel %vm307, %v2019, 0.0
  %v2023 = vrot.slane %v2022, 4
  %v2024 = vadd.f32 %v2022, %v2023
  %v2025 = vrot.slane %v2024, 2
  %v2026 = vadd.f32 %v2024, %v2025
  %v2027 = vrot.slane %v2026, 1
  %v2028 = vadd.f32 %v2026, %v2027
  %v2029 = vsel %vm307, %v2021, 0.0
  %v2030 = vrot.slane %v2029, 4
  %v2031 = vadd.f32 %v2029, %v2030
  %v2032 = vrot.slane %v2031, 2
  %v2033 = vadd.f32 %v2031, %v2032
  %v2034 = vrot.slane %v2033, 1
  %v2035 = vadd.f32 %v2033, %v2034
  %v2036 = vrcp.pop %v2028
  %v2037 = vrcp.pop %v2035
  %v2038 = vmul.f32 %v2019, %v2036
  %v2039 = vmul.f32 %v2021, %v2037
  %v2040 = vpack.c.bf16 %v1899, %v1899
  %v2041 = vpack.c.bf16 %v1900, %v1900
  %v2042 = vld [vmem:[%s13] sm:$0xf]
  %v2043 = vld [vmem:[%s13 + $0x4] sm:$0xf]
  %v2044 = vld [vmem:[%s14] sm:$0x1]
  %v2046 = vlaneseq
  %v2047 = vshrl.u32 %v2046, 7
  %v2048 = vsub.s32 0, %v2047
  %v2049 = vrot.slane %v2044, %v2048
  %v2053 = vunpack.c.l.b16 %v2040
  %v2054 = vunpack.c.l.b16 %v2041
  %v2055 = vrot.slane %v2054, 7
  %vm2056 = vcmask 1041409
  %v2057 = vsel %vm2056, %v2055, %v2053
  %v2058 = vpack.c.b16 %v2057, %v2057
  %v2061 = vunpack.c.l.b16 %v2042
  %v2062 = vunpack.c.l.b16 %v2043
  %v2063 = vpack.c.b16 %v2062, %v2061
  %v2066 = vsel %vm1880, %v2058, 0
  %2068 = vmatprep.subr.bf16.mxu0 0
  %2069 = vmatpush1.bf16.msra.mxu0 0
  %2070 = vmatprep.subr.bf16.mxu0 0
  %2071 = vmatpush1.bf16.msra.mxu0 0
  %2072 = vmatprep.subr.bf16.mxu0 0
  %2073 = vmatpush1.bf16.msra.mxu0 0
  %2074 = vmatprep.subr.bf16.mxu0 0
  %2075 = vmatpush1.bf16.msra.mxu0 0
  %2076 = vmatprep.subr.bf16.mxu0 0
  %2077 = vmatpush1.bf16.msra.mxu0 0
  %2078 = vmatprep.subr.bf16.mxu0 0
  %2079 = vmatpush1.bf16.msra.mxu0 0
  %2080 = vmatprep.subr.bf16.mxu0 0
  %2081 = vmatpush1.bf16.msra.mxu0 0
  %2082 = vmatprep.subr.bf16.mxu0 0
  %2083 = vmatpush1.bf16.msra.mxu0 %v2063
  %2084 = vmatprep.subr.bf16.mxu0 0
  %2085 = vmatpush2.bf16.msra.mxu0 0
  %2086 = vmatprep.subr.bf16.mxu0 0
  %2087 = vmatpush2.bf16.msra.mxu0 0
  %2088 = vmatprep.subr.bf16.mxu0 0
  %2089 = vmatpush2.bf16.msra.mxu0 0
  %2090 = vmatprep.subr.bf16.mxu0 0
  %2091 = vmatpush2.bf16.msra.mxu0 0
  %2092 = vmatprep.subr.bf16.mxu0 0
  %2093 = vmatpush2.bf16.msra.mxu0 0
  %2094 = vmatprep.subr.bf16.mxu0 0
  %2095 = vmatpush2.bf16.msra.mxu0 0
  %2096 = vmatprep.subr.bf16.mxu0 0
  %2097 = vmatpush2.bf16.msra.mxu0 0
  %2098 = vmatprep.subr.bf16.mxu0 0
  %2099 = vmatpush2.bf16.msra.mxu0 0
  %2100 = vmatprep.mubr.bf16.mxu0 0
  %2101 = vmatmul.mubr.bf16.gmra.mxu0 %v2066
  %v2102 = vpop.f32.mrf.mxu0
  %v2103 = vadd.f32 %v2049, %v2102
  %v2104 = vpop.f32.mrf.mxu0
  %v2105 = vpop.f32.mrf.mxu0
  %v2106 = vpop.f32.mrf.mxu0
  %2107 = vdwg.mxu0
  %v2108 = vxor.u32 %v2103, 2147483648
  %v2109 = vmul.f32 %v2108, 1.442695
  %v2110 = vpow.pop %v2109
  %v2111 = vadd.f32 %v2110, 1.0
  %v2112 = vrcp.pop %v2111
  %v2113 = vmul.f32 1.0, %v2112
  %v2115 = vsel %vm307, %v2038, 0
  %v2118 = vsel %vm307, %v2039, 0
  %2120 = vmatprep.subr.mxu0 0.0
  %2121 = vmatpush1.msra.mxu0 0.0
  %2122 = vmatprep.subr.mxu0 0.0
  %2123 = vmatpush1.msra.mxu0 0.0
  %2124 = vmatprep.subr.mxu0 0.0
  %2125 = vmatpush1.msra.mxu0 0.0
  %2126 = vmatprep.subr.mxu0 0.0
  %2127 = vmatpush1.msra.mxu0 0.0
  %2128 = vmatprep.subr.mxu0 0.0
  %2129 = vmatpush1.msra.mxu0 0.0
  %2130 = vmatprep.subr.mxu0 0.0
  %2131 = vmatpush1.msra.mxu0 0.0
  %2132 = vmatprep.subr.mxu0 0.0
  %2133 = vmatpush1.msra.mxu0 0.0
  %2134 = vmatprep.subr.mxu0 0.0
  %2135 = vmatpush1.msra.mxu0 0.0
  %2136 = vmatprep.subr.mxu0 0.0
  %2137 = vmatpush1.msra.mxu0 0.0
  %2138 = vmatprep.subr.mxu0 0.0
  %2139 = vmatpush1.msra.mxu0 0.0
  %2140 = vmatprep.subr.mxu0 0.0
  %2141 = vmatpush1.msra.mxu0 0.0
  %2142 = vmatprep.subr.mxu0 0.0
  %2143 = vmatpush1.msra.mxu0 0.0
  %2144 = vmatprep.subr.mxu0 0.0
  %2145 = vmatpush1.msra.mxu0 0.0
  %2146 = vmatprep.subr.mxu0 0.0
  %2147 = vmatpush1.msra.mxu0 0.0
  %2148 = vmatprep.subr.mxu0 0.0
  %2149 = vmatpush1.msra.mxu0 0.0
  %2150 = vmatprep.subr.mxu0 0.0
  %2151 = vmatpush1.msra.mxu0 %v313
  %2152 = vmatprep.subr.mxu0 0.0
  %2153 = vmatpush2.msra.mxu0 0.0
  %2154 = vmatprep.subr.mxu0 0.0
  %2155 = vmatpush2.msra.mxu0 0.0
  %2156 = vmatprep.subr.mxu0 0.0
  %2157 = vmatpush2.msra.mxu0 0.0
  %2158 = vmatprep.subr.mxu0 0.0
  %2159 = vmatpush2.msra.mxu0 0.0
  %2160 = vmatprep.subr.mxu0 0.0
  %2161 = vmatpush2.msra.mxu0 0.0
  %2162 = vmatprep.subr.mxu0 0.0
  %2163 = vmatpush2.msra.mxu0 0.0
  %2164 = vmatprep.subr.mxu0 0.0
  %2165 = vmatpush2.msra.mxu0 0.0
  %2166 = vmatprep.subr.mxu0 0.0
  %2167 = vmatpush2.msra.mxu0 0.0
  %2168 = vmatprep.subr.mxu0 0.0
  %2169 = vmatpush2.msra.mxu0 0.0
  %2170 = vmatprep.subr.mxu0 0.0
  %2171 = vmatpush2.msra.mxu0 0.0
  %2172 = vmatprep.subr.mxu0 0.0
  %2173 = vmatpush2.msra.mxu0 0.0
  %2174 = vmatprep.subr.mxu0 0.0
  %2175 = vmatpush2.msra.mxu0 0.0
  %2176 = vmatprep.subr.mxu0 0.0
  %2177 = vmatpush2.msra.mxu0 0.0
  %2178 = vmatprep.subr.mxu0 0.0
  %2179 = vmatpush2.msra.mxu0 0.0
  %2180 = vmatprep.subr.mxu0 0.0
  %2181 = vmatpush2.msra.mxu0 0.0
  %2182 = vmatprep.subr.mxu0 0.0
  %2183 = vmatpush2.msra.mxu0 0.0
  %2184 = vmatprep.mubr.f32.mxu0 0.0
  %2185 = vmatmul.mubr.f32.gmra.mxu0 %v2115
  %v2186 = vpop.f32.mrf.mxu0
  %v2187 = vadd.f32 0.0, %v2186
  %v2188 = vpop.f32.mrf.mxu0
  %2189 = vmatprep.mubr.f32.mxu0 0.0
  %2190 = vmatmul.mubr.f32.gmra.mxu0 %v2118
  %v2191 = vpop.f32.mrf.mxu0
  %v2192 = vadd.f32 0.0, %v2191
  %v2193 = vpop.f32.mrf.mxu0
  %2194 = vdwg.mxu0
  %v2195 = vmul.f32 %v2187, %v1757
  %v2196 = vmul.f32 %v2192, %v1758
  %v2197 = vsel %vm101, %v2195, 0.0
  %v2198 = vrot.slane %v2197, 4
  %v2199 = vadd.f32 %v2197, %v2198
  %v2200 = vrot.slane %v2199, 2
  %v2201 = vadd.f32 %v2199, %v2200
  %v2202 = vrot.slane %v2201, 1
  %v2203 = vadd.f32 %v2201, %v2202
  %v2204 = vsel %vm101, %v2196, 0.0
  %v2205 = vrot.slane %v2204, 4
  %v2206 = vadd.f32 %v2204, %v2205
  %v2207 = vrot.slane %v2206, 2
  %v2208 = vadd.f32 %v2206, %v2207
  %v2209 = vrot.slane %v2208, 1
  %v2210 = vadd.f32 %v2208, %v2209
  %v2213 = vsel %vm2056, %v2210, %v2203
  %v2215 = vmul.f32 %v1314, %v2213
  %v2216 = vmul.f32 %v2215, %v2113
  %vm2217 = vcmask 254976
  %2218 = vst.msk [vmem:[%s17] sm:$0x3] %vm2217, %v2216
  %v2219 = vpack.c.bf16 %v2216, %v2216
  %v2220 = vld [vmem:[%s15] sm:$0xf]
  %v2221 = vld [vmem:[%s15 + $0x4] sm:$0xf]
  %v2222 = vld [vmem:[%s15 + $0x8] sm:$0xf]
  %v2223 = vld [vmem:[%s15 + $0xc] sm:$0xf]
  %v2224 = vld [vmem:[%s16] sm:$0x1]
  %v2226 = vlaneseq
  %v2227 = vshrl.u32 %v2226, 7
  %v2228 = vsub.s32 0, %v2227
  %v2229 = vrot.slane %v2224, %v2228
  %v2235 = vunpack.c.l.b16 %v2220
  %v2236 = vunpack.c.l.b16 %v2221
  %v2237 = vunpack.c.l.b16 %v2222
  %v2238 = vunpack.c.l.b16 %v2223
  %v2239 = vpack.c.b16 %v2236, %v2235
  %v2240 = vpack.c.b16 %v2238, %v2237
  %v2244 = vsel %vm101, %v2219, 0
  %2246 = vmatprep.subr.bf16.mxu0 0
  %2247 = vmatpush1.bf16.msra.mxu0 0
  %2248 = vmatprep.subr.bf16.mxu0 0
  %2249 = vmatpush1.bf16.msra.mxu0 0
  %2250 = vmatprep.subr.bf16.mxu0 0
  %2251 = vmatpush1.bf16.msra.mxu0 0
  %2252 = vmatprep.subr.bf16.mxu0 0
  %2253 = vmatpush1.bf16.msra.mxu0 0
  %2254 = vmatprep.subr.bf16.mxu0 0
  %2255 = vmatpush1.bf16.msra.mxu0 0
  %2256 = vmatprep.subr.bf16.mxu0 0
  %2257 = vmatpush1.bf16.msra.mxu0 0
  %2258 = vmatprep.subr.bf16.mxu0 0
  %2259 = vmatpush1.bf16.msra.mxu0 %v2240
  %2260 = vmatprep.subr.bf16.mxu0 0
  %2261 = vmatpush1.bf16.msra.mxu0 %v2239
  %2262 = vmatprep.subr.bf16.mxu0 0
  %2263 = vmatpush2.bf16.msra.mxu0 0
  %2264 = vmatprep.subr.bf16.mxu0 0
  %2265 = vmatpush2.bf16.msra.mxu0 0
  %2266 = vmatprep.subr.bf16.mxu0 0
  %2267 = vmatpush2.bf16.msra.mxu0 0
  %2268 = vmatprep.subr.bf16.mxu0 0
  %2269 = vmatpush2.bf16.msra.mxu0 0
  %2270 = vmatprep.subr.bf16.mxu0 0
  %2271 = vmatpush2.bf16.msra.mxu0 0
  %2272 = vmatprep.subr.bf16.mxu0 0
  %2273 = vmatpush2.bf16.msra.mxu0 0
  %2274 = vmatprep.subr.bf16.mxu0 0
  %2275 = vmatpush2.bf16.msra.mxu0 0
  %2276 = vmatprep.subr.bf16.mxu0 0
  %2277 = vmatpush2.bf16.msra.mxu0 0
  %2278 = vmatprep.mubr.bf16.mxu0 0
  %2279 = vmatmul.mubr.bf16.gmra.mxu0 %v2244
  %v2280 = vpop.f32.mrf.mxu0
  %v2281 = vadd.f32 %v2229, %v2280
  %v2282 = vpop.f32.mrf.mxu0
  %v2283 = vpop.f32.mrf.mxu0
  %v2284 = vpop.f32.mrf.mxu0
  %2285 = vdwg.mxu0
  %v2288 = vunpack.c.l.s4 1966171168
  %v2289 = vunpack.c.0.s8 %v2288
  %v2290 = vlaneseq
  %v2291 = vshrl.u32 %v2290, 7
  %v2292 = vsub.s32 %v2289, %v2291
  %v2293 = vrot.slane %v2281, %v2292
  %v2294 = vcombine.high %v2293, %v2293
  %v2296 = vunpack.c.l.s4 1966171168
  %v2297 = vunpack.c.0.s8 %v2296
  %v2298 = vlaneseq
  %v2299 = vshrl.u32 %v2298, 7
  %v2300 = vsub.s32 %v2297, %v2299
  %v2301 = vrot.slane %v2293, %v2300
  %v2303 = vunpack.c.l.s4 1966171168
  %v2304 = vunpack.c.0.s8 %v2303
  %v2305 = vlaneseq
  %v2306 = vshrl.u32 %v2305, 7
  %v2307 = vsub.s32 %v2304, %v2306
  %v2308 = vrot.slane %v2294, %v2307
  %vm2311 = vcmask 253952
  %2312 = vst.msk [vmem:[%s18] sm:$0x1] %vm2311, %v2301
  %2313 = vst.msk [vmem:[%s18 + $0x1] sm:$0x1] %vm2311, %v2308
  // Predicated region
  $region70: #{encoder_forward.7} parent=0 // pred_check
    _
  $region71: #{encoder_forward.7} parent=0 // pred_check_branch
    %2315 = sbr.rel (0) target = $region73
  $region72: #{encoder_forward.7} parent=0 // pred_region
    _
  $region73: #{encoder_forward.7} parent=0 // pred_fallthru
    _
  // Predicated region
  $region74: #{encoder_forward.7} parent=0 // pred_check
    _
  $region75: #{encoder_forward.7} parent=0 // pred_check_branch
    %2317 = sbr.rel (0) target = $region77
  $region76: #{encoder_forward.7} parent=0 // pred_region
    _
  $region77: #{encoder_forward.7} parent=0 // pred_fallthru
    _
  // Predicated region
  $region78: #{encoder_forward.7} parent=0 // pred_check
    _
  $region79: #{encoder_forward.7} parent=0 // pred_check_branch
    %2319 = sbr.rel (0) target = $region81
  $region80: #{encoder_forward.7} parent=0 // pred_region
    _
  $region81: #{encoder_forward.7} parent=0 // pred_fallthru
    _
  // Predicated region
  $region82: #{encoder_forward.7} parent=0 // pred_check
    _
  $region83: #{encoder_forward.7} parent=0 // pred_check_branch
    %2321 = sbr.rel (0) target = $region85
  $region84: #{encoder_forward.7} parent=0 // pred_region
    _
  $region85: #{encoder_forward.7} parent=0 // pred_fallthru
    _

// kernel: encoder_forward.5
$region0: #{encoder_forward.5}
  #allocation0 [shape = 'u32[]', space=smem, size = 0x4, offset = 0x4, fixed_abs, tag = 'smem constant byte address 0x4 - core index']
  #allocation1 [shape = 'u32[144,128]{1,0:T(1,128)}', space=vmem, size = 0x12000, scoped, tag = 'internal scratch']
  #allocation2 [shape = 'f32[1,1]{1,0:T(1,128)S(1)}', space=vmem, size = 0x200, scoped, tag = 'scoped memory for encoder_forward.5']
  %s0 = inlined_call_operand.vmem [shape: f32[2,8,32], index: 0, kind: input, shape index: {}]
  %s1 = inlined_call_operand.vmem [shape: f32[2,8], index: 1, kind: input, shape index: {}]
  %s2 = inlined_call_operand.vmem [shape: bf16[4,32,32], index: 2, kind: input, shape index: {}]
  %s3 = inlined_call_operand.vmem [shape: f32[4,1,32], index: 3, kind: input, shape index: {}]
  %s4 = inlined_call_operand.vmem [shape: f32[4,1,32], index: 4, kind: input, shape index: {}]
  %s5 = inlined_call_operand.vmem [shape: f32[4,1,32], index: 5, kind: input, shape index: {}]
  %s6 = inlined_call_operand.vmem [shape: f32[32,4], index: 6, kind: input, shape index: {}]
  %s7 = inlined_call_operand.vmem [shape: f32[4,32], index: 7, kind: input, shape index: {}]
  %s8 = inlined_call_operand.vmem [shape: bf16[32,16], index: 8, kind: input, shape index: {}]
  %s9 = inlined_call_operand.vmem [shape: f32[1,16], index: 9, kind: input, shape index: {}]
  %s10 = inlined_call_operand.vmem [shape: f32[16,4], index: 10, kind: input, shape index: {}]
  %s11 = inlined_call_operand.<no memory space> [shape: f32[1,1], index: 11, kind: input, shape index: {}]
  %s12 = inlined_call_operand.vmem [shape: bf16[16,32], index: 12, kind: input, shape index: {}]
  %s13 = inlined_call_operand.vmem [shape: f32[1,32], index: 13, kind: input, shape index: {}]
  %s14 = inlined_call_operand.vmem [shape: bf16[32,32], index: 14, kind: input, shape index: {}]
  %s15 = inlined_call_operand.vmem [shape: f32[1,32], index: 15, kind: input, shape index: {}]
  %s16 = inlined_call_operand.vmem [shape: f32[2,32], index: 16, kind: output, shape index: {0}]
  %s17 = inlined_call_operand.vmem [shape: f32[2,32], index: 17, kind: output, shape index: {1}]
  %s18 = inlined_call_operand.vmem [shape: f32[2,1,32], index: 18, kind: output, shape index: {2}]
  %19 = xla_tuple %s16, %s17, %s18
  %s20 = sld [smem:[#allocation0]]
  $region90: #{encoder_forward.5} parent=0
    _
  %s22 = ssub.s32 1, %s20
  %s23 = scalar_select 0, %s22, %s20
  %v24 = vstv %s11
  %25 = vst [vmem:[#allocation2] sm:$0x1] %v24
  // Predicated region
  $region2: #{encoder_forward.5} parent=0 // pred_check
    _
  $region3: #{encoder_forward.5} parent=0 // pred_check_branch
    %27 = sbr.rel (0) target = $region5
  $region4: #{encoder_forward.5} parent=0 // pred_region
    _
  $region5: #{encoder_forward.5} parent=0 // pred_fallthru
    _
  // Predicated region
  $region6: #{encoder_forward.5} parent=0 // pred_check
    _
  $region7: #{encoder_forward.5} parent=0 // pred_check_branch
    %29 = sbr.rel (0) target = $region9
  $region8: #{encoder_forward.5} parent=0 // pred_region
    _
  $region9: #{encoder_forward.5} parent=0 // pred_fallthru
    _
  // Predicated region
  $region10: #{encoder_forward.5} parent=0 // pred_check
    _
  $region11: #{encoder_forward.5} parent=0 // pred_check_branch
    %31 = sbr.rel (0) target = $region13
  $region12: #{encoder_forward.5} parent=0 // pred_region
    _
  $region13: #{encoder_forward.5} parent=0 // pred_fallthru
    _
  // Predicated region
  $region14: #{encoder_forward.5} parent=0 // pred_check
    _
  $region15: #{encoder_forward.5} parent=0 // pred_check_branch
    %33 = sbr.rel (0) target = $region17
  $region16: #{encoder_forward.5} parent=0 // pred_region
    _
  $region17: #{encoder_forward.5} parent=0 // pred_fallthru
    _
  // Predicated region
  $region18: #{encoder_forward.5} parent=0 // pred_check
    _
  $region19: #{encoder_forward.5} parent=0 // pred_check_branch
    %35 = sbr.rel (0) target = $region21
  $region20: #{encoder_forward.5} parent=0 // pred_region
    _
  $region21: #{encoder_forward.5} parent=0 // pred_fallthru
    _
  // Predicated region
  $region22: #{encoder_forward.5} parent=0 // pred_check
    _
  $region23: #{encoder_forward.5} parent=0 // pred_check_branch
    %37 = sbr.rel (0) target = $region25
  $region24: #{encoder_forward.5} parent=0 // pred_region
    _
  $region25: #{encoder_forward.5} parent=0 // pred_fallthru
    _
  // Predicated region
  $region26: #{encoder_forward.5} parent=0 // pred_check
    _
  $region27: #{encoder_forward.5} parent=0 // pred_check_branch
    %39 = sbr.rel (0) target = $region29
  $region28: #{encoder_forward.5} parent=0 // pred_region
    _
  $region29: #{encoder_forward.5} parent=0 // pred_fallthru
    _
  // Predicated region
  $region30: #{encoder_forward.5} parent=0 // pred_check
    _
  $region31: #{encoder_forward.5} parent=0 // pred_check_branch
    %41 = sbr.rel (0) target = $region33
  $region32: #{encoder_forward.5} parent=0 // pred_region
    _
  $region33: #{encoder_forward.5} parent=0 // pred_fallthru
    _
  // Predicated region
  $region34: #{encoder_forward.5} parent=0 // pred_check
    _
  $region35: #{encoder_forward.5} parent=0 // pred_check_branch
    %43 = sbr.rel (0) target = $region37
  $region36: #{encoder_forward.5} parent=0 // pred_region
    _
  $region37: #{encoder_forward.5} parent=0 // pred_fallthru
    _
  // Predicated region
  $region38: #{encoder_forward.5} parent=0 // pred_check
    _
  $region39: #{encoder_forward.5} parent=0 // pred_check_branch
    %45 = sbr.rel (0) target = $region41
  $region40: #{encoder_forward.5} parent=0 // pred_region
    _
  $region41: #{encoder_forward.5} parent=0 // pred_fallthru
    _
  // Predicated region
  $region42: #{encoder_forward.5} parent=0 // pred_check
    _
  $region43: #{encoder_forward.5} parent=0 // pred_check_branch
    %47 = sbr.rel (0) target = $region45
  $region44: #{encoder_forward.5} parent=0 // pred_region
    _
  $region45: #{encoder_forward.5} parent=0 // pred_fallthru
    _
  // Predicated region
  $region46: #{encoder_forward.5} parent=0 // pred_check
    _
  $region47: #{encoder_forward.5} parent=0 // pred_check_branch
    %49 = sbr.rel (0) target = $region49
  $region48: #{encoder_forward.5} parent=0 // pred_region
    _
  $region49: #{encoder_forward.5} parent=0 // pred_fallthru
    _
  // Predicated region
  $region50: #{encoder_forward.5} parent=0 // pred_check
    _
  $region51: #{encoder_forward.5} parent=0 // pred_check_branch
    %51 = sbr.rel (0) target = $region53
  $region52: #{encoder_forward.5} parent=0 // pred_region
    _
  $region53: #{encoder_forward.5} parent=0 // pred_fallthru
    _
  // Predicated region
  $region54: #{encoder_forward.5} parent=0 // pred_check
    _
  $region55: #{encoder_forward.5} parent=0 // pred_check_branch
    %53 = sbr.rel (0) target = $region57
  $region56: #{encoder_forward.5} parent=0 // pred_region
    _
  $region57: #{encoder_forward.5} parent=0 // pred_fallthru
    _
  // Predicated region
  $region58: #{encoder_forward.5} parent=0 // pred_check
    _
  $region59: #{encoder_forward.5} parent=0 // pred_check_branch
    %55 = sbr.rel (0) target = $region61
  $region60: #{encoder_forward.5} parent=0 // pred_region
    _
  $region61: #{encoder_forward.5} parent=0 // pred_fallthru
    _
  // Predicated region
  $region62: #{encoder_forward.5} parent=0 // pred_check
    _
  $region63: #{encoder_forward.5} parent=0 // pred_check_branch
    %57 = sbr.rel (0) target = $region65
  $region64: #{encoder_forward.5} parent=0 // pred_region
    _
  $region65: #{encoder_forward.5} parent=0 // pred_fallthru
    _
  %v59 = vld [vmem:[%s0] sm:$0xff]
  %v60 = vld [vmem:[%s0 + $0x8] sm:$0xff]
  %v61 = vld [vmem:[%s1] sm:$0x3]
  %v62 = vpack.c.bf16 %v60, %v59
  %vm63 = vcmask 58368
  %v64 = vsel %vm63, %v61, 0.0
  %65 = vadd.xlane.f32.xlu0 %v64
  %v66 = vpop.xlane.xlu0 %65
  %v67 = vmax.f32 %v66, 1.0
  %v68 = vrcp.pop %v67
  %v69 = vlaneseq
  %v70 = vshrl.u32 %v69, 7
  %v71 = vsub.s32 0, %v70
  %v72 = vrot.slane %v61, %v71
  %74 = vbcast.lane.b32.xlu0 %v72, 256
  %v75 = vpop.permute.xlu0 %74
  %v76 = vlaneseq
  %v77 = vshrl.u32 %v76, 7
  %v78 = vsub.s32 1, %v77
  %v79 = vrot.slane %v61, %v78
  %81 = vbcast.lane.b32.xlu0 %v79, 256
  %v82 = vpop.permute.xlu0 %81
  %v83 = vmul.f32 %v59, %v75
  %v84 = vmul.f32 %v60, %v82
  %vm85 = vcmask 261120
  %v86 = vsel %vm85, %v83, 0.0
  %v87 = vrot.slane %v86, 4
  %v88 = vadd.f32 %v86, %v87
  %v89 = vrot.slane %v88, 2
  %v90 = vadd.f32 %v88, %v89
  %v91 = vrot.slane %v90, 1
  %v92 = vadd.f32 %v90, %v91
  %v93 = vsel %vm85, %v84, 0.0
  %v94 = vrot.slane %v93, 4
  %v95 = vadd.f32 %v93, %v94
  %v96 = vrot.slane %v95, 2
  %v97 = vadd.f32 %v95, %v96
  %v98 = vrot.slane %v97, 1
  %v99 = vadd.f32 %v97, %v98
  %v101 = vrot.slane %v68, 1
  %v104 = vmul.f32 %v92, %v68
  %v105 = vmul.f32 %v99, %v101
  %v108 = vrot.slane %v105, 7
  %vm109 = vcmask 1041409
  %v110 = vsel %vm109, %v108, %v104
  %vm112 = vcmask 254976
  %113 = vst.msk [vmem:[%s16] sm:$0x3] %vm112, %v110
  %v114 = vpack.c.bf16 %v104, %v104
  %v115 = vpack.c.bf16 %v105, %v105
  %v116 = vld [vmem:[%s6] sm:$0xff]
  %v117 = vld [vmem:[%s6 + $0x8] sm:$0xff]
  %v118 = vld [vmem:[%s6 + $0x10] sm:$0xff]
  %v119 = vld [vmem:[%s6 + $0x18] sm:$0xff]
  %v120 = vld [vmem:[%s7] sm:$0xf]
  %v121 = vld [vmem:[%s2] sm:$0xf]
  %v122 = vld [vmem:[%s2 + $0x4] sm:$0xf]
  %v123 = vld [vmem:[%s2 + $0x8] sm:$0xf]
  %v124 = vld [vmem:[%s2 + $0xc] sm:$0xf]
  %v125 = vld [vmem:[%s3] sm:$0x1]
  %v127 = vlaneseq
  %v128 = vshrl.u32 %v127, 7
  %v129 = vsub.s32 0, %v128
  %v130 = vrot.slane %v125, %v129
  %v134 = vunpack.c.l.b16 %v114
  %v135 = vunpack.c.l.b16 %v115
  %v136 = vrot.slane %v135, 7
  %v137 = vsel %vm109, %v136, %v134
  %v138 = vpack.c.b16 %v137, %v137
  %v143 = vunpack.c.l.b16 %v121
  %v144 = vunpack.c.l.b16 %v122
  %v145 = vunpack.c.l.b16 %v123
  %v146 = vunpack.c.l.b16 %v124
  %v147 = vpack.c.b16 %v144, %v143
  %v148 = vpack.c.b16 %v146, %v145
  %v152 = vsel %vm85, %v138, 0
  %154 = vmatprep.subr.bf16.mxu0 0
  %155 = vmatpush1.bf16.msra.mxu0 0
  %156 = vmatprep.subr.bf16.mxu0 0
  %157 = vmatpush1.bf16.msra.mxu0 0
  %158 = vmatprep.subr.bf16.mxu0 0
  %159 = vmatpush1.bf16.msra.mxu0 0
  %160 = vmatprep.subr.bf16.mxu0 0
  %161 = vmatpush1.bf16.msra.mxu0 0
  %162 = vmatprep.subr.bf16.mxu0 0
  %163 = vmatpush1.bf16.msra.mxu0 0
  %164 = vmatprep.subr.bf16.mxu0 0
  %165 = vmatpush1.bf16.msra.mxu0 0
  %166 = vmatprep.subr.bf16.mxu0 0
  %167 = vmatpush1.bf16.msra.mxu0 %v148
  %168 = vmatprep.subr.bf16.mxu0 0
  %169 = vmatpush1.bf16.msra.mxu0 %v147
  %170 = vmatprep.subr.bf16.mxu0 0
  %171 = vmatpush2.bf16.msra.mxu0 0
  %172 = vmatprep.subr.bf16.mxu0 0
  %173 = vmatpush2.bf16.msra.mxu0 0
  %174 = vmatprep.subr.bf16.mxu0 0
  %175 = vmatpush2.bf16.msra.mxu0 0
  %176 = vmatprep.subr.bf16.mxu0 0
  %177 = vmatpush2.bf16.msra.mxu0 0
  %178 = vmatprep.subr.bf16.mxu0 0
  %179 = vmatpush2.bf16.msra.mxu0 0
  %180 = vmatprep.subr.bf16.mxu0 0
  %181 = vmatpush2.bf16.msra.mxu0 0
  %182 = vmatprep.subr.bf16.mxu0 0
  %183 = vmatpush2.bf16.msra.mxu0 0
  %184 = vmatprep.subr.bf16.mxu0 0
  %185 = vmatpush2.bf16.msra.mxu0 0
  %186 = vmatprep.mubr.bf16.mxu0 0
  %187 = vmatmul.mubr.bf16.gmra.mxu0 %v152
  %v188 = vpop.f32.mrf.mxu0
  %v189 = vadd.f32 %v130, %v188
  %v190 = vpop.f32.mrf.mxu0
  %v191 = vpop.f32.mrf.mxu0
  %v192 = vpop.f32.mrf.mxu0
  %193 = vdwg.mxu0
  %v194 = vmax.f32 %v189, 0.0
  %v195 = vrcp.pop 1.3
  %v196 = vmul.f32 %v189, %v195
  %v197 = vmul.f32 %v196, 1.442695
  %v198 = vpow.pop %v197
  %v199 = vsub.f32 %v198, 1.0
  %v200 = vmul.f32 %v199, 1.3
  %v201 = vmin.f32 %v200, 0.0
  %v202 = vadd.f32 %v194, %v201
  %v204 = vsel %vm85, %v202, 0
  %206 = vmatprep.subr.mxu0 0.0
  %207 = vmatpush1.msra.mxu0 0.0
  %208 = vmatprep.subr.mxu0 0.0
  %209 = vmatpush1.msra.mxu0 0.0
  %210 = vmatprep.subr.mxu0 0.0
  %211 = vmatpush1.msra.mxu0 0.0
  %212 = vmatprep.subr.mxu0 0.0
  %213 = vmatpush1.msra.mxu0 0.0
  %214 = vmatprep.subr.mxu0 0.0
  %215 = vmatpush1.msra.mxu0 0.0
  %216 = vmatprep.subr.mxu0 0.0
  %217 = vmatpush1.msra.mxu0 0.0
  %218 = vmatprep.subr.mxu0 0.0
  %219 = vmatpush1.msra.mxu0 0.0
  %220 = vmatprep.subr.mxu0 0.0
  %221 = vmatpush1.msra.mxu0 0.0
  %222 = vmatprep.subr.mxu0 0.0
  %223 = vmatpush1.msra.mxu0 0.0
  %224 = vmatprep.subr.mxu0 0.0
  %225 = vmatpush1.msra.mxu0 0.0
  %226 = vmatprep.subr.mxu0 0.0
  %227 = vmatpush1.msra.mxu0 0.0
  %228 = vmatprep.subr.mxu0 0.0
  %229 = vmatpush1.msra.mxu0 0.0
  %230 = vmatprep.subr.mxu0 0.0
  %231 = vmatpush1.msra.mxu0 %v119
  %232 = vmatprep.subr.mxu0 0.0
  %233 = vmatpush1.msra.mxu0 %v118
  %234 = vmatprep.subr.mxu0 0.0
  %235 = vmatpush1.msra.mxu0 %v117
  %236 = vmatprep.subr.mxu0 0.0
  %237 = vmatpush1.msra.mxu0 %v116
  %238 = vmatprep.subr.mxu0 0.0
  %239 = vmatpush2.msra.mxu0 0.0
  %240 = vmatprep.subr.mxu0 0.0
  %241 = vmatpush2.msra.mxu0 0.0
  %242 = vmatprep.subr.mxu0 0.0
  %243 = vmatpush2.msra.mxu0 0.0
  %244 = vmatprep.subr.mxu0 0.0
  %245 = vmatpush2.msra.mxu0 0.0
  %246 = vmatprep.subr.mxu0 0.0
  %247 = vmatpush2.msra.mxu0 0.0
  %248 = vmatprep.subr.mxu0 0.0
  %249 = vmatpush2.msra.mxu0 0.0
  %250 = vmatprep.subr.mxu0 0.0
  %251 = vmatpush2.msra.mxu0 0.0
  %252 = vmatprep.subr.mxu0 0.0
  %253 = vmatpush2.msra.mxu0 0.0
  %254 = vmatprep.subr.mxu0 0.0
  %255 = vmatpush2.msra.mxu0 0.0
  %256 = vmatprep.subr.mxu0 0.0
  %257 = vmatpush2.msra.mxu0 0.0
  %258 = vmatprep.subr.mxu0 0.0
  %259 = vmatpush2.msra.mxu0 0.0
  %260 = vmatprep.subr.mxu0 0.0
  %261 = vmatpush2.msra.mxu0 0.0
  %262 = vmatprep.subr.mxu0 0.0
  %263 = vmatpush2.msra.mxu0 0.0
  %264 = vmatprep.subr.mxu0 0.0
  %265 = vmatpush2.msra.mxu0 0.0
  %266 = vmatprep.subr.mxu0 0.0
  %267 = vmatpush2.msra.mxu0 0.0
  %268 = vmatprep.subr.mxu0 0.0
  %269 = vmatpush2.msra.mxu0 0.0
  %270 = vmatprep.mubr.f32.mxu0 0.0
  %271 = vmatmul.mubr.f32.gmra.mxu0 %v204
  %v272 = vpop.f32.mrf.mxu0
  %v273 = vadd.f32 0.0, %v272
  %v274 = vpop.f32.mrf.mxu0
  %275 = vdwg.mxu0
  %v276 = vmul.f32 %v202, %v202
  %v278 = vsel %vm85, %v276, 0
  %280 = vmatprep.subr.mxu0 0.0
  %281 = vmatpush1.msra.mxu0 0.0
  %282 = vmatprep.subr.mxu0 0.0
  %283 = vmatpush1.msra.mxu0 0.0
  %284 = vmatprep.subr.mxu0 0.0
  %285 = vmatpush1.msra.mxu0 0.0
  %286 = vmatprep.subr.mxu0 0.0
  %287 = vmatpush1.msra.mxu0 0.0
  %288 = vmatprep.subr.mxu0 0.0
  %289 = vmatpush1.msra.mxu0 0.0
  %290 = vmatprep.subr.mxu0 0.0
  %291 = vmatpush1.msra.mxu0 0.0
  %292 = vmatprep.subr.mxu0 0.0
  %293 = vmatpush1.msra.mxu0 0.0
  %294 = vmatprep.subr.mxu0 0.0
  %295 = vmatpush1.msra.mxu0 0.0
  %296 = vmatprep.subr.mxu0 0.0
  %297 = vmatpush1.msra.mxu0 0.0
  %298 = vmatprep.subr.mxu0 0.0
  %299 = vmatpush1.msra.mxu0 0.0
  %300 = vmatprep.subr.mxu0 0.0
  %301 = vmatpush1.msra.mxu0 0.0
  %302 = vmatprep.subr.mxu0 0.0
  %303 = vmatpush1.msra.mxu0 0.0
  %304 = vmatprep.subr.mxu0 0.0
  %305 = vmatpush1.msra.mxu0 %v119
  %306 = vmatprep.subr.mxu0 0.0
  %307 = vmatpush1.msra.mxu0 %v118
  %308 = vmatprep.subr.mxu0 0.0
  %309 = vmatpush1.msra.mxu0 %v117
  %310 = vmatprep.subr.mxu0 0.0
  %311 = vmatpush1.msra.mxu0 %v116
  %312 = vmatprep.subr.mxu0 0.0
  %313 = vmatpush2.msra.mxu0 0.0
  %314 = vmatprep.subr.mxu0 0.0
  %315 = vmatpush2.msra.mxu0 0.0
  %316 = vmatprep.subr.mxu0 0.0
  %317 = vmatpush2.msra.mxu0 0.0
  %318 = vmatprep.subr.mxu0 0.0
  %319 = vmatpush2.msra.mxu0 0.0
  %320 = vmatprep.subr.mxu0 0.0
  %321 = vmatpush2.msra.mxu0 0.0
  %322 = vmatprep.subr.mxu0 0.0
  %323 = vmatpush2.msra.mxu0 0.0
  %324 = vmatprep.subr.mxu0 0.0
  %325 = vmatpush2.msra.mxu0 0.0
  %326 = vmatprep.subr.mxu0 0.0
  %327 = vmatpush2.msra.mxu0 0.0
  %328 = vmatprep.subr.mxu0 0.0
  %329 = vmatpush2.msra.mxu0 0.0
  %330 = vmatprep.subr.mxu0 0.0
  %331 = vmatpush2.msra.mxu0 0.0
  %332 = vmatprep.subr.mxu0 0.0
  %333 = vmatpush2.msra.mxu0 0.0
  %334 = vmatprep.subr.mxu0 0.0
  %335 = vmatpush2.msra.mxu0 0.0
  %336 = vmatprep.subr.mxu0 0.0
  %337 = vmatpush2.msra.mxu0 0.0
  %338 = vmatprep.subr.mxu0 0.0
  %339 = vmatpush2.msra.mxu0 0.0
  %340 = vmatprep.subr.mxu0 0.0
  %341 = vmatpush2.msra.mxu0 0.0
  %342 = vmatprep.subr.mxu0 0.0
  %343 = vmatpush2.msra.mxu0 0.0
  %344 = vmatprep.mubr.f32.mxu0 0.0
  %345 = vmatmul.mubr.f32.gmra.mxu0 %v278
  %v346 = vpop.f32.mrf.mxu0
  %v347 = vadd.f32 0.0, %v346
  %v348 = vpop.f32.mrf.mxu0
  %349 = vdwg.mxu0
  %v350 = vmul.f32 %v273, 0.125
  %v351 = vmul.f32 %v347, 0.125
  %v352 = vmul.f32 %v350, %v350
  %v353 = vsub.f32 %v351, %v352
  %v354 = vadd.f32 %v353, 1e-05
  %v355 = vrsqrt.pop %v354
  %vm356 = vcmask 31744
  %v358 = vsel %vm356, %v350, 0
  %vm360 = vcmask 1043456
  %v362 = vsel %vm360, %v120, 0
  %364 = vmatprep.subr.mxu0 0.0
  %365 = vmatpush1.msra.mxu0 0.0
  %366 = vmatprep.subr.mxu0 0.0
  %367 = vmatpush1.msra.mxu0 0.0
  %368 = vmatprep.subr.mxu0 0.0
  %369 = vmatpush1.msra.mxu0 0.0
  %370 = vmatprep.subr.mxu0 0.0
  %371 = vmatpush1.msra.mxu0 0.0
  %372 = vmatprep.subr.mxu0 0.0
  %373 = vmatpush1.msra.mxu0 0.0
  %374 = vmatprep.subr.mxu0 0.0
  %375 = vmatpush1.msra.mxu0 0.0
  %376 = vmatprep.subr.mxu0 0.0
  %377 = vmatpush1.msra.mxu0 0.0
  %378 = vmatprep.subr.mxu0 0.0
  %379 = vmatpush1.msra.mxu0 0.0
  %380 = vmatprep.subr.mxu0 0.0
  %381 = vmatpush1.msra.mxu0 0.0
  %382 = vmatprep.subr.mxu0 0.0
  %383 = vmatpush1.msra.mxu0 0.0
  %384 = vmatprep.subr.mxu0 0.0
  %385 = vmatpush1.msra.mxu0 0.0
  %386 = vmatprep.subr.mxu0 0.0
  %387 = vmatpush1.msra.mxu0 0.0
  %388 = vmatprep.subr.mxu0 0.0
  %389 = vmatpush1.msra.mxu0 0.0
  %390 = vmatprep.subr.mxu0 0.0
  %391 = vmatpush1.msra.mxu0 0.0
  %392 = vmatprep.subr.mxu0 0.0
  %393 = vmatpush1.msra.mxu0 0.0
  %394 = vmatprep.subr.mxu0 0.0
  %395 = vmatpush1.msra.mxu0 %v362
  %396 = vmatprep.subr.mxu0 0.0
  %397 = vmatpush2.msra.mxu0 0.0
  %398 = vmatprep.subr.mxu0 0.0
  %399 = vmatpush2.msra.mxu0 0.0
  %400 = vmatprep.subr.mxu0 0.0
  %401 = vmatpush2.msra.mxu0 0.0
  %402 = vmatprep.subr.mxu0 0.0
  %403 = vmatpush2.msra.mxu0 0.0
  %404 = vmatprep.subr.mxu0 0.0
  %405 = vmatpush2.msra.mxu0 0.0
  %406 = vmatprep.subr.mxu0 0.0
  %407 = vmatpush2.msra.mxu0 0.0
  %408 = vmatprep.subr.mxu0 0.0
  %409 = vmatpush2.msra.mxu0 0.0
  %410 = vmatprep.subr.mxu0 0.0
  %411 = vmatpush2.msra.mxu0 0.0
  %412 = vmatprep.subr.mxu0 0.0
  %413 = vmatpush2.msra.mxu0 0.0
  %414 = vmatprep.subr.mxu0 0.0
  %415 = vmatpush2.msra.mxu0 0.0
  %416 = vmatprep.subr.mxu0 0.0
  %417 = vmatpush2.msra.mxu0 0.0
  %418 = vmatprep.subr.mxu0 0.0
  %419 = vmatpush2.msra.mxu0 0.0
  %420 = vmatprep.subr.mxu0 0.0
  %421 = vmatpush2.msra.mxu0 0.0
  %422 = vmatprep.subr.mxu0 0.0
  %423 = vmatpush2.msra.mxu0 0.0
  %424 = vmatprep.subr.mxu0 0.0
  %425 = vmatpush2.msra.mxu0 0.0
  %426 = vmatprep.subr.mxu0 0.0
  %427 = vmatpush2.msra.mxu0 0.0
  %428 = vmatprep.mubr.f32.mxu0 0.0
  %429 = vmatmul.mubr.f32.gmra.mxu0 %v358
  %v430 = vpop.f32.mrf.mxu0
  %v431 = vadd.f32 0.0, %v430
  %v432 = vpop.f32.mrf.mxu0
  %433 = vdwg.mxu0
  %v435 = vsel %vm356, %v355, 0
  %437 = vmatprep.subr.mxu0 0.0
  %438 = vmatpush1.msra.mxu0 0.0
  %439 = vmatprep.subr.mxu0 0.0
  %440 = vmatpush1.msra.mxu0 0.0
  %441 = vmatprep.subr.mxu0 0.0
  %442 = vmatpush1.msra.mxu0 0.0
  %443 = vmatprep.subr.mxu0 0.0
  %444 = vmatpush1.msra.mxu0 0.0
  %445 = vmatprep.subr.mxu0 0.0
  %446 = vmatpush1.msra.mxu0 0.0
  %447 = vmatprep.subr.mxu0 0.0
  %448 = vmatpush1.msra.mxu0 0.0
  %449 = vmatprep.subr.mxu0 0.0
  %450 = vmatpush1.msra.mxu0 0.0
  %451 = vmatprep.subr.mxu0 0.0
  %452 = vmatpush1.msra.mxu0 0.0
  %453 = vmatprep.subr.mxu0 0.0
  %454 = vmatpush1.msra.mxu0 0.0
  %455 = vmatprep.subr.mxu0 0.0
  %456 = vmatpush1.msra.mxu0 0.0
  %457 = vmatprep.subr.mxu0 0.0
  %458 = vmatpush1.msra.mxu0 0.0
  %459 = vmatprep.subr.mxu0 0.0
  %460 = vmatpush1.msra.mxu0 0.0
  %461 = vmatprep.subr.mxu0 0.0
  %462 = vmatpush1.msra.mxu0 0.0
  %463 = vmatprep.subr.mxu0 0.0
  %464 = vmatpush1.msra.mxu0 0.0
  %465 = vmatprep.subr.mxu0 0.0
  %466 = vmatpush1.msra.mxu0 0.0
  %467 = vmatprep.subr.mxu0 0.0
  %468 = vmatpush1.msra.mxu0 %v362
  %469 = vmatprep.subr.mxu0 0.0
  %470 = vmatpush2.msra.mxu0 0.0
  %471 = vmatprep.subr.mxu0 0.0
  %472 = vmatpush2.msra.mxu0 0.0
  %473 = vmatprep.subr.mxu0 0.0
  %474 = vmatpush2.msra.mxu0 0.0
  %475 = vmatprep.subr.mxu0 0.0
  %476 = vmatpush2.msra.mxu0 0.0
  %477 = vmatprep.subr.mxu0 0.0
  %478 = vmatpush2.msra.mxu0 0.0
  %479 = vmatprep.subr.mxu0 0.0
  %480 = vmatpush2.msra.mxu0 0.0
  %481 = vmatprep.subr.mxu0 0.0
  %482 = vmatpush2.msra.mxu0 0.0
  %483 = vmatprep.subr.mxu0 0.0
  %484 = vmatpush2.msra.mxu0 0.0
  %485 = vmatprep.subr.mxu0 0.0
  %486 = vmatpush2.msra.mxu0 0.0
  %487 = vmatprep.subr.mxu0 0.0
  %488 = vmatpush2.msra.mxu0 0.0
  %489 = vmatprep.subr.mxu0 0.0
  %490 = vmatpush2.msra.mxu0 0.0
  %491 = vmatprep.subr.mxu0 0.0
  %492 = vmatpush2.msra.mxu0 0.0
  %493 = vmatprep.subr.mxu0 0.0
  %494 = vmatpush2.msra.mxu0 0.0
  %495 = vmatprep.subr.mxu0 0.0
  %496 = vmatpush2.msra.mxu0 0.0
  %497 = vmatprep.subr.mxu0 0.0
  %498 = vmatpush2.msra.mxu0 0.0
  %499 = vmatprep.subr.mxu0 0.0
  %500 = vmatpush2.msra.mxu0 0.0
  %501 = vmatprep.mubr.f32.mxu0 0.0
  %502 = vmatmul.mubr.f32.gmra.mxu0 %v435
  %v503 = vpop.f32.mrf.mxu0
  %v504 = vadd.f32 0.0, %v503
  %v505 = vpop.f32.mrf.mxu0
  %506 = vdwg.mxu0
  %v507 = vsub.f32 %v202, %v431
  %v508 = vmul.f32 %v507, %v504
  %v509 = vld [vmem:[%s4] sm:$0x1]
  %v511 = vlaneseq
  %v512 = vshrl.u32 %v511, 7
  %v513 = vsub.s32 0, %v512
  %v514 = vrot.slane %v509, %v513
  %v516 = vmul.f32 %v508, %v514
  %v517 = vld [vmem:[%s5] sm:$0x1]
  %v519 = vlaneseq
  %v520 = vshrl.u32 %v519, 7
  %v521 = vsub.s32 0, %v520
  %v522 = vrot.slane %v517, %v521
  %v524 = vadd.f32 %v516, %v522
  %s525 = scalar_lea.vmem %s2, 16
  %v526 = vld [vmem:[%s525] sm:$0xf]
  %v527 = vld [vmem:[%s525 + $0x4] sm:$0xf]
  %v528 = vld [vmem:[%s525 + $0x8] sm:$0xf]
  %v529 = vld [vmem:[%s525 + $0xc] sm:$0xf]
  %s530 = scalar_lea.vmem %s3, 1
  %v531 = vld [vmem:[%s530] sm:$0x1]
  %v533 = vlaneseq
  %v534 = vshrl.u32 %v533, 7
  %v535 = vsub.s32 0, %v534
  %v536 = vrot.slane %v531, %v535
  %v542 = vunpack.c.l.b16 %v526
  %v543 = vunpack.c.l.b16 %v527
  %v544 = vunpack.c.l.b16 %v528
  %v545 = vunpack.c.l.b16 %v529
  %v546 = vpack.c.b16 %v543, %v542
  %v547 = vpack.c.b16 %v545, %v544
  %v551 = vsel %vm85, %v62, 0
  %553 = vmatprep.subr.bf16.mxu0 0
  %554 = vmatpush1.bf16.msra.mxu0 0
  %555 = vmatprep.subr.bf16.mxu0 0
  %556 = vmatpush1.bf16.msra.mxu0 0
  %557 = vmatprep.subr.bf16.mxu0 0
  %558 = vmatpush1.bf16.msra.mxu0 0
  %559 = vmatprep.subr.bf16.mxu0 0
  %560 = vmatpush1.bf16.msra.mxu0 0
  %561 = vmatprep.subr.bf16.mxu0 0
  %562 = vmatpush1.bf16.msra.mxu0 0
  %563 = vmatprep.subr.bf16.mxu0 0
  %564 = vmatpush1.bf16.msra.mxu0 0
  %565 = vmatprep.subr.bf16.mxu0 0
  %566 = vmatpush1.bf16.msra.mxu0 %v547
  %567 = vmatprep.subr.bf16.mxu0 0
  %568 = vmatpush1.bf16.msra.mxu0 %v546
  %569 = vmatprep.subr.bf16.mxu0 0
  %570 = vmatpush2.bf16.msra.mxu0 0
  %571 = vmatprep.subr.bf16.mxu0 0
  %572 = vmatpush2.bf16.msra.mxu0 0
  %573 = vmatprep.subr.bf16.mxu0 0
  %574 = vmatpush2.bf16.msra.mxu0 0
  %575 = vmatprep.subr.bf16.mxu0 0
  %576 = vmatpush2.bf16.msra.mxu0 0
  %577 = vmatprep.subr.bf16.mxu0 0
  %578 = vmatpush2.bf16.msra.mxu0 0
  %579 = vmatprep.subr.bf16.mxu0 0
  %580 = vmatpush2.bf16.msra.mxu0 0
  %581 = vmatprep.subr.bf16.mxu0 0
  %582 = vmatpush2.bf16.msra.mxu0 0
  %583 = vmatprep.subr.bf16.mxu0 0
  %584 = vmatpush2.bf16.msra.mxu0 0
  %585 = vmatprep.mubr.bf16.mxu0 0
  %586 = vmatmul.mubr.bf16.gmra.mxu0 %v551
  %v587 = vpop.f32.mrf.mxu0
  %v588 = vadd.f32 %v536, %v587
  %v589 = vpop.f32.mrf.mxu0
  %v590 = vpop.f32.mrf.mxu0
  %v591 = vadd.f32 %v536, %v590
  %v592 = vpop.f32.mrf.mxu0
  %593 = vdwg.mxu0
  %v594 = vmax.f32 %v588, 0.0
  %v595 = vmax.f32 %v591, 0.0
  %v596 = vmul.f32 %v588, %v195
  %v597 = vmul.f32 %v591, %v195
  %v598 = vmul.f32 %v596, 1.442695
  %v599 = vpow.pop %v598
  %v600 = vmul.f32 %v597, 1.442695
  %v601 = vpow.pop %v600
  %v602 = vsub.f32 %v599, 1.0
  %v603 = vsub.f32 %v601, 1.0
  %v604 = vmul.f32 %v602, 1.3
  %v605 = vmul.f32 %v603, 1.3
  %v606 = vmin.f32 %v604, 0.0
  %v607 = vmin.f32 %v605, 0.0
  %v608 = vadd.f32 %v594, %v606
  %v609 = vadd.f32 %v595, %v607
  %v611 = vsel %vm85, %v608, 0
  %v614 = vsel %vm85, %v609, 0
  %616 = vmatprep.subr.mxu0 0.0
  %617 = vmatpush1.msra.mxu0 0.0
  %618 = vmatprep.subr.mxu0 0.0
  %619 = vmatpush1.msra.mxu0 0.0
  %620 = vmatprep.subr.mxu0 0.0
  %621 = vmatpush1.msra.mxu0 0.0
  %622 = vmatprep.subr.mxu0 0.0
  %623 = vmatpush1.msra.mxu0 0.0
  %624 = vmatprep.subr.mxu0 0.0
  %625 = vmatpush1.msra.mxu0 0.0
  %626 = vmatprep.subr.mxu0 0.0
  %627 = vmatpush1.msra.mxu0 0.0
  %628 = vmatprep.subr.mxu0 0.0
  %629 = vmatpush1.msra.mxu0 0.0
  %630 = vmatprep.subr.mxu0 0.0
  %631 = vmatpush1.msra.mxu0 0.0
  %632 = vmatprep.subr.mxu0 0.0
  %633 = vmatpush1.msra.mxu0 0.0
  %634 = vmatprep.subr.mxu0 0.0
  %635 = vmatpush1.msra.mxu0 0.0
  %636 = vmatprep.subr.mxu0 0.0
  %637 = vmatpush1.msra.mxu0 0.0
  %638 = vmatprep.subr.mxu0 0.0
  %639 = vmatpush1.msra.mxu0 0.0
  %640 = vmatprep.subr.mxu0 0.0
  %641 = vmatpush1.msra.mxu0 %v119
  %642 = vmatprep.subr.mxu0 0.0
  %643 = vmatpush1.msra.mxu0 %v118
  %644 = vmatprep.subr.mxu0 0.0
  %645 = vmatpush1.msra.mxu0 %v117
  %646 = vmatprep.subr.mxu0 0.0
  %647 = vmatpush1.msra.mxu0 %v116
  %648 = vmatprep.subr.mxu0 0.0
  %649 = vmatpush2.msra.mxu0 0.0
  %650 = vmatprep.subr.mxu0 0.0
  %651 = vmatpush2.msra.mxu0 0.0
  %652 = vmatprep.subr.mxu0 0.0
  %653 = vmatpush2.msra.mxu0 0.0
  %654 = vmatprep.subr.mxu0 0.0
  %655 = vmatpush2.msra.mxu0 0.0
  %656 = vmatprep.subr.mxu0 0.0
  %657 = vmatpush2.msra.mxu0 0.0
  %658 = vmatprep.subr.mxu0 0.0
  %659 = vmatpush2.msra.mxu0 0.0
  %660 = vmatprep.subr.mxu0 0.0
  %661 = vmatpush2.msra.mxu0 0.0
  %662 = vmatprep.subr.mxu0 0.0
  %663 = vmatpush2.msra.mxu0 0.0
  %664 = vmatprep.subr.mxu0 0.0
  %665 = vmatpush2.msra.mxu0 0.0
  %666 = vmatprep.subr.mxu0 0.0
  %667 = vmatpush2.msra.mxu0 0.0
  %668 = vmatprep.subr.mxu0 0.0
  %669 = vmatpush2.msra.mxu0 0.0
  %670 = vmatprep.subr.mxu0 0.0
  %671 = vmatpush2.msra.mxu0 0.0
  %672 = vmatprep.subr.mxu0 0.0
  %673 = vmatpush2.msra.mxu0 0.0
  %674 = vmatprep.subr.mxu0 0.0
  %675 = vmatpush2.msra.mxu0 0.0
  %676 = vmatprep.subr.mxu0 0.0
  %677 = vmatpush2.msra.mxu0 0.0
  %678 = vmatprep.subr.mxu0 0.0
  %679 = vmatpush2.msra.mxu0 0.0
  %680 = vmatprep.mubr.f32.mxu0 0.0
  %681 = vmatmul.mubr.f32.gmra.mxu0 %v611
  %v682 = vpop.f32.mrf.mxu0
  %v683 = vadd.f32 0.0, %v682
  %v684 = vpop.f32.mrf.mxu0
  %685 = vmatprep.mubr.f32.mxu0 0.0
  %686 = vmatmul.mubr.f32.gmra.mxu0 %v614
  %v687 = vpop.f32.mrf.mxu0
  %v688 = vadd.f32 0.0, %v687
  %v689 = vpop.f32.mrf.mxu0
  %690 = vdwg.mxu0
  %v691 = vmul.f32 %v608, %v608
  %v692 = vmul.f32 %v609, %v609
  %v694 = vsel %vm85, %v691, 0
  %v697 = vsel %vm85, %v692, 0
  %699 = vmatprep.subr.mxu0 0.0
  %700 = vmatpush1.msra.mxu0 0.0
  %701 = vmatprep.subr.mxu0 0.0
  %702 = vmatpush1.msra.mxu0 0.0
  %703 = vmatprep.subr.mxu0 0.0
  %704 = vmatpush1.msra.mxu0 0.0
  %705 = vmatprep.subr.mxu0 0.0
  %706 = vmatpush1.msra.mxu0 0.0
  %707 = vmatprep.subr.mxu0 0.0
  %708 = vmatpush1.msra.mxu0 0.0
  %709 = vmatprep.subr.mxu0 0.0
  %710 = vmatpush1.msra.mxu0 0.0
  %711 = vmatprep.subr.mxu0 0.0
  %712 = vmatpush1.msra.mxu0 0.0
  %713 = vmatprep.subr.mxu0 0.0
  %714 = vmatpush1.msra.mxu0 0.0
  %715 = vmatprep.subr.mxu0 0.0
  %716 = vmatpush1.msra.mxu0 0.0
  %717 = vmatprep.subr.mxu0 0.0
  %718 = vmatpush1.msra.mxu0 0.0
  %719 = vmatprep.subr.mxu0 0.0
  %720 = vmatpush1.msra.mxu0 0.0
  %721 = vmatprep.subr.mxu0 0.0
  %722 = vmatpush1.msra.mxu0 0.0
  %723 = vmatprep.subr.mxu0 0.0
  %724 = vmatpush1.msra.mxu0 %v119
  %725 = vmatprep.subr.mxu0 0.0
  %726 = vmatpush1.msra.mxu0 %v118
  %727 = vmatprep.subr.mxu0 0.0
  %728 = vmatpush1.msra.mxu0 %v117
  %729 = vmatprep.subr.mxu0 0.0
  %730 = vmatpush1.msra.mxu0 %v116
  %731 = vmatprep.subr.mxu0 0.0
  %732 = vmatpush2.msra.mxu0 0.0
  %733 = vmatprep.subr.mxu0 0.0
  %734 = vmatpush2.msra.mxu0 0.0
  %735 = vmatprep.subr.mxu0 0.0
  %736 = vmatpush2.msra.mxu0 0.0
  %737 = vmatprep.subr.mxu0 0.0
  %738 = vmatpush2.msra.mxu0 0.0
  %739 = vmatprep.subr.mxu0 0.0
  %740 = vmatpush2.msra.mxu0 0.0
  %741 = vmatprep.subr.mxu0 0.0
  %742 = vmatpush2.msra.mxu0 0.0
  %743 = vmatprep.subr.mxu0 0.0
  %744 = vmatpush2.msra.mxu0 0.0
  %745 = vmatprep.subr.mxu0 0.0
  %746 = vmatpush2.msra.mxu0 0.0
  %747 = vmatprep.subr.mxu0 0.0
  %748 = vmatpush2.msra.mxu0 0.0
  %749 = vmatprep.subr.mxu0 0.0
  %750 = vmatpush2.msra.mxu0 0.0
  %751 = vmatprep.subr.mxu0 0.0
  %752 = vmatpush2.msra.mxu0 0.0
  %753 = vmatprep.subr.mxu0 0.0
  %754 = vmatpush2.msra.mxu0 0.0
  %755 = vmatprep.subr.mxu0 0.0
  %756 = vmatpush2.msra.mxu0 0.0
  %757 = vmatprep.subr.mxu0 0.0
  %758 = vmatpush2.msra.mxu0 0.0
  %759 = vmatprep.subr.mxu0 0.0
  %760 = vmatpush2.msra.mxu0 0.0
  %761 = vmatprep.subr.mxu0 0.0
  %762 = vmatpush2.msra.mxu0 0.0
  %763 = vmatprep.mubr.f32.mxu0 0.0
  %764 = vmatmul.mubr.f32.gmra.mxu0 %v694
  %v765 = vpop.f32.mrf.mxu0
  %v766 = vadd.f32 0.0, %v765
  %v767 = vpop.f32.mrf.mxu0
  %768 = vmatprep.mubr.f32.mxu0 0.0
  %769 = vmatmul.mubr.f32.gmra.mxu0 %v697
  %v770 = vpop.f32.mrf.mxu0
  %v771 = vadd.f32 0.0, %v770
  %v772 = vpop.f32.mrf.mxu0
  %773 = vdwg.mxu0
  %v774 = vmul.f32 %v683, 0.125
  %v775 = vmul.f32 %v688, 0.125
  %v776 = vmul.f32 %v766, 0.125
  %v777 = vmul.f32 %v771, 0.125
  %v778 = vmul.f32 %v774, %v774
  %v779 = vmul.f32 %v775, %v775
  %v780 = vsub.f32 %v776, %v778
  %v781 = vsub.f32 %v777, %v779
  %v782 = vadd.f32 %v780, 1e-05
  %v783 = vadd.f32 %v781, 1e-05
  %v784 = vrsqrt.pop %v782
  %v785 = vrsqrt.pop %v783
  %v787 = vsel %vm356, %v774, 0
  %v790 = vsel %vm356, %v775, 0
  %792 = vmatprep.subr.mxu0 0.0
  %793 = vmatpush1.msra.mxu0 0.0
  %794 = vmatprep.subr.mxu0 0.0
  %795 = vmatpush1.msra.mxu0 0.0
  %796 = vmatprep.subr.mxu0 0.0
  %797 = vmatpush1.msra.mxu0 0.0
  %798 = vmatprep.subr.mxu0 0.0
  %799 = vmatpush1.msra.mxu0 0.0
  %800 = vmatprep.subr.mxu0 0.0
  %801 = vmatpush1.msra.mxu0 0.0
  %802 = vmatprep.subr.mxu0 0.0
  %803 = vmatpush1.msra.mxu0 0.0
  %804 = vmatprep.subr.mxu0 0.0
  %805 = vmatpush1.msra.mxu0 0.0
  %806 = vmatprep.subr.mxu0 0.0
  %807 = vmatpush1.msra.mxu0 0.0
  %808 = vmatprep.subr.mxu0 0.0
  %809 = vmatpush1.msra.mxu0 0.0
  %810 = vmatprep.subr.mxu0 0.0
  %811 = vmatpush1.msra.mxu0 0.0
  %812 = vmatprep.subr.mxu0 0.0
  %813 = vmatpush1.msra.mxu0 0.0
  %814 = vmatprep.subr.mxu0 0.0
  %815 = vmatpush1.msra.mxu0 0.0
  %816 = vmatprep.subr.mxu0 0.0
  %817 = vmatpush1.msra.mxu0 0.0
  %818 = vmatprep.subr.mxu0 0.0
  %819 = vmatpush1.msra.mxu0 0.0
  %820 = vmatprep.subr.mxu0 0.0
  %821 = vmatpush1.msra.mxu0 0.0
  %822 = vmatprep.subr.mxu0 0.0
  %823 = vmatpush1.msra.mxu0 %v362
  %824 = vmatprep.subr.mxu0 0.0
  %825 = vmatpush2.msra.mxu0 0.0
  %826 = vmatprep.subr.mxu0 0.0
  %827 = vmatpush2.msra.mxu0 0.0
  %828 = vmatprep.subr.mxu0 0.0
  %829 = vmatpush2.msra.mxu0 0.0
  %830 = vmatprep.subr.mxu0 0.0
  %831 = vmatpush2.msra.mxu0 0.0
  %832 = vmatprep.subr.mxu0 0.0
  %833 = vmatpush2.msra.mxu0 0.0
  %834 = vmatprep.subr.mxu0 0.0
  %835 = vmatpush2.msra.mxu0 0.0
  %836 = vmatprep.subr.mxu0 0.0
  %837 = vmatpush2.msra.mxu0 0.0
  %838 = vmatprep.subr.mxu0 0.0
  %839 = vmatpush2.msra.mxu0 0.0
  %840 = vmatprep.subr.mxu0 0.0
  %841 = vmatpush2.msra.mxu0 0.0
  %842 = vmatprep.subr.mxu0 0.0
  %843 = vmatpush2.msra.mxu0 0.0
  %844 = vmatprep.subr.mxu0 0.0
  %845 = vmatpush2.msra.mxu0 0.0
  %846 = vmatprep.subr.mxu0 0.0
  %847 = vmatpush2.msra.mxu0 0.0
  %848 = vmatprep.subr.mxu0 0.0
  %849 = vmatpush2.msra.mxu0 0.0
  %850 = vmatprep.subr.mxu0 0.0
  %851 = vmatpush2.msra.mxu0 0.0
  %852 = vmatprep.subr.mxu0 0.0
  %853 = vmatpush2.msra.mxu0 0.0
  %854 = vmatprep.subr.mxu0 0.0
  %855 = vmatpush2.msra.mxu0 0.0
  %856 = vmatprep.mubr.f32.mxu0 0.0
  %857 = vmatmul.mubr.f32.gmra.mxu0 %v787
  %v858 = vpop.f32.mrf.mxu0
  %v859 = vadd.f32 0.0, %v858
  %v860 = vpop.f32.mrf.mxu0
  %861 = vmatprep.mubr.f32.mxu0 0.0
  %862 = vmatmul.mubr.f32.gmra.mxu0 %v790
  %v863 = vpop.f32.mrf.mxu0
  %v864 = vadd.f32 0.0, %v863
  %v865 = vpop.f32.mrf.mxu0
  %866 = vdwg.mxu0
  %v868 = vsel %vm356, %v784, 0
  %v871 = vsel %vm356, %v785, 0
  %873 = vmatprep.subr.mxu0 0.0
  %874 = vmatpush1.msra.mxu0 0.0
  %875 = vmatprep.subr.mxu0 0.0
  %876 = vmatpush1.msra.mxu0 0.0
  %877 = vmatprep.subr.mxu0 0.0
  %878 = vmatpush1.msra.mxu0 0.0
  %879 = vmatprep.subr.mxu0 0.0
  %880 = vmatpush1.msra.mxu0 0.0
  %881 = vmatprep.subr.mxu0 0.0
  %882 = vmatpush1.msra.mxu0 0.0
  %883 = vmatprep.subr.mxu0 0.0
  %884 = vmatpush1.msra.mxu0 0.0
  %885 = vmatprep.subr.mxu0 0.0
  %886 = vmatpush1.msra.mxu0 0.0
  %887 = vmatprep.subr.mxu0 0.0
  %888 = vmatpush1.msra.mxu0 0.0
  %889 = vmatprep.subr.mxu0 0.0
  %890 = vmatpush1.msra.mxu0 0.0
  %891 = vmatprep.subr.mxu0 0.0
  %892 = vmatpush1.msra.mxu0 0.0
  %893 = vmatprep.subr.mxu0 0.0
  %894 = vmatpush1.msra.mxu0 0.0
  %895 = vmatprep.subr.mxu0 0.0
  %896 = vmatpush1.msra.mxu0 0.0
  %897 = vmatprep.subr.mxu0 0.0
  %898 = vmatpush1.msra.mxu0 0.0
  %899 = vmatprep.subr.mxu0 0.0
  %900 = vmatpush1.msra.mxu0 0.0
  %901 = vmatprep.subr.mxu0 0.0
  %902 = vmatpush1.msra.mxu0 0.0
  %903 = vmatprep.subr.mxu0 0.0
  %904 = vmatpush1.msra.mxu0 %v362
  %905 = vmatprep.subr.mxu0 0.0
  %906 = vmatpush2.msra.mxu0 0.0
  %907 = vmatprep.subr.mxu0 0.0
  %908 = vmatpush2.msra.mxu0 0.0
  %909 = vmatprep.subr.mxu0 0.0
  %910 = vmatpush2.msra.mxu0 0.0
  %911 = vmatprep.subr.mxu0 0.0
  %912 = vmatpush2.msra.mxu0 0.0
  %913 = vmatprep.subr.mxu0 0.0
  %914 = vmatpush2.msra.mxu0 0.0
  %915 = vmatprep.subr.mxu0 0.0
  %916 = vmatpush2.msra.mxu0 0.0
  %917 = vmatprep.subr.mxu0 0.0
  %918 = vmatpush2.msra.mxu0 0.0
  %919 = vmatprep.subr.mxu0 0.0
  %920 = vmatpush2.msra.mxu0 0.0
  %921 = vmatprep.subr.mxu0 0.0
  %922 = vmatpush2.msra.mxu0 0.0
  %923 = vmatprep.subr.mxu0 0.0
  %924 = vmatpush2.msra.mxu0 0.0
  %925 = vmatprep.subr.mxu0 0.0
  %926 = vmatpush2.msra.mxu0 0.0
  %927 = vmatprep.subr.mxu0 0.0
  %928 = vmatpush2.msra.mxu0 0.0
  %929 = vmatprep.subr.mxu0 0.0
  %930 = vmatpush2.msra.mxu0 0.0
  %931 = vmatprep.subr.mxu0 0.0
  %932 = vmatpush2.msra.mxu0 0.0
  %933 = vmatprep.subr.mxu0 0.0
  %934 = vmatpush2.msra.mxu0 0.0
  %935 = vmatprep.subr.mxu0 0.0
  %936 = vmatpush2.msra.mxu0 0.0
  %937 = vmatprep.mubr.f32.mxu0 0.0
  %938 = vmatmul.mubr.f32.gmra.mxu0 %v868
  %v939 = vpop.f32.mrf.mxu0
  %v940 = vadd.f32 0.0, %v939
  %v941 = vpop.f32.mrf.mxu0
  %942 = vmatprep.mubr.f32.mxu0 0.0
  %943 = vmatmul.mubr.f32.gmra.mxu0 %v871
  %v944 = vpop.f32.mrf.mxu0
  %v945 = vadd.f32 0.0, %v944
  %v946 = vpop.f32.mrf.mxu0
  %947 = vdwg.mxu0
  %v948 = vsub.f32 %v608, %v859
  %v949 = vsub.f32 %v609, %v864
  %v950 = vmul.f32 %v948, %v940
  %v951 = vmul.f32 %v949, %v945
  %s952 = scalar_lea.vmem %s4, 1
  %v953 = vld [vmem:[%s952] sm:$0x1]
  %v955 = vlaneseq
  %v956 = vshrl.u32 %v955, 7
  %v957 = vsub.s32 0, %v956
  %v958 = vrot.slane %v953, %v957
  %v960 = vmul.f32 %v950, %v958
  %v961 = vmul.f32 %v951, %v958
  %s962 = scalar_lea.vmem %s5, 1
  %v963 = vld [vmem:[%s962] sm:$0x1]
  %v965 = vlaneseq
  %v966 = vshrl.u32 %v965, 7
  %v967 = vsub.s32 0, %v966
  %v968 = vrot.slane %v963, %v967
  %v970 = vadd.f32 %v960, %v968
  %v971 = vadd.f32 %v961, %v968
  %s972 = scalar_lea.vmem %s2, 32
  %v973 = vld [vmem:[%s972] sm:$0xf]
  %v974 = vld [vmem:[%s972 + $0x4] sm:$0xf]
  %v975 = vld [vmem:[%s972 + $0x8] sm:$0xf]
  %v976 = vld [vmem:[%s972 + $0xc] sm:$0xf]
  %s977 = scalar_lea.vmem %s3, 2
  %v978 = vld [vmem:[%s977] sm:$0x1]
  %v980 = vlaneseq
  %v981 = vshrl.u32 %v980, 7
  %v982 = vsub.s32 0, %v981
  %v983 = vrot.slane %v978, %v982
  %v989 = vunpack.c.l.b16 %v973
  %v990 = vunpack.c.l.b16 %v974
  %v991 = vunpack.c.l.b16 %v975
  %v992 = vunpack.c.l.b16 %v976
  %v993 = vpack.c.b16 %v990, %v989
  %v994 = vpack.c.b16 %v992, %v991
  %997 = vmatprep.subr.bf16.mxu0 0
  %998 = vmatpush1.bf16.msra.mxu0 0
  %999 = vmatprep.subr.bf16.mxu0 0
  %1000 = vmatpush1.bf16.msra.mxu0 0
  %1001 = vmatprep.subr.bf16.mxu0 0
  %1002 = vmatpush1.bf16.msra.mxu0 0
  %1003 = vmatprep.subr.bf16.mxu0 0
  %1004 = vmatpush1.bf16.msra.mxu0 0
  %1005 = vmatprep.subr.bf16.mxu0 0
  %1006 = vmatpush1.bf16.msra.mxu0 0
  %1007 = vmatprep.subr.bf16.mxu0 0
  %1008 = vmatpush1.bf16.msra.mxu0 0
  %1009 = vmatprep.subr.bf16.mxu0 0
  %1010 = vmatpush1.bf16.msra.mxu0 %v994
  %1011 = vmatprep.subr.bf16.mxu0 0
  %1012 = vmatpush1.bf16.msra.mxu0 %v993
  %1013 = vmatprep.subr.bf16.mxu0 0
  %1014 = vmatpush2.bf16.msra.mxu0 0
  %1015 = vmatprep.subr.bf16.mxu0 0
  %1016 = vmatpush2.bf16.msra.mxu0 0
  %1017 = vmatprep.subr.bf16.mxu0 0
  %1018 = vmatpush2.bf16.msra.mxu0 0
  %1019 = vmatprep.subr.bf16.mxu0 0
  %1020 = vmatpush2.bf16.msra.mxu0 0
  %1021 = vmatprep.subr.bf16.mxu0 0
  %1022 = vmatpush2.bf16.msra.mxu0 0
  %1023 = vmatprep.subr.bf16.mxu0 0
  %1024 = vmatpush2.bf16.msra.mxu0 0
  %1025 = vmatprep.subr.bf16.mxu0 0
  %1026 = vmatpush2.bf16.msra.mxu0 0
  %1027 = vmatprep.subr.bf16.mxu0 0
  %1028 = vmatpush2.bf16.msra.mxu0 0
  %1029 = vmatprep.mubr.bf16.mxu0 0
  %1030 = vmatmul.mubr.bf16.gmra.mxu0 %v152
  %v1031 = vpop.f32.mrf.mxu0
  %v1032 = vadd.f32 %v983, %v1031
  %v1033 = vpop.f32.mrf.mxu0
  %v1034 = vpop.f32.mrf.mxu0
  %v1035 = vpop.f32.mrf.mxu0
  %1036 = vdwg.mxu0
  %v1037 = vmax.f32 %v1032, 0.0
  %v1038 = vmul.f32 %v1032, %v195
  %v1039 = vmul.f32 %v1038, 1.442695
  %v1040 = vpow.pop %v1039
  %v1041 = vsub.f32 %v1040, 1.0
  %v1042 = vmul.f32 %v1041, 1.3
  %v1043 = vmin.f32 %v1042, 0.0
  %v1044 = vadd.f32 %v1037, %v1043
  %v1046 = vsel %vm85, %v1044, 0
  %1048 = vmatprep.subr.mxu0 0.0
  %1049 = vmatpush1.msra.mxu0 0.0
  %1050 = vmatprep.subr.mxu0 0.0
  %1051 = vmatpush1.msra.mxu0 0.0
  %1052 = vmatprep.subr.mxu0 0.0
  %1053 = vmatpush1.msra.mxu0 0.0
  %1054 = vmatprep.subr.mxu0 0.0
  %1055 = vmatpush1.msra.mxu0 0.0
  %1056 = vmatprep.subr.mxu0 0.0
  %1057 = vmatpush1.msra.mxu0 0.0
  %1058 = vmatprep.subr.mxu0 0.0
  %1059 = vmatpush1.msra.mxu0 0.0
  %1060 = vmatprep.subr.mxu0 0.0
  %1061 = vmatpush1.msra.mxu0 0.0
  %1062 = vmatprep.subr.mxu0 0.0
  %1063 = vmatpush1.msra.mxu0 0.0
  %1064 = vmatprep.subr.mxu0 0.0
  %1065 = vmatpush1.msra.mxu0 0.0
  %1066 = vmatprep.subr.mxu0 0.0
  %1067 = vmatpush1.msra.mxu0 0.0
  %1068 = vmatprep.subr.mxu0 0.0
  %1069 = vmatpush1.msra.mxu0 0.0
  %1070 = vmatprep.subr.mxu0 0.0
  %1071 = vmatpush1.msra.mxu0 0.0
  %1072 = vmatprep.subr.mxu0 0.0
  %1073 = vmatpush1.msra.mxu0 %v119
  %1074 = vmatprep.subr.mxu0 0.0
  %1075 = vmatpush1.msra.mxu0 %v118
  %1076 = vmatprep.subr.mxu0 0.0
  %1077 = vmatpush1.msra.mxu0 %v117
  %1078 = vmatprep.subr.mxu0 0.0
  %1079 = vmatpush1.msra.mxu0 %v116
  %1080 = vmatprep.subr.mxu0 0.0
  %1081 = vmatpush2.msra.mxu0 0.0
  %1082 = vmatprep.subr.mxu0 0.0
  %1083 = vmatpush2.msra.mxu0 0.0
  %1084 = vmatprep.subr.mxu0 0.0
  %1085 = vmatpush2.msra.mxu0 0.0
  %1086 = vmatprep.subr.mxu0 0.0
  %1087 = vmatpush2.msra.mxu0 0.0
  %1088 = vmatprep.subr.mxu0 0.0
  %1089 = vmatpush2.msra.mxu0 0.0
  %1090 = vmatprep.subr.mxu0 0.0
  %1091 = vmatpush2.msra.mxu0 0.0
  %1092 = vmatprep.subr.mxu0 0.0
  %1093 = vmatpush2.msra.mxu0 0.0
  %1094 = vmatprep.subr.mxu0 0.0
  %1095 = vmatpush2.msra.mxu0 0.0
  %1096 = vmatprep.subr.mxu0 0.0
  %1097 = vmatpush2.msra.mxu0 0.0
  %1098 = vmatprep.subr.mxu0 0.0
  %1099 = vmatpush2.msra.mxu0 0.0
  %1100 = vmatprep.subr.mxu0 0.0
  %1101 = vmatpush2.msra.mxu0 0.0
  %1102 = vmatprep.subr.mxu0 0.0
  %1103 = vmatpush2.msra.mxu0 0.0
  %1104 = vmatprep.subr.mxu0 0.0
  %1105 = vmatpush2.msra.mxu0 0.0
  %1106 = vmatprep.subr.mxu0 0.0
  %1107 = vmatpush2.msra.mxu0 0.0
  %1108 = vmatprep.subr.mxu0 0.0
  %1109 = vmatpush2.msra.mxu0 0.0
  %1110 = vmatprep.subr.mxu0 0.0
  %1111 = vmatpush2.msra.mxu0 0.0
  %1112 = vmatprep.mubr.f32.mxu0 0.0
  %1113 = vmatmul.mubr.f32.gmra.mxu0 %v1046
  %v1114 = vpop.f32.mrf.mxu0
  %v1115 = vadd.f32 0.0, %v1114
  %v1116 = vpop.f32.mrf.mxu0
  %1117 = vdwg.mxu0
  %v1118 = vmul.f32 %v1044, %v1044
  %v1120 = vsel %vm85, %v1118, 0
  %1122 = vmatprep.subr.mxu0 0.0
  %1123 = vmatpush1.msra.mxu0 0.0
  %1124 = vmatprep.subr.mxu0 0.0
  %1125 = vmatpush1.msra.mxu0 0.0
  %1126 = vmatprep.subr.mxu0 0.0
  %1127 = vmatpush1.msra.mxu0 0.0
  %1128 = vmatprep.subr.mxu0 0.0
  %1129 = vmatpush1.msra.mxu0 0.0
  %1130 = vmatprep.subr.mxu0 0.0
  %1131 = vmatpush1.msra.mxu0 0.0
  %1132 = vmatprep.subr.mxu0 0.0
  %1133 = vmatpush1.msra.mxu0 0.0
  %1134 = vmatprep.subr.mxu0 0.0
  %1135 = vmatpush1.msra.mxu0 0.0
  %1136 = vmatprep.subr.mxu0 0.0
  %1137 = vmatpush1.msra.mxu0 0.0
  %1138 = vmatprep.subr.mxu0 0.0
  %1139 = vmatpush1.msra.mxu0 0.0
  %1140 = vmatprep.subr.mxu0 0.0
  %1141 = vmatpush1.msra.mxu0 0.0
  %1142 = vmatprep.subr.mxu0 0.0
  %1143 = vmatpush1.msra.mxu0 0.0
  %1144 = vmatprep.subr.mxu0 0.0
  %1145 = vmatpush1.msra.mxu0 0.0
  %1146 = vmatprep.subr.mxu0 0.0
  %1147 = vmatpush1.msra.mxu0 %v119
  %1148 = vmatprep.subr.mxu0 0.0
  %1149 = vmatpush1.msra.mxu0 %v118
  %1150 = vmatprep.subr.mxu0 0.0
  %1151 = vmatpush1.msra.mxu0 %v117
  %1152 = vmatprep.subr.mxu0 0.0
  %1153 = vmatpush1.msra.mxu0 %v116
  %1154 = vmatprep.subr.mxu0 0.0
  %1155 = vmatpush2.msra.mxu0 0.0
  %1156 = vmatprep.subr.mxu0 0.0
  %1157 = vmatpush2.msra.mxu0 0.0
  %1158 = vmatprep.subr.mxu0 0.0
  %1159 = vmatpush2.msra.mxu0 0.0
  %1160 = vmatprep.subr.mxu0 0.0
  %1161 = vmatpush2.msra.mxu0 0.0
  %1162 = vmatprep.subr.mxu0 0.0
  %1163 = vmatpush2.msra.mxu0 0.0
  %1164 = vmatprep.subr.mxu0 0.0
  %1165 = vmatpush2.msra.mxu0 0.0
  %1166 = vmatprep.subr.mxu0 0.0
  %1167 = vmatpush2.msra.mxu0 0.0
  %1168 = vmatprep.subr.mxu0 0.0
  %1169 = vmatpush2.msra.mxu0 0.0
  %1170 = vmatprep.subr.mxu0 0.0
  %1171 = vmatpush2.msra.mxu0 0.0
  %1172 = vmatprep.subr.mxu0 0.0
  %1173 = vmatpush2.msra.mxu0 0.0
  %1174 = vmatprep.subr.mxu0 0.0
  %1175 = vmatpush2.msra.mxu0 0.0
  %1176 = vmatprep.subr.mxu0 0.0
  %1177 = vmatpush2.msra.mxu0 0.0
  %1178 = vmatprep.subr.mxu0 0.0
  %1179 = vmatpush2.msra.mxu0 0.0
  %1180 = vmatprep.subr.mxu0 0.0
  %1181 = vmatpush2.msra.mxu0 0.0
  %1182 = vmatprep.subr.mxu0 0.0
  %1183 = vmatpush2.msra.mxu0 0.0
  %1184 = vmatprep.subr.mxu0 0.0
  %1185 = vmatpush2.msra.mxu0 0.0
  %1186 = vmatprep.mubr.f32.mxu0 0.0
  %1187 = vmatmul.mubr.f32.gmra.mxu0 %v1120
  %v1188 = vpop.f32.mrf.mxu0
  %v1189 = vadd.f32 0.0, %v1188
  %v1190 = vpop.f32.mrf.mxu0
  %1191 = vdwg.mxu0
  %v1192 = vmul.f32 %v1115, 0.125
  %v1193 = vmul.f32 %v1189, 0.125
  %v1194 = vmul.f32 %v1192, %v1192
  %v1195 = vsub.f32 %v1193, %v1194
  %v1196 = vadd.f32 %v1195, 1e-05
  %v1197 = vrsqrt.pop %v1196
  %v1199 = vsel %vm356, %v1192, 0
  %1201 = vmatprep.subr.mxu0 0.0
  %1202 = vmatpush1.msra.mxu0 0.0
  %1203 = vmatprep.subr.mxu0 0.0
  %1204 = vmatpush1.msra.mxu0 0.0
  %1205 = vmatprep.subr.mxu0 0.0
  %1206 = vmatpush1.msra.mxu0 0.0
  %1207 = vmatprep.subr.mxu0 0.0
  %1208 = vmatpush1.msra.mxu0 0.0
  %1209 = vmatprep.subr.mxu0 0.0
  %1210 = vmatpush1.msra.mxu0 0.0
  %1211 = vmatprep.subr.mxu0 0.0
  %1212 = vmatpush1.msra.mxu0 0.0
  %1213 = vmatprep.subr.mxu0 0.0
  %1214 = vmatpush1.msra.mxu0 0.0
  %1215 = vmatprep.subr.mxu0 0.0
  %1216 = vmatpush1.msra.mxu0 0.0
  %1217 = vmatprep.subr.mxu0 0.0
  %1218 = vmatpush1.msra.mxu0 0.0
  %1219 = vmatprep.subr.mxu0 0.0
  %1220 = vmatpush1.msra.mxu0 0.0
  %1221 = vmatprep.subr.mxu0 0.0
  %1222 = vmatpush1.msra.mxu0 0.0
  %1223 = vmatprep.subr.mxu0 0.0
  %1224 = vmatpush1.msra.mxu0 0.0
  %1225 = vmatprep.subr.mxu0 0.0
  %1226 = vmatpush1.msra.mxu0 0.0
  %1227 = vmatprep.subr.mxu0 0.0
  %1228 = vmatpush1.msra.mxu0 0.0
  %1229 = vmatprep.subr.mxu0 0.0
  %1230 = vmatpush1.msra.mxu0 0.0
  %1231 = vmatprep.subr.mxu0 0.0
  %1232 = vmatpush1.msra.mxu0 %v362
  %1233 = vmatprep.subr.mxu0 0.0
  %1234 = vmatpush2.msra.mxu0 0.0
  %1235 = vmatprep.subr.mxu0 0.0
  %1236 = vmatpush2.msra.mxu0 0.0
  %1237 = vmatprep.subr.mxu0 0.0
  %1238 = vmatpush2.msra.mxu0 0.0
  %1239 = vmatprep.subr.mxu0 0.0
  %1240 = vmatpush2.msra.mxu0 0.0
  %1241 = vmatprep.subr.mxu0 0.0
  %1242 = vmatpush2.msra.mxu0 0.0
  %1243 = vmatprep.subr.mxu0 0.0
  %1244 = vmatpush2.msra.mxu0 0.0
  %1245 = vmatprep.subr.mxu0 0.0
  %1246 = vmatpush2.msra.mxu0 0.0
  %1247 = vmatprep.subr.mxu0 0.0
  %1248 = vmatpush2.msra.mxu0 0.0
  %1249 = vmatprep.subr.mxu0 0.0
  %1250 = vmatpush2.msra.mxu0 0.0
  %1251 = vmatprep.subr.mxu0 0.0
  %1252 = vmatpush2.msra.mxu0 0.0
  %1253 = vmatprep.subr.mxu0 0.0
  %1254 = vmatpush2.msra.mxu0 0.0
  %1255 = vmatprep.subr.mxu0 0.0
  %1256 = vmatpush2.msra.mxu0 0.0
  %1257 = vmatprep.subr.mxu0 0.0
  %1258 = vmatpush2.msra.mxu0 0.0
  %1259 = vmatprep.subr.mxu0 0.0
  %1260 = vmatpush2.msra.mxu0 0.0
  %1261 = vmatprep.subr.mxu0 0.0
  %1262 = vmatpush2.msra.mxu0 0.0
  %1263 = vmatprep.subr.mxu0 0.0
  %1264 = vmatpush2.msra.mxu0 0.0
  %1265 = vmatprep.mubr.f32.mxu0 0.0
  %1266 = vmatmul.mubr.f32.gmra.mxu0 %v1199
  %v1267 = vpop.f32.mrf.mxu0
  %v1268 = vadd.f32 0.0, %v1267
  %v1269 = vpop.f32.mrf.mxu0
  %1270 = vdwg.mxu0
  %v1272 = vsel %vm356, %v1197, 0
  %1274 = vmatprep.subr.mxu0 0.0
  %1275 = vmatpush1.msra.mxu0 0.0
  %1276 = vmatprep.subr.mxu0 0.0
  %1277 = vmatpush1.msra.mxu0 0.0
  %1278 = vmatprep.subr.mxu0 0.0
  %1279 = vmatpush1.msra.mxu0 0.0
  %1280 = vmatprep.subr.mxu0 0.0
  %1281 = vmatpush1.msra.mxu0 0.0
  %1282 = vmatprep.subr.mxu0 0.0
  %1283 = vmatpush1.msra.mxu0 0.0
  %1284 = vmatprep.subr.mxu0 0.0
  %1285 = vmatpush1.msra.mxu0 0.0
  %1286 = vmatprep.subr.mxu0 0.0
  %1287 = vmatpush1.msra.mxu0 0.0
  %1288 = vmatprep.subr.mxu0 0.0
  %1289 = vmatpush1.msra.mxu0 0.0
  %1290 = vmatprep.subr.mxu0 0.0
  %1291 = vmatpush1.msra.mxu0 0.0
  %1292 = vmatprep.subr.mxu0 0.0
  %1293 = vmatpush1.msra.mxu0 0.0
  %1294 = vmatprep.subr.mxu0 0.0
  %1295 = vmatpush1.msra.mxu0 0.0
  %1296 = vmatprep.subr.mxu0 0.0
  %1297 = vmatpush1.msra.mxu0 0.0
  %1298 = vmatprep.subr.mxu0 0.0
  %1299 = vmatpush1.msra.mxu0 0.0
  %1300 = vmatprep.subr.mxu0 0.0
  %1301 = vmatpush1.msra.mxu0 0.0
  %1302 = vmatprep.subr.mxu0 0.0
  %1303 = vmatpush1.msra.mxu0 0.0
  %1304 = vmatprep.subr.mxu0 0.0
  %1305 = vmatpush1.msra.mxu0 %v362
  %1306 = vmatprep.subr.mxu0 0.0
  %1307 = vmatpush2.msra.mxu0 0.0
  %1308 = vmatprep.subr.mxu0 0.0
  %1309 = vmatpush2.msra.mxu0 0.0
  %1310 = vmatprep.subr.mxu0 0.0
  %1311 = vmatpush2.msra.mxu0 0.0
  %1312 = vmatprep.subr.mxu0 0.0
  %1313 = vmatpush2.msra.mxu0 0.0
  %1314 = vmatprep.subr.mxu0 0.0
  %1315 = vmatpush2.msra.mxu0 0.0
  %1316 = vmatprep.subr.mxu0 0.0
  %1317 = vmatpush2.msra.mxu0 0.0
  %1318 = vmatprep.subr.mxu0 0.0
  %1319 = vmatpush2.msra.mxu0 0.0
  %1320 = vmatprep.subr.mxu0 0.0
  %1321 = vmatpush2.msra.mxu0 0.0
  %1322 = vmatprep.subr.mxu0 0.0
  %1323 = vmatpush2.msra.mxu0 0.0
  %1324 = vmatprep.subr.mxu0 0.0
  %1325 = vmatpush2.msra.mxu0 0.0
  %1326 = vmatprep.subr.mxu0 0.0
  %1327 = vmatpush2.msra.mxu0 0.0
  %1328 = vmatprep.subr.mxu0 0.0
  %1329 = vmatpush2.msra.mxu0 0.0
  %1330 = vmatprep.subr.mxu0 0.0
  %1331 = vmatpush2.msra.mxu0 0.0
  %1332 = vmatprep.subr.mxu0 0.0
  %1333 = vmatpush2.msra.mxu0 0.0
  %1334 = vmatprep.subr.mxu0 0.0
  %1335 = vmatpush2.msra.mxu0 0.0
  %1336 = vmatprep.subr.mxu0 0.0
  %1337 = vmatpush2.msra.mxu0 0.0
  %1338 = vmatprep.mubr.f32.mxu0 0.0
  %1339 = vmatmul.mubr.f32.gmra.mxu0 %v1272
  %v1340 = vpop.f32.mrf.mxu0
  %v1341 = vadd.f32 0.0, %v1340
  %v1342 = vpop.f32.mrf.mxu0
  %1343 = vdwg.mxu0
  %v1344 = vsub.f32 %v1044, %v1268
  %v1345 = vmul.f32 %v1344, %v1341
  %s1346 = scalar_lea.vmem %s4, 2
  %v1347 = vld [vmem:[%s1346] sm:$0x1]
  %v1349 = vlaneseq
  %v1350 = vshrl.u32 %v1349, 7
  %v1351 = vsub.s32 0, %v1350
  %v1352 = vrot.slane %v1347, %v1351
  %v1354 = vmul.f32 %v1345, %v1352
  %s1355 = scalar_lea.vmem %s5, 2
  %v1356 = vld [vmem:[%s1355] sm:$0x1]
  %v1358 = vlaneseq
  %v1359 = vshrl.u32 %v1358, 7
  %v1360 = vsub.s32 0, %v1359
  %v1361 = vrot.slane %v1356, %v1360
  %v1363 = vadd.f32 %v1354, %v1361
  %s1364 = scalar_lea.vmem %s2, 48
  %v1365 = vld [vmem:[%s1364] sm:$0xf]
  %v1366 = vld [vmem:[%s1364 + $0x4] sm:$0xf]
  %v1367 = vld [vmem:[%s1364 + $0x8] sm:$0xf]
  %v1368 = vld [vmem:[%s1364 + $0xc] sm:$0xf]
  %s1369 = scalar_lea.vmem %s3, 3
  %v1370 = vld [vmem:[%s1369] sm:$0x1]
  %v1372 = vlaneseq
  %v1373 = vshrl.u32 %v1372, 7
  %v1374 = vsub.s32 0, %v1373
  %v1375 = vrot.slane %v1370, %v1374
  %v1381 = vunpack.c.l.b16 %v1365
  %v1382 = vunpack.c.l.b16 %v1366
  %v1383 = vunpack.c.l.b16 %v1367
  %v1384 = vunpack.c.l.b16 %v1368
  %v1385 = vpack.c.b16 %v1382, %v1381
  %v1386 = vpack.c.b16 %v1384, %v1383
  %1389 = vmatprep.subr.bf16.mxu0 0
  %1390 = vmatpush1.bf16.msra.mxu0 0
  %1391 = vmatprep.subr.bf16.mxu0 0
  %1392 = vmatpush1.bf16.msra.mxu0 0
  %1393 = vmatprep.subr.bf16.mxu0 0
  %1394 = vmatpush1.bf16.msra.mxu0 0
  %1395 = vmatprep.subr.bf16.mxu0 0
  %1396 = vmatpush1.bf16.msra.mxu0 0
  %1397 = vmatprep.subr.bf16.mxu0 0
  %1398 = vmatpush1.bf16.msra.mxu0 0
  %1399 = vmatprep.subr.bf16.mxu0 0
  %1400 = vmatpush1.bf16.msra.mxu0 0
  %1401 = vmatprep.subr.bf16.mxu0 0
  %1402 = vmatpush1.bf16.msra.mxu0 %v1386
  %1403 = vmatprep.subr.bf16.mxu0 0
  %1404 = vmatpush1.bf16.msra.mxu0 %v1385
  %1405 = vmatprep.subr.bf16.mxu0 0
  %1406 = vmatpush2.bf16.msra.mxu0 0
  %1407 = vmatprep.subr.bf16.mxu0 0
  %1408 = vmatpush2.bf16.msra.mxu0 0
  %1409 = vmatprep.subr.bf16.mxu0 0
  %1410 = vmatpush2.bf16.msra.mxu0 0
  %1411 = vmatprep.subr.bf16.mxu0 0
  %1412 = vmatpush2.bf16.msra.mxu0 0
  %1413 = vmatprep.subr.bf16.mxu0 0
  %1414 = vmatpush2.bf16.msra.mxu0 0
  %1415 = vmatprep.subr.bf16.mxu0 0
  %1416 = vmatpush2.bf16.msra.mxu0 0
  %1417 = vmatprep.subr.bf16.mxu0 0
  %1418 = vmatpush2.bf16.msra.mxu0 0
  %1419 = vmatprep.subr.bf16.mxu0 0
  %1420 = vmatpush2.bf16.msra.mxu0 0
  %1421 = vmatprep.mubr.bf16.mxu0 0
  %1422 = vmatmul.mubr.bf16.gmra.mxu0 %v551
  %v1423 = vpop.f32.mrf.mxu0
  %v1424 = vadd.f32 %v1375, %v1423
  %v1425 = vpop.f32.mrf.mxu0
  %v1426 = vpop.f32.mrf.mxu0
  %v1427 = vadd.f32 %v1375, %v1426
  %v1428 = vpop.f32.mrf.mxu0
  %1429 = vdwg.mxu0
  %v1430 = vmax.f32 %v1424, 0.0
  %v1431 = vmax.f32 %v1427, 0.0
  %v1432 = vmul.f32 %v1424, %v195
  %v1433 = vmul.f32 %v1427, %v195
  %v1434 = vmul.f32 %v1432, 1.442695
  %v1435 = vpow.pop %v1434
  %v1436 = vmul.f32 %v1433, 1.442695
  %v1437 = vpow.pop %v1436
  %v1438 = vsub.f32 %v1435, 1.0
  %v1439 = vsub.f32 %v1437, 1.0
  %v1440 = vmul.f32 %v1438, 1.3
  %v1441 = vmul.f32 %v1439, 1.3
  %v1442 = vmin.f32 %v1440, 0.0
  %v1443 = vmin.f32 %v1441, 0.0
  %v1444 = vadd.f32 %v1430, %v1442
  %v1445 = vadd.f32 %v1431, %v1443
  %v1447 = vsel %vm85, %v1444, 0
  %v1450 = vsel %vm85, %v1445, 0
  %1452 = vmatprep.subr.mxu0 0.0
  %1453 = vmatpush1.msra.mxu0 0.0
  %1454 = vmatprep.subr.mxu0 0.0
  %1455 = vmatpush1.msra.mxu0 0.0
  %1456 = vmatprep.subr.mxu0 0.0
  %1457 = vmatpush1.msra.mxu0 0.0
  %1458 = vmatprep.subr.mxu0 0.0
  %1459 = vmatpush1.msra.mxu0 0.0
  %1460 = vmatprep.subr.mxu0 0.0
  %1461 = vmatpush1.msra.mxu0 0.0
  %1462 = vmatprep.subr.mxu0 0.0
  %1463 = vmatpush1.msra.mxu0 0.0
  %1464 = vmatprep.subr.mxu0 0.0
  %1465 = vmatpush1.msra.mxu0 0.0
  %1466 = vmatprep.subr.mxu0 0.0
  %1467 = vmatpush1.msra.mxu0 0.0
  %1468 = vmatprep.subr.mxu0 0.0
  %1469 = vmatpush1.msra.mxu0 0.0
  %1470 = vmatprep.subr.mxu0 0.0
  %1471 = vmatpush1.msra.mxu0 0.0
  %1472 = vmatprep.subr.mxu0 0.0
  %1473 = vmatpush1.msra.mxu0 0.0
  %1474 = vmatprep.subr.mxu0 0.0
  %1475 = vmatpush1.msra.mxu0 0.0
  %1476 = vmatprep.subr.mxu0 0.0
  %1477 = vmatpush1.msra.mxu0 %v119
  %1478 = vmatprep.subr.mxu0 0.0
  %1479 = vmatpush1.msra.mxu0 %v118
  %1480 = vmatprep.subr.mxu0 0.0
  %1481 = vmatpush1.msra.mxu0 %v117
  %1482 = vmatprep.subr.mxu0 0.0
  %1483 = vmatpush1.msra.mxu0 %v116
  %1484 = vmatprep.subr.mxu0 0.0
  %1485 = vmatpush2.msra.mxu0 0.0
  %1486 = vmatprep.subr.mxu0 0.0
  %1487 = vmatpush2.msra.mxu0 0.0
  %1488 = vmatprep.subr.mxu0 0.0
  %1489 = vmatpush2.msra.mxu0 0.0
  %1490 = vmatprep.subr.mxu0 0.0
  %1491 = vmatpush2.msra.mxu0 0.0
  %1492 = vmatprep.subr.mxu0 0.0
  %1493 = vmatpush2.msra.mxu0 0.0
  %1494 = vmatprep.subr.mxu0 0.0
  %1495 = vmatpush2.msra.mxu0 0.0
  %1496 = vmatprep.subr.mxu0 0.0
  %1497 = vmatpush2.msra.mxu0 0.0
  %1498 = vmatprep.subr.mxu0 0.0
  %1499 = vmatpush2.msra.mxu0 0.0
  %1500 = vmatprep.subr.mxu0 0.0
  %1501 = vmatpush2.msra.mxu0 0.0
  %1502 = vmatprep.subr.mxu0 0.0
  %1503 = vmatpush2.msra.mxu0 0.0
  %1504 = vmatprep.subr.mxu0 0.0
  %1505 = vmatpush2.msra.mxu0 0.0
  %1506 = vmatprep.subr.mxu0 0.0
  %1507 = vmatpush2.msra.mxu0 0.0
  %1508 = vmatprep.subr.mxu0 0.0
  %1509 = vmatpush2.msra.mxu0 0.0
  %1510 = vmatprep.subr.mxu0 0.0
  %1511 = vmatpush2.msra.mxu0 0.0
  %1512 = vmatprep.subr.mxu0 0.0
  %1513 = vmatpush2.msra.mxu0 0.0
  %1514 = vmatprep.subr.mxu0 0.0
  %1515 = vmatpush2.msra.mxu0 0.0
  %1516 = vmatprep.mubr.f32.mxu0 0.0
  %1517 = vmatmul.mubr.f32.gmra.mxu0 %v1447
  %v1518 = vpop.f32.mrf.mxu0
  %v1519 = vadd.f32 0.0, %v1518
  %v1520 = vpop.f32.mrf.mxu0
  %1521 = vmatprep.mubr.f32.mxu0 0.0
  %1522 = vmatmul.mubr.f32.gmra.mxu0 %v1450
  %v1523 = vpop.f32.mrf.mxu0
  %v1524 = vadd.f32 0.0, %v1523
  %v1525 = vpop.f32.mrf.mxu0
  %1526 = vdwg.mxu0
  %v1527 = vmul.f32 %v1444, %v1444
  %v1528 = vmul.f32 %v1445, %v1445
  %v1530 = vsel %vm85, %v1527, 0
  %v1533 = vsel %vm85, %v1528, 0
  %1535 = vmatprep.subr.mxu0 0.0
  %1536 = vmatpush1.msra.mxu0 0.0
  %1537 = vmatprep.subr.mxu0 0.0
  %1538 = vmatpush1.msra.mxu0 0.0
  %1539 = vmatprep.subr.mxu0 0.0
  %1540 = vmatpush1.msra.mxu0 0.0
  %1541 = vmatprep.subr.mxu0 0.0
  %1542 = vmatpush1.msra.mxu0 0.0
  %1543 = vmatprep.subr.mxu0 0.0
  %1544 = vmatpush1.msra.mxu0 0.0
  %1545 = vmatprep.subr.mxu0 0.0
  %1546 = vmatpush1.msra.mxu0 0.0
  %1547 = vmatprep.subr.mxu0 0.0
  %1548 = vmatpush1.msra.mxu0 0.0
  %1549 = vmatprep.subr.mxu0 0.0
  %1550 = vmatpush1.msra.mxu0 0.0
  %1551 = vmatprep.subr.mxu0 0.0
  %1552 = vmatpush1.msra.mxu0 0.0
  %1553 = vmatprep.subr.mxu0 0.0
  %1554 = vmatpush1.msra.mxu0 0.0
  %1555 = vmatprep.subr.mxu0 0.0
  %1556 = vmatpush1.msra.mxu0 0.0
  %1557 = vmatprep.subr.mxu0 0.0
  %1558 = vmatpush1.msra.mxu0 0.0
  %1559 = vmatprep.subr.mxu0 0.0
  %1560 = vmatpush1.msra.mxu0 %v119
  %1561 = vmatprep.subr.mxu0 0.0
  %1562 = vmatpush1.msra.mxu0 %v118
  %1563 = vmatprep.subr.mxu0 0.0
  %1564 = vmatpush1.msra.mxu0 %v117
  %1565 = vmatprep.subr.mxu0 0.0
  %1566 = vmatpush1.msra.mxu0 %v116
  %1567 = vmatprep.subr.mxu0 0.0
  %1568 = vmatpush2.msra.mxu0 0.0
  %1569 = vmatprep.subr.mxu0 0.0
  %1570 = vmatpush2.msra.mxu0 0.0
  %1571 = vmatprep.subr.mxu0 0.0
  %1572 = vmatpush2.msra.mxu0 0.0
  %1573 = vmatprep.subr.mxu0 0.0
  %1574 = vmatpush2.msra.mxu0 0.0
  %1575 = vmatprep.subr.mxu0 0.0
  %1576 = vmatpush2.msra.mxu0 0.0
  %1577 = vmatprep.subr.mxu0 0.0
  %1578 = vmatpush2.msra.mxu0 0.0
  %1579 = vmatprep.subr.mxu0 0.0
  %1580 = vmatpush2.msra.mxu0 0.0
  %1581 = vmatprep.subr.mxu0 0.0
  %1582 = vmatpush2.msra.mxu0 0.0
  %1583 = vmatprep.subr.mxu0 0.0
  %1584 = vmatpush2.msra.mxu0 0.0
  %1585 = vmatprep.subr.mxu0 0.0
  %1586 = vmatpush2.msra.mxu0 0.0
  %1587 = vmatprep.subr.mxu0 0.0
  %1588 = vmatpush2.msra.mxu0 0.0
  %1589 = vmatprep.subr.mxu0 0.0
  %1590 = vmatpush2.msra.mxu0 0.0
  %1591 = vmatprep.subr.mxu0 0.0
  %1592 = vmatpush2.msra.mxu0 0.0
  %1593 = vmatprep.subr.mxu0 0.0
  %1594 = vmatpush2.msra.mxu0 0.0
  %1595 = vmatprep.subr.mxu0 0.0
  %1596 = vmatpush2.msra.mxu0 0.0
  %1597 = vmatprep.subr.mxu0 0.0
  %1598 = vmatpush2.msra.mxu0 0.0
  %1599 = vmatprep.mubr.f32.mxu0 0.0
  %1600 = vmatmul.mubr.f32.gmra.mxu0 %v1530
  %v1601 = vpop.f32.mrf.mxu0
  %v1602 = vadd.f32 0.0, %v1601
  %v1603 = vpop.f32.mrf.mxu0
  %1604 = vmatprep.mubr.f32.mxu0 0.0
  %1605 = vmatmul.mubr.f32.gmra.mxu0 %v1533
  %v1606 = vpop.f32.mrf.mxu0
  %v1607 = vadd.f32 0.0, %v1606
  %v1608 = vpop.f32.mrf.mxu0
  %1609 = vdwg.mxu0
  %v1610 = vmul.f32 %v1519, 0.125
  %v1611 = vmul.f32 %v1524, 0.125
  %v1612 = vmul.f32 %v1602, 0.125
  %v1613 = vmul.f32 %v1607, 0.125
  %v1614 = vmul.f32 %v1610, %v1610
  %v1615 = vmul.f32 %v1611, %v1611
  %v1616 = vsub.f32 %v1612, %v1614
  %v1617 = vsub.f32 %v1613, %v1615
  %v1618 = vadd.f32 %v1616, 1e-05
  %v1619 = vadd.f32 %v1617, 1e-05
  %v1620 = vrsqrt.pop %v1618
  %v1621 = vrsqrt.pop %v1619
  %v1623 = vsel %vm356, %v1610, 0
  %v1626 = vsel %vm356, %v1611, 0
  %1628 = vmatprep.subr.mxu0 0.0
  %1629 = vmatpush1.msra.mxu0 0.0
  %1630 = vmatprep.subr.mxu0 0.0
  %1631 = vmatpush1.msra.mxu0 0.0
  %1632 = vmatprep.subr.mxu0 0.0
  %1633 = vmatpush1.msra.mxu0 0.0
  %1634 = vmatprep.subr.mxu0 0.0
  %1635 = vmatpush1.msra.mxu0 0.0
  %1636 = vmatprep.subr.mxu0 0.0
  %1637 = vmatpush1.msra.mxu0 0.0
  %1638 = vmatprep.subr.mxu0 0.0
  %1639 = vmatpush1.msra.mxu0 0.0
  %1640 = vmatprep.subr.mxu0 0.0
  %1641 = vmatpush1.msra.mxu0 0.0
  %1642 = vmatprep.subr.mxu0 0.0
  %1643 = vmatpush1.msra.mxu0 0.0
  %1644 = vmatprep.subr.mxu0 0.0
  %1645 = vmatpush1.msra.mxu0 0.0
  %1646 = vmatprep.subr.mxu0 0.0
  %1647 = vmatpush1.msra.mxu0 0.0
  %1648 = vmatprep.subr.mxu0 0.0
  %1649 = vmatpush1.msra.mxu0 0.0
  %1650 = vmatprep.subr.mxu0 0.0
  %1651 = vmatpush1.msra.mxu0 0.0
  %1652 = vmatprep.subr.mxu0 0.0
  %1653 = vmatpush1.msra.mxu0 0.0
  %1654 = vmatprep.subr.mxu0 0.0
  %1655 = vmatpush1.msra.mxu0 0.0
  %1656 = vmatprep.subr.mxu0 0.0
  %1657 = vmatpush1.msra.mxu0 0.0
  %1658 = vmatprep.subr.mxu0 0.0
  %1659 = vmatpush1.msra.mxu0 %v362
  %1660 = vmatprep.subr.mxu0 0.0
  %1661 = vmatpush2.msra.mxu0 0.0
  %1662 = vmatprep.subr.mxu0 0.0
  %1663 = vmatpush2.msra.mxu0 0.0
  %1664 = vmatprep.subr.mxu0 0.0
  %1665 = vmatpush2.msra.mxu0 0.0
  %1666 = vmatprep.subr.mxu0 0.0
  %1667 = vmatpush2.msra.mxu0 0.0
  %1668 = vmatprep.subr.mxu0 0.0
  %1669 = vmatpush2.msra.mxu0 0.0
  %1670 = vmatprep.subr.mxu0 0.0
  %1671 = vmatpush2.msra.mxu0 0.0
  %1672 = vmatprep.subr.mxu0 0.0
  %1673 = vmatpush2.msra.mxu0 0.0
  %1674 = vmatprep.subr.mxu0 0.0
  %1675 = vmatpush2.msra.mxu0 0.0
  %1676 = vmatprep.subr.mxu0 0.0
  %1677 = vmatpush2.msra.mxu0 0.0
  %1678 = vmatprep.subr.mxu0 0.0
  %1679 = vmatpush2.msra.mxu0 0.0
  %1680 = vmatprep.subr.mxu0 0.0
  %1681 = vmatpush2.msra.mxu0 0.0
  %1682 = vmatprep.subr.mxu0 0.0
  %1683 = vmatpush2.msra.mxu0 0.0
  %1684 = vmatprep.subr.mxu0 0.0
  %1685 = vmatpush2.msra.mxu0 0.0
  %1686 = vmatprep.subr.mxu0 0.0
  %1687 = vmatpush2.msra.mxu0 0.0
  %1688 = vmatprep.subr.mxu0 0.0
  %1689 = vmatpush2.msra.mxu0 0.0
  %1690 = vmatprep.subr.mxu0 0.0
  %1691 = vmatpush2.msra.mxu0 0.0
  %1692 = vmatprep.mubr.f32.mxu0 0.0
  %1693 = vmatmul.mubr.f32.gmra.mxu0 %v1623
  %v1694 = vpop.f32.mrf.mxu0
  %v1695 = vadd.f32 0.0, %v1694
  %v1696 = vpop.f32.mrf.mxu0
  %1697 = vmatprep.mubr.f32.mxu0 0.0
  %1698 = vmatmul.mubr.f32.gmra.mxu0 %v1626
  %v1699 = vpop.f32.mrf.mxu0
  %v1700 = vadd.f32 0.0, %v1699
  %v1701 = vpop.f32.mrf.mxu0
  %1702 = vdwg.mxu0
  %v1704 = vsel %vm356, %v1620, 0
  %v1707 = vsel %vm356, %v1621, 0
  %1709 = vmatprep.subr.mxu0 0.0
  %1710 = vmatpush1.msra.mxu0 0.0
  %1711 = vmatprep.subr.mxu0 0.0
  %1712 = vmatpush1.msra.mxu0 0.0
  %1713 = vmatprep.subr.mxu0 0.0
  %1714 = vmatpush1.msra.mxu0 0.0
  %1715 = vmatprep.subr.mxu0 0.0
  %1716 = vmatpush1.msra.mxu0 0.0
  %1717 = vmatprep.subr.mxu0 0.0
  %1718 = vmatpush1.msra.mxu0 0.0
  %1719 = vmatprep.subr.mxu0 0.0
  %1720 = vmatpush1.msra.mxu0 0.0
  %1721 = vmatprep.subr.mxu0 0.0
  %1722 = vmatpush1.msra.mxu0 0.0
  %1723 = vmatprep.subr.mxu0 0.0
  %1724 = vmatpush1.msra.mxu0 0.0
  %1725 = vmatprep.subr.mxu0 0.0
  %1726 = vmatpush1.msra.mxu0 0.0
  %1727 = vmatprep.subr.mxu0 0.0
  %1728 = vmatpush1.msra.mxu0 0.0
  %1729 = vmatprep.subr.mxu0 0.0
  %1730 = vmatpush1.msra.mxu0 0.0
  %1731 = vmatprep.subr.mxu0 0.0
  %1732 = vmatpush1.msra.mxu0 0.0
  %1733 = vmatprep.subr.mxu0 0.0
  %1734 = vmatpush1.msra.mxu0 0.0
  %1735 = vmatprep.subr.mxu0 0.0
  %1736 = vmatpush1.msra.mxu0 0.0
  %1737 = vmatprep.subr.mxu0 0.0
  %1738 = vmatpush1.msra.mxu0 0.0
  %1739 = vmatprep.subr.mxu0 0.0
  %1740 = vmatpush1.msra.mxu0 %v362
  %1741 = vmatprep.subr.mxu0 0.0
  %1742 = vmatpush2.msra.mxu0 0.0
  %1743 = vmatprep.subr.mxu0 0.0
  %1744 = vmatpush2.msra.mxu0 0.0
  %1745 = vmatprep.subr.mxu0 0.0
  %1746 = vmatpush2.msra.mxu0 0.0
  %1747 = vmatprep.subr.mxu0 0.0
  %1748 = vmatpush2.msra.mxu0 0.0
  %1749 = vmatprep.subr.mxu0 0.0
  %1750 = vmatpush2.msra.mxu0 0.0
  %1751 = vmatprep.subr.mxu0 0.0
  %1752 = vmatpush2.msra.mxu0 0.0
  %1753 = vmatprep.subr.mxu0 0.0
  %1754 = vmatpush2.msra.mxu0 0.0
  %1755 = vmatprep.subr.mxu0 0.0
  %1756 = vmatpush2.msra.mxu0 0.0
  %1757 = vmatprep.subr.mxu0 0.0
  %1758 = vmatpush2.msra.mxu0 0.0
  %1759 = vmatprep.subr.mxu0 0.0
  %1760 = vmatpush2.msra.mxu0 0.0
  %1761 = vmatprep.subr.mxu0 0.0
  %1762 = vmatpush2.msra.mxu0 0.0
  %1763 = vmatprep.subr.mxu0 0.0
  %1764 = vmatpush2.msra.mxu0 0.0
  %1765 = vmatprep.subr.mxu0 0.0
  %1766 = vmatpush2.msra.mxu0 0.0
  %1767 = vmatprep.subr.mxu0 0.0
  %1768 = vmatpush2.msra.mxu0 0.0
  %1769 = vmatprep.subr.mxu0 0.0
  %1770 = vmatpush2.msra.mxu0 0.0
  %1771 = vmatprep.subr.mxu0 0.0
  %1772 = vmatpush2.msra.mxu0 0.0
  %1773 = vmatprep.mubr.f32.mxu0 0.0
  %1774 = vmatmul.mubr.f32.gmra.mxu0 %v1704
  %v1775 = vpop.f32.mrf.mxu0
  %v1776 = vadd.f32 0.0, %v1775
  %v1777 = vpop.f32.mrf.mxu0
  %1778 = vmatprep.mubr.f32.mxu0 0.0
  %1779 = vmatmul.mubr.f32.gmra.mxu0 %v1707
  %v1780 = vpop.f32.mrf.mxu0
  %v1781 = vadd.f32 0.0, %v1780
  %v1782 = vpop.f32.mrf.mxu0
  %1783 = vdwg.mxu0
  %v1784 = vsub.f32 %v1444, %v1695
  %v1785 = vsub.f32 %v1445, %v1700
  %v1786 = vmul.f32 %v1784, %v1776
  %v1787 = vmul.f32 %v1785, %v1781
  %s1788 = scalar_lea.vmem %s4, 3
  %v1789 = vld [vmem:[%s1788] sm:$0x1]
  %v1791 = vlaneseq
  %v1792 = vshrl.u32 %v1791, 7
  %v1793 = vsub.s32 0, %v1792
  %v1794 = vrot.slane %v1789, %v1793
  %v1796 = vmul.f32 %v1786, %v1794
  %v1797 = vmul.f32 %v1787, %v1794
  %s1798 = scalar_lea.vmem %s5, 3
  %v1799 = vld [vmem:[%s1798] sm:$0x1]
  %v1801 = vlaneseq
  %v1802 = vshrl.u32 %v1801, 7
  %v1803 = vsub.s32 0, %v1802
  %v1804 = vrot.slane %v1799, %v1803
  %v1806 = vadd.f32 %v1796, %v1804
  %v1807 = vadd.f32 %v1797, %v1804
  %v1810 = vunpack.c.l.s4 1966171168
  %v1811 = vunpack.c.0.s8 %v1810
  %v1812 = vlaneseq
  %v1813 = vshrl.u32 %v1812, 7
  %v1814 = vsub.s32 %v1811, %v1813
  %v1815 = vrot.slane %v524, %v1814
  %v1816 = vcombine.high %v1815, %v1815
  %v1818 = vunpack.c.l.s4 1966171168
  %v1819 = vunpack.c.0.s8 %v1818
  %v1820 = vlaneseq
  %v1821 = vshrl.u32 %v1820, 7
  %v1822 = vsub.s32 %v1819, %v1821
  %v1823 = vrot.slane %v1815, %v1822
  %v1825 = vunpack.c.l.s4 1966171168
  %v1826 = vunpack.c.0.s8 %v1825
  %v1827 = vlaneseq
  %v1828 = vshrl.u32 %v1827, 7
  %v1829 = vsub.s32 %v1826, %v1828
  %v1830 = vrot.slane %v1816, %v1829
  %v1831 = vlaneseq
  %v1832 = vshrl.u32 %v1831, 7
  %v1833 = vsub.s32 0, %v1832
  %v1834 = vrot.slane %v1823, %v1833
  %v1835 = vlaneseq
  %v1836 = vshrl.u32 %v1835, 7
  %v1837 = vsub.s32 0, %v1836
  %v1838 = vrot.slane %v1830, %v1837
  %v1841 = vmul.f32 %v1834, %v970
  %v1842 = vmul.f32 %v1838, %v971
  %v1843 = vpack.c.bf16 %v1842, %v1841
  %v1844 = vld [vmem:[%s8] sm:$0xf]
  %v1845 = vld [vmem:[%s8 + $0x4] sm:$0xf]
  %v1846 = vld [vmem:[%s8 + $0x8] sm:$0xf]
  %v1847 = vld [vmem:[%s8 + $0xc] sm:$0xf]
  %v1848 = vld [vmem:[%s9] sm:$0x1]
  %v1850 = vlaneseq
  %v1851 = vshrl.u32 %v1850, 7
  %v1852 = vsub.s32 0, %v1851
  %v1853 = vrot.slane %v1848, %v1852
  %v1859 = vunpack.c.l.b16 %v1844
  %v1860 = vunpack.c.l.b16 %v1845
  %v1861 = vunpack.c.l.b16 %v1846
  %v1862 = vunpack.c.l.b16 %v1847
  %v1863 = vpack.c.b16 %v1860, %v1859
  %v1864 = vpack.c.b16 %v1862, %v1861
  %v1868 = vsel %vm85, %v1843, 0
  %1870 = vmatprep.subr.bf16.mxu0 0
  %1871 = vmatpush1.bf16.msra.mxu0 0
  %1872 = vmatprep.subr.bf16.mxu0 0
  %1873 = vmatpush1.bf16.msra.mxu0 0
  %1874 = vmatprep.subr.bf16.mxu0 0
  %1875 = vmatpush1.bf16.msra.mxu0 0
  %1876 = vmatprep.subr.bf16.mxu0 0
  %1877 = vmatpush1.bf16.msra.mxu0 0
  %1878 = vmatprep.subr.bf16.mxu0 0
  %1879 = vmatpush1.bf16.msra.mxu0 0
  %1880 = vmatprep.subr.bf16.mxu0 0
  %1881 = vmatpush1.bf16.msra.mxu0 0
  %1882 = vmatprep.subr.bf16.mxu0 0
  %1883 = vmatpush1.bf16.msra.mxu0 %v1864
  %1884 = vmatprep.subr.bf16.mxu0 0
  %1885 = vmatpush1.bf16.msra.mxu0 %v1863
  %1886 = vmatprep.subr.bf16.mxu0 0
  %1887 = vmatpush2.bf16.msra.mxu0 0
  %1888 = vmatprep.subr.bf16.mxu0 0
  %1889 = vmatpush2.bf16.msra.mxu0 0
  %1890 = vmatprep.subr.bf16.mxu0 0
  %1891 = vmatpush2.bf16.msra.mxu0 0
  %1892 = vmatprep.subr.bf16.mxu0 0
  %1893 = vmatpush2.bf16.msra.mxu0 0
  %1894 = vmatprep.subr.bf16.mxu0 0
  %1895 = vmatpush2.bf16.msra.mxu0 0
  %1896 = vmatprep.subr.bf16.mxu0 0
  %1897 = vmatpush2.bf16.msra.mxu0 0
  %1898 = vmatprep.subr.bf16.mxu0 0
  %1899 = vmatpush2.bf16.msra.mxu0 0
  %1900 = vmatprep.subr.bf16.mxu0 0
  %1901 = vmatpush2.bf16.msra.mxu0 0
  %1902 = vmatprep.mubr.bf16.mxu0 0
  %1903 = vmatmul.mubr.bf16.gmra.mxu0 %v1868
  %v1904 = vpop.f32.mrf.mxu0
  %v1905 = vadd.f32 %v1853, %v1904
  %v1906 = vpop.f32.mrf.mxu0
  %v1907 = vpop.f32.mrf.mxu0
  %v1908 = vadd.f32 %v1853, %v1907
  %v1909 = vpop.f32.mrf.mxu0
  %1910 = vdwg.mxu0
  %v1911 = vmax.f32 %v1905, 0.0
  %v1912 = vmax.f32 %v1908, 0.0
  %v1913 = vmul.f32 %v1911, %v75
  %v1914 = vmul.f32 %v1912, %v82
  %vm1915 = vcmask 130048
  %v1916 = vsel %vm1915, %v1913, 0.0
  %v1917 = vrot.slane %v1916, 4
  %v1918 = vadd.f32 %v1916, %v1917
  %v1919 = vrot.slane %v1918, 2
  %v1920 = vadd.f32 %v1918, %v1919
  %v1921 = vrot.slane %v1920, 1
  %v1922 = vadd.f32 %v1920, %v1921
  %v1923 = vsel %vm1915, %v1914, 0.0
  %v1924 = vrot.slane %v1923, 4
  %v1925 = vadd.f32 %v1923, %v1924
  %v1926 = vrot.slane %v1925, 2
  %v1927 = vadd.f32 %v1925, %v1926
  %v1928 = vrot.slane %v1927, 1
  %v1929 = vadd.f32 %v1927, %v1928
  %v1930 = vmul.f32 %v1922, %v68
  %v1931 = vmul.f32 %v1929, %v101
  %v1932 = vld [vmem:[%s10] sm:$0xff]
  %v1933 = vld [vmem:[%s10 + $0x8] sm:$0xff]
  %v1934 = vld [vmem:[#allocation2] sm:$0x1]
  %v1936 = vlaneseq
  %v1937 = vshrl.u32 %v1936, 7
  %v1938 = vsub.s32 0, %v1937
  %v1939 = vrot.slane %v1934, %v1938
  %1940 = vset.pattern.permute.xlu0 0
  %1941 = vperm.xlu0 %1940, %v1939
  %v1942 = vpop.permute.xlu0 %1941
  %v1945 = vsel %vm1915, %v1911, 0
  %v1948 = vsel %vm1915, %v1912, 0
  %1950 = vmatprep.subr.mxu0 0.0
  %1951 = vmatpush1.msra.mxu0 0.0
  %1952 = vmatprep.subr.mxu0 0.0
  %1953 = vmatpush1.msra.mxu0 0.0
  %1954 = vmatprep.subr.mxu0 0.0
  %1955 = vmatpush1.msra.mxu0 0.0
  %1956 = vmatprep.subr.mxu0 0.0
  %1957 = vmatpush1.msra.mxu0 0.0
  %1958 = vmatprep.subr.mxu0 0.0
  %1959 = vmatpush1.msra.mxu0 0.0
  %1960 = vmatprep.subr.mxu0 0.0
  %1961 = vmatpush1.msra.mxu0 0.0
  %1962 = vmatprep.subr.mxu0 0.0
  %1963 = vmatpush1.msra.mxu0 0.0
  %1964 = vmatprep.subr.mxu0 0.0
  %1965 = vmatpush1.msra.mxu0 0.0
  %1966 = vmatprep.subr.mxu0 0.0
  %1967 = vmatpush1.msra.mxu0 0.0
  %1968 = vmatprep.subr.mxu0 0.0
  %1969 = vmatpush1.msra.mxu0 0.0
  %1970 = vmatprep.subr.mxu0 0.0
  %1971 = vmatpush1.msra.mxu0 0.0
  %1972 = vmatprep.subr.mxu0 0.0
  %1973 = vmatpush1.msra.mxu0 0.0
  %1974 = vmatprep.subr.mxu0 0.0
  %1975 = vmatpush1.msra.mxu0 0.0
  %1976 = vmatprep.subr.mxu0 0.0
  %1977 = vmatpush1.msra.mxu0 0.0
  %1978 = vmatprep.subr.mxu0 0.0
  %1979 = vmatpush1.msra.mxu0 %v1933
  %1980 = vmatprep.subr.mxu0 0.0
  %1981 = vmatpush1.msra.mxu0 %v1932
  %1982 = vmatprep.subr.mxu0 0.0
  %1983 = vmatpush2.msra.mxu0 0.0
  %1984 = vmatprep.subr.mxu0 0.0
  %1985 = vmatpush2.msra.mxu0 0.0
  %1986 = vmatprep.subr.mxu0 0.0
  %1987 = vmatpush2.msra.mxu0 0.0
  %1988 = vmatprep.subr.mxu0 0.0
  %1989 = vmatpush2.msra.mxu0 0.0
  %1990 = vmatprep.subr.mxu0 0.0
  %1991 = vmatpush2.msra.mxu0 0.0
  %1992 = vmatprep.subr.mxu0 0.0
  %1993 = vmatpush2.msra.mxu0 0.0
  %1994 = vmatprep.subr.mxu0 0.0
  %1995 = vmatpush2.msra.mxu0 0.0
  %1996 = vmatprep.subr.mxu0 0.0
  %1997 = vmatpush2.msra.mxu0 0.0
  %1998 = vmatprep.subr.mxu0 0.0
  %1999 = vmatpush2.msra.mxu0 0.0
  %2000 = vmatprep.subr.mxu0 0.0
  %2001 = vmatpush2.msra.mxu0 0.0
  %2002 = vmatprep.subr.mxu0 0.0
  %2003 = vmatpush2.msra.mxu0 0.0
  %2004 = vmatprep.subr.mxu0 0.0
  %2005 = vmatpush2.msra.mxu0 0.0
  %2006 = vmatprep.subr.mxu0 0.0
  %2007 = vmatpush2.msra.mxu0 0.0
  %2008 = vmatprep.subr.mxu0 0.0
  %2009 = vmatpush2.msra.mxu0 0.0
  %2010 = vmatprep.subr.mxu0 0.0
  %2011 = vmatpush2.msra.mxu0 0.0
  %2012 = vmatprep.subr.mxu0 0.0
  %2013 = vmatpush2.msra.mxu0 0.0
  %2014 = vmatprep.mubr.f32.mxu0 0.0
  %2015 = vmatmul.mubr.f32.gmra.mxu0 %v1945
  %v2016 = vpop.f32.mrf.mxu0
  %v2017 = vadd.f32 %v1942, %v2016
  %v2018 = vpop.f32.mrf.mxu0
  %2019 = vmatprep.mubr.f32.mxu0 0.0
  %2020 = vmatmul.mubr.f32.gmra.mxu0 %v1948
  %v2021 = vpop.f32.mrf.mxu0
  %v2022 = vadd.f32 %v1942, %v2021
  %v2023 = vpop.f32.mrf.mxu0
  %2024 = vdwg.mxu0
  %vm2025 = vcmp.eq.f32.partialorder %v75, 0.0
  %vm2026 = vcmp.eq.f32.partialorder %v82, 0.0
  %v2027 = vsel %vm2025, 1, 0
  %v2028 = vsel %vm2026, 1, 0
  %vm2029 = vcmp.eq.s32.totalorder %v2027, 1
  %vm2030 = vcmp.eq.s32.totalorder %v2028, 1
  %v2031 = vsel %vm2029, -1e+09, %v2017
  %v2032 = vsel %vm2030, -1e+09, %v2022
  %v2033 = vsel %vm356, %v2031, -inf
  %v2034 = vrot.slane %v2033, 4
  %v2035 = vmax.f32 %v2033, %v2034
  %v2036 = vrot.slane %v2035, 2
  %v2037 = vmax.f32 %v2035, %v2036
  %v2038 = vrot.slane %v2037, 1
  %v2039 = vmax.f32 %v2037, %v2038
  %v2040 = vsel %vm356, %v2032, -inf
  %v2041 = vrot.slane %v2040, 4
  %v2042 = vmax.f32 %v2040, %v2041
  %v2043 = vrot.slane %v2042, 2
  %v2044 = vmax.f32 %v2042, %v2043
  %v2045 = vrot.slane %v2044, 1
  %v2046 = vmax.f32 %v2044, %v2045
  %v2047 = vsub.f32 %v2031, %v2039
  %v2048 = vsub.f32 %v2032, %v2046
  %v2049 = vmul.f32 %v2047, 1.442695
  %v2050 = vpow.pop %v2049
  %v2051 = vmul.f32 %v2048, 1.442695
  %v2052 = vpow.pop %v2051
  %v2053 = vsel %vm356, %v2050, 0.0
  %v2054 = vrot.slane %v2053, 4
  %v2055 = vadd.f32 %v2053, %v2054
  %v2056 = vrot.slane %v2055, 2
  %v2057 = vadd.f32 %v2055, %v2056
  %v2058 = vrot.slane %v2057, 1
  %v2059 = vadd.f32 %v2057, %v2058
  %v2060 = vsel %vm356, %v2052, 0.0
  %v2061 = vrot.slane %v2060, 4
  %v2062 = vadd.f32 %v2060, %v2061
  %v2063 = vrot.slane %v2062, 2
  %v2064 = vadd.f32 %v2062, %v2063
  %v2065 = vrot.slane %v2064, 1
  %v2066 = vadd.f32 %v2064, %v2065
  %v2067 = vrcp.pop %v2059
  %v2068 = vrcp.pop %v2066
  %v2069 = vmul.f32 %v2050, %v2067
  %v2070 = vmul.f32 %v2052, %v2068
  %v2071 = vpack.c.bf16 %v1930, %v1930
  %v2072 = vpack.c.bf16 %v1931, %v1931
  %v2073 = vld [vmem:[%s12] sm:$0xf]
  %v2074 = vld [vmem:[%s12 + $0x4] sm:$0xf]
  %v2075 = vld [vmem:[%s13] sm:$0x1]
  %v2077 = vlaneseq
  %v2078 = vshrl.u32 %v2077, 7
  %v2079 = vsub.s32 0, %v2078
  %v2080 = vrot.slane %v2075, %v2079
  %v2084 = vunpack.c.l.b16 %v2071
  %v2085 = vunpack.c.l.b16 %v2072
  %v2086 = vrot.slane %v2085, 7
  %v2087 = vsel %vm109, %v2086, %v2084
  %v2088 = vpack.c.b16 %v2087, %v2087
  %v2091 = vunpack.c.l.b16 %v2073
  %v2092 = vunpack.c.l.b16 %v2074
  %v2093 = vpack.c.b16 %v2092, %v2091
  %v2096 = vsel %vm1915, %v2088, 0
  %2098 = vmatprep.subr.bf16.mxu0 0
  %2099 = vmatpush1.bf16.msra.mxu0 0
  %2100 = vmatprep.subr.bf16.mxu0 0
  %2101 = vmatpush1.bf16.msra.mxu0 0
  %2102 = vmatprep.subr.bf16.mxu0 0
  %2103 = vmatpush1.bf16.msra.mxu0 0
  %2104 = vmatprep.subr.bf16.mxu0 0
  %2105 = vmatpush1.bf16.msra.mxu0 0
  %2106 = vmatprep.subr.bf16.mxu0 0
  %2107 = vmatpush1.bf16.msra.mxu0 0
  %2108 = vmatprep.subr.bf16.mxu0 0
  %2109 = vmatpush1.bf16.msra.mxu0 0
  %2110 = vmatprep.subr.bf16.mxu0 0
  %2111 = vmatpush1.bf16.msra.mxu0 0
  %2112 = vmatprep.subr.bf16.mxu0 0
  %2113 = vmatpush1.bf16.msra.mxu0 %v2093
  %2114 = vmatprep.subr.bf16.mxu0 0
  %2115 = vmatpush2.bf16.msra.mxu0 0
  %2116 = vmatprep.subr.bf16.mxu0 0
  %2117 = vmatpush2.bf16.msra.mxu0 0
  %2118 = vmatprep.subr.bf16.mxu0 0
  %2119 = vmatpush2.bf16.msra.mxu0 0
  %2120 = vmatprep.subr.bf16.mxu0 0
  %2121 = vmatpush2.bf16.msra.mxu0 0
  %2122 = vmatprep.subr.bf16.mxu0 0
  %2123 = vmatpush2.bf16.msra.mxu0 0
  %2124 = vmatprep.subr.bf16.mxu0 0
  %2125 = vmatpush2.bf16.msra.mxu0 0
  %2126 = vmatprep.subr.bf16.mxu0 0
  %2127 = vmatpush2.bf16.msra.mxu0 0
  %2128 = vmatprep.subr.bf16.mxu0 0
  %2129 = vmatpush2.bf16.msra.mxu0 0
  %2130 = vmatprep.mubr.bf16.mxu0 0
  %2131 = vmatmul.mubr.bf16.gmra.mxu0 %v2096
  %v2132 = vpop.f32.mrf.mxu0
  %v2133 = vadd.f32 %v2080, %v2132
  %v2134 = vpop.f32.mrf.mxu0
  %v2135 = vpop.f32.mrf.mxu0
  %v2136 = vpop.f32.mrf.mxu0
  %2137 = vdwg.mxu0
  %v2138 = vxor.u32 %v2133, 2147483648
  %v2139 = vmul.f32 %v2138, 1.442695
  %v2140 = vpow.pop %v2139
  %v2141 = vadd.f32 %v2140, 1.0
  %v2142 = vrcp.pop %v2141
  %v2143 = vmul.f32 1.0, %v2142
  %v2145 = vsel %vm356, %v2069, 0
  %v2148 = vsel %vm356, %v2070, 0
  %2150 = vmatprep.subr.mxu0 0.0
  %2151 = vmatpush1.msra.mxu0 0.0
  %2152 = vmatprep.subr.mxu0 0.0
  %2153 = vmatpush1.msra.mxu0 0.0
  %2154 = vmatprep.subr.mxu0 0.0
  %2155 = vmatpush1.msra.mxu0 0.0
  %2156 = vmatprep.subr.mxu0 0.0
  %2157 = vmatpush1.msra.mxu0 0.0
  %2158 = vmatprep.subr.mxu0 0.0
  %2159 = vmatpush1.msra.mxu0 0.0
  %2160 = vmatprep.subr.mxu0 0.0
  %2161 = vmatpush1.msra.mxu0 0.0
  %2162 = vmatprep.subr.mxu0 0.0
  %2163 = vmatpush1.msra.mxu0 0.0
  %2164 = vmatprep.subr.mxu0 0.0
  %2165 = vmatpush1.msra.mxu0 0.0
  %2166 = vmatprep.subr.mxu0 0.0
  %2167 = vmatpush1.msra.mxu0 0.0
  %2168 = vmatprep.subr.mxu0 0.0
  %2169 = vmatpush1.msra.mxu0 0.0
  %2170 = vmatprep.subr.mxu0 0.0
  %2171 = vmatpush1.msra.mxu0 0.0
  %2172 = vmatprep.subr.mxu0 0.0
  %2173 = vmatpush1.msra.mxu0 0.0
  %2174 = vmatprep.subr.mxu0 0.0
  %2175 = vmatpush1.msra.mxu0 0.0
  %2176 = vmatprep.subr.mxu0 0.0
  %2177 = vmatpush1.msra.mxu0 0.0
  %2178 = vmatprep.subr.mxu0 0.0
  %2179 = vmatpush1.msra.mxu0 0.0
  %2180 = vmatprep.subr.mxu0 0.0
  %2181 = vmatpush1.msra.mxu0 %v362
  %2182 = vmatprep.subr.mxu0 0.0
  %2183 = vmatpush2.msra.mxu0 0.0
  %2184 = vmatprep.subr.mxu0 0.0
  %2185 = vmatpush2.msra.mxu0 0.0
  %2186 = vmatprep.subr.mxu0 0.0
  %2187 = vmatpush2.msra.mxu0 0.0
  %2188 = vmatprep.subr.mxu0 0.0
  %2189 = vmatpush2.msra.mxu0 0.0
  %2190 = vmatprep.subr.mxu0 0.0
  %2191 = vmatpush2.msra.mxu0 0.0
  %2192 = vmatprep.subr.mxu0 0.0
  %2193 = vmatpush2.msra.mxu0 0.0
  %2194 = vmatprep.subr.mxu0 0.0
  %2195 = vmatpush2.msra.mxu0 0.0
  %2196 = vmatprep.subr.mxu0 0.0
  %2197 = vmatpush2.msra.mxu0 0.0
  %2198 = vmatprep.subr.mxu0 0.0
  %2199 = vmatpush2.msra.mxu0 0.0
  %2200 = vmatprep.subr.mxu0 0.0
  %2201 = vmatpush2.msra.mxu0 0.0
  %2202 = vmatprep.subr.mxu0 0.0
  %2203 = vmatpush2.msra.mxu0 0.0
  %2204 = vmatprep.subr.mxu0 0.0
  %2205 = vmatpush2.msra.mxu0 0.0
  %2206 = vmatprep.subr.mxu0 0.0
  %2207 = vmatpush2.msra.mxu0 0.0
  %2208 = vmatprep.subr.mxu0 0.0
  %2209 = vmatpush2.msra.mxu0 0.0
  %2210 = vmatprep.subr.mxu0 0.0
  %2211 = vmatpush2.msra.mxu0 0.0
  %2212 = vmatprep.subr.mxu0 0.0
  %2213 = vmatpush2.msra.mxu0 0.0
  %2214 = vmatprep.mubr.f32.mxu0 0.0
  %2215 = vmatmul.mubr.f32.gmra.mxu0 %v2145
  %v2216 = vpop.f32.mrf.mxu0
  %v2217 = vadd.f32 0.0, %v2216
  %v2218 = vpop.f32.mrf.mxu0
  %2219 = vmatprep.mubr.f32.mxu0 0.0
  %2220 = vmatmul.mubr.f32.gmra.mxu0 %v2148
  %v2221 = vpop.f32.mrf.mxu0
  %v2222 = vadd.f32 0.0, %v2221
  %v2223 = vpop.f32.mrf.mxu0
  %2224 = vdwg.mxu0
  %v2225 = vmul.f32 %v2217, %v1806
  %v2226 = vmul.f32 %v2222, %v1807
  %v2227 = vsel %vm85, %v2225, 0.0
  %v2228 = vrot.slane %v2227, 4
  %v2229 = vadd.f32 %v2227, %v2228
  %v2230 = vrot.slane %v2229, 2
  %v2231 = vadd.f32 %v2229, %v2230
  %v2232 = vrot.slane %v2231, 1
  %v2233 = vadd.f32 %v2231, %v2232
  %v2234 = vsel %vm85, %v2226, 0.0
  %v2235 = vrot.slane %v2234, 4
  %v2236 = vadd.f32 %v2234, %v2235
  %v2237 = vrot.slane %v2236, 2
  %v2238 = vadd.f32 %v2236, %v2237
  %v2239 = vrot.slane %v2238, 1
  %v2240 = vadd.f32 %v2238, %v2239
  %v2243 = vsel %vm109, %v2240, %v2233
  %v2245 = vmul.f32 %v1363, %v2243
  %v2246 = vmul.f32 %v2245, %v2143
  %2247 = vst.msk [vmem:[%s17] sm:$0x3] %vm112, %v2246
  %v2248 = vpack.c.bf16 %v2246, %v2246
  %v2249 = vld [vmem:[%s14] sm:$0xf]
  %v2250 = vld [vmem:[%s14 + $0x4] sm:$0xf]
  %v2251 = vld [vmem:[%s14 + $0x8] sm:$0xf]
  %v2252 = vld [vmem:[%s14 + $0xc] sm:$0xf]
  %v2253 = vld [vmem:[%s15] sm:$0x1]
  %v2255 = vlaneseq
  %v2256 = vshrl.u32 %v2255, 7
  %v2257 = vsub.s32 0, %v2256
  %v2258 = vrot.slane %v2253, %v2257
  %v2264 = vunpack.c.l.b16 %v2249
  %v2265 = vunpack.c.l.b16 %v2250
  %v2266 = vunpack.c.l.b16 %v2251
  %v2267 = vunpack.c.l.b16 %v2252
  %v2268 = vpack.c.b16 %v2265, %v2264
  %v2269 = vpack.c.b16 %v2267, %v2266
  %v2273 = vsel %vm85, %v2248, 0
  %2275 = vmatprep.subr.bf16.mxu0 0
  %2276 = vmatpush1.bf16.msra.mxu0 0
  %2277 = vmatprep.subr.bf16.mxu0 0
  %2278 = vmatpush1.bf16.msra.mxu0 0
  %2279 = vmatprep.subr.bf16.mxu0 0
  %2280 = vmatpush1.bf16.msra.mxu0 0
  %2281 = vmatprep.subr.bf16.mxu0 0
  %2282 = vmatpush1.bf16.msra.mxu0 0
  %2283 = vmatprep.subr.bf16.mxu0 0
  %2284 = vmatpush1.bf16.msra.mxu0 0
  %2285 = vmatprep.subr.bf16.mxu0 0
  %2286 = vmatpush1.bf16.msra.mxu0 0
  %2287 = vmatprep.subr.bf16.mxu0 0
  %2288 = vmatpush1.bf16.msra.mxu0 %v2269
  %2289 = vmatprep.subr.bf16.mxu0 0
  %2290 = vmatpush1.bf16.msra.mxu0 %v2268
  %2291 = vmatprep.subr.bf16.mxu0 0
  %2292 = vmatpush2.bf16.msra.mxu0 0
  %2293 = vmatprep.subr.bf16.mxu0 0
  %2294 = vmatpush2.bf16.msra.mxu0 0
  %2295 = vmatprep.subr.bf16.mxu0 0
  %2296 = vmatpush2.bf16.msra.mxu0 0
  %2297 = vmatprep.subr.bf16.mxu0 0
  %2298 = vmatpush2.bf16.msra.mxu0 0
  %2299 = vmatprep.subr.bf16.mxu0 0
  %2300 = vmatpush2.bf16.msra.mxu0 0
  %2301 = vmatprep.subr.bf16.mxu0 0
  %2302 = vmatpush2.bf16.msra.mxu0 0
  %2303 = vmatprep.subr.bf16.mxu0 0
  %2304 = vmatpush2.bf16.msra.mxu0 0
  %2305 = vmatprep.subr.bf16.mxu0 0
  %2306 = vmatpush2.bf16.msra.mxu0 0
  %2307 = vmatprep.mubr.bf16.mxu0 0
  %2308 = vmatmul.mubr.bf16.gmra.mxu0 %v2273
  %v2309 = vpop.f32.mrf.mxu0
  %v2310 = vadd.f32 %v2258, %v2309
  %v2311 = vpop.f32.mrf.mxu0
  %v2312 = vpop.f32.mrf.mxu0
  %v2313 = vpop.f32.mrf.mxu0
  %2314 = vdwg.mxu0
  %v2317 = vunpack.c.l.s4 1966171168
  %v2318 = vunpack.c.0.s8 %v2317
  %v2319 = vlaneseq
  %v2320 = vshrl.u32 %v2319, 7
  %v2321 = vsub.s32 %v2318, %v2320
  %v2322 = vrot.slane %v2310, %v2321
  %v2323 = vcombine.high %v2322, %v2322
  %v2325 = vunpack.c.l.s4 1966171168
  %v2326 = vunpack.c.0.s8 %v2325
  %v2327 = vlaneseq
  %v2328 = vshrl.u32 %v2327, 7
  %v2329 = vsub.s32 %v2326, %v2328
  %v2330 = vrot.slane %v2322, %v2329
  %v2332 = vunpack.c.l.s4 1966171168
  %v2333 = vunpack.c.0.s8 %v2332
  %v2334 = vlaneseq
  %v2335 = vshrl.u32 %v2334, 7
  %v2336 = vsub.s32 %v2333, %v2335
  %v2337 = vrot.slane %v2323, %v2336
  %vm2340 = vcmask 253952
  %2341 = vst.msk [vmem:[%s18] sm:$0x1] %vm2340, %v2330
  %2342 = vst.msk [vmem:[%s18 + $0x1] sm:$0x1] %vm2340, %v2337
  // Predicated region
  $region66: #{encoder_forward.5} parent=0 // pred_check
    _
  $region67: #{encoder_forward.5} parent=0 // pred_check_branch
    %2344 = sbr.rel (0) target = $region69
  $region68: #{encoder_forward.5} parent=0 // pred_region
    _
  $region69: #{encoder_forward.5} parent=0 // pred_fallthru
    _
  // Predicated region
  $region70: #{encoder_forward.5} parent=0 // pred_check
    _
  $region71: #{encoder_forward.5} parent=0 // pred_check_branch
    %2346 = sbr.rel (0) target = $region73
  $region72: #{encoder_forward.5} parent=0 // pred_region
    _
  $region73: #{encoder_forward.5} parent=0 // pred_fallthru
    _
  // Predicated region
  $region74: #{encoder_forward.5} parent=0 // pred_check
    _
  $region75: #{encoder_forward.5} parent=0 // pred_check_branch
    %2348 = sbr.rel (0) target = $region77
  $region76: #{encoder_forward.5} parent=0 // pred_region
    _
  $region77: #{encoder_forward.5} parent=0 // pred_fallthru
    _
  // Predicated region
  $region78: #{encoder_forward.5} parent=0 // pred_check
    _
  $region79: #{encoder_forward.5} parent=0 // pred_check_branch
    %2350 = sbr.rel (0) target = $region81
  $region80: #{encoder_forward.5} parent=0 // pred_region
    _
  $region81: #{encoder_forward.5} parent=0 // pred_fallthru
    _
  // Predicated region
  $region82: #{encoder_forward.5} parent=0 // pred_check
    _
  $region83: #{encoder_forward.5} parent=0 // pred_check_branch
    %2352 = sbr.rel (0) target = $region85
  $region84: #{encoder_forward.5} parent=0 // pred_region
    _
  $region85: #{encoder_forward.5} parent=0 // pred_fallthru
    _
  // Predicated region
  $region86: #{encoder_forward.5} parent=0 // pred_check
    _
  $region87: #{encoder_forward.5} parent=0 // pred_check_branch
    %2354 = sbr.rel (0) target = $region89
  $region88: #{encoder_forward.5} parent=0 // pred_region
    _
  $region89: #{encoder_forward.5} parent=0 // pred_fallthru
    _

</llo_original>
